<compile_context>
chip_gen: v7x
topology: tpu7x:2x2x1
jax: 0.10.0
libtpu: 0.0.40
codegen_flags: <defaults>
</compile_context>

<pallas_src>
import math
from functools import partial

import jax
import jax.numpy as jnp
from jax.experimental import pallas as pl
from jax.experimental.pallas import tpu as pltpu

_HI = jax.lax.Precision.HIGHEST
_C_PAD = 128  # lane-dense channel padding (C_out = 50 -> 128)


def _round_up(x, m):
  return ((x + m - 1) // m) * m


def _make_fused_kernel(stage_dims, rows1, l_final_pad):
  """stage_dims: ((K, L_out, L_pool), ...) per stage, applied in order.

  rows1        sublane-padded row count of the stage-1 im2col block / dot.
  l_final_pad  sublane-padded row count of the output block.
  """
  n_stages = len(stage_dims)

  def kernel(xi_ref, w1_ref, w2_ref, w3_ref, sh_ref, o_ref, ybuf, xbuf):
    w_refs = (w1_ref, w2_ref, w3_ref)
    for si, (K, L_out, L_pool) in enumerate(stage_dims):
      shift = sh_ref[pl.ds(si, 1), :]                       # (1, 128)

      if si == 0:
        # Stage 1: im2col -> a single (rows1, K*c_in) @ (K*c_in, 128) MXU dot.
        # Rows >= L_out come from zero-padded im2col rows and are never pooled.
        acc = jnp.dot(xi_ref[0], w1_ref[...],
                      preferred_element_type=jnp.float32, precision=_HI)
        y = jnp.maximum(acc + shift, 0.0)                   # (rows1, 128)
        ybuf[pl.ds(0, rows1), :] = y                        # unmasked (rows1 % 8 == 0)
      else:
        # Stages 2/3: K sublane-shifted VMEM ref loads feeding MXU dots.
        w = w_refs[si]
        acc = jnp.dot(xbuf[pl.ds(0, L_out), :], w[0],
                      preferred_element_type=jnp.float32, precision=_HI)
        for k in range(1, K):
          acc = acc + jnp.dot(xbuf[pl.ds(k, L_out), :], w[k],
                              preferred_element_type=jnp.float32, precision=_HI)
        y = jnp.maximum(acc + shift, 0.0)                   # (L_out, 128)
        ybuf[pl.ds(0, L_out), :] = y

      # MaxPool1d(kernel=2, stride=2): two stride-2 sublane loads + a VPU max.
      is_last = si == n_stages - 1
      rows = l_final_pad if is_last else L_pool
      even = ybuf[pl.ds(0, rows, stride=2), :]
      odd = ybuf[pl.ds(1, rows, stride=2), :]
      pooled = jnp.maximum(even, odd)
      if is_last:
        # Rows >= L_pool are junk (sliced off by the wrapper); writing them keeps
        # the HBM block store a full, unmasked (l_final_pad, 128) store.  They
        # read ybuf rows that stage 1 already wrote, so they are always finite.
        o_ref[0] = pooled.astype(o_ref.dtype)
      else:
        xbuf[pl.ds(0, L_pool), :] = pooled                  # next stage's input

  return kernel


def prepare_params(params, c_in):
  """One-time prep, OUTSIDE the jitted forward: fold conv bias + BatchNorm into
  the conv weights (w' = w * scale, shift' = b * scale + shift), zero-pad
  channels to 128 lanes, flatten the stage-1 weight for im2col, stack shifts.

  Pad lanes get weight columns == 0 and shift == 0, so ReLU keeps them at
  exactly 0 through every stage.
  """
  p1, p2, p3 = params
  c_out = p1["w"].shape[-1]

  def fold(p):
    return p["w"] * p["scale"][None, None, :], p["b"] * p["scale"] + p["shift"]

  w1, sh1 = fold(p1)
  w2, sh2 = fold(p2)
  w3, sh3 = fold(p3)

  K1 = w1.shape[0]
  w1_flat = jnp.zeros((K1 * c_in, _C_PAD), jnp.float32)
  w1_flat = w1_flat.at[:, :c_out].set(w1.reshape(K1 * c_in, c_out))

  def pad_mid(w):
    K, ci, co = w.shape
    return jnp.zeros((K, _C_PAD, _C_PAD), jnp.float32).at[:, :ci, :co].set(w)

  shifts = jnp.zeros((8, _C_PAD), jnp.float32)
  shifts = (shifts.at[0, :c_out].set(sh1)
                  .at[1, :c_out].set(sh2)
                  .at[2, :c_out].set(sh3))

  return dict(w1=w1_flat, w2=pad_mid(w2), w3=pad_mid(w3), shifts=shifts)


@partial(jax.jit, static_argnames=("c_out",))
def cnn2_forward(x_ncl, prep, c_out):
  """Full CNN2 forward.  x_ncl: (N, in_dim, L) like the PyTorch module."""
  N, c_in, L = x_ncl.shape
  w1, w2, w3, shifts = prep["w1"], prep["w2"], prep["w3"], prep["shifts"]
  K1 = w1.shape[0] // c_in
  K2, K3 = w2.shape[0], w3.shape[0]

  # Static stage geometry.
  L0 = L + 8
  L_out1 = L0 - K1 + 1
  L_p1 = L_out1 // 2
  L_out2 = L_p1 - K2 + 1
  L_p2 = L_out2 // 2
  L_out3 = L_p2 - K3 + 1
  L_p3 = L_out3 // 2

  rows1 = _round_up(L_out1, 8)
  l_final_pad = _round_up(L_p3, 8)
  scratch_rows = max(rows1, _round_up(L_out2, 8), _round_up(L_out3, 8),
                     2 * l_final_pad)
  xbuf_rows = max(_round_up(L_p1, 8), _round_up(L_p2, 8))
  # Padded-output pooling only reads rows that stage 1 has already written.
  assert 2 * l_final_pad <= rows1

  # Tiny XLA-side plumbing on KB-scale activations:
  # ConstantPad1d((4,4),0), NCL -> NLC, stage-1 im2col (+ sublane pad).
  x = jnp.transpose(jnp.pad(x_ncl, ((0, 0), (0, 0), (4, 4))), (0, 2, 1))
  xi = jnp.concatenate([x[:, k:k + L_out1, :] for k in range(K1)], axis=2)
  xi = jnp.pad(xi, ((0, 0), (0, rows1 - L_out1), (0, 0)))   # (N, rows1, K1*c_in)

  stage_dims = ((K1, L_out1, L_p1), (K2, L_out2, L_p2), (K3, L_out3, L_p3))

  out_pad = pl.pallas_call(
      _make_fused_kernel(stage_dims, rows1, l_final_pad),
      out_shape=jax.ShapeDtypeStruct((N, l_final_pad, _C_PAD), jnp.float32),
      grid=(N,),
      in_specs=[
          pl.BlockSpec((1, rows1, K1 * c_in), lambda n: (n, 0, 0)),
          pl.BlockSpec(w1.shape, lambda n: (0, 0)),
          pl.BlockSpec(w2.shape, lambda n: (0, 0, 0)),
          pl.BlockSpec(w3.shape, lambda n: (0, 0, 0)),
          pl.BlockSpec(shifts.shape, lambda n: (0, 0)),
      ],
      out_specs=pl.BlockSpec((1, l_final_pad, _C_PAD), lambda n: (n, 0, 0)),
      scratch_shapes=[
          pltpu.VMEM((scratch_rows, _C_PAD), jnp.float32),  # pre-pool activations
          pltpu.VMEM((xbuf_rows, _C_PAD), jnp.float32),     # pooled stage input
      ],
      compiler_params=pltpu.CompilerParams(dimension_semantics=("parallel",)),
  )(xi, w1, w2, w3, shifts)

  # NLC -> NCL, drop padded rows / channels.
  return jnp.transpose(out_pad[:, :L_p3, :c_out], (0, 2, 1))


def reference_forward(x_ncl, params):
  """Pure-JAX reference (same math, no Pallas, unpadded channels)."""
  x = jnp.pad(x_ncl, ((0, 0), (0, 0), (4, 4)))
  x = jnp.transpose(x, (0, 2, 1))
  for p in params:
    K = p["w"].shape[0]
    L_out = x.shape[1] - K + 1
    y = p["b"][None, None, :]
    for k in range(K):
      y = y + jnp.einsum("nlc,co->nlo", x[:, k:k + L_out, :], p["w"][k],
                         precision=_HI)
    y = y * p["scale"][None, None, :] + p["shift"][None, None, :]
    y = jnp.maximum(y, 0.0)
    lp = L_out // 2
    y = y[:, :2 * lp, :].reshape(y.shape[0], lp, 2, -1).max(axis=2)
    x = y
  return jnp.transpose(x, (0, 2, 1))


def init_params(key, in_dim):
  """Deterministic synthetic params.  Conv weights generated in PyTorch (O, C, K)
  layout then transposed to (K, C, O); BatchNorm folded to (scale, shift)."""
  cfgs = [(in_dim, 50, 8), (50, 50, 8), (50, 50, 4)]
  eps = 1e-5
  params = []
  for cin, cout, k in cfgs:
    key, kw, kb, kg, kbt, km, kv = jax.random.split(key, 7)
    bound = 1.0 / math.sqrt(cin * k)
    w_pt = jax.random.uniform(kw, (cout, cin, k), jnp.float32, -bound, bound)
    b = jax.random.uniform(kb, (cout,), jnp.float32, -bound, bound)
    gamma = 1.0 + 0.1 * jax.random.normal(kg, (cout,), jnp.float32)
    beta = 0.1 * jax.random.normal(kbt, (cout,), jnp.float32)
    rmean = 0.1 * jax.random.normal(km, (cout,), jnp.float32)
    rvar = jnp.abs(jax.random.normal(kv, (cout,), jnp.float32)) + 0.5
    scale = gamma / jnp.sqrt(rvar + eps)
    shift = beta - rmean * scale
    params.append(dict(w=jnp.transpose(w_pt, (2, 1, 0)), b=b,
                       scale=scale, shift=shift))
  return params


if __name__ == "__main__":
  N, in_dim, L = 2, 4, 64
  key = jax.random.PRNGKey(0)
  kp, kx = jax.random.split(key)
  params = init_params(kp, in_dim)
  x = jax.random.normal(kx, (N, in_dim, L), jnp.float32)

  # One-time weight fold / pad (eager, outside the jitted forward).
  prep = prepare_params(params, in_dim)
  c_out = params[-1]["w"].shape[-1]

  out = cnn2_forward(x, prep, c_out=c_out)
  out = jax.block_until_ready(out)

  # Shape check: L=64 -> pad 72 -> 65 -> pool 32 -> 25 -> pool 12 -> 9 -> pool 4.
  assert out.shape == (N, 50, 4), out.shape

  ref = reference_forward(x, params)
  assert jnp.allclose(out, ref, rtol=1e-4, atol=1e-4), float(
      jnp.max(jnp.abs(out - ref)))

  print("KERNEL_OK")
</pallas_src>

<mosaic_0001>
module attributes {stable_mosaic.version = 11 : i64} {
  func.func @kernel(%arg0: i32, %arg1: memref<1x72x32xf32, #tpu.memory_space<vmem>>, %arg2: memref<32x128xf32, #tpu.memory_space<vmem>>, %arg3: memref<8x128x128xf32, #tpu.memory_space<vmem>>, %arg4: memref<4x128x128xf32, #tpu.memory_space<vmem>>, %arg5: memref<8x128xf32, #tpu.memory_space<vmem>>, %arg6: memref<1x8x128xf32, #tpu.memory_space<vmem>>, %arg7: memref<72x128xf32, #tpu.memory_space<vmem>>, %arg8: memref<32x128xf32, #tpu.memory_space<vmem>>) attributes {dimension_semantics = [#tpu.dimension_semantics<parallel>], iteration_bounds = array<i64: 2>, scalar_prefetch = 0 : i64, scratch_operands = 2 : i64, tpu.core_type = #tpu.core_type<tc>, window_params = [{transform_indices = @transform_0, window_bounds = array<i64: 1, 72, 32>}, {pipeline_mode = #tpu.pipeline_mode<synchronous>, transform_indices = @transform_1, window_bounds = array<i64: 32, 128>}, {pipeline_mode = #tpu.pipeline_mode<synchronous>, transform_indices = @transform_2, window_bounds = array<i64: 8, 128, 128>}, {pipeline_mode = #tpu.pipeline_mode<synchronous>, transform_indices = @transform_3, window_bounds = array<i64: 4, 128, 128>}, {pipeline_mode = #tpu.pipeline_mode<synchronous>, transform_indices = @transform_4, window_bounds = array<i64: 8, 128>}, {transform_indices = @transform_5, window_bounds = array<i64: 1, 8, 128>}]} {
    %c0 = arith.constant 0 : index
    %c0_0 = arith.constant 0 : index
    %0 = vector.load %arg5[%c0, %c0_0] : memref<8x128xf32, #tpu.memory_space<vmem>>, vector<1x128xf32>
    %c0_1 = arith.constant 0 : index
    %c0_2 = arith.constant 0 : index
    %c0_3 = arith.constant 0 : index
    %1 = vector.load %arg1[%c0_1, %c0_2, %c0_3] : memref<1x72x32xf32, #tpu.memory_space<vmem>>, vector<1x72x32xf32>
    %2 = vector.shape_cast %1 : vector<1x72x32xf32> to vector<72x32xf32>
    %c0_4 = arith.constant 0 : index
    %c0_5 = arith.constant 0 : index
    %3 = vector.load %arg2[%c0_4, %c0_5] : memref<32x128xf32, #tpu.memory_space<vmem>>, vector<32x128xf32>
    %cst = arith.constant dense<0.000000e+00> : vector<72x128xf32>
    %4 = tpu.matmul %2, %3, %cst {dimension_numbers = #tpu.dot_dimension_numbers<[1], [0], [0], [1], [0, 0, 1, 1], [], []>, precision = #tpu.contract_precision<fp32>} : vector<72x32xf32>, vector<32x128xf32>, vector<72x128xf32> -> vector<72x128xf32>
    %5 = vector.broadcast %0 : vector<1x128xf32> to vector<72x128xf32>
    %6 = arith.addf %4, %5 : vector<72x128xf32>
    %cst_6 = arith.constant 0.000000e+00 : f32
    %7 = vector.broadcast %cst_6 : f32 to vector<72x128xf32>
    %8 = arith.maximumf %6, %7 : vector<72x128xf32>
    %c0_7 = arith.constant 0 : index
    %c0_8 = arith.constant 0 : index
    %9 = vector.load %arg7[%c0_7, %c0_8] : memref<72x128xf32, #tpu.memory_space<vmem>>, vector<72x128xf32>
    tpu.vector_store %arg7[%c0_7, %c0_8], %8 {strides = array<i32>} : memref<72x128xf32, #tpu.memory_space<vmem>>, vector<72x128xf32>,
    %c0_9 = arith.constant 0 : index
    %c0_10 = arith.constant 0 : index
    %10 = tpu.strided_load %arg7[%c0_9, %c0_10] {strides = array<i32: 2, 1>} : memref<72x128xf32, #tpu.memory_space<vmem>>, vector<32x128xf32>
    %c1 = arith.constant 1 : index
    %c0_11 = arith.constant 0 : index
    %11 = tpu.strided_load %arg7[%c1, %c0_11] {strides = array<i32: 2, 1>} : memref<72x128xf32, #tpu.memory_space<vmem>>, vector<32x128xf32>
    %12 = arith.maximumf %10, %11 : vector<32x128xf32>
    %c0_12 = arith.constant 0 : index
    %c0_13 = arith.constant 0 : index
    %13 = vector.load %arg8[%c0_12, %c0_13] : memref<32x128xf32, #tpu.memory_space<vmem>>, vector<32x128xf32>
    tpu.vector_store %arg8[%c0_12, %c0_13], %12 {strides = array<i32>} : memref<32x128xf32, #tpu.memory_space<vmem>>, vector<32x128xf32>,
    %c1_14 = arith.constant 1 : index
    %c0_15 = arith.constant 0 : index
    %14 = vector.load %arg5[%c1_14, %c0_15] : memref<8x128xf32, #tpu.memory_space<vmem>>, vector<1x128xf32>
    %c0_16 = arith.constant 0 : index
    %c0_17 = arith.constant 0 : index
    %15 = vector.load %arg8[%c0_16, %c0_17] : memref<32x128xf32, #tpu.memory_space<vmem>>, vector<25x128xf32>
    %c0_18 = arith.constant 0 : index
    %c0_19 = arith.constant 0 : index
    %c0_20 = arith.constant 0 : index
    %16 = vector.load %arg3[%c0_18, %c0_19, %c0_20] : memref<8x128x128xf32, #tpu.memory_space<vmem>>, vector<1x128x128xf32>
    %17 = vector.shape_cast %16 : vector<1x128x128xf32> to vector<128x128xf32>
    %cst_21 = arith.constant dense<0.000000e+00> : vector<25x128xf32>
    %18 = tpu.matmul %15, %17, %cst_21 {dimension_numbers = #tpu.dot_dimension_numbers<[1], [0], [0], [1], [0, 0, 1, 1], [], []>, precision = #tpu.contract_precision<fp32>} : vector<25x128xf32>, vector<128x128xf32>, vector<25x128xf32> -> vector<25x128xf32>
    %c1_22 = arith.constant 1 : index
    %c0_23 = arith.constant 0 : index
    %19 = vector.load %arg8[%c1_22, %c0_23] : memref<32x128xf32, #tpu.memory_space<vmem>>, vector<25x128xf32>
    %c1_24 = arith.constant 1 : index
    %c0_25 = arith.constant 0 : index
    %c0_26 = arith.constant 0 : index
    %20 = vector.load %arg3[%c1_24, %c0_25, %c0_26] : memref<8x128x128xf32, #tpu.memory_space<vmem>>, vector<1x128x128xf32>
    %21 = vector.shape_cast %20 : vector<1x128x128xf32> to vector<128x128xf32>
    %cst_27 = arith.constant dense<0.000000e+00> : vector<25x128xf32>
    %22 = tpu.matmul %19, %21, %cst_27 {dimension_numbers = #tpu.dot_dimension_numbers<[1], [0], [0], [1], [0, 0, 1, 1], [], []>, precision = #tpu.contract_precision<fp32>} : vector<25x128xf32>, vector<128x128xf32>, vector<25x128xf32> -> vector<25x128xf32>
    %23 = arith.addf %18, %22 : vector<25x128xf32>
    %c2 = arith.constant 2 : index
    %c0_28 = arith.constant 0 : index
    %24 = vector.load %arg8[%c2, %c0_28] : memref<32x128xf32, #tpu.memory_space<vmem>>, vector<25x128xf32>
    %c2_29 = arith.constant 2 : index
    %c0_30 = arith.constant 0 : index
    %c0_31 = arith.constant 0 : index
    %25 = vector.load %arg3[%c2_29, %c0_30, %c0_31] : memref<8x128x128xf32, #tpu.memory_space<vmem>>, vector<1x128x128xf32>
    %26 = vector.shape_cast %25 : vector<1x128x128xf32> to vector<128x128xf32>
    %cst_32 = arith.constant dense<0.000000e+00> : vector<25x128xf32>
    %27 = tpu.matmul %24, %26, %cst_32 {dimension_numbers = #tpu.dot_dimension_numbers<[1], [0], [0], [1], [0, 0, 1, 1], [], []>, precision = #tpu.contract_precision<fp32>} : vector<25x128xf32>, vector<128x128xf32>, vector<25x128xf32> -> vector<25x128xf32>
    %28 = arith.addf %23, %27 : vector<25x128xf32>
    %c3 = arith.constant 3 : index
    %c0_33 = arith.constant 0 : index
    %29 = vector.load %arg8[%c3, %c0_33] : memref<32x128xf32, #tpu.memory_space<vmem>>, vector<25x128xf32>
    %c3_34 = arith.constant 3 : index
    %c0_35 = arith.constant 0 : index
    %c0_36 = arith.constant 0 : index
    %30 = vector.load %arg3[%c3_34, %c0_35, %c0_36] : memref<8x128x128xf32, #tpu.memory_space<vmem>>, vector<1x128x128xf32>
    %31 = vector.shape_cast %30 : vector<1x128x128xf32> to vector<128x128xf32>
    %cst_37 = arith.constant dense<0.000000e+00> : vector<25x128xf32>
    %32 = tpu.matmul %29, %31, %cst_37 {dimension_numbers = #tpu.dot_dimension_numbers<[1], [0], [0], [1], [0, 0, 1, 1], [], []>, precision = #tpu.contract_precision<fp32>} : vector<25x128xf32>, vector<128x128xf32>, vector<25x128xf32> -> vector<25x128xf32>
    %33 = arith.addf %28, %32 : vector<25x128xf32>
    %c4 = arith.constant 4 : index
    %c0_38 = arith.constant 0 : index
    %34 = vector.load %arg8[%c4, %c0_38] : memref<32x128xf32, #tpu.memory_space<vmem>>, vector<25x128xf32>
    %c4_39 = arith.constant 4 : index
    %c0_40 = arith.constant 0 : index
    %c0_41 = arith.constant 0 : index
    %35 = vector.load %arg3[%c4_39, %c0_40, %c0_41] : memref<8x128x128xf32, #tpu.memory_space<vmem>>, vector<1x128x128xf32>
    %36 = vector.shape_cast %35 : vector<1x128x128xf32> to vector<128x128xf32>
    %cst_42 = arith.constant dense<0.000000e+00> : vector<25x128xf32>
    %37 = tpu.matmul %34, %36, %cst_42 {dimension_numbers = #tpu.dot_dimension_numbers<[1], [0], [0], [1], [0, 0, 1, 1], [], []>, precision = #tpu.contract_precision<fp32>} : vector<25x128xf32>, vector<128x128xf32>, vector<25x128xf32> -> vector<25x128xf32>
    %38 = arith.addf %33, %37 : vector<25x128xf32>
    %c5 = arith.constant 5 : index
    %c0_43 = arith.constant 0 : index
    %39 = vector.load %arg8[%c5, %c0_43] : memref<32x128xf32, #tpu.memory_space<vmem>>, vector<25x128xf32>
    %c5_44 = arith.constant 5 : index
    %c0_45 = arith.constant 0 : index
    %c0_46 = arith.constant 0 : index
    %40 = vector.load %arg3[%c5_44, %c0_45, %c0_46] : memref<8x128x128xf32, #tpu.memory_space<vmem>>, vector<1x128x128xf32>
    %41 = vector.shape_cast %40 : vector<1x128x128xf32> to vector<128x128xf32>
    %cst_47 = arith.constant dense<0.000000e+00> : vector<25x128xf32>
    %42 = tpu.matmul %39, %41, %cst_47 {dimension_numbers = #tpu.dot_dimension_numbers<[1], [0], [0], [1], [0, 0, 1, 1], [], []>, precision = #tpu.contract_precision<fp32>} : vector<25x128xf32>, vector<128x128xf32>, vector<25x128xf32> -> vector<25x128xf32>
    %43 = arith.addf %38, %42 : vector<25x128xf32>
    %c6 = arith.constant 6 : index
    %c0_48 = arith.constant 0 : index
    %44 = vector.load %arg8[%c6, %c0_48] : memref<32x128xf32, #tpu.memory_space<vmem>>, vector<25x128xf32>
    %c6_49 = arith.constant 6 : index
    %c0_50 = arith.constant 0 : index
    %c0_51 = arith.constant 0 : index
    %45 = vector.load %arg3[%c6_49, %c0_50, %c0_51] : memref<8x128x128xf32, #tpu.memory_space<vmem>>, vector<1x128x128xf32>
    %46 = vector.shape_cast %45 : vector<1x128x128xf32> to vector<128x128xf32>
    %cst_52 = arith.constant dense<0.000000e+00> : vector<25x128xf32>
    %47 = tpu.matmul %44, %46, %cst_52 {dimension_numbers = #tpu.dot_dimension_numbers<[1], [0], [0], [1], [0, 0, 1, 1], [], []>, precision = #tpu.contract_precision<fp32>} : vector<25x128xf32>, vector<128x128xf32>, vector<25x128xf32> -> vector<25x128xf32>
    %48 = arith.addf %43, %47 : vector<25x128xf32>
    %c7 = arith.constant 7 : index
    %c0_53 = arith.constant 0 : index
    %49 = vector.load %arg8[%c7, %c0_53] : memref<32x128xf32, #tpu.memory_space<vmem>>, vector<25x128xf32>
    %c7_54 = arith.constant 7 : index
    %c0_55 = arith.constant 0 : index
    %c0_56 = arith.constant 0 : index
    %50 = vector.load %arg3[%c7_54, %c0_55, %c0_56] : memref<8x128x128xf32, #tpu.memory_space<vmem>>, vector<1x128x128xf32>
    %51 = vector.shape_cast %50 : vector<1x128x128xf32> to vector<128x128xf32>
    %cst_57 = arith.constant dense<0.000000e+00> : vector<25x128xf32>
    %52 = tpu.matmul %49, %51, %cst_57 {dimension_numbers = #tpu.dot_dimension_numbers<[1], [0], [0], [1], [0, 0, 1, 1], [], []>, precision = #tpu.contract_precision<fp32>} : vector<25x128xf32>, vector<128x128xf32>, vector<25x128xf32> -> vector<25x128xf32>
    %53 = arith.addf %48, %52 : vector<25x128xf32>
    %54 = vector.broadcast %14 : vector<1x128xf32> to vector<25x128xf32>
    %55 = arith.addf %53, %54 : vector<25x128xf32>
    %cst_58 = arith.constant 0.000000e+00 : f32
    %56 = vector.broadcast %cst_58 : f32 to vector<25x128xf32>
    %57 = arith.maximumf %55, %56 : vector<25x128xf32>
    %c0_59 = arith.constant 0 : index
    %c0_60 = arith.constant 0 : index
    %58 = vector.load %arg7[%c0_59, %c0_60] : memref<72x128xf32, #tpu.memory_space<vmem>>, vector<25x128xf32>
    tpu.vector_store %arg7[%c0_59, %c0_60], %57 {strides = array<i32>} : memref<72x128xf32, #tpu.memory_space<vmem>>, vector<25x128xf32>,
    %c0_61 = arith.constant 0 : index
    %c0_62 = arith.constant 0 : index
    %59 = tpu.strided_load %arg7[%c0_61, %c0_62] {strides = array<i32: 2, 1>} : memref<72x128xf32, #tpu.memory_space<vmem>>, vector<12x128xf32>
    %c1_63 = arith.constant 1 : index
    %c0_64 = arith.constant 0 : index
    %60 = tpu.strided_load %arg7[%c1_63, %c0_64] {strides = array<i32: 2, 1>} : memref<72x128xf32, #tpu.memory_space<vmem>>, vector<12x128xf32>
    %61 = arith.maximumf %59, %60 : vector<12x128xf32>
    %c0_65 = arith.constant 0 : index
    %c0_66 = arith.constant 0 : index
    %62 = vector.load %arg8[%c0_65, %c0_66] : memref<32x128xf32, #tpu.memory_space<vmem>>, vector<12x128xf32>
    tpu.vector_store %arg8[%c0_65, %c0_66], %61 {strides = array<i32>} : memref<32x128xf32, #tpu.memory_space<vmem>>, vector<12x128xf32>,
    %c2_67 = arith.constant 2 : index
    %c0_68 = arith.constant 0 : index
    %63 = vector.load %arg5[%c2_67, %c0_68] : memref<8x128xf32, #tpu.memory_space<vmem>>, vector<1x128xf32>
    %c0_69 = arith.constant 0 : index
    %c0_70 = arith.constant 0 : index
    %64 = vector.load %arg8[%c0_69, %c0_70] : memref<32x128xf32, #tpu.memory_space<vmem>>, vector<9x128xf32>
    %c0_71 = arith.constant 0 : index
    %c0_72 = arith.constant 0 : index
    %c0_73 = arith.constant 0 : index
    %65 = vector.load %arg4[%c0_71, %c0_72, %c0_73] : memref<4x128x128xf32, #tpu.memory_space<vmem>>, vector<1x128x128xf32>
    %66 = vector.shape_cast %65 : vector<1x128x128xf32> to vector<128x128xf32>
    %cst_74 = arith.constant dense<0.000000e+00> : vector<9x128xf32>
    %67 = tpu.matmul %64, %66, %cst_74 {dimension_numbers = #tpu.dot_dimension_numbers<[1], [0], [0], [1], [0, 0, 1, 1], [], []>, precision = #tpu.contract_precision<fp32>} : vector<9x128xf32>, vector<128x128xf32>, vector<9x128xf32> -> vector<9x128xf32>
    %c1_75 = arith.constant 1 : index
    %c0_76 = arith.constant 0 : index
    %68 = vector.load %arg8[%c1_75, %c0_76] : memref<32x128xf32, #tpu.memory_space<vmem>>, vector<9x128xf32>
    %c1_77 = arith.constant 1 : index
    %c0_78 = arith.constant 0 : index
    %c0_79 = arith.constant 0 : index
    %69 = vector.load %arg4[%c1_77, %c0_78, %c0_79] : memref<4x128x128xf32, #tpu.memory_space<vmem>>, vector<1x128x128xf32>
    %70 = vector.shape_cast %69 : vector<1x128x128xf32> to vector<128x128xf32>
    %cst_80 = arith.constant dense<0.000000e+00> : vector<9x128xf32>
    %71 = tpu.matmul %68, %70, %cst_80 {dimension_numbers = #tpu.dot_dimension_numbers<[1], [0], [0], [1], [0, 0, 1, 1], [], []>, precision = #tpu.contract_precision<fp32>} : vector<9x128xf32>, vector<128x128xf32>, vector<9x128xf32> -> vector<9x128xf32>
    %72 = arith.addf %67, %71 : vector<9x128xf32>
    %c2_81 = arith.constant 2 : index
    %c0_82 = arith.constant 0 : index
    %73 = vector.load %arg8[%c2_81, %c0_82] : memref<32x128xf32, #tpu.memory_space<vmem>>, vector<9x128xf32>
    %c2_83 = arith.constant 2 : index
    %c0_84 = arith.constant 0 : index
    %c0_85 = arith.constant 0 : index
    %74 = vector.load %arg4[%c2_83, %c0_84, %c0_85] : memref<4x128x128xf32, #tpu.memory_space<vmem>>, vector<1x128x128xf32>
    %75 = vector.shape_cast %74 : vector<1x128x128xf32> to vector<128x128xf32>
    %cst_86 = arith.constant dense<0.000000e+00> : vector<9x128xf32>
    %76 = tpu.matmul %73, %75, %cst_86 {dimension_numbers = #tpu.dot_dimension_numbers<[1], [0], [0], [1], [0, 0, 1, 1], [], []>, precision = #tpu.contract_precision<fp32>} : vector<9x128xf32>, vector<128x128xf32>, vector<9x128xf32> -> vector<9x128xf32>
    %77 = arith.addf %72, %76 : vector<9x128xf32>
    %c3_87 = arith.constant 3 : index
    %c0_88 = arith.constant 0 : index
    %78 = vector.load %arg8[%c3_87, %c0_88] : memref<32x128xf32, #tpu.memory_space<vmem>>, vector<9x128xf32>
    %c3_89 = arith.constant 3 : index
    %c0_90 = arith.constant 0 : index
    %c0_91 = arith.constant 0 : index
    %79 = vector.load %arg4[%c3_89, %c0_90, %c0_91] : memref<4x128x128xf32, #tpu.memory_space<vmem>>, vector<1x128x128xf32>
    %80 = vector.shape_cast %79 : vector<1x128x128xf32> to vector<128x128xf32>
    %cst_92 = arith.constant dense<0.000000e+00> : vector<9x128xf32>
    %81 = tpu.matmul %78, %80, %cst_92 {dimension_numbers = #tpu.dot_dimension_numbers<[1], [0], [0], [1], [0, 0, 1, 1], [], []>, precision = #tpu.contract_precision<fp32>} : vector<9x128xf32>, vector<128x128xf32>, vector<9x128xf32> -> vector<9x128xf32>
    %82 = arith.addf %77, %81 : vector<9x128xf32>
    %83 = vector.broadcast %63 : vector<1x128xf32> to vector<9x128xf32>
    %84 = arith.addf %82, %83 : vector<9x128xf32>
    %cst_93 = arith.constant 0.000000e+00 : f32
    %85 = vector.broadcast %cst_93 : f32 to vector<9x128xf32>
    %86 = arith.maximumf %84, %85 : vector<9x128xf32>
    %c0_94 = arith.constant 0 : index
    %c0_95 = arith.constant 0 : index
    %87 = vector.load %arg7[%c0_94, %c0_95] : memref<72x128xf32, #tpu.memory_space<vmem>>, vector<9x128xf32>
    tpu.vector_store %arg7[%c0_94, %c0_95], %86 {strides = array<i32>} : memref<72x128xf32, #tpu.memory_space<vmem>>, vector<9x128xf32>,
    %c0_96 = arith.constant 0 : index
    %c0_97 = arith.constant 0 : index
    %88 = tpu.strided_load %arg7[%c0_96, %c0_97] {strides = array<i32: 2, 1>} : memref<72x128xf32, #tpu.memory_space<vmem>>, vector<8x128xf32>
    %c1_98 = arith.constant 1 : index
    %c0_99 = arith.constant 0 : index
    %89 = tpu.strided_load %arg7[%c1_98, %c0_99] {strides = array<i32: 2, 1>} : memref<72x128xf32, #tpu.memory_space<vmem>>, vector<8x128xf32>
    %90 = arith.maximumf %88, %89 : vector<8x128xf32>
    %c0_100 = arith.constant 0 : index
    %c0_101 = arith.constant 0 : index
    %c0_102 = arith.constant 0 : index
    %91 = vector.load %arg6[%c0_100, %c0_101, %c0_102] : memref<1x8x128xf32, #tpu.memory_space<vmem>>, vector<1x8x128xf32>
    %92 = vector.shape_cast %91 : vector<1x8x128xf32> to vector<8x128xf32>
    %93 = vector.shape_cast %90 : vector<8x128xf32> to vector<1x8x128xf32>
    tpu.vector_store %arg6[%c0_100, %c0_101, %c0_102], %93 {strides = array<i32>} : memref<1x8x128xf32, #tpu.memory_space<vmem>>, vector<1x8x128xf32>,
    return
  }
  func.func @transform_0(%arg0: i32) -> (i32, i32, i32) {
    %c0_i32 = arith.constant 0 : i32
    %c0_i32_0 = arith.constant 0 : i32
    %c0_i32_1 = arith.constant 0 : i32
    return %arg0, %c0_i32, %c0_i32_0 : i32, i32, i32
  }
  func.func @transform_1(%arg0: i32) -> (i32, i32) {
    %c0_i32 = arith.constant 0 : i32
    %c0_i32_0 = arith.constant 0 : i32
    %c0_i32_1 = arith.constant 0 : i32
    return %c0_i32, %c0_i32_0 : i32, i32
  }
  func.func @transform_2(%arg0: i32) -> (i32, i32, i32) {
    %c0_i32 = arith.constant 0 : i32
    %c0_i32_0 = arith.constant 0 : i32
    %c0_i32_1 = arith.constant 0 : i32
    %c0_i32_2 = arith.constant 0 : i32
    return %c0_i32, %c0_i32_0, %c0_i32_1 : i32, i32, i32
  }
  func.func @transform_3(%arg0: i32) -> (i32, i32, i32) {
    %c0_i32 = arith.constant 0 : i32
    %c0_i32_0 = arith.constant 0 : i32
    %c0_i32_1 = arith.constant 0 : i32
    %c0_i32_2 = arith.constant 0 : i32
    return %c0_i32, %c0_i32_0, %c0_i32_1 : i32, i32, i32
  }
  func.func @transform_4(%arg0: i32) -> (i32, i32) {
    %c0_i32 = arith.constant 0 : i32
    %c0_i32_0 = arith.constant 0 : i32
    %c0_i32_1 = arith.constant 0 : i32
    return %c0_i32, %c0_i32_0 : i32, i32
  }
  func.func @transform_5(%arg0: i32) -> (i32, i32, i32) {
    %c0_i32 = arith.constant 0 : i32
    %c0_i32_0 = arith.constant 0 : i32
    %c0_i32_1 = arith.constant 0 : i32
    return %arg0, %c0_i32, %c0_i32_0 : i32, i32, i32
  }
}

</mosaic_0001>

<llo_original>
// kernel: cnn2_forward.1
$region0: #{cnn2_forward.1}
  #allocation0 [shape = 'u32[]', space=smem, size = 0x4, offset = 0x4, fixed_abs, tag = 'smem constant byte address 0x4 - core index']
  #allocation1 [shape = 'u32[144,128]{1,0:T(1,128)}', space=vmem, size = 0x12000, scoped, tag = 'internal scratch']
  #allocation2 [shape = 'f32[72,128]{1,0:T(8,128)}', space=vmem, size = 0x9000, scoped, tag = 'scratch operand']
  #allocation3 [shape = 'f32[32,128]{1,0:T(8,128)}', space=vmem, size = 0x4000, scoped, tag = 'scratch operand']
  %s0 = inlined_call_operand.vmem [shape: f32[2,72,32], index: 0, kind: input, shape index: {}]
  %s1 = inlined_call_operand.vmem [shape: f32[32,128], index: 1, kind: input, shape index: {}]
  %s2 = inlined_call_operand.hbm [shape: f32[8,128,128], index: 2, kind: input, shape index: {}]
  %s3 = inlined_call_operand.vmem [shape: f32[4,128,128], index: 3, kind: input, shape index: {}]
  %s4 = inlined_call_operand.vmem [shape: f32[8,128], index: 4, kind: input, shape index: {}]
  %s5 = inlined_call_operand.vmem [shape: f32[2,8,128], index: 5, kind: output, shape index: {}]
  %s6 = sld [smem:[#allocation0]]
  $region57: #{cnn2_forward.1} parent=0
    _
  %s8 = ssub.s32 1, %s6
  %s9 = scalar_select 0, %s8, %s6
  $region1: #{cnn2_forward.1} parent=0
    #allocation4 [shape = 'u8[524288]{0}', space=vmem, size = 0x80000, scoped, tag = 'input window, operand 2, single buffered']
    #allocation5 [shape = 's32[2]{0}', space=sflag, size = 0x8, scoped, tag = 'scoped memory for cnn2_forward.1']
    %10 = vsyncpa [#allocation5], 0
    loop: start=0, step=1, limit=4
    $region2: #{cnn2_forward.1} parent=1 // loop_pre_header
      _
    $region3: #{cnn2_forward.1} parent=1 // loop_header
      %s12 = sphi 0, %s16
      %p13 = scmp.ge.s32.totalorder %s12, 4
      %s22 = sphi 0, %s24
      %s25 = sphi 0, %s22
      %s26 = sphi 0, %s25
      %s42 = sphi 0, %s26
      %s46 = sphi 0, %s46
      %s48 = sphi 0, %s46
      %s49 = sphi 0, %s48
      %s63 = sphi 0, %s49
      %s67 = sphi 0, %s67
      %s69 = sphi 0, %s67
      %s70 = sphi 0, %s69
      %s84 = sphi 0, %s70
      %s88 = sphi 0, %s88
      %s90 = sphi 0, %s88
      %s91 = sphi 0, %s90
      %s105 = sphi 0, %s91
      %s109 = sphi 0, %s109
      %s111 = sphi 0, %s109
      %s112 = sphi 0, %s111
      %s126 = sphi 0, %s112
      %s132 = sphi 0, %s134
      %s135 = sphi 0, %s132
      %s136 = sphi 0, %s135
      %s152 = sphi 0, %s136
    $region4: #{cnn2_forward.1} parent=1 // loop_header_branch
      %15 = sbr.rel (%p13) target = $region8
    $region5: #{cnn2_forward.1} parent=1 // loop_body
      %s17 = ssub.s32 %s12, 1
      %s18 = ssub.s32 %s12, 2
      %s19 = sadd.s32 %s12, 1
      %s20 = ssub.s32 %s12, %s19
      %p21 = scmp.eq.s32.totalorder %s20, 0
      %s23 = sadd.s32 %s22, 1
      %s24 = scalar_select %p21, %s22, %s23
      %p27 = pneg %p21
      %p28 = scmp.eq.s32.totalorder %s12, 1
      %p29 = por %p27, %p28
      %p30 = scmp.ne.s32.totalorder %s22, %s25
      %p31 = scmp.eq.s32.totalorder %s12, 0
      %p32 = por %p30, %p31
      %p33 = scmp.ne.s32.totalorder %s22, %s25
      %p34 = scmp.eq.s32.totalorder %s17, 1
      %p35 = por %p33, %p34
      %p36 = scmp.ne.s32.totalorder %s25, %s26
      %p37 = scmp.eq.s32.totalorder %s17, 0
      %p38 = por %p36, %p37
      %p39 = scmp.ne.s32.totalorder %s25, %s26
      %p40 = scmp.eq.s32.totalorder %s18, 1
      %p41 = por %p39, %p40
      %p43 = scmp.ne.s32.totalorder %s26, %s42
      %p44 = scmp.eq.s32.totalorder %s18, 0
      %p45 = por %p43, %p44
      %s47 = sadd.s32 %s46, 1
      %p50 = scmp.eq.s32.totalorder %s12, 1
      %p51 = scmp.ne.s32.totalorder %s46, %s48
      %p52 = scmp.eq.s32.totalorder %s12, 0
      %p53 = por %p51, %p52
      %p54 = scmp.ne.s32.totalorder %s46, %s48
      %p55 = scmp.eq.s32.totalorder %s17, 1
      %p56 = por %p54, %p55
      %p57 = scmp.ne.s32.totalorder %s48, %s49
      %p58 = scmp.eq.s32.totalorder %s17, 0
      %p59 = por %p57, %p58
      %p60 = scmp.ne.s32.totalorder %s48, %s49
      %p61 = scmp.eq.s32.totalorder %s18, 1
      %p62 = por %p60, %p61
      %p64 = scmp.ne.s32.totalorder %s49, %s63
      %p65 = scmp.eq.s32.totalorder %s18, 0
      %p66 = por %p64, %p65
      %s68 = sadd.s32 %s67, 1
      %p71 = scmp.eq.s32.totalorder %s12, 1
      %p72 = scmp.ne.s32.totalorder %s67, %s69
      %p73 = scmp.eq.s32.totalorder %s12, 0
      %p74 = por %p72, %p73
      %p75 = scmp.ne.s32.totalorder %s67, %s69
      %p76 = scmp.eq.s32.totalorder %s17, 1
      %p77 = por %p75, %p76
      %p78 = scmp.ne.s32.totalorder %s69, %s70
      %p79 = scmp.eq.s32.totalorder %s17, 0
      %p80 = por %p78, %p79
      %p81 = scmp.ne.s32.totalorder %s69, %s70
      %p82 = scmp.eq.s32.totalorder %s18, 1
      %p83 = por %p81, %p82
      %p85 = scmp.ne.s32.totalorder %s70, %s84
      %p86 = scmp.eq.s32.totalorder %s18, 0
      %p87 = por %p85, %p86
      %s89 = sadd.s32 %s88, 1
      %p92 = scmp.eq.s32.totalorder %s12, 1
      %p93 = scmp.ne.s32.totalorder %s88, %s90
      %p94 = scmp.eq.s32.totalorder %s12, 0
      %p95 = por %p93, %p94
      %p96 = scmp.ne.s32.totalorder %s88, %s90
      %p97 = scmp.eq.s32.totalorder %s17, 1
      %p98 = por %p96, %p97
      %p99 = scmp.ne.s32.totalorder %s90, %s91
      %p100 = scmp.eq.s32.totalorder %s17, 0
      %p101 = por %p99, %p100
      %p102 = scmp.ne.s32.totalorder %s90, %s91
      %p103 = scmp.eq.s32.totalorder %s18, 1
      %p104 = por %p102, %p103
      %p106 = scmp.ne.s32.totalorder %s91, %s105
      %p107 = scmp.eq.s32.totalorder %s18, 0
      %p108 = por %p106, %p107
      %s110 = sadd.s32 %s109, 1
      %p113 = scmp.eq.s32.totalorder %s12, 1
      %p114 = scmp.ne.s32.totalorder %s109, %s111
      %p115 = scmp.eq.s32.totalorder %s12, 0
      %p116 = por %p114, %p115
      %p117 = scmp.ne.s32.totalorder %s109, %s111
      %p118 = scmp.eq.s32.totalorder %s17, 1
      %p119 = por %p117, %p118
      %p120 = scmp.ne.s32.totalorder %s111, %s112
      %p121 = scmp.eq.s32.totalorder %s17, 0
      %p122 = por %p120, %p121
      %p123 = scmp.ne.s32.totalorder %s111, %s112
      %p124 = scmp.eq.s32.totalorder %s18, 1
      %p125 = por %p123, %p124
      %p127 = scmp.ne.s32.totalorder %s112, %s126
      %p128 = scmp.eq.s32.totalorder %s18, 0
      %p129 = por %p127, %p128
      %s130 = ssub.s32 %s12, %s19
      %p131 = scmp.eq.s32.totalorder %s130, 0
      %s133 = sadd.s32 %s132, 1
      %s134 = scalar_select %p131, %s132, %s133
      %p137 = pneg %p131
      %p138 = scmp.eq.s32.totalorder %s12, 1
      %p139 = por %p137, %p138
      %p140 = scmp.ne.s32.totalorder %s132, %s135
      %p141 = scmp.eq.s32.totalorder %s12, 0
      %p142 = por %p140, %p141
      %p143 = scmp.ne.s32.totalorder %s132, %s135
      %p144 = scmp.eq.s32.totalorder %s17, 1
      %p145 = por %p143, %p144
      %p146 = scmp.ne.s32.totalorder %s135, %s136
      %p147 = scmp.eq.s32.totalorder %s17, 0
      %p148 = por %p146, %p147
      %p149 = scmp.ne.s32.totalorder %s135, %s136
      %p150 = scmp.eq.s32.totalorder %s18, 1
      %p151 = por %p149, %p150
      %p153 = scmp.ne.s32.totalorder %s136, %s152
      %p154 = scmp.eq.s32.totalorder %s18, 0
      %p155 = por %p153, %p154
      %p156 = scmp.le.s32.totalorder 1, %s12
      %p157 = scmp.lt.s32.totalorder %s12, 3
      %p158 = pnand %p156, %p157
      %p159 = pneg %p158
      // Predicated region
      $region9: #{cnn2_forward.1} parent=5 // pred_check
        _
      $region10: #{cnn2_forward.1} parent=5 // pred_check_branch
        %161 = sbr.rel (%p158) target = $region12
      $region11: #{cnn2_forward.1} parent=5 // pred_region
        %s162 = ssub.s32 %s12, 1
        // Predicated region
        $region13: #{cnn2_forward.1} parent=11 // pred_check
          %p163 = pneg %p59
        $region14: #{cnn2_forward.1} parent=11 // pred_check_branch
          %165 = sbr.rel (%p163) target = $region16
        $region15: #{cnn2_forward.1} parent=11 // pred_region
          _
        $region16: #{cnn2_forward.1} parent=11 // pred_fallthru
          _
        // Predicated region
        $region17: #{cnn2_forward.1} parent=11 // pred_check
          %p166 = pneg %p80
        $region18: #{cnn2_forward.1} parent=11 // pred_check_branch
          %168 = sbr.rel (%p166) target = $region20
        $region19: #{cnn2_forward.1} parent=11 // pred_region
          %s170 = ssub.s32 16384, 16384
          %171 = vsyncadd [#allocation5], %s170
          %s172 = sshll.u32 [#allocation4], 4
          %s173 = int_to_ptr.vmem [resolvable:$true] %s172
          %178 = dma.hbm_to_vmem [thread:$0]  %s2, 16384, %s173, [#allocation5], 128, 128, 8
        $region20: #{cnn2_forward.1} parent=11 // pred_fallthru
          _
        // Predicated region
        $region21: #{cnn2_forward.1} parent=11 // pred_check
          %p179 = pneg %p101
        $region22: #{cnn2_forward.1} parent=11 // pred_check_branch
          %181 = sbr.rel (%p179) target = $region24
        $region23: #{cnn2_forward.1} parent=11 // pred_region
          _
        $region24: #{cnn2_forward.1} parent=11 // pred_fallthru
          _
        // Predicated region
        $region25: #{cnn2_forward.1} parent=11 // pred_check
          %p182 = pneg %p122
        $region26: #{cnn2_forward.1} parent=11 // pred_check_branch
          %184 = sbr.rel (%p182) target = $region28
        $region27: #{cnn2_forward.1} parent=11 // pred_region
          _
        $region28: #{cnn2_forward.1} parent=11 // pred_fallthru
          _
      $region12: #{cnn2_forward.1} parent=5 // pred_fallthru
        _
      %p185 = scmp.lt.s32.totalorder %s12, 2
      // Predicated region
      $region29: #{cnn2_forward.1} parent=5 // pred_check
        %p186 = pneg %p185
      $region30: #{cnn2_forward.1} parent=5 // pred_check_branch
        %188 = sbr.rel (%p186) target = $region32
      $region31: #{cnn2_forward.1} parent=5 // pred_region
        // Predicated region
        $region33: #{cnn2_forward.1} parent=31 // pred_check
          %p189 = pneg %p32
        $region34: #{cnn2_forward.1} parent=31 // pred_check_branch
          %191 = sbr.rel (%p189) target = $region36
        $region35: #{cnn2_forward.1} parent=31 // pred_region
          %p192 = scmp.lt.s32.totalorder %s12, 1
          %s193 = scalar_select %p192, %s12, 1
          %s194 = smul.addr %s193, 9
          %s195 = smul.addr %s194, 8
          %s196 = scalar_lea.vmem %s0, %s195
        $region36: #{cnn2_forward.1} parent=31 // pred_fallthru
          _
      $region32: #{cnn2_forward.1} parent=5 // pred_fallthru
        _
      %p197 = scmp.le.s32.totalorder 1, %s12
      %p198 = scmp.lt.s32.totalorder %s12, 3
      %p199 = pnand %p197, %p198
      %p200 = pneg %p199
      // Predicated region
      $region37: #{cnn2_forward.1} parent=5 // pred_check
        _
      $region38: #{cnn2_forward.1} parent=5 // pred_check_branch
        %202 = sbr.rel (%p199) target = $region40
      $region39: #{cnn2_forward.1} parent=5 // pred_region
        %s203 = ssub.s32 %s12, 1
        // Predicated region
        $region41: #{cnn2_forward.1} parent=39 // pred_check
          %p204 = pneg %p80
        $region42: #{cnn2_forward.1} parent=39 // pred_check_branch
          %206 = sbr.rel (%p204) target = $region44
        $region43: #{cnn2_forward.1} parent=39 // pred_region
          %207 = dma.done [#allocation5], 16384
        $region44: #{cnn2_forward.1} parent=39 // pred_fallthru
          _
        %p208 = scmp.lt.s32.totalorder %s17, 1
        %s209 = scalar_select %p208, %s17, 1
        %s210 = smul.addr %s209, 9
        %s211 = smul.addr %s210, 8
        %s212 = scalar_lea.vmem %s0, %s211
        %p213 = pneg %p38
        %p214 = pneg %p35
        %p215 = pneg %p59
        %p216 = pneg %p56
        %p217 = pneg %p80
        %p218 = pneg %p77
        %p219 = pneg %p101
        %p220 = pneg %p98
        %p221 = pneg %p122
        %p222 = pneg %p119
        %p223 = pneg %p148
        %p224 = pneg %p145
        %p225 = scmp.lt.s32.totalorder %s17, 1
        %s226 = scalar_select %p225, %s17, 1
        %s227 = smul.addr %s226, 8
        %s228 = scalar_lea.vmem %s5, %s227
        %p229 = scmp.lt.s32.totalorder %s17, 1
        %s230 = scalar_select %p229, %s17, 1
        %s231 = smul.addr %s230, 9
        %s232 = smul.addr %s231, 8
        %s233 = scalar_lea.vmem %s0, %s232
        %p234 = scmp.lt.s32.totalorder %s17, 1
        %s235 = scalar_select %p234, %s17, 1
        %s236 = smul.addr %s235, 8
        %s237 = scalar_lea.vmem %s5, %s236
        %v238 = vld [vmem:[%s4] sm:$0x1]
        %v239 = vld [vmem:[%s233] sm:$0xff]
        %v240 = vld [vmem:[%s233 + $0x8] sm:$0xff]
        %v241 = vld [vmem:[%s233 + $0x10] sm:$0xff]
        %v242 = vld [vmem:[%s233 + $0x18] sm:$0xff]
        %v243 = vld [vmem:[%s233 + $0x20] sm:$0xff]
        %v244 = vld [vmem:[%s233 + $0x28] sm:$0xff]
        %v245 = vld [vmem:[%s233 + $0x30] sm:$0xff]
        %v246 = vld [vmem:[%s233 + $0x38] sm:$0xff]
        %v247 = vld [vmem:[%s233 + $0x40] sm:$0xff]
        %v248 = vld [vmem:[%s1] sm:$0xff]
        %v249 = vld [vmem:[%s1 + $0x8] sm:$0xff]
        %v250 = vld [vmem:[%s1 + $0x10] sm:$0xff]
        %v251 = vld [vmem:[%s1 + $0x18] sm:$0xff]
        %v252 = vlaneseq
        %v253 = vshrl.u32 %v252, 7
        %v254 = vsub.s32 0, %v253
        %v255 = vrot.slane %v238, %v254
        %vm256 = vcmask 261120
        %v258 = vsel %vm256, %v239, 0
        %v261 = vsel %vm256, %v240, 0
        %v264 = vsel %vm256, %v241, 0
        %v267 = vsel %vm256, %v242, 0
        %v270 = vsel %vm256, %v243, 0
        %v273 = vsel %vm256, %v244, 0
        %v276 = vsel %vm256, %v245, 0
        %v279 = vsel %vm256, %v246, 0
        %v282 = vsel %vm256, %v247, 0
        %284 = vmatprep.subr.mxu0 0.0
        %v285 = vand.u32 %v248, 4294901760
        %286 = vmatpush1.msra.mxu0 %v285
        %287 = vmatprep.subr.mxu0 0.0
        %v288 = vand.u32 %v249, 4294901760
        %289 = vmatpush1.msra.mxu0 %v288
        %290 = vmatprep.subr.mxu0 0.0
        %v291 = vand.u32 %v250, 4294901760
        %292 = vmatpush1.msra.mxu0 %v291
        %293 = vmatprep.subr.mxu0 0.0
        %v294 = vand.u32 %v251, 4294901760
        %295 = vmatpush1.msra.mxu0 %v294
        %296 = vmatprep.subr.mxu0 0.0
        %297 = vmatpush1.msra.mxu0 0.0
        %298 = vmatprep.subr.mxu0 0.0
        %299 = vmatpush1.msra.mxu0 0.0
        %300 = vmatprep.subr.mxu0 0.0
        %301 = vmatpush1.msra.mxu0 0.0
        %302 = vmatprep.subr.mxu0 0.0
        %303 = vmatpush1.msra.mxu0 0.0
        %304 = vmatprep.subr.mxu0 0.0
        %305 = vmatpush1.msra.mxu0 0.0
        %306 = vmatprep.subr.mxu0 0.0
        %307 = vmatpush1.msra.mxu0 0.0
        %308 = vmatprep.subr.mxu0 0.0
        %309 = vmatpush1.msra.mxu0 0.0
        %310 = vmatprep.subr.mxu0 0.0
        %311 = vmatpush1.msra.mxu0 0.0
        %312 = vmatprep.subr.mxu0 0.0
        %313 = vmatpush1.msra.mxu0 0.0
        %314 = vmatprep.subr.mxu0 0.0
        %315 = vmatpush1.msra.mxu0 0.0
        %316 = vmatprep.subr.mxu0 0.0
        %317 = vmatpush1.msra.mxu0 0.0
        %318 = vmatprep.subr.mxu0 0.0
        %319 = vmatpush1.msra.mxu0 0.0
        %320 = vmatprep.subr.mxu0 0.0
        %321 = vmatpush1.msra.mxu0 0.0
        %322 = vmatprep.subr.mxu0 0.0
        %323 = vmatpush1.msra.mxu0 0.0
        %324 = vmatprep.subr.mxu0 0.0
        %325 = vmatpush1.msra.mxu0 0.0
        %326 = vmatprep.subr.mxu0 0.0
        %327 = vmatpush1.msra.mxu0 0.0
        %328 = vmatprep.subr.mxu0 0.0
        %329 = vmatpush1.msra.mxu0 0.0
        %330 = vmatprep.subr.mxu0 0.0
        %331 = vmatpush1.msra.mxu0 0.0
        %332 = vmatprep.subr.mxu0 0.0
        %333 = vmatpush1.msra.mxu0 0.0
        %334 = vmatprep.subr.mxu0 0.0
        %335 = vmatpush1.msra.mxu0 0.0
        %336 = vmatprep.subr.mxu0 0.0
        %337 = vmatpush1.msra.mxu0 0.0
        %338 = vmatprep.subr.mxu0 0.0
        %339 = vmatpush1.msra.mxu0 0.0
        %340 = vmatprep.subr.mxu0 0.0
        %341 = vmatpush1.msra.mxu0 0.0
        %342 = vmatprep.subr.mxu0 0.0
        %343 = vmatpush1.msra.mxu0 0.0
        %344 = vmatprep.subr.mxu0 0.0
        %345 = vmatpush1.msra.mxu0 0.0
        %346 = vmatprep.subr.mxu0 0.0
        %347 = vmatpush1.msra.mxu0 0.0
        %348 = vmatprep.subr.mxu0 0.0
        %349 = vmatpush1.msra.mxu0 0.0
        %350 = vmatprep.subr.mxu0 0.0
        %351 = vmatpush1.msra.mxu0 0.0
        %352 = vmatprep.mubr.f32.mxu0 0.0
        %v353 = vand.u32 %v258, 4294901760
        %v354 = vsub.f32 %v258, %v353
        %v355 = vand.u32 %v354, 4294901760
        %v356 = vsub.f32 %v354, %v355
        %v357 = vand.u32 %v356, 4294901760
        %358 = vmatmul.mubr.f32.gmra.mrb[0].mxu0 %v357
        %v359 = vpop.f32.mrb[0].mxu0
        %v360 = vadd.f32 %v255, %v359
        %v361 = vpop.f32.mrb[0].mxu0
        %362 = vmatprep.mubr.f32.mxu0 0.0
        %v363 = vand.u32 %v261, 4294901760
        %v364 = vsub.f32 %v261, %v363
        %v365 = vand.u32 %v364, 4294901760
        %v366 = vsub.f32 %v364, %v365
        %v367 = vand.u32 %v366, 4294901760
        %368 = vmatmul.mubr.f32.gmra.mrb[0].mxu0 %v367
        %v369 = vpop.f32.mrb[0].mxu0
        %v370 = vadd.f32 %v255, %v369
        %v371 = vpop.f32.mrb[0].mxu0
        %372 = vmatprep.mubr.f32.mxu0 0.0
        %v373 = vand.u32 %v264, 4294901760
        %v374 = vsub.f32 %v264, %v373
        %v375 = vand.u32 %v374, 4294901760
        %v376 = vsub.f32 %v374, %v375
        %v377 = vand.u32 %v376, 4294901760
        %378 = vmatmul.mubr.f32.gmra.mrb[0].mxu0 %v377
        %v379 = vpop.f32.mrb[0].mxu0
        %v380 = vadd.f32 %v255, %v379
        %v381 = vpop.f32.mrb[0].mxu0
        %382 = vmatprep.mubr.f32.mxu0 0.0
        %v383 = vand.u32 %v267, 4294901760
        %v384 = vsub.f32 %v267, %v383
        %v385 = vand.u32 %v384, 4294901760
        %v386 = vsub.f32 %v384, %v385
        %v387 = vand.u32 %v386, 4294901760
        %388 = vmatmul.mubr.f32.gmra.mrb[0].mxu0 %v387
        %v389 = vpop.f32.mrb[0].mxu0
        %v390 = vadd.f32 %v255, %v389
        %v391 = vpop.f32.mrb[0].mxu0
        %392 = vmatprep.mubr.f32.mxu0 0.0
        %v393 = vand.u32 %v270, 4294901760
        %v394 = vsub.f32 %v270, %v393
        %v395 = vand.u32 %v394, 4294901760
        %v396 = vsub.f32 %v394, %v395
        %v397 = vand.u32 %v396, 4294901760
        %398 = vmatmul.mubr.f32.gmra.mrb[0].mxu0 %v397
        %v399 = vpop.f32.mrb[0].mxu0
        %v400 = vadd.f32 %v255, %v399
        %v401 = vpop.f32.mrb[0].mxu0
        %402 = vmatprep.mubr.f32.mxu0 0.0
        %v403 = vand.u32 %v273, 4294901760
        %v404 = vsub.f32 %v273, %v403
        %v405 = vand.u32 %v404, 4294901760
        %v406 = vsub.f32 %v404, %v405
        %v407 = vand.u32 %v406, 4294901760
        %408 = vmatmul.mubr.f32.gmra.mrb[0].mxu0 %v407
        %v409 = vpop.f32.mrb[0].mxu0
        %v410 = vadd.f32 %v255, %v409
        %v411 = vpop.f32.mrb[0].mxu0
        %412 = vmatprep.mubr.f32.mxu0 0.0
        %v413 = vand.u32 %v276, 4294901760
        %v414 = vsub.f32 %v276, %v413
        %v415 = vand.u32 %v414, 4294901760
        %v416 = vsub.f32 %v414, %v415
        %v417 = vand.u32 %v416, 4294901760
        %418 = vmatmul.mubr.f32.gmra.mrb[0].mxu0 %v417
        %v419 = vpop.f32.mrb[0].mxu0
        %v420 = vadd.f32 %v255, %v419
        %v421 = vpop.f32.mrb[0].mxu0
        %422 = vmatprep.mubr.f32.mxu0 0.0
        %v423 = vand.u32 %v279, 4294901760
        %v424 = vsub.f32 %v279, %v423
        %v425 = vand.u32 %v424, 4294901760
        %v426 = vsub.f32 %v424, %v425
        %v427 = vand.u32 %v426, 4294901760
        %428 = vmatmul.mubr.f32.gmra.mrb[0].mxu0 %v427
        %v429 = vpop.f32.mrb[0].mxu0
        %v430 = vadd.f32 %v255, %v429
        %v431 = vpop.f32.mrb[0].mxu0
        %432 = vmatprep.mubr.f32.mxu0 0.0
        %v433 = vand.u32 %v282, 4294901760
        %v434 = vsub.f32 %v282, %v433
        %v435 = vand.u32 %v434, 4294901760
        %v436 = vsub.f32 %v434, %v435
        %v437 = vand.u32 %v436, 4294901760
        %438 = vmatmul.mubr.f32.gmra.mrb[0].mxu0 %v437
        %v439 = vpop.f32.mrb[0].mxu0
        %v440 = vadd.f32 %v255, %v439
        %v441 = vpop.f32.mrb[0].mxu0
        %442 = vdwg.mxu0
        %443 = vmatprep.subr.mxu0 0.0
        %v444 = vand.u32 %v248, 4294901760
        %v445 = vsub.f32 %v248, %v444
        %v446 = vand.u32 %v445, 4294901760
        %v447 = vsub.f32 %v445, %v446
        %v448 = vand.u32 %v447, 4294901760
        %449 = vmatpush1.msra.mxu0 %v448
        %450 = vmatprep.subr.mxu0 0.0
        %v451 = vand.u32 %v249, 4294901760
        %v452 = vsub.f32 %v249, %v451
        %v453 = vand.u32 %v452, 4294901760
        %v454 = vsub.f32 %v452, %v453
        %v455 = vand.u32 %v454, 4294901760
        %456 = vmatpush1.msra.mxu0 %v455
        %457 = vmatprep.subr.mxu0 0.0
        %v458 = vand.u32 %v250, 4294901760
        %v459 = vsub.f32 %v250, %v458
        %v460 = vand.u32 %v459, 4294901760
        %v461 = vsub.f32 %v459, %v460
        %v462 = vand.u32 %v461, 4294901760
        %463 = vmatpush1.msra.mxu0 %v462
        %464 = vmatprep.subr.mxu0 0.0
        %v465 = vand.u32 %v251, 4294901760
        %v466 = vsub.f32 %v251, %v465
        %v467 = vand.u32 %v466, 4294901760
        %v468 = vsub.f32 %v466, %v467
        %v469 = vand.u32 %v468, 4294901760
        %470 = vmatpush1.msra.mxu0 %v469
        %471 = vmatprep.subr.mxu0 0.0
        %472 = vmatpush1.msra.mxu0 0.0
        %473 = vmatprep.subr.mxu0 0.0
        %474 = vmatpush1.msra.mxu0 0.0
        %475 = vmatprep.subr.mxu0 0.0
        %476 = vmatpush1.msra.mxu0 0.0
        %477 = vmatprep.subr.mxu0 0.0
        %478 = vmatpush1.msra.mxu0 0.0
        %479 = vmatprep.subr.mxu0 0.0
        %480 = vmatpush1.msra.mxu0 0.0
        %481 = vmatprep.subr.mxu0 0.0
        %482 = vmatpush1.msra.mxu0 0.0
        %483 = vmatprep.subr.mxu0 0.0
        %484 = vmatpush1.msra.mxu0 0.0
        %485 = vmatprep.subr.mxu0 0.0
        %486 = vmatpush1.msra.mxu0 0.0
        %487 = vmatprep.subr.mxu0 0.0
        %488 = vmatpush1.msra.mxu0 0.0
        %489 = vmatprep.subr.mxu0 0.0
        %490 = vmatpush1.msra.mxu0 0.0
        %491 = vmatprep.subr.mxu0 0.0
        %492 = vmatpush1.msra.mxu0 0.0
        %493 = vmatprep.subr.mxu0 0.0
        %494 = vmatpush1.msra.mxu0 0.0
        %495 = vmatprep.subr.mxu0 0.0
        %496 = vmatpush1.msra.mxu0 0.0
        %497 = vmatprep.subr.mxu0 0.0
        %498 = vmatpush1.msra.mxu0 0.0
        %499 = vmatprep.subr.mxu0 0.0
        %500 = vmatpush1.msra.mxu0 0.0
        %501 = vmatprep.subr.mxu0 0.0
        %502 = vmatpush1.msra.mxu0 0.0
        %503 = vmatprep.subr.mxu0 0.0
        %504 = vmatpush1.msra.mxu0 0.0
        %505 = vmatprep.subr.mxu0 0.0
        %506 = vmatpush1.msra.mxu0 0.0
        %507 = vmatprep.subr.mxu0 0.0
        %508 = vmatpush1.msra.mxu0 0.0
        %509 = vmatprep.subr.mxu0 0.0
        %510 = vmatpush1.msra.mxu0 0.0
        %511 = vmatprep.subr.mxu0 0.0
        %512 = vmatpush1.msra.mxu0 0.0
        %513 = vmatprep.subr.mxu0 0.0
        %514 = vmatpush1.msra.mxu0 0.0
        %515 = vmatprep.subr.mxu0 0.0
        %516 = vmatpush1.msra.mxu0 0.0
        %517 = vmatprep.subr.mxu0 0.0
        %518 = vmatpush1.msra.mxu0 0.0
        %519 = vmatprep.subr.mxu0 0.0
        %520 = vmatpush1.msra.mxu0 0.0
        %521 = vmatprep.subr.mxu0 0.0
        %522 = vmatpush1.msra.mxu0 0.0
        %523 = vmatprep.subr.mxu0 0.0
        %524 = vmatpush1.msra.mxu0 0.0
        %525 = vmatprep.subr.mxu0 0.0
        %526 = vmatpush1.msra.mxu0 0.0
        %527 = vmatprep.mubr.f32.mxu0 0.0
        %v528 = vand.u32 %v258, 4294901760
        %529 = vmatmul.mubr.f32.gmra.mrb[0].mxu0 %v528
        %v530 = vpop.f32.mrb[0].mxu0
        %v531 = vadd.f32 %v360, %v530
        %v532 = vpop.f32.mrb[0].mxu0
        %533 = vmatprep.mubr.f32.mxu0 0.0
        %v534 = vand.u32 %v261, 4294901760
        %535 = vmatmul.mubr.f32.gmra.mrb[0].mxu0 %v534
        %v536 = vpop.f32.mrb[0].mxu0
        %v537 = vadd.f32 %v370, %v536
        %v538 = vpop.f32.mrb[0].mxu0
        %539 = vmatprep.mubr.f32.mxu0 0.0
        %v540 = vand.u32 %v264, 4294901760
        %541 = vmatmul.mubr.f32.gmra.mrb[0].mxu0 %v540
        %v542 = vpop.f32.mrb[0].mxu0
        %v543 = vadd.f32 %v380, %v542
        %v544 = vpop.f32.mrb[0].mxu0
        %545 = vmatprep.mubr.f32.mxu0 0.0
        %v546 = vand.u32 %v267, 4294901760
        %547 = vmatmul.mubr.f32.gmra.mrb[0].mxu0 %v546
        %v548 = vpop.f32.mrb[0].mxu0
        %v549 = vadd.f32 %v390, %v548
        %v550 = vpop.f32.mrb[0].mxu0
        %551 = vmatprep.mubr.f32.mxu0 0.0
        %v552 = vand.u32 %v270, 4294901760
        %553 = vmatmul.mubr.f32.gmra.mrb[0].mxu0 %v552
        %v554 = vpop.f32.mrb[0].mxu0
        %v555 = vadd.f32 %v400, %v554
        %v556 = vpop.f32.mrb[0].mxu0
        %557 = vmatprep.mubr.f32.mxu0 0.0
        %v558 = vand.u32 %v273, 4294901760
        %559 = vmatmul.mubr.f32.gmra.mrb[0].mxu0 %v558
        %v560 = vpop.f32.mrb[0].mxu0
        %v561 = vadd.f32 %v410, %v560
        %v562 = vpop.f32.mrb[0].mxu0
        %563 = vmatprep.mubr.f32.mxu0 0.0
        %v564 = vand.u32 %v276, 4294901760
        %565 = vmatmul.mubr.f32.gmra.mrb[0].mxu0 %v564
        %v566 = vpop.f32.mrb[0].mxu0
        %v567 = vadd.f32 %v420, %v566
        %v568 = vpop.f32.mrb[0].mxu0
        %569 = vmatprep.mubr.f32.mxu0 0.0
        %v570 = vand.u32 %v279, 4294901760
        %571 = vmatmul.mubr.f32.gmra.mrb[0].mxu0 %v570
        %v572 = vpop.f32.mrb[0].mxu0
        %v573 = vadd.f32 %v430, %v572
        %v574 = vpop.f32.mrb[0].mxu0
        %575 = vmatprep.mubr.f32.mxu0 0.0
        %v576 = vand.u32 %v282, 4294901760
        %577 = vmatmul.mubr.f32.gmra.mrb[0].mxu0 %v576
        %v578 = vpop.f32.mrb[0].mxu0
        %v579 = vadd.f32 %v440, %v578
        %v580 = vpop.f32.mrb[0].mxu0
        %581 = vdwg.mxu0
        %582 = vmatprep.subr.mxu0 0.0
        %v583 = vand.u32 %v248, 4294901760
        %v584 = vsub.f32 %v248, %v583
        %585 = vmatpush1.msra.mxu0 %v584
        %586 = vmatprep.subr.mxu0 0.0
        %v587 = vand.u32 %v249, 4294901760
        %v588 = vsub.f32 %v249, %v587
        %589 = vmatpush1.msra.mxu0 %v588
        %590 = vmatprep.subr.mxu0 0.0
        %v591 = vand.u32 %v250, 4294901760
        %v592 = vsub.f32 %v250, %v591
        %593 = vmatpush1.msra.mxu0 %v592
        %594 = vmatprep.subr.mxu0 0.0
        %v595 = vand.u32 %v251, 4294901760
        %v596 = vsub.f32 %v251, %v595
        %597 = vmatpush1.msra.mxu0 %v596
        %598 = vmatprep.subr.mxu0 0.0
        %599 = vmatpush1.msra.mxu0 0.0
        %600 = vmatprep.subr.mxu0 0.0
        %601 = vmatpush1.msra.mxu0 0.0
        %602 = vmatprep.subr.mxu0 0.0
        %603 = vmatpush1.msra.mxu0 0.0
        %604 = vmatprep.subr.mxu0 0.0
        %605 = vmatpush1.msra.mxu0 0.0
        %606 = vmatprep.subr.mxu0 0.0
        %607 = vmatpush1.msra.mxu0 0.0
        %608 = vmatprep.subr.mxu0 0.0
        %609 = vmatpush1.msra.mxu0 0.0
        %610 = vmatprep.subr.mxu0 0.0
        %611 = vmatpush1.msra.mxu0 0.0
        %612 = vmatprep.subr.mxu0 0.0
        %613 = vmatpush1.msra.mxu0 0.0
        %614 = vmatprep.subr.mxu0 0.0
        %615 = vmatpush1.msra.mxu0 0.0
        %616 = vmatprep.subr.mxu0 0.0
        %617 = vmatpush1.msra.mxu0 0.0
        %618 = vmatprep.subr.mxu0 0.0
        %619 = vmatpush1.msra.mxu0 0.0
        %620 = vmatprep.subr.mxu0 0.0
        %621 = vmatpush1.msra.mxu0 0.0
        %622 = vmatprep.subr.mxu0 0.0
        %623 = vmatpush1.msra.mxu0 0.0
        %624 = vmatprep.subr.mxu0 0.0
        %625 = vmatpush1.msra.mxu0 0.0
        %626 = vmatprep.subr.mxu0 0.0
        %627 = vmatpush1.msra.mxu0 0.0
        %628 = vmatprep.subr.mxu0 0.0
        %629 = vmatpush1.msra.mxu0 0.0
        %630 = vmatprep.subr.mxu0 0.0
        %631 = vmatpush1.msra.mxu0 0.0
        %632 = vmatprep.subr.mxu0 0.0
        %633 = vmatpush1.msra.mxu0 0.0
        %634 = vmatprep.subr.mxu0 0.0
        %635 = vmatpush1.msra.mxu0 0.0
        %636 = vmatprep.subr.mxu0 0.0
        %637 = vmatpush1.msra.mxu0 0.0
        %638 = vmatprep.subr.mxu0 0.0
        %639 = vmatpush1.msra.mxu0 0.0
        %640 = vmatprep.subr.mxu0 0.0
        %641 = vmatpush1.msra.mxu0 0.0
        %642 = vmatprep.subr.mxu0 0.0
        %643 = vmatpush1.msra.mxu0 0.0
        %644 = vmatprep.subr.mxu0 0.0
        %645 = vmatpush1.msra.mxu0 0.0
        %646 = vmatprep.subr.mxu0 0.0
        %647 = vmatpush1.msra.mxu0 0.0
        %648 = vmatprep.subr.mxu0 0.0
        %649 = vmatpush1.msra.mxu0 0.0
        %650 = vmatprep.subr.mxu0 0.0
        %651 = vmatpush1.msra.mxu0 0.0
        %652 = vmatprep.subr.mxu0 0.0
        %653 = vmatpush1.msra.mxu0 0.0
        %654 = vmatprep.mubr.f32.mxu0 0.0
        %v655 = vand.u32 %v258, 4294901760
        %v656 = vsub.f32 %v258, %v655
        %657 = vmatmul.mubr.f32.gmra.mrb[0].mxu0 %v656
        %v658 = vpop.f32.mrb[0].mxu0
        %v659 = vadd.f32 %v531, %v658
        %v660 = vpop.f32.mrb[0].mxu0
        %661 = vmatprep.mubr.f32.mxu0 0.0
        %v662 = vand.u32 %v261, 4294901760
        %v663 = vsub.f32 %v261, %v662
        %664 = vmatmul.mubr.f32.gmra.mrb[0].mxu0 %v663
        %v665 = vpop.f32.mrb[0].mxu0
        %v666 = vadd.f32 %v537, %v665
        %v667 = vpop.f32.mrb[0].mxu0
        %668 = vmatprep.mubr.f32.mxu0 0.0
        %v669 = vand.u32 %v264, 4294901760
        %v670 = vsub.f32 %v264, %v669
        %671 = vmatmul.mubr.f32.gmra.mrb[0].mxu0 %v670
        %v672 = vpop.f32.mrb[0].mxu0
        %v673 = vadd.f32 %v543, %v672
        %v674 = vpop.f32.mrb[0].mxu0
        %675 = vmatprep.mubr.f32.mxu0 0.0
        %v676 = vand.u32 %v267, 4294901760
        %v677 = vsub.f32 %v267, %v676
        %678 = vmatmul.mubr.f32.gmra.mrb[0].mxu0 %v677
        %v679 = vpop.f32.mrb[0].mxu0
        %v680 = vadd.f32 %v549, %v679
        %v681 = vpop.f32.mrb[0].mxu0
        %682 = vmatprep.mubr.f32.mxu0 0.0
        %v683 = vand.u32 %v270, 4294901760
        %v684 = vsub.f32 %v270, %v683
        %685 = vmatmul.mubr.f32.gmra.mrb[0].mxu0 %v684
        %v686 = vpop.f32.mrb[0].mxu0
        %v687 = vadd.f32 %v555, %v686
        %v688 = vpop.f32.mrb[0].mxu0
        %689 = vmatprep.mubr.f32.mxu0 0.0
        %v690 = vand.u32 %v273, 4294901760
        %v691 = vsub.f32 %v273, %v690
        %692 = vmatmul.mubr.f32.gmra.mrb[0].mxu0 %v691
        %v693 = vpop.f32.mrb[0].mxu0
        %v694 = vadd.f32 %v561, %v693
        %v695 = vpop.f32.mrb[0].mxu0
        %696 = vmatprep.mubr.f32.mxu0 0.0
        %v697 = vand.u32 %v276, 4294901760
        %v698 = vsub.f32 %v276, %v697
        %699 = vmatmul.mubr.f32.gmra.mrb[0].mxu0 %v698
        %v700 = vpop.f32.mrb[0].mxu0
        %v701 = vadd.f32 %v567, %v700
        %v702 = vpop.f32.mrb[0].mxu0
        %703 = vmatprep.mubr.f32.mxu0 0.0
        %v704 = vand.u32 %v279, 4294901760
        %v705 = vsub.f32 %v279, %v704
        %706 = vmatmul.mubr.f32.gmra.mrb[0].mxu0 %v705
        %v707 = vpop.f32.mrb[0].mxu0
        %v708 = vadd.f32 %v573, %v707
        %v709 = vpop.f32.mrb[0].mxu0
        %710 = vmatprep.mubr.f32.mxu0 0.0
        %v711 = vand.u32 %v282, 4294901760
        %v712 = vsub.f32 %v282, %v711
        %713 = vmatmul.mubr.f32.gmra.mrb[0].mxu0 %v712
        %v714 = vpop.f32.mrb[0].mxu0
        %v715 = vadd.f32 %v579, %v714
        %v716 = vpop.f32.mrb[0].mxu0
        %717 = vdwg.mxu0
        %718 = vmatprep.subr.mxu0 0.0
        %v719 = vand.u32 %v248, 4294901760
        %720 = vmatpush1.msra.mxu0 %v719
        %721 = vmatprep.subr.mxu0 0.0
        %v722 = vand.u32 %v249, 4294901760
        %723 = vmatpush1.msra.mxu0 %v722
        %724 = vmatprep.subr.mxu0 0.0
        %v725 = vand.u32 %v250, 4294901760
        %726 = vmatpush1.msra.mxu0 %v725
        %727 = vmatprep.subr.mxu0 0.0
        %v728 = vand.u32 %v251, 4294901760
        %729 = vmatpush1.msra.mxu0 %v728
        %730 = vmatprep.subr.mxu0 0.0
        %731 = vmatpush1.msra.mxu0 0.0
        %732 = vmatprep.subr.mxu0 0.0
        %733 = vmatpush1.msra.mxu0 0.0
        %734 = vmatprep.subr.mxu0 0.0
        %735 = vmatpush1.msra.mxu0 0.0
        %736 = vmatprep.subr.mxu0 0.0
        %737 = vmatpush1.msra.mxu0 0.0
        %738 = vmatprep.subr.mxu0 0.0
        %739 = vmatpush1.msra.mxu0 0.0
        %740 = vmatprep.subr.mxu0 0.0
        %741 = vmatpush1.msra.mxu0 0.0
        %742 = vmatprep.subr.mxu0 0.0
        %743 = vmatpush1.msra.mxu0 0.0
        %744 = vmatprep.subr.mxu0 0.0
        %745 = vmatpush1.msra.mxu0 0.0
        %746 = vmatprep.subr.mxu0 0.0
        %747 = vmatpush1.msra.mxu0 0.0
        %748 = vmatprep.subr.mxu0 0.0
        %749 = vmatpush1.msra.mxu0 0.0
        %750 = vmatprep.subr.mxu0 0.0
        %751 = vmatpush1.msra.mxu0 0.0
        %752 = vmatprep.subr.mxu0 0.0
        %753 = vmatpush1.msra.mxu0 0.0
        %754 = vmatprep.subr.mxu0 0.0
        %755 = vmatpush1.msra.mxu0 0.0
        %756 = vmatprep.subr.mxu0 0.0
        %757 = vmatpush1.msra.mxu0 0.0
        %758 = vmatprep.subr.mxu0 0.0
        %759 = vmatpush1.msra.mxu0 0.0
        %760 = vmatprep.subr.mxu0 0.0
        %761 = vmatpush1.msra.mxu0 0.0
        %762 = vmatprep.subr.mxu0 0.0
        %763 = vmatpush1.msra.mxu0 0.0
        %764 = vmatprep.subr.mxu0 0.0
        %765 = vmatpush1.msra.mxu0 0.0
        %766 = vmatprep.subr.mxu0 0.0
        %767 = vmatpush1.msra.mxu0 0.0
        %768 = vmatprep.subr.mxu0 0.0
        %769 = vmatpush1.msra.mxu0 0.0
        %770 = vmatprep.subr.mxu0 0.0
        %771 = vmatpush1.msra.mxu0 0.0
        %772 = vmatprep.subr.mxu0 0.0
        %773 = vmatpush1.msra.mxu0 0.0
        %774 = vmatprep.subr.mxu0 0.0
        %775 = vmatpush1.msra.mxu0 0.0
        %776 = vmatprep.subr.mxu0 0.0
        %777 = vmatpush1.msra.mxu0 0.0
        %778 = vmatprep.subr.mxu0 0.0
        %779 = vmatpush1.msra.mxu0 0.0
        %780 = vmatprep.subr.mxu0 0.0
        %781 = vmatpush1.msra.mxu0 0.0
        %782 = vmatprep.subr.mxu0 0.0
        %783 = vmatpush1.msra.mxu0 0.0
        %784 = vmatprep.subr.mxu0 0.0
        %785 = vmatpush1.msra.mxu0 0.0
        %786 = vmatprep.mubr.f32.mxu0 0.0
        %v787 = vand.u32 %v258, 4294901760
        %v788 = vsub.f32 %v258, %v787
        %v789 = vand.u32 %v788, 4294901760
        %790 = vmatmul.mubr.f32.gmra.mrb[0].mxu0 %v789
        %v791 = vpop.f32.mrb[0].mxu0
        %v792 = vadd.f32 %v659, %v791
        %v793 = vpop.f32.mrb[0].mxu0
        %794 = vmatprep.mubr.f32.mxu0 0.0
        %v795 = vand.u32 %v261, 4294901760
        %v796 = vsub.f32 %v261, %v795
        %v797 = vand.u32 %v796, 4294901760
        %798 = vmatmul.mubr.f32.gmra.mrb[0].mxu0 %v797
        %v799 = vpop.f32.mrb[0].mxu0
        %v800 = vadd.f32 %v666, %v799
        %v801 = vpop.f32.mrb[0].mxu0
        %802 = vmatprep.mubr.f32.mxu0 0.0
        %v803 = vand.u32 %v264, 4294901760
        %v804 = vsub.f32 %v264, %v803
        %v805 = vand.u32 %v804, 4294901760
        %806 = vmatmul.mubr.f32.gmra.mrb[0].mxu0 %v805
        %v807 = vpop.f32.mrb[0].mxu0
        %v808 = vadd.f32 %v673, %v807
        %v809 = vpop.f32.mrb[0].mxu0
        %810 = vmatprep.mubr.f32.mxu0 0.0
        %v811 = vand.u32 %v267, 4294901760
        %v812 = vsub.f32 %v267, %v811
        %v813 = vand.u32 %v812, 4294901760
        %814 = vmatmul.mubr.f32.gmra.mrb[0].mxu0 %v813
        %v815 = vpop.f32.mrb[0].mxu0
        %v816 = vadd.f32 %v680, %v815
        %v817 = vpop.f32.mrb[0].mxu0
        %818 = vmatprep.mubr.f32.mxu0 0.0
        %v819 = vand.u32 %v270, 4294901760
        %v820 = vsub.f32 %v270, %v819
        %v821 = vand.u32 %v820, 4294901760
        %822 = vmatmul.mubr.f32.gmra.mrb[0].mxu0 %v821
        %v823 = vpop.f32.mrb[0].mxu0
        %v824 = vadd.f32 %v687, %v823
        %v825 = vpop.f32.mrb[0].mxu0
        %826 = vmatprep.mubr.f32.mxu0 0.0
        %v827 = vand.u32 %v273, 4294901760
        %v828 = vsub.f32 %v273, %v827
        %v829 = vand.u32 %v828, 4294901760
        %830 = vmatmul.mubr.f32.gmra.mrb[0].mxu0 %v829
        %v831 = vpop.f32.mrb[0].mxu0
        %v832 = vadd.f32 %v694, %v831
        %v833 = vpop.f32.mrb[0].mxu0
        %834 = vmatprep.mubr.f32.mxu0 0.0
        %v835 = vand.u32 %v276, 4294901760
        %v836 = vsub.f32 %v276, %v835
        %v837 = vand.u32 %v836, 4294901760
        %838 = vmatmul.mubr.f32.gmra.mrb[0].mxu0 %v837
        %v839 = vpop.f32.mrb[0].mxu0
        %v840 = vadd.f32 %v701, %v839
        %v841 = vpop.f32.mrb[0].mxu0
        %842 = vmatprep.mubr.f32.mxu0 0.0
        %v843 = vand.u32 %v279, 4294901760
        %v844 = vsub.f32 %v279, %v843
        %v845 = vand.u32 %v844, 4294901760
        %846 = vmatmul.mubr.f32.gmra.mrb[0].mxu0 %v845
        %v847 = vpop.f32.mrb[0].mxu0
        %v848 = vadd.f32 %v708, %v847
        %v849 = vpop.f32.mrb[0].mxu0
        %850 = vmatprep.mubr.f32.mxu0 0.0
        %v851 = vand.u32 %v282, 4294901760
        %v852 = vsub.f32 %v282, %v851
        %v853 = vand.u32 %v852, 4294901760
        %854 = vmatmul.mubr.f32.gmra.mrb[0].mxu0 %v853
        %v855 = vpop.f32.mrb[0].mxu0
        %v856 = vadd.f32 %v715, %v855
        %v857 = vpop.f32.mrb[0].mxu0
        %858 = vdwg.mxu0
        %859 = vmatprep.subr.mxu0 0.0
        %v860 = vand.u32 %v248, 4294901760
        %v861 = vsub.f32 %v248, %v860
        %v862 = vand.u32 %v861, 4294901760
        %863 = vmatpush1.msra.mxu0 %v862
        %864 = vmatprep.subr.mxu0 0.0
        %v865 = vand.u32 %v249, 4294901760
        %v866 = vsub.f32 %v249, %v865
        %v867 = vand.u32 %v866, 4294901760
        %868 = vmatpush1.msra.mxu0 %v867
        %869 = vmatprep.subr.mxu0 0.0
        %v870 = vand.u32 %v250, 4294901760
        %v871 = vsub.f32 %v250, %v870
        %v872 = vand.u32 %v871, 4294901760
        %873 = vmatpush1.msra.mxu0 %v872
        %874 = vmatprep.subr.mxu0 0.0
        %v875 = vand.u32 %v251, 4294901760
        %v876 = vsub.f32 %v251, %v875
        %v877 = vand.u32 %v876, 4294901760
        %878 = vmatpush1.msra.mxu0 %v877
        %879 = vmatprep.subr.mxu0 0.0
        %880 = vmatpush1.msra.mxu0 0.0
        %881 = vmatprep.subr.mxu0 0.0
        %882 = vmatpush1.msra.mxu0 0.0
        %883 = vmatprep.subr.mxu0 0.0
        %884 = vmatpush1.msra.mxu0 0.0
        %885 = vmatprep.subr.mxu0 0.0
        %886 = vmatpush1.msra.mxu0 0.0
        %887 = vmatprep.subr.mxu0 0.0
        %888 = vmatpush1.msra.mxu0 0.0
        %889 = vmatprep.subr.mxu0 0.0
        %890 = vmatpush1.msra.mxu0 0.0
        %891 = vmatprep.subr.mxu0 0.0
        %892 = vmatpush1.msra.mxu0 0.0
        %893 = vmatprep.subr.mxu0 0.0
        %894 = vmatpush1.msra.mxu0 0.0
        %895 = vmatprep.subr.mxu0 0.0
        %896 = vmatpush1.msra.mxu0 0.0
        %897 = vmatprep.subr.mxu0 0.0
        %898 = vmatpush1.msra.mxu0 0.0
        %899 = vmatprep.subr.mxu0 0.0
        %900 = vmatpush1.msra.mxu0 0.0
        %901 = vmatprep.subr.mxu0 0.0
        %902 = vmatpush1.msra.mxu0 0.0
        %903 = vmatprep.subr.mxu0 0.0
        %904 = vmatpush1.msra.mxu0 0.0
        %905 = vmatprep.subr.mxu0 0.0
        %906 = vmatpush1.msra.mxu0 0.0
        %907 = vmatprep.subr.mxu0 0.0
        %908 = vmatpush1.msra.mxu0 0.0
        %909 = vmatprep.subr.mxu0 0.0
        %910 = vmatpush1.msra.mxu0 0.0
        %911 = vmatprep.subr.mxu0 0.0
        %912 = vmatpush1.msra.mxu0 0.0
        %913 = vmatprep.subr.mxu0 0.0
        %914 = vmatpush1.msra.mxu0 0.0
        %915 = vmatprep.subr.mxu0 0.0
        %916 = vmatpush1.msra.mxu0 0.0
        %917 = vmatprep.subr.mxu0 0.0
        %918 = vmatpush1.msra.mxu0 0.0
        %919 = vmatprep.subr.mxu0 0.0
        %920 = vmatpush1.msra.mxu0 0.0
        %921 = vmatprep.subr.mxu0 0.0
        %922 = vmatpush1.msra.mxu0 0.0
        %923 = vmatprep.subr.mxu0 0.0
        %924 = vmatpush1.msra.mxu0 0.0
        %925 = vmatprep.subr.mxu0 0.0
        %926 = vmatpush1.msra.mxu0 0.0
        %927 = vmatprep.subr.mxu0 0.0
        %928 = vmatpush1.msra.mxu0 0.0
        %929 = vmatprep.subr.mxu0 0.0
        %930 = vmatpush1.msra.mxu0 0.0
        %931 = vmatprep.subr.mxu0 0.0
        %932 = vmatpush1.msra.mxu0 0.0
        %933 = vmatprep.subr.mxu0 0.0
        %934 = vmatpush1.msra.mxu0 0.0
        %935 = vmatprep.mubr.f32.mxu0 0.0
        %v936 = vand.u32 %v258, 4294901760
        %937 = vmatmul.mubr.f32.gmra.mrb[0].mxu0 %v936
        %v938 = vpop.f32.mrb[0].mxu0
        %v939 = vadd.f32 %v792, %v938
        %v940 = vpop.f32.mrb[0].mxu0
        %941 = vmatprep.mubr.f32.mxu0 0.0
        %v942 = vand.u32 %v261, 4294901760
        %943 = vmatmul.mubr.f32.gmra.mrb[0].mxu0 %v942
        %v944 = vpop.f32.mrb[0].mxu0
        %v945 = vadd.f32 %v800, %v944
        %v946 = vpop.f32.mrb[0].mxu0
        %947 = vmatprep.mubr.f32.mxu0 0.0
        %v948 = vand.u32 %v264, 4294901760
        %949 = vmatmul.mubr.f32.gmra.mrb[0].mxu0 %v948
        %v950 = vpop.f32.mrb[0].mxu0
        %v951 = vadd.f32 %v808, %v950
        %v952 = vpop.f32.mrb[0].mxu0
        %953 = vmatprep.mubr.f32.mxu0 0.0
        %v954 = vand.u32 %v267, 4294901760
        %955 = vmatmul.mubr.f32.gmra.mrb[0].mxu0 %v954
        %v956 = vpop.f32.mrb[0].mxu0
        %v957 = vadd.f32 %v816, %v956
        %v958 = vpop.f32.mrb[0].mxu0
        %959 = vmatprep.mubr.f32.mxu0 0.0
        %v960 = vand.u32 %v270, 4294901760
        %961 = vmatmul.mubr.f32.gmra.mrb[0].mxu0 %v960
        %v962 = vpop.f32.mrb[0].mxu0
        %v963 = vadd.f32 %v824, %v962
        %v964 = vpop.f32.mrb[0].mxu0
        %965 = vmatprep.mubr.f32.mxu0 0.0
        %v966 = vand.u32 %v273, 4294901760
        %967 = vmatmul.mubr.f32.gmra.mrb[0].mxu0 %v966
        %v968 = vpop.f32.mrb[0].mxu0
        %v969 = vadd.f32 %v832, %v968
        %v970 = vpop.f32.mrb[0].mxu0
        %971 = vmatprep.mubr.f32.mxu0 0.0
        %v972 = vand.u32 %v276, 4294901760
        %973 = vmatmul.mubr.f32.gmra.mrb[0].mxu0 %v972
        %v974 = vpop.f32.mrb[0].mxu0
        %v975 = vadd.f32 %v840, %v974
        %v976 = vpop.f32.mrb[0].mxu0
        %977 = vmatprep.mubr.f32.mxu0 0.0
        %v978 = vand.u32 %v279, 4294901760
        %979 = vmatmul.mubr.f32.gmra.mrb[0].mxu0 %v978
        %v980 = vpop.f32.mrb[0].mxu0
        %v981 = vadd.f32 %v848, %v980
        %v982 = vpop.f32.mrb[0].mxu0
        %983 = vmatprep.mubr.f32.mxu0 0.0
        %v984 = vand.u32 %v282, 4294901760
        %985 = vmatmul.mubr.f32.gmra.mrb[0].mxu0 %v984
        %v986 = vpop.f32.mrb[0].mxu0
        %v987 = vadd.f32 %v856, %v986
        %v988 = vpop.f32.mrb[0].mxu0
        %989 = vdwg.mxu0
        %990 = vmatprep.subr.mxu0 0.0
        %v991 = vand.u32 %v248, 4294901760
        %992 = vmatpush1.msra.mxu0 %v991
        %993 = vmatprep.subr.mxu0 0.0
        %v994 = vand.u32 %v249, 4294901760
        %995 = vmatpush1.msra.mxu0 %v994
        %996 = vmatprep.subr.mxu0 0.0
        %v997 = vand.u32 %v250, 4294901760
        %998 = vmatpush1.msra.mxu0 %v997
        %999 = vmatprep.subr.mxu0 0.0
        %v1000 = vand.u32 %v251, 4294901760
        %1001 = vmatpush1.msra.mxu0 %v1000
        %1002 = vmatprep.subr.mxu0 0.0
        %1003 = vmatpush1.msra.mxu0 0.0
        %1004 = vmatprep.subr.mxu0 0.0
        %1005 = vmatpush1.msra.mxu0 0.0
        %1006 = vmatprep.subr.mxu0 0.0
        %1007 = vmatpush1.msra.mxu0 0.0
        %1008 = vmatprep.subr.mxu0 0.0
        %1009 = vmatpush1.msra.mxu0 0.0
        %1010 = vmatprep.subr.mxu0 0.0
        %1011 = vmatpush1.msra.mxu0 0.0
        %1012 = vmatprep.subr.mxu0 0.0
        %1013 = vmatpush1.msra.mxu0 0.0
        %1014 = vmatprep.subr.mxu0 0.0
        %1015 = vmatpush1.msra.mxu0 0.0
        %1016 = vmatprep.subr.mxu0 0.0
        %1017 = vmatpush1.msra.mxu0 0.0
        %1018 = vmatprep.subr.mxu0 0.0
        %1019 = vmatpush1.msra.mxu0 0.0
        %1020 = vmatprep.subr.mxu0 0.0
        %1021 = vmatpush1.msra.mxu0 0.0
        %1022 = vmatprep.subr.mxu0 0.0
        %1023 = vmatpush1.msra.mxu0 0.0
        %1024 = vmatprep.subr.mxu0 0.0
        %1025 = vmatpush1.msra.mxu0 0.0
        %1026 = vmatprep.subr.mxu0 0.0
        %1027 = vmatpush1.msra.mxu0 0.0
        %1028 = vmatprep.subr.mxu0 0.0
        %1029 = vmatpush1.msra.mxu0 0.0
        %1030 = vmatprep.subr.mxu0 0.0
        %1031 = vmatpush1.msra.mxu0 0.0
        %1032 = vmatprep.subr.mxu0 0.0
        %1033 = vmatpush1.msra.mxu0 0.0
        %1034 = vmatprep.subr.mxu0 0.0
        %1035 = vmatpush1.msra.mxu0 0.0
        %1036 = vmatprep.subr.mxu0 0.0
        %1037 = vmatpush1.msra.mxu0 0.0
        %1038 = vmatprep.subr.mxu0 0.0
        %1039 = vmatpush1.msra.mxu0 0.0
        %1040 = vmatprep.subr.mxu0 0.0
        %1041 = vmatpush1.msra.mxu0 0.0
        %1042 = vmatprep.subr.mxu0 0.0
        %1043 = vmatpush1.msra.mxu0 0.0
        %1044 = vmatprep.subr.mxu0 0.0
        %1045 = vmatpush1.msra.mxu0 0.0
        %1046 = vmatprep.subr.mxu0 0.0
        %1047 = vmatpush1.msra.mxu0 0.0
        %1048 = vmatprep.subr.mxu0 0.0
        %1049 = vmatpush1.msra.mxu0 0.0
        %1050 = vmatprep.subr.mxu0 0.0
        %1051 = vmatpush1.msra.mxu0 0.0
        %1052 = vmatprep.subr.mxu0 0.0
        %1053 = vmatpush1.msra.mxu0 0.0
        %1054 = vmatprep.subr.mxu0 0.0
        %1055 = vmatpush1.msra.mxu0 0.0
        %1056 = vmatprep.subr.mxu0 0.0
        %1057 = vmatpush1.msra.mxu0 0.0
        %1058 = vmatprep.mubr.f32.mxu0 0.0
        %v1059 = vand.u32 %v258, 4294901760
        %1060 = vmatmul.mubr.f32.gmra.mrb[0].mxu0 %v1059
        %v1061 = vpop.f32.mrb[0].mxu0
        %v1062 = vadd.f32 %v939, %v1061
        %v1063 = vpop.f32.mrb[0].mxu0
        %1064 = vmatprep.mubr.f32.mxu0 0.0
        %v1065 = vand.u32 %v261, 4294901760
        %1066 = vmatmul.mubr.f32.gmra.mrb[0].mxu0 %v1065
        %v1067 = vpop.f32.mrb[0].mxu0
        %v1068 = vadd.f32 %v945, %v1067
        %v1069 = vpop.f32.mrb[0].mxu0
        %1070 = vmatprep.mubr.f32.mxu0 0.0
        %v1071 = vand.u32 %v264, 4294901760
        %1072 = vmatmul.mubr.f32.gmra.mrb[0].mxu0 %v1071
        %v1073 = vpop.f32.mrb[0].mxu0
        %v1074 = vadd.f32 %v951, %v1073
        %v1075 = vpop.f32.mrb[0].mxu0
        %1076 = vmatprep.mubr.f32.mxu0 0.0
        %v1077 = vand.u32 %v267, 4294901760
        %1078 = vmatmul.mubr.f32.gmra.mrb[0].mxu0 %v1077
        %v1079 = vpop.f32.mrb[0].mxu0
        %v1080 = vadd.f32 %v957, %v1079
        %v1081 = vpop.f32.mrb[0].mxu0
        %1082 = vmatprep.mubr.f32.mxu0 0.0
        %v1083 = vand.u32 %v270, 4294901760
        %1084 = vmatmul.mubr.f32.gmra.mrb[0].mxu0 %v1083
        %v1085 = vpop.f32.mrb[0].mxu0
        %v1086 = vadd.f32 %v963, %v1085
        %v1087 = vpop.f32.mrb[0].mxu0
        %1088 = vmatprep.mubr.f32.mxu0 0.0
        %v1089 = vand.u32 %v273, 4294901760
        %1090 = vmatmul.mubr.f32.gmra.mrb[0].mxu0 %v1089
        %v1091 = vpop.f32.mrb[0].mxu0
        %v1092 = vadd.f32 %v969, %v1091
        %v1093 = vpop.f32.mrb[0].mxu0
        %1094 = vmatprep.mubr.f32.mxu0 0.0
        %v1095 = vand.u32 %v276, 4294901760
        %1096 = vmatmul.mubr.f32.gmra.mrb[0].mxu0 %v1095
        %v1097 = vpop.f32.mrb[0].mxu0
        %v1098 = vadd.f32 %v975, %v1097
        %v1099 = vpop.f32.mrb[0].mxu0
        %1100 = vmatprep.mubr.f32.mxu0 0.0
        %v1101 = vand.u32 %v279, 4294901760
        %1102 = vmatmul.mubr.f32.gmra.mrb[0].mxu0 %v1101
        %v1103 = vpop.f32.mrb[0].mxu0
        %v1104 = vadd.f32 %v981, %v1103
        %v1105 = vpop.f32.mrb[0].mxu0
        %1106 = vmatprep.mubr.f32.mxu0 0.0
        %v1107 = vand.u32 %v282, 4294901760
        %1108 = vmatmul.mubr.f32.gmra.mrb[0].mxu0 %v1107
        %v1109 = vpop.f32.mrb[0].mxu0
        %v1110 = vadd.f32 %v987, %v1109
        %v1111 = vpop.f32.mrb[0].mxu0
        %1112 = vdwg.mxu0
        %v1113 = vmax.f32 %v1062, 0.0
        %v1114 = vmax.f32 %v1068, 0.0
        %v1115 = vmax.f32 %v1074, 0.0
        %v1116 = vmax.f32 %v1080, 0.0
        %v1117 = vmax.f32 %v1086, 0.0
        %v1118 = vmax.f32 %v1092, 0.0
        %v1119 = vmax.f32 %v1098, 0.0
        %v1120 = vmax.f32 %v1104, 0.0
        %v1121 = vmax.f32 %v1110, 0.0
        %1122 = vst [vmem:[#allocation2] sm:$0xff] %v1113
        %1123 = vst [vmem:[#allocation2 + $0x8] sm:$0xff] %v1114
        %1124 = vst [vmem:[#allocation2 + $0x10] sm:$0xff] %v1115
        %1125 = vst [vmem:[#allocation2 + $0x18] sm:$0xff] %v1116
        %1126 = vst [vmem:[#allocation2 + $0x20] sm:$0xff] %v1117
        %1127 = vst [vmem:[#allocation2 + $0x28] sm:$0xff] %v1118
        %1128 = vst [vmem:[#allocation2 + $0x30] sm:$0xff] %v1119
        %1129 = vst [vmem:[#allocation2 + $0x38] sm:$0xff] %v1120
        %1130 = vst [vmem:[#allocation2 + $0x40] sm:$0xff] %v1121
        %v1131 = vld [vmem:[#allocation2] ss:$2 sm:$0xff]
        %s1132 = scalar_lea.vmem [#allocation2], 16
        %v1133 = vld [vmem:[%s1132] ss:$2 sm:$0xff]
        %s1134 = scalar_lea.vmem [#allocation2], 32
        %v1135 = vld [vmem:[%s1134] ss:$2 sm:$0xff]
        %s1136 = scalar_lea.vmem [#allocation2], 48
        %v1137 = vld [vmem:[%s1136] ss:$2 sm:$0xff]
        %s1138 = scalar_lea.vmem [#allocation2], 1
        %v1139 = vld [vmem:[%s1138] ss:$2 sm:$0xff]
        %s1140 = scalar_lea.vmem [#allocation2], 17
        %v1141 = vld [vmem:[%s1140] ss:$2 sm:$0xff]
        %s1142 = scalar_lea.vmem [#allocation2], 33
        %v1143 = vld [vmem:[%s1142] ss:$2 sm:$0xff]
        %s1144 = scalar_lea.vmem [#allocation2], 49
        %v1145 = vld [vmem:[%s1144] ss:$2 sm:$0xff]
        %v1146 = vmax.f32 %v1131, %v1139
        %v1147 = vmax.f32 %v1133, %v1141
        %v1148 = vmax.f32 %v1135, %v1143
        %v1149 = vmax.f32 %v1137, %v1145
        %1150 = vst [vmem:[#allocation3] sm:$0xff] %v1146
        %1151 = vst [vmem:[#allocation3 + $0x8] sm:$0xff] %v1147
        %1152 = vst [vmem:[#allocation3 + $0x10] sm:$0xff] %v1148
        %1153 = vst [vmem:[#allocation3 + $0x18] sm:$0xff] %v1149
        %v1154 = vld [vmem:[%s4 + $0x1] sm:$0x1]
        %v1155 = vld [vmem:[#allocation3] sm:$0xff]
        %v1156 = vld [vmem:[#allocation3 + $0x8] sm:$0xff]
        %v1157 = vld [vmem:[#allocation3 + $0x10] sm:$0xff]
        %v1158 = vld [vmem:[#allocation3 + $0x18] sm:$0x1]
        %v1159 = vld [vmem:[#allocation4] sm:$0xff]
        %v1160 = vld [vmem:[#allocation4 + $0x8] sm:$0xff]
        %v1161 = vld [vmem:[#allocation4 + $0x10] sm:$0xff]
        %v1162 = vld [vmem:[#allocation4 + $0x18] sm:$0xff]
        %v1163 = vld [vmem:[#allocation4 + $0x20] sm:$0xff]
        %v1164 = vld [vmem:[#allocation4 + $0x28] sm:$0xff]
        %v1165 = vld [vmem:[#allocation4 + $0x30] sm:$0xff]
        %v1166 = vld [vmem:[#allocation4 + $0x38] sm:$0xff]
        %v1167 = vld [vmem:[#allocation4 + $0x40] sm:$0xff]
        %v1168 = vld [vmem:[#allocation4 + $0x48] sm:$0xff]
        %v1169 = vld [vmem:[#allocation4 + $0x50] sm:$0xff]
        %v1170 = vld [vmem:[#allocation4 + $0x58] sm:$0xff]
        %v1171 = vld [vmem:[#allocation4 + $0x60] sm:$0xff]
        %v1172 = vld [vmem:[#allocation4 + $0x68] sm:$0xff]
        %v1173 = vld [vmem:[#allocation4 + $0x70] sm:$0xff]
        %v1174 = vld [vmem:[#allocation4 + $0x78] sm:$0xff]
        %v1175 = vld [vmem:[#allocation3 + $0x1] sm:$0xff]
        %v1176 = vld [vmem:[#allocation3 + $0x9] sm:$0xff]
        %v1177 = vld [vmem:[#allocation3 + $0x11] sm:$0xff]
        %v1178 = vld [vmem:[#allocation3 + $0x19] sm:$0x1]
        %s1179 = scalar_lea.vmem [#allocation4], 128
        %v1180 = vld [vmem:[%s1179] sm:$0xff]
        %v1181 = vld [vmem:[%s1179 + $0x8] sm:$0xff]
        %v1182 = vld [vmem:[%s1179 + $0x10] sm:$0xff]
        %v1183 = vld [vmem:[%s1179 + $0x18] sm:$0xff]
        %v1184 = vld [vmem:[%s1179 + $0x20] sm:$0xff]
        %v1185 = vld [vmem:[%s1179 + $0x28] sm:$0xff]
        %v1186 = vld [vmem:[%s1179 + $0x30] sm:$0xff]
        %v1187 = vld [vmem:[%s1179 + $0x38] sm:$0xff]
        %v1188 = vld [vmem:[%s1179 + $0x40] sm:$0xff]
        %v1189 = vld [vmem:[%s1179 + $0x48] sm:$0xff]
        %v1190 = vld [vmem:[%s1179 + $0x50] sm:$0xff]
        %v1191 = vld [vmem:[%s1179 + $0x58] sm:$0xff]
        %v1192 = vld [vmem:[%s1179 + $0x60] sm:$0xff]
        %v1193 = vld [vmem:[%s1179 + $0x68] sm:$0xff]
        %v1194 = vld [vmem:[%s1179 + $0x70] sm:$0xff]
        %v1195 = vld [vmem:[%s1179 + $0x78] sm:$0xff]
        %1196 = vmatprep.subr.mxu0 0.0
        %v1197 = vand.u32 %v1180, 4294901760
        %1198 = vmatpush1.msra.mxu0 %v1197
        %1199 = vmatprep.subr.mxu0 0.0
        %v1200 = vand.u32 %v1181, 4294901760
        %1201 = vmatpush1.msra.mxu0 %v1200
        %1202 = vmatprep.subr.mxu0 0.0
        %v1203 = vand.u32 %v1182, 4294901760
        %1204 = vmatpush1.msra.mxu0 %v1203
        %1205 = vmatprep.subr.mxu0 0.0
        %v1206 = vand.u32 %v1183, 4294901760
        %1207 = vmatpush1.msra.mxu0 %v1206
        %1208 = vmatprep.subr.mxu0 0.0
        %v1209 = vand.u32 %v1184, 4294901760
        %1210 = vmatpush1.msra.mxu0 %v1209
        %1211 = vmatprep.subr.mxu0 0.0
        %v1212 = vand.u32 %v1185, 4294901760
        %1213 = vmatpush1.msra.mxu0 %v1212
        %1214 = vmatprep.subr.mxu0 0.0
        %v1215 = vand.u32 %v1186, 4294901760
        %1216 = vmatpush1.msra.mxu0 %v1215
        %1217 = vmatprep.subr.mxu0 0.0
        %v1218 = vand.u32 %v1187, 4294901760
        %1219 = vmatpush1.msra.mxu0 %v1218
        %1220 = vmatprep.subr.mxu0 0.0
        %v1221 = vand.u32 %v1188, 4294901760
        %1222 = vmatpush1.msra.mxu0 %v1221
        %1223 = vmatprep.subr.mxu0 0.0
        %v1224 = vand.u32 %v1189, 4294901760
        %1225 = vmatpush1.msra.mxu0 %v1224
        %1226 = vmatprep.subr.mxu0 0.0
        %v1227 = vand.u32 %v1190, 4294901760
        %1228 = vmatpush1.msra.mxu0 %v1227
        %1229 = vmatprep.subr.mxu0 0.0
        %v1230 = vand.u32 %v1191, 4294901760
        %1231 = vmatpush1.msra.mxu0 %v1230
        %1232 = vmatprep.subr.mxu0 0.0
        %v1233 = vand.u32 %v1192, 4294901760
        %1234 = vmatpush1.msra.mxu0 %v1233
        %1235 = vmatprep.subr.mxu0 0.0
        %v1236 = vand.u32 %v1193, 4294901760
        %1237 = vmatpush1.msra.mxu0 %v1236
        %1238 = vmatprep.subr.mxu0 0.0
        %v1239 = vand.u32 %v1194, 4294901760
        %1240 = vmatpush1.msra.mxu0 %v1239
        %1241 = vmatprep.subr.mxu0 0.0
        %v1242 = vand.u32 %v1195, 4294901760
        %1243 = vmatpush1.msra.mxu0 %v1242
        %1244 = vmatprep.subr.mxu0 0.0
        %1245 = vmatpush1.msra.mxu0 0.0
        %1246 = vmatprep.subr.mxu0 0.0
        %1247 = vmatpush1.msra.mxu0 0.0
        %1248 = vmatprep.subr.mxu0 0.0
        %1249 = vmatpush1.msra.mxu0 0.0
        %1250 = vmatprep.subr.mxu0 0.0
        %1251 = vmatpush1.msra.mxu0 0.0
        %1252 = vmatprep.subr.mxu0 0.0
        %1253 = vmatpush1.msra.mxu0 0.0
        %1254 = vmatprep.subr.mxu0 0.0
        %1255 = vmatpush1.msra.mxu0 0.0
        %1256 = vmatprep.subr.mxu0 0.0
        %1257 = vmatpush1.msra.mxu0 0.0
        %1258 = vmatprep.subr.mxu0 0.0
        %1259 = vmatpush1.msra.mxu0 0.0
        %1260 = vmatprep.subr.mxu0 0.0
        %1261 = vmatpush1.msra.mxu0 0.0
        %1262 = vmatprep.subr.mxu0 0.0
        %1263 = vmatpush1.msra.mxu0 0.0
        %1264 = vmatprep.subr.mxu0 0.0
        %1265 = vmatpush1.msra.mxu0 0.0
        %1266 = vmatprep.subr.mxu0 0.0
        %1267 = vmatpush1.msra.mxu0 0.0
        %1268 = vmatprep.subr.mxu0 0.0
        %1269 = vmatpush1.msra.mxu0 0.0
        %1270 = vmatprep.subr.mxu0 0.0
        %1271 = vmatpush1.msra.mxu0 0.0
        %1272 = vmatprep.subr.mxu0 0.0
        %1273 = vmatpush1.msra.mxu0 0.0
        %1274 = vmatprep.subr.mxu0 0.0
        %1275 = vmatpush1.msra.mxu0 0.0
        %1276 = vmatprep.mubr.f32.mxu0 0.0
        %v1277 = vand.u32 %v1175, 4294901760
        %v1278 = vsub.f32 %v1175, %v1277
        %v1279 = vand.u32 %v1278, 4294901760
        %v1280 = vsub.f32 %v1278, %v1279
        %v1281 = vand.u32 %v1280, 4294901760
        %1282 = vmatmul.mubr.f32.gmra.mrb[0].mxu0 %v1281
        %v1283 = vpop.f32.mrb[0].mxu0
        %v1284 = vadd.f32 0.0, %v1283
        %v1285 = vpop.f32.mrb[0].mxu0
        %1286 = vmatprep.mubr.f32.mxu0 0.0
        %v1287 = vand.u32 %v1176, 4294901760
        %v1288 = vsub.f32 %v1176, %v1287
        %v1289 = vand.u32 %v1288, 4294901760
        %v1290 = vsub.f32 %v1288, %v1289
        %v1291 = vand.u32 %v1290, 4294901760
        %1292 = vmatmul.mubr.f32.gmra.mrb[0].mxu0 %v1291
        %v1293 = vpop.f32.mrb[0].mxu0
        %v1294 = vadd.f32 0.0, %v1293
        %v1295 = vpop.f32.mrb[0].mxu0
        %1296 = vmatprep.mubr.f32.mxu0 0.0
        %v1297 = vand.u32 %v1177, 4294901760
        %v1298 = vsub.f32 %v1177, %v1297
        %v1299 = vand.u32 %v1298, 4294901760
        %v1300 = vsub.f32 %v1298, %v1299
        %v1301 = vand.u32 %v1300, 4294901760
        %1302 = vmatmul.mubr.f32.gmra.mrb[0].mxu0 %v1301
        %v1303 = vpop.f32.mrb[0].mxu0
        %v1304 = vadd.f32 0.0, %v1303
        %v1305 = vpop.f32.mrb[0].mxu0
        %1306 = vmatprep.mubr.f32.mxu0 0.0
        %v1307 = vand.u32 %v1178, 4294901760
        %v1308 = vsub.f32 %v1178, %v1307
        %v1309 = vand.u32 %v1308, 4294901760
        %v1310 = vsub.f32 %v1308, %v1309
        %v1311 = vand.u32 %v1310, 4294901760
        %1312 = vmatmul.mubr.f32.gmra.mrb[0].mxu0 %v1311
        %v1313 = vpop.f32.mrb[0].mxu0
        %v1314 = vadd.f32 0.0, %v1313
        %v1315 = vpop.f32.mrb[0].mxu0
        %1316 = vdwg.mxu0
        %1317 = vmatprep.subr.mxu0 0.0
        %v1318 = vand.u32 %v1180, 4294901760
        %v1319 = vsub.f32 %v1180, %v1318
        %v1320 = vand.u32 %v1319, 4294901760
        %v1321 = vsub.f32 %v1319, %v1320
        %v1322 = vand.u32 %v1321, 4294901760
        %1323 = vmatpush1.msra.mxu0 %v1322
        %1324 = vmatprep.subr.mxu0 0.0
        %v1325 = vand.u32 %v1181, 4294901760
        %v1326 = vsub.f32 %v1181, %v1325
        %v1327 = vand.u32 %v1326, 4294901760
        %v1328 = vsub.f32 %v1326, %v1327
        %v1329 = vand.u32 %v1328, 4294901760
        %1330 = vmatpush1.msra.mxu0 %v1329
        %1331 = vmatprep.subr.mxu0 0.0
        %v1332 = vand.u32 %v1182, 4294901760
        %v1333 = vsub.f32 %v1182, %v1332
        %v1334 = vand.u32 %v1333, 4294901760
        %v1335 = vsub.f32 %v1333, %v1334
        %v1336 = vand.u32 %v1335, 4294901760
        %1337 = vmatpush1.msra.mxu0 %v1336
        %1338 = vmatprep.subr.mxu0 0.0
        %v1339 = vand.u32 %v1183, 4294901760
        %v1340 = vsub.f32 %v1183, %v1339
        %v1341 = vand.u32 %v1340, 4294901760
        %v1342 = vsub.f32 %v1340, %v1341
        %v1343 = vand.u32 %v1342, 4294901760
        %1344 = vmatpush1.msra.mxu0 %v1343
        %1345 = vmatprep.subr.mxu0 0.0
        %v1346 = vand.u32 %v1184, 4294901760
        %v1347 = vsub.f32 %v1184, %v1346
        %v1348 = vand.u32 %v1347, 4294901760
        %v1349 = vsub.f32 %v1347, %v1348
        %v1350 = vand.u32 %v1349, 4294901760
        %1351 = vmatpush1.msra.mxu0 %v1350
        %1352 = vmatprep.subr.mxu0 0.0
        %v1353 = vand.u32 %v1185, 4294901760
        %v1354 = vsub.f32 %v1185, %v1353
        %v1355 = vand.u32 %v1354, 4294901760
        %v1356 = vsub.f32 %v1354, %v1355
        %v1357 = vand.u32 %v1356, 4294901760
        %1358 = vmatpush1.msra.mxu0 %v1357
        %1359 = vmatprep.subr.mxu0 0.0
        %v1360 = vand.u32 %v1186, 4294901760
        %v1361 = vsub.f32 %v1186, %v1360
        %v1362 = vand.u32 %v1361, 4294901760
        %v1363 = vsub.f32 %v1361, %v1362
        %v1364 = vand.u32 %v1363, 4294901760
        %1365 = vmatpush1.msra.mxu0 %v1364
        %1366 = vmatprep.subr.mxu0 0.0
        %v1367 = vand.u32 %v1187, 4294901760
        %v1368 = vsub.f32 %v1187, %v1367
        %v1369 = vand.u32 %v1368, 4294901760
        %v1370 = vsub.f32 %v1368, %v1369
        %v1371 = vand.u32 %v1370, 4294901760
        %1372 = vmatpush1.msra.mxu0 %v1371
        %1373 = vmatprep.subr.mxu0 0.0
        %v1374 = vand.u32 %v1188, 4294901760
        %v1375 = vsub.f32 %v1188, %v1374
        %v1376 = vand.u32 %v1375, 4294901760
        %v1377 = vsub.f32 %v1375, %v1376
        %v1378 = vand.u32 %v1377, 4294901760
        %1379 = vmatpush1.msra.mxu0 %v1378
        %1380 = vmatprep.subr.mxu0 0.0
        %v1381 = vand.u32 %v1189, 4294901760
        %v1382 = vsub.f32 %v1189, %v1381
        %v1383 = vand.u32 %v1382, 4294901760
        %v1384 = vsub.f32 %v1382, %v1383
        %v1385 = vand.u32 %v1384, 4294901760
        %1386 = vmatpush1.msra.mxu0 %v1385
        %1387 = vmatprep.subr.mxu0 0.0
        %v1388 = vand.u32 %v1190, 4294901760
        %v1389 = vsub.f32 %v1190, %v1388
        %v1390 = vand.u32 %v1389, 4294901760
        %v1391 = vsub.f32 %v1389, %v1390
        %v1392 = vand.u32 %v1391, 4294901760
        %1393 = vmatpush1.msra.mxu0 %v1392
        %1394 = vmatprep.subr.mxu0 0.0
        %v1395 = vand.u32 %v1191, 4294901760
        %v1396 = vsub.f32 %v1191, %v1395
        %v1397 = vand.u32 %v1396, 4294901760
        %v1398 = vsub.f32 %v1396, %v1397
        %v1399 = vand.u32 %v1398, 4294901760
        %1400 = vmatpush1.msra.mxu0 %v1399
        %1401 = vmatprep.subr.mxu0 0.0
        %v1402 = vand.u32 %v1192, 4294901760
        %v1403 = vsub.f32 %v1192, %v1402
        %v1404 = vand.u32 %v1403, 4294901760
        %v1405 = vsub.f32 %v1403, %v1404
        %v1406 = vand.u32 %v1405, 4294901760
        %1407 = vmatpush1.msra.mxu0 %v1406
        %1408 = vmatprep.subr.mxu0 0.0
        %v1409 = vand.u32 %v1193, 4294901760
        %v1410 = vsub.f32 %v1193, %v1409
        %v1411 = vand.u32 %v1410, 4294901760
        %v1412 = vsub.f32 %v1410, %v1411
        %v1413 = vand.u32 %v1412, 4294901760
        %1414 = vmatpush1.msra.mxu0 %v1413
        %1415 = vmatprep.subr.mxu0 0.0
        %v1416 = vand.u32 %v1194, 4294901760
        %v1417 = vsub.f32 %v1194, %v1416
        %v1418 = vand.u32 %v1417, 4294901760
        %v1419 = vsub.f32 %v1417, %v1418
        %v1420 = vand.u32 %v1419, 4294901760
        %1421 = vmatpush1.msra.mxu0 %v1420
        %1422 = vmatprep.subr.mxu0 0.0
        %v1423 = vand.u32 %v1195, 4294901760
        %v1424 = vsub.f32 %v1195, %v1423
        %v1425 = vand.u32 %v1424, 4294901760
        %v1426 = vsub.f32 %v1424, %v1425
        %v1427 = vand.u32 %v1426, 4294901760
        %1428 = vmatpush1.msra.mxu0 %v1427
        %1429 = vmatprep.subr.mxu0 0.0
        %1430 = vmatpush1.msra.mxu0 0.0
        %1431 = vmatprep.subr.mxu0 0.0
        %1432 = vmatpush1.msra.mxu0 0.0
        %1433 = vmatprep.subr.mxu0 0.0
        %1434 = vmatpush1.msra.mxu0 0.0
        %1435 = vmatprep.subr.mxu0 0.0
        %1436 = vmatpush1.msra.mxu0 0.0
        %1437 = vmatprep.subr.mxu0 0.0
        %1438 = vmatpush1.msra.mxu0 0.0
        %1439 = vmatprep.subr.mxu0 0.0
        %1440 = vmatpush1.msra.mxu0 0.0
        %1441 = vmatprep.subr.mxu0 0.0
        %1442 = vmatpush1.msra.mxu0 0.0
        %1443 = vmatprep.subr.mxu0 0.0
        %1444 = vmatpush1.msra.mxu0 0.0
        %1445 = vmatprep.subr.mxu0 0.0
        %1446 = vmatpush1.msra.mxu0 0.0
        %1447 = vmatprep.subr.mxu0 0.0
        %1448 = vmatpush1.msra.mxu0 0.0
        %1449 = vmatprep.subr.mxu0 0.0
        %1450 = vmatpush1.msra.mxu0 0.0
        %1451 = vmatprep.subr.mxu0 0.0
        %1452 = vmatpush1.msra.mxu0 0.0
        %1453 = vmatprep.subr.mxu0 0.0
        %1454 = vmatpush1.msra.mxu0 0.0
        %1455 = vmatprep.subr.mxu0 0.0
        %1456 = vmatpush1.msra.mxu0 0.0
        %1457 = vmatprep.subr.mxu0 0.0
        %1458 = vmatpush1.msra.mxu0 0.0
        %1459 = vmatprep.subr.mxu0 0.0
        %1460 = vmatpush1.msra.mxu0 0.0
        %1461 = vmatprep.mubr.f32.mxu0 0.0
        %v1462 = vand.u32 %v1175, 4294901760
        %1463 = vmatmul.mubr.f32.gmra.mrb[0].mxu0 %v1462
        %v1464 = vpop.f32.mrb[0].mxu0
        %v1465 = vadd.f32 %v1284, %v1464
        %v1466 = vpop.f32.mrb[0].mxu0
        %1467 = vmatprep.mubr.f32.mxu0 0.0
        %v1468 = vand.u32 %v1176, 4294901760
        %1469 = vmatmul.mubr.f32.gmra.mrb[0].mxu0 %v1468
        %v1470 = vpop.f32.mrb[0].mxu0
        %v1471 = vadd.f32 %v1294, %v1470
        %v1472 = vpop.f32.mrb[0].mxu0
        %1473 = vmatprep.mubr.f32.mxu0 0.0
        %v1474 = vand.u32 %v1177, 4294901760
        %1475 = vmatmul.mubr.f32.gmra.mrb[0].mxu0 %v1474
        %v1476 = vpop.f32.mrb[0].mxu0
        %v1477 = vadd.f32 %v1304, %v1476
        %v1478 = vpop.f32.mrb[0].mxu0
        %1479 = vmatprep.mubr.f32.mxu0 0.0
        %v1480 = vand.u32 %v1178, 4294901760
        %1481 = vmatmul.mubr.f32.gmra.mrb[0].mxu0 %v1480
        %v1482 = vpop.f32.mrb[0].mxu0
        %v1483 = vadd.f32 %v1314, %v1482
        %v1484 = vpop.f32.mrb[0].mxu0
        %1485 = vdwg.mxu0
        %1486 = vmatprep.subr.mxu0 0.0
        %v1487 = vand.u32 %v1180, 4294901760
        %v1488 = vsub.f32 %v1180, %v1487
        %1489 = vmatpush1.msra.mxu0 %v1488
        %1490 = vmatprep.subr.mxu0 0.0
        %v1491 = vand.u32 %v1181, 4294901760
        %v1492 = vsub.f32 %v1181, %v1491
        %1493 = vmatpush1.msra.mxu0 %v1492
        %1494 = vmatprep.subr.mxu0 0.0
        %v1495 = vand.u32 %v1182, 4294901760
        %v1496 = vsub.f32 %v1182, %v1495
        %1497 = vmatpush1.msra.mxu0 %v1496
        %1498 = vmatprep.subr.mxu0 0.0
        %v1499 = vand.u32 %v1183, 4294901760
        %v1500 = vsub.f32 %v1183, %v1499
        %1501 = vmatpush1.msra.mxu0 %v1500
        %1502 = vmatprep.subr.mxu0 0.0
        %v1503 = vand.u32 %v1184, 4294901760
        %v1504 = vsub.f32 %v1184, %v1503
        %1505 = vmatpush1.msra.mxu0 %v1504
        %1506 = vmatprep.subr.mxu0 0.0
        %v1507 = vand.u32 %v1185, 4294901760
        %v1508 = vsub.f32 %v1185, %v1507
        %1509 = vmatpush1.msra.mxu0 %v1508
        %1510 = vmatprep.subr.mxu0 0.0
        %v1511 = vand.u32 %v1186, 4294901760
        %v1512 = vsub.f32 %v1186, %v1511
        %1513 = vmatpush1.msra.mxu0 %v1512
        %1514 = vmatprep.subr.mxu0 0.0
        %v1515 = vand.u32 %v1187, 4294901760
        %v1516 = vsub.f32 %v1187, %v1515
        %1517 = vmatpush1.msra.mxu0 %v1516
        %1518 = vmatprep.subr.mxu0 0.0
        %v1519 = vand.u32 %v1188, 4294901760
        %v1520 = vsub.f32 %v1188, %v1519
        %1521 = vmatpush1.msra.mxu0 %v1520
        %1522 = vmatprep.subr.mxu0 0.0
        %v1523 = vand.u32 %v1189, 4294901760
        %v1524 = vsub.f32 %v1189, %v1523
        %1525 = vmatpush1.msra.mxu0 %v1524
        %1526 = vmatprep.subr.mxu0 0.0
        %v1527 = vand.u32 %v1190, 4294901760
        %v1528 = vsub.f32 %v1190, %v1527
        %1529 = vmatpush1.msra.mxu0 %v1528
        %1530 = vmatprep.subr.mxu0 0.0
        %v1531 = vand.u32 %v1191, 4294901760
        %v1532 = vsub.f32 %v1191, %v1531
        %1533 = vmatpush1.msra.mxu0 %v1532
        %1534 = vmatprep.subr.mxu0 0.0
        %v1535 = vand.u32 %v1192, 4294901760
        %v1536 = vsub.f32 %v1192, %v1535
        %1537 = vmatpush1.msra.mxu0 %v1536
        %1538 = vmatprep.subr.mxu0 0.0
        %v1539 = vand.u32 %v1193, 4294901760
        %v1540 = vsub.f32 %v1193, %v1539
        %1541 = vmatpush1.msra.mxu0 %v1540
        %1542 = vmatprep.subr.mxu0 0.0
        %v1543 = vand.u32 %v1194, 4294901760
        %v1544 = vsub.f32 %v1194, %v1543
        %1545 = vmatpush1.msra.mxu0 %v1544
        %1546 = vmatprep.subr.mxu0 0.0
        %v1547 = vand.u32 %v1195, 4294901760
        %v1548 = vsub.f32 %v1195, %v1547
        %1549 = vmatpush1.msra.mxu0 %v1548
        %1550 = vmatprep.subr.mxu0 0.0
        %1551 = vmatpush1.msra.mxu0 0.0
        %1552 = vmatprep.subr.mxu0 0.0
        %1553 = vmatpush1.msra.mxu0 0.0
        %1554 = vmatprep.subr.mxu0 0.0
        %1555 = vmatpush1.msra.mxu0 0.0
        %1556 = vmatprep.subr.mxu0 0.0
        %1557 = vmatpush1.msra.mxu0 0.0
        %1558 = vmatprep.subr.mxu0 0.0
        %1559 = vmatpush1.msra.mxu0 0.0
        %1560 = vmatprep.subr.mxu0 0.0
        %1561 = vmatpush1.msra.mxu0 0.0
        %1562 = vmatprep.subr.mxu0 0.0
        %1563 = vmatpush1.msra.mxu0 0.0
        %1564 = vmatprep.subr.mxu0 0.0
        %1565 = vmatpush1.msra.mxu0 0.0
        %1566 = vmatprep.subr.mxu0 0.0
        %1567 = vmatpush1.msra.mxu0 0.0
        %1568 = vmatprep.subr.mxu0 0.0
        %1569 = vmatpush1.msra.mxu0 0.0
        %1570 = vmatprep.subr.mxu0 0.0
        %1571 = vmatpush1.msra.mxu0 0.0
        %1572 = vmatprep.subr.mxu0 0.0
        %1573 = vmatpush1.msra.mxu0 0.0
        %1574 = vmatprep.subr.mxu0 0.0
        %1575 = vmatpush1.msra.mxu0 0.0
        %1576 = vmatprep.subr.mxu0 0.0
        %1577 = vmatpush1.msra.mxu0 0.0
        %1578 = vmatprep.subr.mxu0 0.0
        %1579 = vmatpush1.msra.mxu0 0.0
        %1580 = vmatprep.subr.mxu0 0.0
        %1581 = vmatpush1.msra.mxu0 0.0
        %1582 = vmatprep.mubr.f32.mxu0 0.0
        %v1583 = vand.u32 %v1175, 4294901760
        %v1584 = vsub.f32 %v1175, %v1583
        %1585 = vmatmul.mubr.f32.gmra.mrb[0].mxu0 %v1584
        %v1586 = vpop.f32.mrb[0].mxu0
        %v1587 = vadd.f32 %v1465, %v1586
        %v1588 = vpop.f32.mrb[0].mxu0
        %1589 = vmatprep.mubr.f32.mxu0 0.0
        %v1590 = vand.u32 %v1176, 4294901760
        %v1591 = vsub.f32 %v1176, %v1590
        %1592 = vmatmul.mubr.f32.gmra.mrb[0].mxu0 %v1591
        %v1593 = vpop.f32.mrb[0].mxu0
        %v1594 = vadd.f32 %v1471, %v1593
        %v1595 = vpop.f32.mrb[0].mxu0
        %1596 = vmatprep.mubr.f32.mxu0 0.0
        %v1597 = vand.u32 %v1177, 4294901760
        %v1598 = vsub.f32 %v1177, %v1597
        %1599 = vmatmul.mubr.f32.gmra.mrb[0].mxu0 %v1598
        %v1600 = vpop.f32.mrb[0].mxu0
        %v1601 = vadd.f32 %v1477, %v1600
        %v1602 = vpop.f32.mrb[0].mxu0
        %1603 = vmatprep.mubr.f32.mxu0 0.0
        %v1604 = vand.u32 %v1178, 4294901760
        %v1605 = vsub.f32 %v1178, %v1604
        %1606 = vmatmul.mubr.f32.gmra.mrb[0].mxu0 %v1605
        %v1607 = vpop.f32.mrb[0].mxu0
        %v1608 = vadd.f32 %v1483, %v1607
        %v1609 = vpop.f32.mrb[0].mxu0
        %1610 = vdwg.mxu0
        %1611 = vmatprep.subr.mxu0 0.0
        %v1612 = vand.u32 %v1180, 4294901760
        %1613 = vmatpush1.msra.mxu0 %v1612
        %1614 = vmatprep.subr.mxu0 0.0
        %v1615 = vand.u32 %v1181, 4294901760
        %1616 = vmatpush1.msra.mxu0 %v1615
        %1617 = vmatprep.subr.mxu0 0.0
        %v1618 = vand.u32 %v1182, 4294901760
        %1619 = vmatpush1.msra.mxu0 %v1618
        %1620 = vmatprep.subr.mxu0 0.0
        %v1621 = vand.u32 %v1183, 4294901760
        %1622 = vmatpush1.msra.mxu0 %v1621
        %1623 = vmatprep.subr.mxu0 0.0
        %v1624 = vand.u32 %v1184, 4294901760
        %1625 = vmatpush1.msra.mxu0 %v1624
        %1626 = vmatprep.subr.mxu0 0.0
        %v1627 = vand.u32 %v1185, 4294901760
        %1628 = vmatpush1.msra.mxu0 %v1627
        %1629 = vmatprep.subr.mxu0 0.0
        %v1630 = vand.u32 %v1186, 4294901760
        %1631 = vmatpush1.msra.mxu0 %v1630
        %1632 = vmatprep.subr.mxu0 0.0
        %v1633 = vand.u32 %v1187, 4294901760
        %1634 = vmatpush1.msra.mxu0 %v1633
        %1635 = vmatprep.subr.mxu0 0.0
        %v1636 = vand.u32 %v1188, 4294901760
        %1637 = vmatpush1.msra.mxu0 %v1636
        %1638 = vmatprep.subr.mxu0 0.0
        %v1639 = vand.u32 %v1189, 4294901760
        %1640 = vmatpush1.msra.mxu0 %v1639
        %1641 = vmatprep.subr.mxu0 0.0
        %v1642 = vand.u32 %v1190, 4294901760
        %1643 = vmatpush1.msra.mxu0 %v1642
        %1644 = vmatprep.subr.mxu0 0.0
        %v1645 = vand.u32 %v1191, 4294901760
        %1646 = vmatpush1.msra.mxu0 %v1645
        %1647 = vmatprep.subr.mxu0 0.0
        %v1648 = vand.u32 %v1192, 4294901760
        %1649 = vmatpush1.msra.mxu0 %v1648
        %1650 = vmatprep.subr.mxu0 0.0
        %v1651 = vand.u32 %v1193, 4294901760
        %1652 = vmatpush1.msra.mxu0 %v1651
        %1653 = vmatprep.subr.mxu0 0.0
        %v1654 = vand.u32 %v1194, 4294901760
        %1655 = vmatpush1.msra.mxu0 %v1654
        %1656 = vmatprep.subr.mxu0 0.0
        %v1657 = vand.u32 %v1195, 4294901760
        %1658 = vmatpush1.msra.mxu0 %v1657
        %1659 = vmatprep.subr.mxu0 0.0
        %1660 = vmatpush1.msra.mxu0 0.0
        %1661 = vmatprep.subr.mxu0 0.0
        %1662 = vmatpush1.msra.mxu0 0.0
        %1663 = vmatprep.subr.mxu0 0.0
        %1664 = vmatpush1.msra.mxu0 0.0
        %1665 = vmatprep.subr.mxu0 0.0
        %1666 = vmatpush1.msra.mxu0 0.0
        %1667 = vmatprep.subr.mxu0 0.0
        %1668 = vmatpush1.msra.mxu0 0.0
        %1669 = vmatprep.subr.mxu0 0.0
        %1670 = vmatpush1.msra.mxu0 0.0
        %1671 = vmatprep.subr.mxu0 0.0
        %1672 = vmatpush1.msra.mxu0 0.0
        %1673 = vmatprep.subr.mxu0 0.0
        %1674 = vmatpush1.msra.mxu0 0.0
        %1675 = vmatprep.subr.mxu0 0.0
        %1676 = vmatpush1.msra.mxu0 0.0
        %1677 = vmatprep.subr.mxu0 0.0
        %1678 = vmatpush1.msra.mxu0 0.0
        %1679 = vmatprep.subr.mxu0 0.0
        %1680 = vmatpush1.msra.mxu0 0.0
        %1681 = vmatprep.subr.mxu0 0.0
        %1682 = vmatpush1.msra.mxu0 0.0
        %1683 = vmatprep.subr.mxu0 0.0
        %1684 = vmatpush1.msra.mxu0 0.0
        %1685 = vmatprep.subr.mxu0 0.0
        %1686 = vmatpush1.msra.mxu0 0.0
        %1687 = vmatprep.subr.mxu0 0.0
        %1688 = vmatpush1.msra.mxu0 0.0
        %1689 = vmatprep.subr.mxu0 0.0
        %1690 = vmatpush1.msra.mxu0 0.0
        %1691 = vmatprep.mubr.f32.mxu0 0.0
        %v1692 = vand.u32 %v1175, 4294901760
        %v1693 = vsub.f32 %v1175, %v1692
        %v1694 = vand.u32 %v1693, 4294901760
        %1695 = vmatmul.mubr.f32.gmra.mrb[0].mxu0 %v1694
        %v1696 = vpop.f32.mrb[0].mxu0
        %v1697 = vadd.f32 %v1587, %v1696
        %v1698 = vpop.f32.mrb[0].mxu0
        %1699 = vmatprep.mubr.f32.mxu0 0.0
        %v1700 = vand.u32 %v1176, 4294901760
        %v1701 = vsub.f32 %v1176, %v1700
        %v1702 = vand.u32 %v1701, 4294901760
        %1703 = vmatmul.mubr.f32.gmra.mrb[0].mxu0 %v1702
        %v1704 = vpop.f32.mrb[0].mxu0
        %v1705 = vadd.f32 %v1594, %v1704
        %v1706 = vpop.f32.mrb[0].mxu0
        %1707 = vmatprep.mubr.f32.mxu0 0.0
        %v1708 = vand.u32 %v1177, 4294901760
        %v1709 = vsub.f32 %v1177, %v1708
        %v1710 = vand.u32 %v1709, 4294901760
        %1711 = vmatmul.mubr.f32.gmra.mrb[0].mxu0 %v1710
        %v1712 = vpop.f32.mrb[0].mxu0
        %v1713 = vadd.f32 %v1601, %v1712
        %v1714 = vpop.f32.mrb[0].mxu0
        %1715 = vmatprep.mubr.f32.mxu0 0.0
        %v1716 = vand.u32 %v1178, 4294901760
        %v1717 = vsub.f32 %v1178, %v1716
        %v1718 = vand.u32 %v1717, 4294901760
        %1719 = vmatmul.mubr.f32.gmra.mrb[0].mxu0 %v1718
        %v1720 = vpop.f32.mrb[0].mxu0
        %v1721 = vadd.f32 %v1608, %v1720
        %v1722 = vpop.f32.mrb[0].mxu0
        %1723 = vdwg.mxu0
        %1724 = vmatprep.subr.mxu0 0.0
        %v1725 = vand.u32 %v1180, 4294901760
        %v1726 = vsub.f32 %v1180, %v1725
        %v1727 = vand.u32 %v1726, 4294901760
        %1728 = vmatpush1.msra.mxu0 %v1727
        %1729 = vmatprep.subr.mxu0 0.0
        %v1730 = vand.u32 %v1181, 4294901760
        %v1731 = vsub.f32 %v1181, %v1730
        %v1732 = vand.u32 %v1731, 4294901760
        %1733 = vmatpush1.msra.mxu0 %v1732
        %1734 = vmatprep.subr.mxu0 0.0
        %v1735 = vand.u32 %v1182, 4294901760
        %v1736 = vsub.f32 %v1182, %v1735
        %v1737 = vand.u32 %v1736, 4294901760
        %1738 = vmatpush1.msra.mxu0 %v1737
        %1739 = vmatprep.subr.mxu0 0.0
        %v1740 = vand.u32 %v1183, 4294901760
        %v1741 = vsub.f32 %v1183, %v1740
        %v1742 = vand.u32 %v1741, 4294901760
        %1743 = vmatpush1.msra.mxu0 %v1742
        %1744 = vmatprep.subr.mxu0 0.0
        %v1745 = vand.u32 %v1184, 4294901760
        %v1746 = vsub.f32 %v1184, %v1745
        %v1747 = vand.u32 %v1746, 4294901760
        %1748 = vmatpush1.msra.mxu0 %v1747
        %1749 = vmatprep.subr.mxu0 0.0
        %v1750 = vand.u32 %v1185, 4294901760
        %v1751 = vsub.f32 %v1185, %v1750
        %v1752 = vand.u32 %v1751, 4294901760
        %1753 = vmatpush1.msra.mxu0 %v1752
        %1754 = vmatprep.subr.mxu0 0.0
        %v1755 = vand.u32 %v1186, 4294901760
        %v1756 = vsub.f32 %v1186, %v1755
        %v1757 = vand.u32 %v1756, 4294901760
        %1758 = vmatpush1.msra.mxu0 %v1757
        %1759 = vmatprep.subr.mxu0 0.0
        %v1760 = vand.u32 %v1187, 4294901760
        %v1761 = vsub.f32 %v1187, %v1760
        %v1762 = vand.u32 %v1761, 4294901760
        %1763 = vmatpush1.msra.mxu0 %v1762
        %1764 = vmatprep.subr.mxu0 0.0
        %v1765 = vand.u32 %v1188, 4294901760
        %v1766 = vsub.f32 %v1188, %v1765
        %v1767 = vand.u32 %v1766, 4294901760
        %1768 = vmatpush1.msra.mxu0 %v1767
        %1769 = vmatprep.subr.mxu0 0.0
        %v1770 = vand.u32 %v1189, 4294901760
        %v1771 = vsub.f32 %v1189, %v1770
        %v1772 = vand.u32 %v1771, 4294901760
        %1773 = vmatpush1.msra.mxu0 %v1772
        %1774 = vmatprep.subr.mxu0 0.0
        %v1775 = vand.u32 %v1190, 4294901760
        %v1776 = vsub.f32 %v1190, %v1775
        %v1777 = vand.u32 %v1776, 4294901760
        %1778 = vmatpush1.msra.mxu0 %v1777
        %1779 = vmatprep.subr.mxu0 0.0
        %v1780 = vand.u32 %v1191, 4294901760
        %v1781 = vsub.f32 %v1191, %v1780
        %v1782 = vand.u32 %v1781, 4294901760
        %1783 = vmatpush1.msra.mxu0 %v1782
        %1784 = vmatprep.subr.mxu0 0.0
        %v1785 = vand.u32 %v1192, 4294901760
        %v1786 = vsub.f32 %v1192, %v1785
        %v1787 = vand.u32 %v1786, 4294901760
        %1788 = vmatpush1.msra.mxu0 %v1787
        %1789 = vmatprep.subr.mxu0 0.0
        %v1790 = vand.u32 %v1193, 4294901760
        %v1791 = vsub.f32 %v1193, %v1790
        %v1792 = vand.u32 %v1791, 4294901760
        %1793 = vmatpush1.msra.mxu0 %v1792
        %1794 = vmatprep.subr.mxu0 0.0
        %v1795 = vand.u32 %v1194, 4294901760
        %v1796 = vsub.f32 %v1194, %v1795
        %v1797 = vand.u32 %v1796, 4294901760
        %1798 = vmatpush1.msra.mxu0 %v1797
        %1799 = vmatprep.subr.mxu0 0.0
        %v1800 = vand.u32 %v1195, 4294901760
        %v1801 = vsub.f32 %v1195, %v1800
        %v1802 = vand.u32 %v1801, 4294901760
        %1803 = vmatpush1.msra.mxu0 %v1802
        %1804 = vmatprep.subr.mxu0 0.0
        %1805 = vmatpush1.msra.mxu0 0.0
        %1806 = vmatprep.subr.mxu0 0.0
        %1807 = vmatpush1.msra.mxu0 0.0
        %1808 = vmatprep.subr.mxu0 0.0
        %1809 = vmatpush1.msra.mxu0 0.0
        %1810 = vmatprep.subr.mxu0 0.0
        %1811 = vmatpush1.msra.mxu0 0.0
        %1812 = vmatprep.subr.mxu0 0.0
        %1813 = vmatpush1.msra.mxu0 0.0
        %1814 = vmatprep.subr.mxu0 0.0
        %1815 = vmatpush1.msra.mxu0 0.0
        %1816 = vmatprep.subr.mxu0 0.0
        %1817 = vmatpush1.msra.mxu0 0.0
        %1818 = vmatprep.subr.mxu0 0.0
        %1819 = vmatpush1.msra.mxu0 0.0
        %1820 = vmatprep.subr.mxu0 0.0
        %1821 = vmatpush1.msra.mxu0 0.0
        %1822 = vmatprep.subr.mxu0 0.0
        %1823 = vmatpush1.msra.mxu0 0.0
        %1824 = vmatprep.subr.mxu0 0.0
        %1825 = vmatpush1.msra.mxu0 0.0
        %1826 = vmatprep.subr.mxu0 0.0
        %1827 = vmatpush1.msra.mxu0 0.0
        %1828 = vmatprep.subr.mxu0 0.0
        %1829 = vmatpush1.msra.mxu0 0.0
        %1830 = vmatprep.subr.mxu0 0.0
        %1831 = vmatpush1.msra.mxu0 0.0
        %1832 = vmatprep.subr.mxu0 0.0
        %1833 = vmatpush1.msra.mxu0 0.0
        %1834 = vmatprep.subr.mxu0 0.0
        %1835 = vmatpush1.msra.mxu0 0.0
        %1836 = vmatprep.mubr.f32.mxu0 0.0
        %v1837 = vand.u32 %v1175, 4294901760
        %1838 = vmatmul.mubr.f32.gmra.mrb[0].mxu0 %v1837
        %v1839 = vpop.f32.mrb[0].mxu0
        %v1840 = vadd.f32 %v1697, %v1839
        %v1841 = vpop.f32.mrb[0].mxu0
        %1842 = vmatprep.mubr.f32.mxu0 0.0
        %v1843 = vand.u32 %v1176, 4294901760
        %1844 = vmatmul.mubr.f32.gmra.mrb[0].mxu0 %v1843
        %v1845 = vpop.f32.mrb[0].mxu0
        %v1846 = vadd.f32 %v1705, %v1845
        %v1847 = vpop.f32.mrb[0].mxu0
        %1848 = vmatprep.mubr.f32.mxu0 0.0
        %v1849 = vand.u32 %v1177, 4294901760
        %1850 = vmatmul.mubr.f32.gmra.mrb[0].mxu0 %v1849
        %v1851 = vpop.f32.mrb[0].mxu0
        %v1852 = vadd.f32 %v1713, %v1851
        %v1853 = vpop.f32.mrb[0].mxu0
        %1854 = vmatprep.mubr.f32.mxu0 0.0
        %v1855 = vand.u32 %v1178, 4294901760
        %1856 = vmatmul.mubr.f32.gmra.mrb[0].mxu0 %v1855
        %v1857 = vpop.f32.mrb[0].mxu0
        %v1858 = vadd.f32 %v1721, %v1857
        %v1859 = vpop.f32.mrb[0].mxu0
        %1860 = vdwg.mxu0
        %1861 = vmatprep.subr.mxu0 0.0
        %v1862 = vand.u32 %v1180, 4294901760
        %1863 = vmatpush1.msra.mxu0 %v1862
        %1864 = vmatprep.subr.mxu0 0.0
        %v1865 = vand.u32 %v1181, 4294901760
        %1866 = vmatpush1.msra.mxu0 %v1865
        %1867 = vmatprep.subr.mxu0 0.0
        %v1868 = vand.u32 %v1182, 4294901760
        %1869 = vmatpush1.msra.mxu0 %v1868
        %1870 = vmatprep.subr.mxu0 0.0
        %v1871 = vand.u32 %v1183, 4294901760
        %1872 = vmatpush1.msra.mxu0 %v1871
        %1873 = vmatprep.subr.mxu0 0.0
        %v1874 = vand.u32 %v1184, 4294901760
        %1875 = vmatpush1.msra.mxu0 %v1874
        %1876 = vmatprep.subr.mxu0 0.0
        %v1877 = vand.u32 %v1185, 4294901760
        %1878 = vmatpush1.msra.mxu0 %v1877
        %1879 = vmatprep.subr.mxu0 0.0
        %v1880 = vand.u32 %v1186, 4294901760
        %1881 = vmatpush1.msra.mxu0 %v1880
        %1882 = vmatprep.subr.mxu0 0.0
        %v1883 = vand.u32 %v1187, 4294901760
        %1884 = vmatpush1.msra.mxu0 %v1883
        %1885 = vmatprep.subr.mxu0 0.0
        %v1886 = vand.u32 %v1188, 4294901760
        %1887 = vmatpush1.msra.mxu0 %v1886
        %1888 = vmatprep.subr.mxu0 0.0
        %v1889 = vand.u32 %v1189, 4294901760
        %1890 = vmatpush1.msra.mxu0 %v1889
        %1891 = vmatprep.subr.mxu0 0.0
        %v1892 = vand.u32 %v1190, 4294901760
        %1893 = vmatpush1.msra.mxu0 %v1892
        %1894 = vmatprep.subr.mxu0 0.0
        %v1895 = vand.u32 %v1191, 4294901760
        %1896 = vmatpush1.msra.mxu0 %v1895
        %1897 = vmatprep.subr.mxu0 0.0
        %v1898 = vand.u32 %v1192, 4294901760
        %1899 = vmatpush1.msra.mxu0 %v1898
        %1900 = vmatprep.subr.mxu0 0.0
        %v1901 = vand.u32 %v1193, 4294901760
        %1902 = vmatpush1.msra.mxu0 %v1901
        %1903 = vmatprep.subr.mxu0 0.0
        %v1904 = vand.u32 %v1194, 4294901760
        %1905 = vmatpush1.msra.mxu0 %v1904
        %1906 = vmatprep.subr.mxu0 0.0
        %v1907 = vand.u32 %v1195, 4294901760
        %1908 = vmatpush1.msra.mxu0 %v1907
        %1909 = vmatprep.subr.mxu0 0.0
        %1910 = vmatpush1.msra.mxu0 0.0
        %1911 = vmatprep.subr.mxu0 0.0
        %1912 = vmatpush1.msra.mxu0 0.0
        %1913 = vmatprep.subr.mxu0 0.0
        %1914 = vmatpush1.msra.mxu0 0.0
        %1915 = vmatprep.subr.mxu0 0.0
        %1916 = vmatpush1.msra.mxu0 0.0
        %1917 = vmatprep.subr.mxu0 0.0
        %1918 = vmatpush1.msra.mxu0 0.0
        %1919 = vmatprep.subr.mxu0 0.0
        %1920 = vmatpush1.msra.mxu0 0.0
        %1921 = vmatprep.subr.mxu0 0.0
        %1922 = vmatpush1.msra.mxu0 0.0
        %1923 = vmatprep.subr.mxu0 0.0
        %1924 = vmatpush1.msra.mxu0 0.0
        %1925 = vmatprep.subr.mxu0 0.0
        %1926 = vmatpush1.msra.mxu0 0.0
        %1927 = vmatprep.subr.mxu0 0.0
        %1928 = vmatpush1.msra.mxu0 0.0
        %1929 = vmatprep.subr.mxu0 0.0
        %1930 = vmatpush1.msra.mxu0 0.0
        %1931 = vmatprep.subr.mxu0 0.0
        %1932 = vmatpush1.msra.mxu0 0.0
        %1933 = vmatprep.subr.mxu0 0.0
        %1934 = vmatpush1.msra.mxu0 0.0
        %1935 = vmatprep.subr.mxu0 0.0
        %1936 = vmatpush1.msra.mxu0 0.0
        %1937 = vmatprep.subr.mxu0 0.0
        %1938 = vmatpush1.msra.mxu0 0.0
        %1939 = vmatprep.subr.mxu0 0.0
        %1940 = vmatpush1.msra.mxu0 0.0
        %1941 = vmatprep.mubr.f32.mxu0 0.0
        %v1942 = vand.u32 %v1175, 4294901760
        %1943 = vmatmul.mubr.f32.gmra.mrb[0].mxu0 %v1942
        %v1944 = vpop.f32.mrb[0].mxu0
        %v1945 = vadd.f32 %v1840, %v1944
        %v1946 = vpop.f32.mrb[0].mxu0
        %1947 = vmatprep.mubr.f32.mxu0 0.0
        %v1948 = vand.u32 %v1176, 4294901760
        %1949 = vmatmul.mubr.f32.gmra.mrb[0].mxu0 %v1948
        %v1950 = vpop.f32.mrb[0].mxu0
        %v1951 = vadd.f32 %v1846, %v1950
        %v1952 = vpop.f32.mrb[0].mxu0
        %1953 = vmatprep.mubr.f32.mxu0 0.0
        %v1954 = vand.u32 %v1177, 4294901760
        %1955 = vmatmul.mubr.f32.gmra.mrb[0].mxu0 %v1954
        %v1956 = vpop.f32.mrb[0].mxu0
        %v1957 = vadd.f32 %v1852, %v1956
        %v1958 = vpop.f32.mrb[0].mxu0
        %1959 = vmatprep.mubr.f32.mxu0 0.0
        %v1960 = vand.u32 %v1178, 4294901760
        %1961 = vmatmul.mubr.f32.gmra.mrb[0].mxu0 %v1960
        %v1962 = vpop.f32.mrb[0].mxu0
        %v1963 = vadd.f32 %v1858, %v1962
        %v1964 = vpop.f32.mrb[0].mxu0
        %1965 = vdwg.mxu0
        %1966 = vmatprep.subr.mxu0 0.0
        %v1967 = vand.u32 %v1159, 4294901760
        %1968 = vmatpush1.msra.mxu0 %v1967
        %1969 = vmatprep.subr.mxu0 0.0
        %v1970 = vand.u32 %v1160, 4294901760
        %1971 = vmatpush1.msra.mxu0 %v1970
        %1972 = vmatprep.subr.mxu0 0.0
        %v1973 = vand.u32 %v1161, 4294901760
        %1974 = vmatpush1.msra.mxu0 %v1973
        %1975 = vmatprep.subr.mxu0 0.0
        %v1976 = vand.u32 %v1162, 4294901760
        %1977 = vmatpush1.msra.mxu0 %v1976
        %1978 = vmatprep.subr.mxu0 0.0
        %v1979 = vand.u32 %v1163, 4294901760
        %1980 = vmatpush1.msra.mxu0 %v1979
        %1981 = vmatprep.subr.mxu0 0.0
        %v1982 = vand.u32 %v1164, 4294901760
        %1983 = vmatpush1.msra.mxu0 %v1982
        %1984 = vmatprep.subr.mxu0 0.0
        %v1985 = vand.u32 %v1165, 4294901760
        %1986 = vmatpush1.msra.mxu0 %v1985
        %1987 = vmatprep.subr.mxu0 0.0
        %v1988 = vand.u32 %v1166, 4294901760
        %1989 = vmatpush1.msra.mxu0 %v1988
        %1990 = vmatprep.subr.mxu0 0.0
        %v1991 = vand.u32 %v1167, 4294901760
        %1992 = vmatpush1.msra.mxu0 %v1991
        %1993 = vmatprep.subr.mxu0 0.0
        %v1994 = vand.u32 %v1168, 4294901760
        %1995 = vmatpush1.msra.mxu0 %v1994
        %1996 = vmatprep.subr.mxu0 0.0
        %v1997 = vand.u32 %v1169, 4294901760
        %1998 = vmatpush1.msra.mxu0 %v1997
        %1999 = vmatprep.subr.mxu0 0.0
        %v2000 = vand.u32 %v1170, 4294901760
        %2001 = vmatpush1.msra.mxu0 %v2000
        %2002 = vmatprep.subr.mxu0 0.0
        %v2003 = vand.u32 %v1171, 4294901760
        %2004 = vmatpush1.msra.mxu0 %v2003
        %2005 = vmatprep.subr.mxu0 0.0
        %v2006 = vand.u32 %v1172, 4294901760
        %2007 = vmatpush1.msra.mxu0 %v2006
        %2008 = vmatprep.subr.mxu0 0.0
        %v2009 = vand.u32 %v1173, 4294901760
        %2010 = vmatpush1.msra.mxu0 %v2009
        %2011 = vmatprep.subr.mxu0 0.0
        %v2012 = vand.u32 %v1174, 4294901760
        %2013 = vmatpush1.msra.mxu0 %v2012
        %2014 = vmatprep.subr.mxu0 0.0
        %2015 = vmatpush1.msra.mxu0 0.0
        %2016 = vmatprep.subr.mxu0 0.0
        %2017 = vmatpush1.msra.mxu0 0.0
        %2018 = vmatprep.subr.mxu0 0.0
        %2019 = vmatpush1.msra.mxu0 0.0
        %2020 = vmatprep.subr.mxu0 0.0
        %2021 = vmatpush1.msra.mxu0 0.0
        %2022 = vmatprep.subr.mxu0 0.0
        %2023 = vmatpush1.msra.mxu0 0.0
        %2024 = vmatprep.subr.mxu0 0.0
        %2025 = vmatpush1.msra.mxu0 0.0
        %2026 = vmatprep.subr.mxu0 0.0
        %2027 = vmatpush1.msra.mxu0 0.0
        %2028 = vmatprep.subr.mxu0 0.0
        %2029 = vmatpush1.msra.mxu0 0.0
        %2030 = vmatprep.subr.mxu0 0.0
        %2031 = vmatpush1.msra.mxu0 0.0
        %2032 = vmatprep.subr.mxu0 0.0
        %2033 = vmatpush1.msra.mxu0 0.0
        %2034 = vmatprep.subr.mxu0 0.0
        %2035 = vmatpush1.msra.mxu0 0.0
        %2036 = vmatprep.subr.mxu0 0.0
        %2037 = vmatpush1.msra.mxu0 0.0
        %2038 = vmatprep.subr.mxu0 0.0
        %2039 = vmatpush1.msra.mxu0 0.0
        %2040 = vmatprep.subr.mxu0 0.0
        %2041 = vmatpush1.msra.mxu0 0.0
        %2042 = vmatprep.subr.mxu0 0.0
        %2043 = vmatpush1.msra.mxu0 0.0
        %2044 = vmatprep.subr.mxu0 0.0
        %2045 = vmatpush1.msra.mxu0 0.0
        %2046 = vmatprep.mubr.f32.mxu0 0.0
        %v2047 = vand.u32 %v1155, 4294901760
        %v2048 = vsub.f32 %v1155, %v2047
        %v2049 = vand.u32 %v2048, 4294901760
        %v2050 = vsub.f32 %v2048, %v2049
        %v2051 = vand.u32 %v2050, 4294901760
        %2052 = vmatmul.mubr.f32.gmra.mrb[0].mxu0 %v2051
        %v2053 = vpop.f32.mrb[0].mxu0
        %v2054 = vadd.f32 %v1945, %v2053
        %v2055 = vpop.f32.mrb[0].mxu0
        %2056 = vmatprep.mubr.f32.mxu0 0.0
        %v2057 = vand.u32 %v1156, 4294901760
        %v2058 = vsub.f32 %v1156, %v2057
        %v2059 = vand.u32 %v2058, 4294901760
        %v2060 = vsub.f32 %v2058, %v2059
        %v2061 = vand.u32 %v2060, 4294901760
        %2062 = vmatmul.mubr.f32.gmra.mrb[0].mxu0 %v2061
        %v2063 = vpop.f32.mrb[0].mxu0
        %v2064 = vadd.f32 %v1951, %v2063
        %v2065 = vpop.f32.mrb[0].mxu0
        %2066 = vmatprep.mubr.f32.mxu0 0.0
        %v2067 = vand.u32 %v1157, 4294901760
        %v2068 = vsub.f32 %v1157, %v2067
        %v2069 = vand.u32 %v2068, 4294901760
        %v2070 = vsub.f32 %v2068, %v2069
        %v2071 = vand.u32 %v2070, 4294901760
        %2072 = vmatmul.mubr.f32.gmra.mrb[0].mxu0 %v2071
        %v2073 = vpop.f32.mrb[0].mxu0
        %v2074 = vadd.f32 %v1957, %v2073
        %v2075 = vpop.f32.mrb[0].mxu0
        %2076 = vmatprep.mubr.f32.mxu0 0.0
        %v2077 = vand.u32 %v1158, 4294901760
        %v2078 = vsub.f32 %v1158, %v2077
        %v2079 = vand.u32 %v2078, 4294901760
        %v2080 = vsub.f32 %v2078, %v2079
        %v2081 = vand.u32 %v2080, 4294901760
        %2082 = vmatmul.mubr.f32.gmra.mrb[0].mxu0 %v2081
        %v2083 = vpop.f32.mrb[0].mxu0
        %v2084 = vadd.f32 %v1963, %v2083
        %v2085 = vpop.f32.mrb[0].mxu0
        %2086 = vdwg.mxu0
        %2087 = vmatprep.subr.mxu0 0.0
        %v2088 = vand.u32 %v1159, 4294901760
        %v2089 = vsub.f32 %v1159, %v2088
        %v2090 = vand.u32 %v2089, 4294901760
        %v2091 = vsub.f32 %v2089, %v2090
        %v2092 = vand.u32 %v2091, 4294901760
        %2093 = vmatpush1.msra.mxu0 %v2092
        %2094 = vmatprep.subr.mxu0 0.0
        %v2095 = vand.u32 %v1160, 4294901760
        %v2096 = vsub.f32 %v1160, %v2095
        %v2097 = vand.u32 %v2096, 4294901760
        %v2098 = vsub.f32 %v2096, %v2097
        %v2099 = vand.u32 %v2098, 4294901760
        %2100 = vmatpush1.msra.mxu0 %v2099
        %2101 = vmatprep.subr.mxu0 0.0
        %v2102 = vand.u32 %v1161, 4294901760
        %v2103 = vsub.f32 %v1161, %v2102
        %v2104 = vand.u32 %v2103, 4294901760
        %v2105 = vsub.f32 %v2103, %v2104
        %v2106 = vand.u32 %v2105, 4294901760
        %2107 = vmatpush1.msra.mxu0 %v2106
        %2108 = vmatprep.subr.mxu0 0.0
        %v2109 = vand.u32 %v1162, 4294901760
        %v2110 = vsub.f32 %v1162, %v2109
        %v2111 = vand.u32 %v2110, 4294901760
        %v2112 = vsub.f32 %v2110, %v2111
        %v2113 = vand.u32 %v2112, 4294901760
        %2114 = vmatpush1.msra.mxu0 %v2113
        %2115 = vmatprep.subr.mxu0 0.0
        %v2116 = vand.u32 %v1163, 4294901760
        %v2117 = vsub.f32 %v1163, %v2116
        %v2118 = vand.u32 %v2117, 4294901760
        %v2119 = vsub.f32 %v2117, %v2118
        %v2120 = vand.u32 %v2119, 4294901760
        %2121 = vmatpush1.msra.mxu0 %v2120
        %2122 = vmatprep.subr.mxu0 0.0
        %v2123 = vand.u32 %v1164, 4294901760
        %v2124 = vsub.f32 %v1164, %v2123
        %v2125 = vand.u32 %v2124, 4294901760
        %v2126 = vsub.f32 %v2124, %v2125
        %v2127 = vand.u32 %v2126, 4294901760
        %2128 = vmatpush1.msra.mxu0 %v2127
        %2129 = vmatprep.subr.mxu0 0.0
        %v2130 = vand.u32 %v1165, 4294901760
        %v2131 = vsub.f32 %v1165, %v2130
        %v2132 = vand.u32 %v2131, 4294901760
        %v2133 = vsub.f32 %v2131, %v2132
        %v2134 = vand.u32 %v2133, 4294901760
        %2135 = vmatpush1.msra.mxu0 %v2134
        %2136 = vmatprep.subr.mxu0 0.0
        %v2137 = vand.u32 %v1166, 4294901760
        %v2138 = vsub.f32 %v1166, %v2137
        %v2139 = vand.u32 %v2138, 4294901760
        %v2140 = vsub.f32 %v2138, %v2139
        %v2141 = vand.u32 %v2140, 4294901760
        %2142 = vmatpush1.msra.mxu0 %v2141
        %2143 = vmatprep.subr.mxu0 0.0
        %v2144 = vand.u32 %v1167, 4294901760
        %v2145 = vsub.f32 %v1167, %v2144
        %v2146 = vand.u32 %v2145, 4294901760
        %v2147 = vsub.f32 %v2145, %v2146
        %v2148 = vand.u32 %v2147, 4294901760
        %2149 = vmatpush1.msra.mxu0 %v2148
        %2150 = vmatprep.subr.mxu0 0.0
        %v2151 = vand.u32 %v1168, 4294901760
        %v2152 = vsub.f32 %v1168, %v2151
        %v2153 = vand.u32 %v2152, 4294901760
        %v2154 = vsub.f32 %v2152, %v2153
        %v2155 = vand.u32 %v2154, 4294901760
        %2156 = vmatpush1.msra.mxu0 %v2155
        %2157 = vmatprep.subr.mxu0 0.0
        %v2158 = vand.u32 %v1169, 4294901760
        %v2159 = vsub.f32 %v1169, %v2158
        %v2160 = vand.u32 %v2159, 4294901760
        %v2161 = vsub.f32 %v2159, %v2160
        %v2162 = vand.u32 %v2161, 4294901760
        %2163 = vmatpush1.msra.mxu0 %v2162
        %2164 = vmatprep.subr.mxu0 0.0
        %v2165 = vand.u32 %v1170, 4294901760
        %v2166 = vsub.f32 %v1170, %v2165
        %v2167 = vand.u32 %v2166, 4294901760
        %v2168 = vsub.f32 %v2166, %v2167
        %v2169 = vand.u32 %v2168, 4294901760
        %2170 = vmatpush1.msra.mxu0 %v2169
        %2171 = vmatprep.subr.mxu0 0.0
        %v2172 = vand.u32 %v1171, 4294901760
        %v2173 = vsub.f32 %v1171, %v2172
        %v2174 = vand.u32 %v2173, 4294901760
        %v2175 = vsub.f32 %v2173, %v2174
        %v2176 = vand.u32 %v2175, 4294901760
        %2177 = vmatpush1.msra.mxu0 %v2176
        %2178 = vmatprep.subr.mxu0 0.0
        %v2179 = vand.u32 %v1172, 4294901760
        %v2180 = vsub.f32 %v1172, %v2179
        %v2181 = vand.u32 %v2180, 4294901760
        %v2182 = vsub.f32 %v2180, %v2181
        %v2183 = vand.u32 %v2182, 4294901760
        %2184 = vmatpush1.msra.mxu0 %v2183
        %2185 = vmatprep.subr.mxu0 0.0
        %v2186 = vand.u32 %v1173, 4294901760
        %v2187 = vsub.f32 %v1173, %v2186
        %v2188 = vand.u32 %v2187, 4294901760
        %v2189 = vsub.f32 %v2187, %v2188
        %v2190 = vand.u32 %v2189, 4294901760
        %2191 = vmatpush1.msra.mxu0 %v2190
        %2192 = vmatprep.subr.mxu0 0.0
        %v2193 = vand.u32 %v1174, 4294901760
        %v2194 = vsub.f32 %v1174, %v2193
        %v2195 = vand.u32 %v2194, 4294901760
        %v2196 = vsub.f32 %v2194, %v2195
        %v2197 = vand.u32 %v2196, 4294901760
        %2198 = vmatpush1.msra.mxu0 %v2197
        %2199 = vmatprep.subr.mxu0 0.0
        %2200 = vmatpush1.msra.mxu0 0.0
        %2201 = vmatprep.subr.mxu0 0.0
        %2202 = vmatpush1.msra.mxu0 0.0
        %2203 = vmatprep.subr.mxu0 0.0
        %2204 = vmatpush1.msra.mxu0 0.0
        %2205 = vmatprep.subr.mxu0 0.0
        %2206 = vmatpush1.msra.mxu0 0.0
        %2207 = vmatprep.subr.mxu0 0.0
        %2208 = vmatpush1.msra.mxu0 0.0
        %2209 = vmatprep.subr.mxu0 0.0
        %2210 = vmatpush1.msra.mxu0 0.0
        %2211 = vmatprep.subr.mxu0 0.0
        %2212 = vmatpush1.msra.mxu0 0.0
        %2213 = vmatprep.subr.mxu0 0.0
        %2214 = vmatpush1.msra.mxu0 0.0
        %2215 = vmatprep.subr.mxu0 0.0
        %2216 = vmatpush1.msra.mxu0 0.0
        %2217 = vmatprep.subr.mxu0 0.0
        %2218 = vmatpush1.msra.mxu0 0.0
        %2219 = vmatprep.subr.mxu0 0.0
        %2220 = vmatpush1.msra.mxu0 0.0
        %2221 = vmatprep.subr.mxu0 0.0
        %2222 = vmatpush1.msra.mxu0 0.0
        %2223 = vmatprep.subr.mxu0 0.0
        %2224 = vmatpush1.msra.mxu0 0.0
        %2225 = vmatprep.subr.mxu0 0.0
        %2226 = vmatpush1.msra.mxu0 0.0
        %2227 = vmatprep.subr.mxu0 0.0
        %2228 = vmatpush1.msra.mxu0 0.0
        %2229 = vmatprep.subr.mxu0 0.0
        %2230 = vmatpush1.msra.mxu0 0.0
        %2231 = vmatprep.mubr.f32.mxu0 0.0
        %v2232 = vand.u32 %v1155, 4294901760
        %2233 = vmatmul.mubr.f32.gmra.mrb[0].mxu0 %v2232
        %v2234 = vpop.f32.mrb[0].mxu0
        %v2235 = vadd.f32 %v2054, %v2234
        %v2236 = vpop.f32.mrb[0].mxu0
        %2237 = vmatprep.mubr.f32.mxu0 0.0
        %v2238 = vand.u32 %v1156, 4294901760
        %2239 = vmatmul.mubr.f32.gmra.mrb[0].mxu0 %v2238
        %v2240 = vpop.f32.mrb[0].mxu0
        %v2241 = vadd.f32 %v2064, %v2240
        %v2242 = vpop.f32.mrb[0].mxu0
        %2243 = vmatprep.mubr.f32.mxu0 0.0
        %v2244 = vand.u32 %v1157, 4294901760
        %2245 = vmatmul.mubr.f32.gmra.mrb[0].mxu0 %v2244
        %v2246 = vpop.f32.mrb[0].mxu0
        %v2247 = vadd.f32 %v2074, %v2246
        %v2248 = vpop.f32.mrb[0].mxu0
        %2249 = vmatprep.mubr.f32.mxu0 0.0
        %v2250 = vand.u32 %v1158, 4294901760
        %2251 = vmatmul.mubr.f32.gmra.mrb[0].mxu0 %v2250
        %v2252 = vpop.f32.mrb[0].mxu0
        %v2253 = vadd.f32 %v2084, %v2252
        %v2254 = vpop.f32.mrb[0].mxu0
        %2255 = vdwg.mxu0
        %2256 = vmatprep.subr.mxu0 0.0
        %v2257 = vand.u32 %v1159, 4294901760
        %v2258 = vsub.f32 %v1159, %v2257
        %2259 = vmatpush1.msra.mxu0 %v2258
        %2260 = vmatprep.subr.mxu0 0.0
        %v2261 = vand.u32 %v1160, 4294901760
        %v2262 = vsub.f32 %v1160, %v2261
        %2263 = vmatpush1.msra.mxu0 %v2262
        %2264 = vmatprep.subr.mxu0 0.0
        %v2265 = vand.u32 %v1161, 4294901760
        %v2266 = vsub.f32 %v1161, %v2265
        %2267 = vmatpush1.msra.mxu0 %v2266
        %2268 = vmatprep.subr.mxu0 0.0
        %v2269 = vand.u32 %v1162, 4294901760
        %v2270 = vsub.f32 %v1162, %v2269
        %2271 = vmatpush1.msra.mxu0 %v2270
        %2272 = vmatprep.subr.mxu0 0.0
        %v2273 = vand.u32 %v1163, 4294901760
        %v2274 = vsub.f32 %v1163, %v2273
        %2275 = vmatpush1.msra.mxu0 %v2274
        %2276 = vmatprep.subr.mxu0 0.0
        %v2277 = vand.u32 %v1164, 4294901760
        %v2278 = vsub.f32 %v1164, %v2277
        %2279 = vmatpush1.msra.mxu0 %v2278
        %2280 = vmatprep.subr.mxu0 0.0
        %v2281 = vand.u32 %v1165, 4294901760
        %v2282 = vsub.f32 %v1165, %v2281
        %2283 = vmatpush1.msra.mxu0 %v2282
        %2284 = vmatprep.subr.mxu0 0.0
        %v2285 = vand.u32 %v1166, 4294901760
        %v2286 = vsub.f32 %v1166, %v2285
        %2287 = vmatpush1.msra.mxu0 %v2286
        %2288 = vmatprep.subr.mxu0 0.0
        %v2289 = vand.u32 %v1167, 4294901760
        %v2290 = vsub.f32 %v1167, %v2289
        %2291 = vmatpush1.msra.mxu0 %v2290
        %2292 = vmatprep.subr.mxu0 0.0
        %v2293 = vand.u32 %v1168, 4294901760
        %v2294 = vsub.f32 %v1168, %v2293
        %2295 = vmatpush1.msra.mxu0 %v2294
        %2296 = vmatprep.subr.mxu0 0.0
        %v2297 = vand.u32 %v1169, 4294901760
        %v2298 = vsub.f32 %v1169, %v2297
        %2299 = vmatpush1.msra.mxu0 %v2298
        %2300 = vmatprep.subr.mxu0 0.0
        %v2301 = vand.u32 %v1170, 4294901760
        %v2302 = vsub.f32 %v1170, %v2301
        %2303 = vmatpush1.msra.mxu0 %v2302
        %2304 = vmatprep.subr.mxu0 0.0
        %v2305 = vand.u32 %v1171, 4294901760
        %v2306 = vsub.f32 %v1171, %v2305
        %2307 = vmatpush1.msra.mxu0 %v2306
        %2308 = vmatprep.subr.mxu0 0.0
        %v2309 = vand.u32 %v1172, 4294901760
        %v2310 = vsub.f32 %v1172, %v2309
        %2311 = vmatpush1.msra.mxu0 %v2310
        %2312 = vmatprep.subr.mxu0 0.0
        %v2313 = vand.u32 %v1173, 4294901760
        %v2314 = vsub.f32 %v1173, %v2313
        %2315 = vmatpush1.msra.mxu0 %v2314
        %2316 = vmatprep.subr.mxu0 0.0
        %v2317 = vand.u32 %v1174, 4294901760
        %v2318 = vsub.f32 %v1174, %v2317
        %2319 = vmatpush1.msra.mxu0 %v2318
        %2320 = vmatprep.subr.mxu0 0.0
        %2321 = vmatpush1.msra.mxu0 0.0
        %2322 = vmatprep.subr.mxu0 0.0
        %2323 = vmatpush1.msra.mxu0 0.0
        %2324 = vmatprep.subr.mxu0 0.0
        %2325 = vmatpush1.msra.mxu0 0.0
        %2326 = vmatprep.subr.mxu0 0.0
        %2327 = vmatpush1.msra.mxu0 0.0
        %2328 = vmatprep.subr.mxu0 0.0
        %2329 = vmatpush1.msra.mxu0 0.0
        %2330 = vmatprep.subr.mxu0 0.0
        %2331 = vmatpush1.msra.mxu0 0.0
        %2332 = vmatprep.subr.mxu0 0.0
        %2333 = vmatpush1.msra.mxu0 0.0
        %2334 = vmatprep.subr.mxu0 0.0
        %2335 = vmatpush1.msra.mxu0 0.0
        %2336 = vmatprep.subr.mxu0 0.0
        %2337 = vmatpush1.msra.mxu0 0.0
        %2338 = vmatprep.subr.mxu0 0.0
        %2339 = vmatpush1.msra.mxu0 0.0
        %2340 = vmatprep.subr.mxu0 0.0
        %2341 = vmatpush1.msra.mxu0 0.0
        %2342 = vmatprep.subr.mxu0 0.0
        %2343 = vmatpush1.msra.mxu0 0.0
        %2344 = vmatprep.subr.mxu0 0.0
        %2345 = vmatpush1.msra.mxu0 0.0
        %2346 = vmatprep.subr.mxu0 0.0
        %2347 = vmatpush1.msra.mxu0 0.0
        %2348 = vmatprep.subr.mxu0 0.0
        %2349 = vmatpush1.msra.mxu0 0.0
        %2350 = vmatprep.subr.mxu0 0.0
        %2351 = vmatpush1.msra.mxu0 0.0
        %2352 = vmatprep.mubr.f32.mxu0 0.0
        %v2353 = vand.u32 %v1155, 4294901760
        %v2354 = vsub.f32 %v1155, %v2353
        %2355 = vmatmul.mubr.f32.gmra.mrb[0].mxu0 %v2354
        %v2356 = vpop.f32.mrb[0].mxu0
        %v2357 = vadd.f32 %v2235, %v2356
        %v2358 = vpop.f32.mrb[0].mxu0
        %2359 = vmatprep.mubr.f32.mxu0 0.0
        %v2360 = vand.u32 %v1156, 4294901760
        %v2361 = vsub.f32 %v1156, %v2360
        %2362 = vmatmul.mubr.f32.gmra.mrb[0].mxu0 %v2361
        %v2363 = vpop.f32.mrb[0].mxu0
        %v2364 = vadd.f32 %v2241, %v2363
        %v2365 = vpop.f32.mrb[0].mxu0
        %2366 = vmatprep.mubr.f32.mxu0 0.0
        %v2367 = vand.u32 %v1157, 4294901760
        %v2368 = vsub.f32 %v1157, %v2367
        %2369 = vmatmul.mubr.f32.gmra.mrb[0].mxu0 %v2368
        %v2370 = vpop.f32.mrb[0].mxu0
        %v2371 = vadd.f32 %v2247, %v2370
        %v2372 = vpop.f32.mrb[0].mxu0
        %2373 = vmatprep.mubr.f32.mxu0 0.0
        %v2374 = vand.u32 %v1158, 4294901760
        %v2375 = vsub.f32 %v1158, %v2374
        %2376 = vmatmul.mubr.f32.gmra.mrb[0].mxu0 %v2375
        %v2377 = vpop.f32.mrb[0].mxu0
        %v2378 = vadd.f32 %v2253, %v2377
        %v2379 = vpop.f32.mrb[0].mxu0
        %2380 = vdwg.mxu0
        %2381 = vmatprep.subr.mxu0 0.0
        %v2382 = vand.u32 %v1159, 4294901760
        %2383 = vmatpush1.msra.mxu0 %v2382
        %2384 = vmatprep.subr.mxu0 0.0
        %v2385 = vand.u32 %v1160, 4294901760
        %2386 = vmatpush1.msra.mxu0 %v2385
        %2387 = vmatprep.subr.mxu0 0.0
        %v2388 = vand.u32 %v1161, 4294901760
        %2389 = vmatpush1.msra.mxu0 %v2388
        %2390 = vmatprep.subr.mxu0 0.0
        %v2391 = vand.u32 %v1162, 4294901760
        %2392 = vmatpush1.msra.mxu0 %v2391
        %2393 = vmatprep.subr.mxu0 0.0
        %v2394 = vand.u32 %v1163, 4294901760
        %2395 = vmatpush1.msra.mxu0 %v2394
        %2396 = vmatprep.subr.mxu0 0.0
        %v2397 = vand.u32 %v1164, 4294901760
        %2398 = vmatpush1.msra.mxu0 %v2397
        %2399 = vmatprep.subr.mxu0 0.0
        %v2400 = vand.u32 %v1165, 4294901760
        %2401 = vmatpush1.msra.mxu0 %v2400
        %2402 = vmatprep.subr.mxu0 0.0
        %v2403 = vand.u32 %v1166, 4294901760
        %2404 = vmatpush1.msra.mxu0 %v2403
        %2405 = vmatprep.subr.mxu0 0.0
        %v2406 = vand.u32 %v1167, 4294901760
        %2407 = vmatpush1.msra.mxu0 %v2406
        %2408 = vmatprep.subr.mxu0 0.0
        %v2409 = vand.u32 %v1168, 4294901760
        %2410 = vmatpush1.msra.mxu0 %v2409
        %2411 = vmatprep.subr.mxu0 0.0
        %v2412 = vand.u32 %v1169, 4294901760
        %2413 = vmatpush1.msra.mxu0 %v2412
        %2414 = vmatprep.subr.mxu0 0.0
        %v2415 = vand.u32 %v1170, 4294901760
        %2416 = vmatpush1.msra.mxu0 %v2415
        %2417 = vmatprep.subr.mxu0 0.0
        %v2418 = vand.u32 %v1171, 4294901760
        %2419 = vmatpush1.msra.mxu0 %v2418
        %2420 = vmatprep.subr.mxu0 0.0
        %v2421 = vand.u32 %v1172, 4294901760
        %2422 = vmatpush1.msra.mxu0 %v2421
        %2423 = vmatprep.subr.mxu0 0.0
        %v2424 = vand.u32 %v1173, 4294901760
        %2425 = vmatpush1.msra.mxu0 %v2424
        %2426 = vmatprep.subr.mxu0 0.0
        %v2427 = vand.u32 %v1174, 4294901760
        %2428 = vmatpush1.msra.mxu0 %v2427
        %2429 = vmatprep.subr.mxu0 0.0
        %2430 = vmatpush1.msra.mxu0 0.0
        %2431 = vmatprep.subr.mxu0 0.0
        %2432 = vmatpush1.msra.mxu0 0.0
        %2433 = vmatprep.subr.mxu0 0.0
        %2434 = vmatpush1.msra.mxu0 0.0
        %2435 = vmatprep.subr.mxu0 0.0
        %2436 = vmatpush1.msra.mxu0 0.0
        %2437 = vmatprep.subr.mxu0 0.0
        %2438 = vmatpush1.msra.mxu0 0.0
        %2439 = vmatprep.subr.mxu0 0.0
        %2440 = vmatpush1.msra.mxu0 0.0
        %2441 = vmatprep.subr.mxu0 0.0
        %2442 = vmatpush1.msra.mxu0 0.0
        %2443 = vmatprep.subr.mxu0 0.0
        %2444 = vmatpush1.msra.mxu0 0.0
        %2445 = vmatprep.subr.mxu0 0.0
        %2446 = vmatpush1.msra.mxu0 0.0
        %2447 = vmatprep.subr.mxu0 0.0
        %2448 = vmatpush1.msra.mxu0 0.0
        %2449 = vmatprep.subr.mxu0 0.0
        %2450 = vmatpush1.msra.mxu0 0.0
        %2451 = vmatprep.subr.mxu0 0.0
        %2452 = vmatpush1.msra.mxu0 0.0
        %2453 = vmatprep.subr.mxu0 0.0
        %2454 = vmatpush1.msra.mxu0 0.0
        %2455 = vmatprep.subr.mxu0 0.0
        %2456 = vmatpush1.msra.mxu0 0.0
        %2457 = vmatprep.subr.mxu0 0.0
        %2458 = vmatpush1.msra.mxu0 0.0
        %2459 = vmatprep.subr.mxu0 0.0
        %2460 = vmatpush1.msra.mxu0 0.0
        %2461 = vmatprep.mubr.f32.mxu0 0.0
        %v2462 = vand.u32 %v1155, 4294901760
        %v2463 = vsub.f32 %v1155, %v2462
        %v2464 = vand.u32 %v2463, 4294901760
        %2465 = vmatmul.mubr.f32.gmra.mrb[0].mxu0 %v2464
        %v2466 = vpop.f32.mrb[0].mxu0
        %v2467 = vadd.f32 %v2357, %v2466
        %v2468 = vpop.f32.mrb[0].mxu0
        %2469 = vmatprep.mubr.f32.mxu0 0.0
        %v2470 = vand.u32 %v1156, 4294901760
        %v2471 = vsub.f32 %v1156, %v2470
        %v2472 = vand.u32 %v2471, 4294901760
        %2473 = vmatmul.mubr.f32.gmra.mrb[0].mxu0 %v2472
        %v2474 = vpop.f32.mrb[0].mxu0
        %v2475 = vadd.f32 %v2364, %v2474
        %v2476 = vpop.f32.mrb[0].mxu0
        %2477 = vmatprep.mubr.f32.mxu0 0.0
        %v2478 = vand.u32 %v1157, 4294901760
        %v2479 = vsub.f32 %v1157, %v2478
        %v2480 = vand.u32 %v2479, 4294901760
        %2481 = vmatmul.mubr.f32.gmra.mrb[0].mxu0 %v2480
        %v2482 = vpop.f32.mrb[0].mxu0
        %v2483 = vadd.f32 %v2371, %v2482
        %v2484 = vpop.f32.mrb[0].mxu0
        %2485 = vmatprep.mubr.f32.mxu0 0.0
        %v2486 = vand.u32 %v1158, 4294901760
        %v2487 = vsub.f32 %v1158, %v2486
        %v2488 = vand.u32 %v2487, 4294901760
        %2489 = vmatmul.mubr.f32.gmra.mrb[0].mxu0 %v2488
        %v2490 = vpop.f32.mrb[0].mxu0
        %v2491 = vadd.f32 %v2378, %v2490
        %v2492 = vpop.f32.mrb[0].mxu0
        %2493 = vdwg.mxu0
        %2494 = vmatprep.subr.mxu0 0.0
        %v2495 = vand.u32 %v1159, 4294901760
        %v2496 = vsub.f32 %v1159, %v2495
        %v2497 = vand.u32 %v2496, 4294901760
        %2498 = vmatpush1.msra.mxu0 %v2497
        %2499 = vmatprep.subr.mxu0 0.0
        %v2500 = vand.u32 %v1160, 4294901760
        %v2501 = vsub.f32 %v1160, %v2500
        %v2502 = vand.u32 %v2501, 4294901760
        %2503 = vmatpush1.msra.mxu0 %v2502
        %2504 = vmatprep.subr.mxu0 0.0
        %v2505 = vand.u32 %v1161, 4294901760
        %v2506 = vsub.f32 %v1161, %v2505
        %v2507 = vand.u32 %v2506, 4294901760
        %2508 = vmatpush1.msra.mxu0 %v2507
        %2509 = vmatprep.subr.mxu0 0.0
        %v2510 = vand.u32 %v1162, 4294901760
        %v2511 = vsub.f32 %v1162, %v2510
        %v2512 = vand.u32 %v2511, 4294901760
        %2513 = vmatpush1.msra.mxu0 %v2512
        %2514 = vmatprep.subr.mxu0 0.0
        %v2515 = vand.u32 %v1163, 4294901760
        %v2516 = vsub.f32 %v1163, %v2515
        %v2517 = vand.u32 %v2516, 4294901760
        %2518 = vmatpush1.msra.mxu0 %v2517
        %2519 = vmatprep.subr.mxu0 0.0
        %v2520 = vand.u32 %v1164, 4294901760
        %v2521 = vsub.f32 %v1164, %v2520
        %v2522 = vand.u32 %v2521, 4294901760
        %2523 = vmatpush1.msra.mxu0 %v2522
        %2524 = vmatprep.subr.mxu0 0.0
        %v2525 = vand.u32 %v1165, 4294901760
        %v2526 = vsub.f32 %v1165, %v2525
        %v2527 = vand.u32 %v2526, 4294901760
        %2528 = vmatpush1.msra.mxu0 %v2527
        %2529 = vmatprep.subr.mxu0 0.0
        %v2530 = vand.u32 %v1166, 4294901760
        %v2531 = vsub.f32 %v1166, %v2530
        %v2532 = vand.u32 %v2531, 4294901760
        %2533 = vmatpush1.msra.mxu0 %v2532
        %2534 = vmatprep.subr.mxu0 0.0
        %v2535 = vand.u32 %v1167, 4294901760
        %v2536 = vsub.f32 %v1167, %v2535
        %v2537 = vand.u32 %v2536, 4294901760
        %2538 = vmatpush1.msra.mxu0 %v2537
        %2539 = vmatprep.subr.mxu0 0.0
        %v2540 = vand.u32 %v1168, 4294901760
        %v2541 = vsub.f32 %v1168, %v2540
        %v2542 = vand.u32 %v2541, 4294901760
        %2543 = vmatpush1.msra.mxu0 %v2542
        %2544 = vmatprep.subr.mxu0 0.0
        %v2545 = vand.u32 %v1169, 4294901760
        %v2546 = vsub.f32 %v1169, %v2545
        %v2547 = vand.u32 %v2546, 4294901760
        %2548 = vmatpush1.msra.mxu0 %v2547
        %2549 = vmatprep.subr.mxu0 0.0
        %v2550 = vand.u32 %v1170, 4294901760
        %v2551 = vsub.f32 %v1170, %v2550
        %v2552 = vand.u32 %v2551, 4294901760
        %2553 = vmatpush1.msra.mxu0 %v2552
        %2554 = vmatprep.subr.mxu0 0.0
        %v2555 = vand.u32 %v1171, 4294901760
        %v2556 = vsub.f32 %v1171, %v2555
        %v2557 = vand.u32 %v2556, 4294901760
        %2558 = vmatpush1.msra.mxu0 %v2557
        %2559 = vmatprep.subr.mxu0 0.0
        %v2560 = vand.u32 %v1172, 4294901760
        %v2561 = vsub.f32 %v1172, %v2560
        %v2562 = vand.u32 %v2561, 4294901760
        %2563 = vmatpush1.msra.mxu0 %v2562
        %2564 = vmatprep.subr.mxu0 0.0
        %v2565 = vand.u32 %v1173, 4294901760
        %v2566 = vsub.f32 %v1173, %v2565
        %v2567 = vand.u32 %v2566, 4294901760
        %2568 = vmatpush1.msra.mxu0 %v2567
        %2569 = vmatprep.subr.mxu0 0.0
        %v2570 = vand.u32 %v1174, 4294901760
        %v2571 = vsub.f32 %v1174, %v2570
        %v2572 = vand.u32 %v2571, 4294901760
        %2573 = vmatpush1.msra.mxu0 %v2572
        %2574 = vmatprep.subr.mxu0 0.0
        %2575 = vmatpush1.msra.mxu0 0.0
        %2576 = vmatprep.subr.mxu0 0.0
        %2577 = vmatpush1.msra.mxu0 0.0
        %2578 = vmatprep.subr.mxu0 0.0
        %2579 = vmatpush1.msra.mxu0 0.0
        %2580 = vmatprep.subr.mxu0 0.0
        %2581 = vmatpush1.msra.mxu0 0.0
        %2582 = vmatprep.subr.mxu0 0.0
        %2583 = vmatpush1.msra.mxu0 0.0
        %2584 = vmatprep.subr.mxu0 0.0
        %2585 = vmatpush1.msra.mxu0 0.0
        %2586 = vmatprep.subr.mxu0 0.0
        %2587 = vmatpush1.msra.mxu0 0.0
        %2588 = vmatprep.subr.mxu0 0.0
        %2589 = vmatpush1.msra.mxu0 0.0
        %2590 = vmatprep.subr.mxu0 0.0
        %2591 = vmatpush1.msra.mxu0 0.0
        %2592 = vmatprep.subr.mxu0 0.0
        %2593 = vmatpush1.msra.mxu0 0.0
        %2594 = vmatprep.subr.mxu0 0.0
        %2595 = vmatpush1.msra.mxu0 0.0
        %2596 = vmatprep.subr.mxu0 0.0
        %2597 = vmatpush1.msra.mxu0 0.0
        %2598 = vmatprep.subr.mxu0 0.0
        %2599 = vmatpush1.msra.mxu0 0.0
        %2600 = vmatprep.subr.mxu0 0.0
        %2601 = vmatpush1.msra.mxu0 0.0
        %2602 = vmatprep.subr.mxu0 0.0
        %2603 = vmatpush1.msra.mxu0 0.0
        %2604 = vmatprep.subr.mxu0 0.0
        %2605 = vmatpush1.msra.mxu0 0.0
        %2606 = vmatprep.mubr.f32.mxu0 0.0
        %v2607 = vand.u32 %v1155, 4294901760
        %2608 = vmatmul.mubr.f32.gmra.mrb[0].mxu0 %v2607
        %v2609 = vpop.f32.mrb[0].mxu0
        %v2610 = vadd.f32 %v2467, %v2609
        %v2611 = vpop.f32.mrb[0].mxu0
        %2612 = vmatprep.mubr.f32.mxu0 0.0
        %v2613 = vand.u32 %v1156, 4294901760
        %2614 = vmatmul.mubr.f32.gmra.mrb[0].mxu0 %v2613
        %v2615 = vpop.f32.mrb[0].mxu0
        %v2616 = vadd.f32 %v2475, %v2615
        %v2617 = vpop.f32.mrb[0].mxu0
        %2618 = vmatprep.mubr.f32.mxu0 0.0
        %v2619 = vand.u32 %v1157, 4294901760
        %2620 = vmatmul.mubr.f32.gmra.mrb[0].mxu0 %v2619
        %v2621 = vpop.f32.mrb[0].mxu0
        %v2622 = vadd.f32 %v2483, %v2621
        %v2623 = vpop.f32.mrb[0].mxu0
        %2624 = vmatprep.mubr.f32.mxu0 0.0
        %v2625 = vand.u32 %v1158, 4294901760
        %2626 = vmatmul.mubr.f32.gmra.mrb[0].mxu0 %v2625
        %v2627 = vpop.f32.mrb[0].mxu0
        %v2628 = vadd.f32 %v2491, %v2627
        %v2629 = vpop.f32.mrb[0].mxu0
        %2630 = vdwg.mxu0
        %2631 = vmatprep.subr.mxu0 0.0
        %v2632 = vand.u32 %v1159, 4294901760
        %2633 = vmatpush1.msra.mxu0 %v2632
        %2634 = vmatprep.subr.mxu0 0.0
        %v2635 = vand.u32 %v1160, 4294901760
        %2636 = vmatpush1.msra.mxu0 %v2635
        %2637 = vmatprep.subr.mxu0 0.0
        %v2638 = vand.u32 %v1161, 4294901760
        %2639 = vmatpush1.msra.mxu0 %v2638
        %2640 = vmatprep.subr.mxu0 0.0
        %v2641 = vand.u32 %v1162, 4294901760
        %2642 = vmatpush1.msra.mxu0 %v2641
        %2643 = vmatprep.subr.mxu0 0.0
        %v2644 = vand.u32 %v1163, 4294901760
        %2645 = vmatpush1.msra.mxu0 %v2644
        %2646 = vmatprep.subr.mxu0 0.0
        %v2647 = vand.u32 %v1164, 4294901760
        %2648 = vmatpush1.msra.mxu0 %v2647
        %2649 = vmatprep.subr.mxu0 0.0
        %v2650 = vand.u32 %v1165, 4294901760
        %2651 = vmatpush1.msra.mxu0 %v2650
        %2652 = vmatprep.subr.mxu0 0.0
        %v2653 = vand.u32 %v1166, 4294901760
        %2654 = vmatpush1.msra.mxu0 %v2653
        %2655 = vmatprep.subr.mxu0 0.0
        %v2656 = vand.u32 %v1167, 4294901760
        %2657 = vmatpush1.msra.mxu0 %v2656
        %2658 = vmatprep.subr.mxu0 0.0
        %v2659 = vand.u32 %v1168, 4294901760
        %2660 = vmatpush1.msra.mxu0 %v2659
        %2661 = vmatprep.subr.mxu0 0.0
        %v2662 = vand.u32 %v1169, 4294901760
        %2663 = vmatpush1.msra.mxu0 %v2662
        %2664 = vmatprep.subr.mxu0 0.0
        %v2665 = vand.u32 %v1170, 4294901760
        %2666 = vmatpush1.msra.mxu0 %v2665
        %2667 = vmatprep.subr.mxu0 0.0
        %v2668 = vand.u32 %v1171, 4294901760
        %2669 = vmatpush1.msra.mxu0 %v2668
        %2670 = vmatprep.subr.mxu0 0.0
        %v2671 = vand.u32 %v1172, 4294901760
        %2672 = vmatpush1.msra.mxu0 %v2671
        %2673 = vmatprep.subr.mxu0 0.0
        %v2674 = vand.u32 %v1173, 4294901760
        %2675 = vmatpush1.msra.mxu0 %v2674
        %2676 = vmatprep.subr.mxu0 0.0
        %v2677 = vand.u32 %v1174, 4294901760
        %2678 = vmatpush1.msra.mxu0 %v2677
        %2679 = vmatprep.subr.mxu0 0.0
        %2680 = vmatpush1.msra.mxu0 0.0
        %2681 = vmatprep.subr.mxu0 0.0
        %2682 = vmatpush1.msra.mxu0 0.0
        %2683 = vmatprep.subr.mxu0 0.0
        %2684 = vmatpush1.msra.mxu0 0.0
        %2685 = vmatprep.subr.mxu0 0.0
        %2686 = vmatpush1.msra.mxu0 0.0
        %2687 = vmatprep.subr.mxu0 0.0
        %2688 = vmatpush1.msra.mxu0 0.0
        %2689 = vmatprep.subr.mxu0 0.0
        %2690 = vmatpush1.msra.mxu0 0.0
        %2691 = vmatprep.subr.mxu0 0.0
        %2692 = vmatpush1.msra.mxu0 0.0
        %2693 = vmatprep.subr.mxu0 0.0
        %2694 = vmatpush1.msra.mxu0 0.0
        %2695 = vmatprep.subr.mxu0 0.0
        %2696 = vmatpush1.msra.mxu0 0.0
        %2697 = vmatprep.subr.mxu0 0.0
        %2698 = vmatpush1.msra.mxu0 0.0
        %2699 = vmatprep.subr.mxu0 0.0
        %2700 = vmatpush1.msra.mxu0 0.0
        %2701 = vmatprep.subr.mxu0 0.0
        %2702 = vmatpush1.msra.mxu0 0.0
        %2703 = vmatprep.subr.mxu0 0.0
        %2704 = vmatpush1.msra.mxu0 0.0
        %2705 = vmatprep.subr.mxu0 0.0
        %2706 = vmatpush1.msra.mxu0 0.0
        %2707 = vmatprep.subr.mxu0 0.0
        %2708 = vmatpush1.msra.mxu0 0.0
        %2709 = vmatprep.subr.mxu0 0.0
        %2710 = vmatpush1.msra.mxu0 0.0
        %2711 = vmatprep.mubr.f32.mxu0 0.0
        %v2712 = vand.u32 %v1155, 4294901760
        %2713 = vmatmul.mubr.f32.gmra.mrb[0].mxu0 %v2712
        %v2714 = vpop.f32.mrb[0].mxu0
        %v2715 = vadd.f32 %v2610, %v2714
        %v2716 = vpop.f32.mrb[0].mxu0
        %2717 = vmatprep.mubr.f32.mxu0 0.0
        %v2718 = vand.u32 %v1156, 4294901760
        %2719 = vmatmul.mubr.f32.gmra.mrb[0].mxu0 %v2718
        %v2720 = vpop.f32.mrb[0].mxu0
        %v2721 = vadd.f32 %v2616, %v2720
        %v2722 = vpop.f32.mrb[0].mxu0
        %2723 = vmatprep.mubr.f32.mxu0 0.0
        %v2724 = vand.u32 %v1157, 4294901760
        %2725 = vmatmul.mubr.f32.gmra.mrb[0].mxu0 %v2724
        %v2726 = vpop.f32.mrb[0].mxu0
        %v2727 = vadd.f32 %v2622, %v2726
        %v2728 = vpop.f32.mrb[0].mxu0
        %2729 = vmatprep.mubr.f32.mxu0 0.0
        %v2730 = vand.u32 %v1158, 4294901760
        %2731 = vmatmul.mubr.f32.gmra.mrb[0].mxu0 %v2730
        %v2732 = vpop.f32.mrb[0].mxu0
        %v2733 = vadd.f32 %v2628, %v2732
        %v2734 = vpop.f32.mrb[0].mxu0
        %2735 = vdwg.mxu0
        %v2736 = vld [vmem:[#allocation3 + $0x2] sm:$0xff]
        %v2737 = vld [vmem:[#allocation3 + $0xa] sm:$0xff]
        %v2738 = vld [vmem:[#allocation3 + $0x12] sm:$0xff]
        %v2739 = vld [vmem:[#allocation3 + $0x1a] sm:$0x1]
        %s2740 = scalar_lea.vmem [#allocation4], 256
        %v2741 = vld [vmem:[%s2740] sm:$0xff]
        %v2742 = vld [vmem:[%s2740 + $0x8] sm:$0xff]
        %v2743 = vld [vmem:[%s2740 + $0x10] sm:$0xff]
        %v2744 = vld [vmem:[%s2740 + $0x18] sm:$0xff]
        %v2745 = vld [vmem:[%s2740 + $0x20] sm:$0xff]
        %v2746 = vld [vmem:[%s2740 + $0x28] sm:$0xff]
        %v2747 = vld [vmem:[%s2740 + $0x30] sm:$0xff]
        %v2748 = vld [vmem:[%s2740 + $0x38] sm:$0xff]
        %v2749 = vld [vmem:[%s2740 + $0x40] sm:$0xff]
        %v2750 = vld [vmem:[%s2740 + $0x48] sm:$0xff]
        %v2751 = vld [vmem:[%s2740 + $0x50] sm:$0xff]
        %v2752 = vld [vmem:[%s2740 + $0x58] sm:$0xff]
        %v2753 = vld [vmem:[%s2740 + $0x60] sm:$0xff]
        %v2754 = vld [vmem:[%s2740 + $0x68] sm:$0xff]
        %v2755 = vld [vmem:[%s2740 + $0x70] sm:$0xff]
        %v2756 = vld [vmem:[%s2740 + $0x78] sm:$0xff]
        %2757 = vmatprep.subr.mxu0 0.0
        %v2758 = vand.u32 %v2741, 4294901760
        %2759 = vmatpush1.msra.mxu0 %v2758
        %2760 = vmatprep.subr.mxu0 0.0
        %v2761 = vand.u32 %v2742, 4294901760
        %2762 = vmatpush1.msra.mxu0 %v2761
        %2763 = vmatprep.subr.mxu0 0.0
        %v2764 = vand.u32 %v2743, 4294901760
        %2765 = vmatpush1.msra.mxu0 %v2764
        %2766 = vmatprep.subr.mxu0 0.0
        %v2767 = vand.u32 %v2744, 4294901760
        %2768 = vmatpush1.msra.mxu0 %v2767
        %2769 = vmatprep.subr.mxu0 0.0
        %v2770 = vand.u32 %v2745, 4294901760
        %2771 = vmatpush1.msra.mxu0 %v2770
        %2772 = vmatprep.subr.mxu0 0.0
        %v2773 = vand.u32 %v2746, 4294901760
        %2774 = vmatpush1.msra.mxu0 %v2773
        %2775 = vmatprep.subr.mxu0 0.0
        %v2776 = vand.u32 %v2747, 4294901760
        %2777 = vmatpush1.msra.mxu0 %v2776
        %2778 = vmatprep.subr.mxu0 0.0
        %v2779 = vand.u32 %v2748, 4294901760
        %2780 = vmatpush1.msra.mxu0 %v2779
        %2781 = vmatprep.subr.mxu0 0.0
        %v2782 = vand.u32 %v2749, 4294901760
        %2783 = vmatpush1.msra.mxu0 %v2782
        %2784 = vmatprep.subr.mxu0 0.0
        %v2785 = vand.u32 %v2750, 4294901760
        %2786 = vmatpush1.msra.mxu0 %v2785
        %2787 = vmatprep.subr.mxu0 0.0
        %v2788 = vand.u32 %v2751, 4294901760
        %2789 = vmatpush1.msra.mxu0 %v2788
        %2790 = vmatprep.subr.mxu0 0.0
        %v2791 = vand.u32 %v2752, 4294901760
        %2792 = vmatpush1.msra.mxu0 %v2791
        %2793 = vmatprep.subr.mxu0 0.0
        %v2794 = vand.u32 %v2753, 4294901760
        %2795 = vmatpush1.msra.mxu0 %v2794
        %2796 = vmatprep.subr.mxu0 0.0
        %v2797 = vand.u32 %v2754, 4294901760
        %2798 = vmatpush1.msra.mxu0 %v2797
        %2799 = vmatprep.subr.mxu0 0.0
        %v2800 = vand.u32 %v2755, 4294901760
        %2801 = vmatpush1.msra.mxu0 %v2800
        %2802 = vmatprep.subr.mxu0 0.0
        %v2803 = vand.u32 %v2756, 4294901760
        %2804 = vmatpush1.msra.mxu0 %v2803
        %2805 = vmatprep.subr.mxu0 0.0
        %2806 = vmatpush1.msra.mxu0 0.0
        %2807 = vmatprep.subr.mxu0 0.0
        %2808 = vmatpush1.msra.mxu0 0.0
        %2809 = vmatprep.subr.mxu0 0.0
        %2810 = vmatpush1.msra.mxu0 0.0
        %2811 = vmatprep.subr.mxu0 0.0
        %2812 = vmatpush1.msra.mxu0 0.0
        %2813 = vmatprep.subr.mxu0 0.0
        %2814 = vmatpush1.msra.mxu0 0.0
        %2815 = vmatprep.subr.mxu0 0.0
        %2816 = vmatpush1.msra.mxu0 0.0
        %2817 = vmatprep.subr.mxu0 0.0
        %2818 = vmatpush1.msra.mxu0 0.0
        %2819 = vmatprep.subr.mxu0 0.0
        %2820 = vmatpush1.msra.mxu0 0.0
        %2821 = vmatprep.subr.mxu0 0.0
        %2822 = vmatpush1.msra.mxu0 0.0
        %2823 = vmatprep.subr.mxu0 0.0
        %2824 = vmatpush1.msra.mxu0 0.0
        %2825 = vmatprep.subr.mxu0 0.0
        %2826 = vmatpush1.msra.mxu0 0.0
        %2827 = vmatprep.subr.mxu0 0.0
        %2828 = vmatpush1.msra.mxu0 0.0
        %2829 = vmatprep.subr.mxu0 0.0
        %2830 = vmatpush1.msra.mxu0 0.0
        %2831 = vmatprep.subr.mxu0 0.0
        %2832 = vmatpush1.msra.mxu0 0.0
        %2833 = vmatprep.subr.mxu0 0.0
        %2834 = vmatpush1.msra.mxu0 0.0
        %2835 = vmatprep.subr.mxu0 0.0
        %2836 = vmatpush1.msra.mxu0 0.0
        %2837 = vmatprep.mubr.f32.mxu0 0.0
        %v2838 = vand.u32 %v2736, 4294901760
        %v2839 = vsub.f32 %v2736, %v2838
        %v2840 = vand.u32 %v2839, 4294901760
        %v2841 = vsub.f32 %v2839, %v2840
        %v2842 = vand.u32 %v2841, 4294901760
        %2843 = vmatmul.mubr.f32.gmra.mrb[0].mxu0 %v2842
        %v2844 = vpop.f32.mrb[0].mxu0
        %v2845 = vadd.f32 0.0, %v2844
        %v2846 = vpop.f32.mrb[0].mxu0
        %2847 = vmatprep.mubr.f32.mxu0 0.0
        %v2848 = vand.u32 %v2737, 4294901760
        %v2849 = vsub.f32 %v2737, %v2848
        %v2850 = vand.u32 %v2849, 4294901760
        %v2851 = vsub.f32 %v2849, %v2850
        %v2852 = vand.u32 %v2851, 4294901760
        %2853 = vmatmul.mubr.f32.gmra.mrb[0].mxu0 %v2852
        %v2854 = vpop.f32.mrb[0].mxu0
        %v2855 = vadd.f32 0.0, %v2854
        %v2856 = vpop.f32.mrb[0].mxu0
        %2857 = vmatprep.mubr.f32.mxu0 0.0
        %v2858 = vand.u32 %v2738, 4294901760
        %v2859 = vsub.f32 %v2738, %v2858
        %v2860 = vand.u32 %v2859, 4294901760
        %v2861 = vsub.f32 %v2859, %v2860
        %v2862 = vand.u32 %v2861, 4294901760
        %2863 = vmatmul.mubr.f32.gmra.mrb[0].mxu0 %v2862
        %v2864 = vpop.f32.mrb[0].mxu0
        %v2865 = vadd.f32 0.0, %v2864
        %v2866 = vpop.f32.mrb[0].mxu0
        %2867 = vmatprep.mubr.f32.mxu0 0.0
        %v2868 = vand.u32 %v2739, 4294901760
        %v2869 = vsub.f32 %v2739, %v2868
        %v2870 = vand.u32 %v2869, 4294901760
        %v2871 = vsub.f32 %v2869, %v2870
        %v2872 = vand.u32 %v2871, 4294901760
        %2873 = vmatmul.mubr.f32.gmra.mrb[0].mxu0 %v2872
        %v2874 = vpop.f32.mrb[0].mxu0
        %v2875 = vadd.f32 0.0, %v2874
        %v2876 = vpop.f32.mrb[0].mxu0
        %2877 = vdwg.mxu0
        %2878 = vmatprep.subr.mxu0 0.0
        %v2879 = vand.u32 %v2741, 4294901760
        %v2880 = vsub.f32 %v2741, %v2879
        %v2881 = vand.u32 %v2880, 4294901760
        %v2882 = vsub.f32 %v2880, %v2881
        %v2883 = vand.u32 %v2882, 4294901760
        %2884 = vmatpush1.msra.mxu0 %v2883
        %2885 = vmatprep.subr.mxu0 0.0
        %v2886 = vand.u32 %v2742, 4294901760
        %v2887 = vsub.f32 %v2742, %v2886
        %v2888 = vand.u32 %v2887, 4294901760
        %v2889 = vsub.f32 %v2887, %v2888
        %v2890 = vand.u32 %v2889, 4294901760
        %2891 = vmatpush1.msra.mxu0 %v2890
        %2892 = vmatprep.subr.mxu0 0.0
        %v2893 = vand.u32 %v2743, 4294901760
        %v2894 = vsub.f32 %v2743, %v2893
        %v2895 = vand.u32 %v2894, 4294901760
        %v2896 = vsub.f32 %v2894, %v2895
        %v2897 = vand.u32 %v2896, 4294901760
        %2898 = vmatpush1.msra.mxu0 %v2897
        %2899 = vmatprep.subr.mxu0 0.0
        %v2900 = vand.u32 %v2744, 4294901760
        %v2901 = vsub.f32 %v2744, %v2900
        %v2902 = vand.u32 %v2901, 4294901760
        %v2903 = vsub.f32 %v2901, %v2902
        %v2904 = vand.u32 %v2903, 4294901760
        %2905 = vmatpush1.msra.mxu0 %v2904
        %2906 = vmatprep.subr.mxu0 0.0
        %v2907 = vand.u32 %v2745, 4294901760
        %v2908 = vsub.f32 %v2745, %v2907
        %v2909 = vand.u32 %v2908, 4294901760
        %v2910 = vsub.f32 %v2908, %v2909
        %v2911 = vand.u32 %v2910, 4294901760
        %2912 = vmatpush1.msra.mxu0 %v2911
        %2913 = vmatprep.subr.mxu0 0.0
        %v2914 = vand.u32 %v2746, 4294901760
        %v2915 = vsub.f32 %v2746, %v2914
        %v2916 = vand.u32 %v2915, 4294901760
        %v2917 = vsub.f32 %v2915, %v2916
        %v2918 = vand.u32 %v2917, 4294901760
        %2919 = vmatpush1.msra.mxu0 %v2918
        %2920 = vmatprep.subr.mxu0 0.0
        %v2921 = vand.u32 %v2747, 4294901760
        %v2922 = vsub.f32 %v2747, %v2921
        %v2923 = vand.u32 %v2922, 4294901760
        %v2924 = vsub.f32 %v2922, %v2923
        %v2925 = vand.u32 %v2924, 4294901760
        %2926 = vmatpush1.msra.mxu0 %v2925
        %2927 = vmatprep.subr.mxu0 0.0
        %v2928 = vand.u32 %v2748, 4294901760
        %v2929 = vsub.f32 %v2748, %v2928
        %v2930 = vand.u32 %v2929, 4294901760
        %v2931 = vsub.f32 %v2929, %v2930
        %v2932 = vand.u32 %v2931, 4294901760
        %2933 = vmatpush1.msra.mxu0 %v2932
        %2934 = vmatprep.subr.mxu0 0.0
        %v2935 = vand.u32 %v2749, 4294901760
        %v2936 = vsub.f32 %v2749, %v2935
        %v2937 = vand.u32 %v2936, 4294901760
        %v2938 = vsub.f32 %v2936, %v2937
        %v2939 = vand.u32 %v2938, 4294901760
        %2940 = vmatpush1.msra.mxu0 %v2939
        %2941 = vmatprep.subr.mxu0 0.0
        %v2942 = vand.u32 %v2750, 4294901760
        %v2943 = vsub.f32 %v2750, %v2942
        %v2944 = vand.u32 %v2943, 4294901760
        %v2945 = vsub.f32 %v2943, %v2944
        %v2946 = vand.u32 %v2945, 4294901760
        %2947 = vmatpush1.msra.mxu0 %v2946
        %2948 = vmatprep.subr.mxu0 0.0
        %v2949 = vand.u32 %v2751, 4294901760
        %v2950 = vsub.f32 %v2751, %v2949
        %v2951 = vand.u32 %v2950, 4294901760
        %v2952 = vsub.f32 %v2950, %v2951
        %v2953 = vand.u32 %v2952, 4294901760
        %2954 = vmatpush1.msra.mxu0 %v2953
        %2955 = vmatprep.subr.mxu0 0.0
        %v2956 = vand.u32 %v2752, 4294901760
        %v2957 = vsub.f32 %v2752, %v2956
        %v2958 = vand.u32 %v2957, 4294901760
        %v2959 = vsub.f32 %v2957, %v2958
        %v2960 = vand.u32 %v2959, 4294901760
        %2961 = vmatpush1.msra.mxu0 %v2960
        %2962 = vmatprep.subr.mxu0 0.0
        %v2963 = vand.u32 %v2753, 4294901760
        %v2964 = vsub.f32 %v2753, %v2963
        %v2965 = vand.u32 %v2964, 4294901760
        %v2966 = vsub.f32 %v2964, %v2965
        %v2967 = vand.u32 %v2966, 4294901760
        %2968 = vmatpush1.msra.mxu0 %v2967
        %2969 = vmatprep.subr.mxu0 0.0
        %v2970 = vand.u32 %v2754, 4294901760
        %v2971 = vsub.f32 %v2754, %v2970
        %v2972 = vand.u32 %v2971, 4294901760
        %v2973 = vsub.f32 %v2971, %v2972
        %v2974 = vand.u32 %v2973, 4294901760
        %2975 = vmatpush1.msra.mxu0 %v2974
        %2976 = vmatprep.subr.mxu0 0.0
        %v2977 = vand.u32 %v2755, 4294901760
        %v2978 = vsub.f32 %v2755, %v2977
        %v2979 = vand.u32 %v2978, 4294901760
        %v2980 = vsub.f32 %v2978, %v2979
        %v2981 = vand.u32 %v2980, 4294901760
        %2982 = vmatpush1.msra.mxu0 %v2981
        %2983 = vmatprep.subr.mxu0 0.0
        %v2984 = vand.u32 %v2756, 4294901760
        %v2985 = vsub.f32 %v2756, %v2984
        %v2986 = vand.u32 %v2985, 4294901760
        %v2987 = vsub.f32 %v2985, %v2986
        %v2988 = vand.u32 %v2987, 4294901760
        %2989 = vmatpush1.msra.mxu0 %v2988
        %2990 = vmatprep.subr.mxu0 0.0
        %2991 = vmatpush1.msra.mxu0 0.0
        %2992 = vmatprep.subr.mxu0 0.0
        %2993 = vmatpush1.msra.mxu0 0.0
        %2994 = vmatprep.subr.mxu0 0.0
        %2995 = vmatpush1.msra.mxu0 0.0
        %2996 = vmatprep.subr.mxu0 0.0
        %2997 = vmatpush1.msra.mxu0 0.0
        %2998 = vmatprep.subr.mxu0 0.0
        %2999 = vmatpush1.msra.mxu0 0.0
        %3000 = vmatprep.subr.mxu0 0.0
        %3001 = vmatpush1.msra.mxu0 0.0
        %3002 = vmatprep.subr.mxu0 0.0
        %3003 = vmatpush1.msra.mxu0 0.0
        %3004 = vmatprep.subr.mxu0 0.0
        %3005 = vmatpush1.msra.mxu0 0.0
        %3006 = vmatprep.subr.mxu0 0.0
        %3007 = vmatpush1.msra.mxu0 0.0
        %3008 = vmatprep.subr.mxu0 0.0
        %3009 = vmatpush1.msra.mxu0 0.0
        %3010 = vmatprep.subr.mxu0 0.0
        %3011 = vmatpush1.msra.mxu0 0.0
        %3012 = vmatprep.subr.mxu0 0.0
        %3013 = vmatpush1.msra.mxu0 0.0
        %3014 = vmatprep.subr.mxu0 0.0
        %3015 = vmatpush1.msra.mxu0 0.0
        %3016 = vmatprep.subr.mxu0 0.0
        %3017 = vmatpush1.msra.mxu0 0.0
        %3018 = vmatprep.subr.mxu0 0.0
        %3019 = vmatpush1.msra.mxu0 0.0
        %3020 = vmatprep.subr.mxu0 0.0
        %3021 = vmatpush1.msra.mxu0 0.0
        %3022 = vmatprep.mubr.f32.mxu0 0.0
        %v3023 = vand.u32 %v2736, 4294901760
        %3024 = vmatmul.mubr.f32.gmra.mrb[0].mxu0 %v3023
        %v3025 = vpop.f32.mrb[0].mxu0
        %v3026 = vadd.f32 %v2845, %v3025
        %v3027 = vpop.f32.mrb[0].mxu0
        %3028 = vmatprep.mubr.f32.mxu0 0.0
        %v3029 = vand.u32 %v2737, 4294901760
        %3030 = vmatmul.mubr.f32.gmra.mrb[0].mxu0 %v3029
        %v3031 = vpop.f32.mrb[0].mxu0
        %v3032 = vadd.f32 %v2855, %v3031
        %v3033 = vpop.f32.mrb[0].mxu0
        %3034 = vmatprep.mubr.f32.mxu0 0.0
        %v3035 = vand.u32 %v2738, 4294901760
        %3036 = vmatmul.mubr.f32.gmra.mrb[0].mxu0 %v3035
        %v3037 = vpop.f32.mrb[0].mxu0
        %v3038 = vadd.f32 %v2865, %v3037
        %v3039 = vpop.f32.mrb[0].mxu0
        %3040 = vmatprep.mubr.f32.mxu0 0.0
        %v3041 = vand.u32 %v2739, 4294901760
        %3042 = vmatmul.mubr.f32.gmra.mrb[0].mxu0 %v3041
        %v3043 = vpop.f32.mrb[0].mxu0
        %v3044 = vadd.f32 %v2875, %v3043
        %v3045 = vpop.f32.mrb[0].mxu0
        %3046 = vdwg.mxu0
        %3047 = vmatprep.subr.mxu0 0.0
        %v3048 = vand.u32 %v2741, 4294901760
        %v3049 = vsub.f32 %v2741, %v3048
        %3050 = vmatpush1.msra.mxu0 %v3049
        %3051 = vmatprep.subr.mxu0 0.0
        %v3052 = vand.u32 %v2742, 4294901760
        %v3053 = vsub.f32 %v2742, %v3052
        %3054 = vmatpush1.msra.mxu0 %v3053
        %3055 = vmatprep.subr.mxu0 0.0
        %v3056 = vand.u32 %v2743, 4294901760
        %v3057 = vsub.f32 %v2743, %v3056
        %3058 = vmatpush1.msra.mxu0 %v3057
        %3059 = vmatprep.subr.mxu0 0.0
        %v3060 = vand.u32 %v2744, 4294901760
        %v3061 = vsub.f32 %v2744, %v3060
        %3062 = vmatpush1.msra.mxu0 %v3061
        %3063 = vmatprep.subr.mxu0 0.0
        %v3064 = vand.u32 %v2745, 4294901760
        %v3065 = vsub.f32 %v2745, %v3064
        %3066 = vmatpush1.msra.mxu0 %v3065
        %3067 = vmatprep.subr.mxu0 0.0
        %v3068 = vand.u32 %v2746, 4294901760
        %v3069 = vsub.f32 %v2746, %v3068
        %3070 = vmatpush1.msra.mxu0 %v3069
        %3071 = vmatprep.subr.mxu0 0.0
        %v3072 = vand.u32 %v2747, 4294901760
        %v3073 = vsub.f32 %v2747, %v3072
        %3074 = vmatpush1.msra.mxu0 %v3073
        %3075 = vmatprep.subr.mxu0 0.0
        %v3076 = vand.u32 %v2748, 4294901760
        %v3077 = vsub.f32 %v2748, %v3076
        %3078 = vmatpush1.msra.mxu0 %v3077
        %3079 = vmatprep.subr.mxu0 0.0
        %v3080 = vand.u32 %v2749, 4294901760
        %v3081 = vsub.f32 %v2749, %v3080
        %3082 = vmatpush1.msra.mxu0 %v3081
        %3083 = vmatprep.subr.mxu0 0.0
        %v3084 = vand.u32 %v2750, 4294901760
        %v3085 = vsub.f32 %v2750, %v3084
        %3086 = vmatpush1.msra.mxu0 %v3085
        %3087 = vmatprep.subr.mxu0 0.0
        %v3088 = vand.u32 %v2751, 4294901760
        %v3089 = vsub.f32 %v2751, %v3088
        %3090 = vmatpush1.msra.mxu0 %v3089
        %3091 = vmatprep.subr.mxu0 0.0
        %v3092 = vand.u32 %v2752, 4294901760
        %v3093 = vsub.f32 %v2752, %v3092
        %3094 = vmatpush1.msra.mxu0 %v3093
        %3095 = vmatprep.subr.mxu0 0.0
        %v3096 = vand.u32 %v2753, 4294901760
        %v3097 = vsub.f32 %v2753, %v3096
        %3098 = vmatpush1.msra.mxu0 %v3097
        %3099 = vmatprep.subr.mxu0 0.0
        %v3100 = vand.u32 %v2754, 4294901760
        %v3101 = vsub.f32 %v2754, %v3100
        %3102 = vmatpush1.msra.mxu0 %v3101
        %3103 = vmatprep.subr.mxu0 0.0
        %v3104 = vand.u32 %v2755, 4294901760
        %v3105 = vsub.f32 %v2755, %v3104
        %3106 = vmatpush1.msra.mxu0 %v3105
        %3107 = vmatprep.subr.mxu0 0.0
        %v3108 = vand.u32 %v2756, 4294901760
        %v3109 = vsub.f32 %v2756, %v3108
        %3110 = vmatpush1.msra.mxu0 %v3109
        %3111 = vmatprep.subr.mxu0 0.0
        %3112 = vmatpush1.msra.mxu0 0.0
        %3113 = vmatprep.subr.mxu0 0.0
        %3114 = vmatpush1.msra.mxu0 0.0
        %3115 = vmatprep.subr.mxu0 0.0
        %3116 = vmatpush1.msra.mxu0 0.0
        %3117 = vmatprep.subr.mxu0 0.0
        %3118 = vmatpush1.msra.mxu0 0.0
        %3119 = vmatprep.subr.mxu0 0.0
        %3120 = vmatpush1.msra.mxu0 0.0
        %3121 = vmatprep.subr.mxu0 0.0
        %3122 = vmatpush1.msra.mxu0 0.0
        %3123 = vmatprep.subr.mxu0 0.0
        %3124 = vmatpush1.msra.mxu0 0.0
        %3125 = vmatprep.subr.mxu0 0.0
        %3126 = vmatpush1.msra.mxu0 0.0
        %3127 = vmatprep.subr.mxu0 0.0
        %3128 = vmatpush1.msra.mxu0 0.0
        %3129 = vmatprep.subr.mxu0 0.0
        %3130 = vmatpush1.msra.mxu0 0.0
        %3131 = vmatprep.subr.mxu0 0.0
        %3132 = vmatpush1.msra.mxu0 0.0
        %3133 = vmatprep.subr.mxu0 0.0
        %3134 = vmatpush1.msra.mxu0 0.0
        %3135 = vmatprep.subr.mxu0 0.0
        %3136 = vmatpush1.msra.mxu0 0.0
        %3137 = vmatprep.subr.mxu0 0.0
        %3138 = vmatpush1.msra.mxu0 0.0
        %3139 = vmatprep.subr.mxu0 0.0
        %3140 = vmatpush1.msra.mxu0 0.0
        %3141 = vmatprep.subr.mxu0 0.0
        %3142 = vmatpush1.msra.mxu0 0.0
        %3143 = vmatprep.mubr.f32.mxu0 0.0
        %v3144 = vand.u32 %v2736, 4294901760
        %v3145 = vsub.f32 %v2736, %v3144
        %3146 = vmatmul.mubr.f32.gmra.mrb[0].mxu0 %v3145
        %v3147 = vpop.f32.mrb[0].mxu0
        %v3148 = vadd.f32 %v3026, %v3147
        %v3149 = vpop.f32.mrb[0].mxu0
        %3150 = vmatprep.mubr.f32.mxu0 0.0
        %v3151 = vand.u32 %v2737, 4294901760
        %v3152 = vsub.f32 %v2737, %v3151
        %3153 = vmatmul.mubr.f32.gmra.mrb[0].mxu0 %v3152
        %v3154 = vpop.f32.mrb[0].mxu0
        %v3155 = vadd.f32 %v3032, %v3154
        %v3156 = vpop.f32.mrb[0].mxu0
        %3157 = vmatprep.mubr.f32.mxu0 0.0
        %v3158 = vand.u32 %v2738, 4294901760
        %v3159 = vsub.f32 %v2738, %v3158
        %3160 = vmatmul.mubr.f32.gmra.mrb[0].mxu0 %v3159
        %v3161 = vpop.f32.mrb[0].mxu0
        %v3162 = vadd.f32 %v3038, %v3161
        %v3163 = vpop.f32.mrb[0].mxu0
        %3164 = vmatprep.mubr.f32.mxu0 0.0
        %v3165 = vand.u32 %v2739, 4294901760
        %v3166 = vsub.f32 %v2739, %v3165
        %3167 = vmatmul.mubr.f32.gmra.mrb[0].mxu0 %v3166
        %v3168 = vpop.f32.mrb[0].mxu0
        %v3169 = vadd.f32 %v3044, %v3168
        %v3170 = vpop.f32.mrb[0].mxu0
        %3171 = vdwg.mxu0
        %3172 = vmatprep.subr.mxu0 0.0
        %v3173 = vand.u32 %v2741, 4294901760
        %3174 = vmatpush1.msra.mxu0 %v3173
        %3175 = vmatprep.subr.mxu0 0.0
        %v3176 = vand.u32 %v2742, 4294901760
        %3177 = vmatpush1.msra.mxu0 %v3176
        %3178 = vmatprep.subr.mxu0 0.0
        %v3179 = vand.u32 %v2743, 4294901760
        %3180 = vmatpush1.msra.mxu0 %v3179
        %3181 = vmatprep.subr.mxu0 0.0
        %v3182 = vand.u32 %v2744, 4294901760
        %3183 = vmatpush1.msra.mxu0 %v3182
        %3184 = vmatprep.subr.mxu0 0.0
        %v3185 = vand.u32 %v2745, 4294901760
        %3186 = vmatpush1.msra.mxu0 %v3185
        %3187 = vmatprep.subr.mxu0 0.0
        %v3188 = vand.u32 %v2746, 4294901760
        %3189 = vmatpush1.msra.mxu0 %v3188
        %3190 = vmatprep.subr.mxu0 0.0
        %v3191 = vand.u32 %v2747, 4294901760
        %3192 = vmatpush1.msra.mxu0 %v3191
        %3193 = vmatprep.subr.mxu0 0.0
        %v3194 = vand.u32 %v2748, 4294901760
        %3195 = vmatpush1.msra.mxu0 %v3194
        %3196 = vmatprep.subr.mxu0 0.0
        %v3197 = vand.u32 %v2749, 4294901760
        %3198 = vmatpush1.msra.mxu0 %v3197
        %3199 = vmatprep.subr.mxu0 0.0
        %v3200 = vand.u32 %v2750, 4294901760
        %3201 = vmatpush1.msra.mxu0 %v3200
        %3202 = vmatprep.subr.mxu0 0.0
        %v3203 = vand.u32 %v2751, 4294901760
        %3204 = vmatpush1.msra.mxu0 %v3203
        %3205 = vmatprep.subr.mxu0 0.0
        %v3206 = vand.u32 %v2752, 4294901760
        %3207 = vmatpush1.msra.mxu0 %v3206
        %3208 = vmatprep.subr.mxu0 0.0
        %v3209 = vand.u32 %v2753, 4294901760
        %3210 = vmatpush1.msra.mxu0 %v3209
        %3211 = vmatprep.subr.mxu0 0.0
        %v3212 = vand.u32 %v2754, 4294901760
        %3213 = vmatpush1.msra.mxu0 %v3212
        %3214 = vmatprep.subr.mxu0 0.0
        %v3215 = vand.u32 %v2755, 4294901760
        %3216 = vmatpush1.msra.mxu0 %v3215
        %3217 = vmatprep.subr.mxu0 0.0
        %v3218 = vand.u32 %v2756, 4294901760
        %3219 = vmatpush1.msra.mxu0 %v3218
        %3220 = vmatprep.subr.mxu0 0.0
        %3221 = vmatpush1.msra.mxu0 0.0
        %3222 = vmatprep.subr.mxu0 0.0
        %3223 = vmatpush1.msra.mxu0 0.0
        %3224 = vmatprep.subr.mxu0 0.0
        %3225 = vmatpush1.msra.mxu0 0.0
        %3226 = vmatprep.subr.mxu0 0.0
        %3227 = vmatpush1.msra.mxu0 0.0
        %3228 = vmatprep.subr.mxu0 0.0
        %3229 = vmatpush1.msra.mxu0 0.0
        %3230 = vmatprep.subr.mxu0 0.0
        %3231 = vmatpush1.msra.mxu0 0.0
        %3232 = vmatprep.subr.mxu0 0.0
        %3233 = vmatpush1.msra.mxu0 0.0
        %3234 = vmatprep.subr.mxu0 0.0
        %3235 = vmatpush1.msra.mxu0 0.0
        %3236 = vmatprep.subr.mxu0 0.0
        %3237 = vmatpush1.msra.mxu0 0.0
        %3238 = vmatprep.subr.mxu0 0.0
        %3239 = vmatpush1.msra.mxu0 0.0
        %3240 = vmatprep.subr.mxu0 0.0
        %3241 = vmatpush1.msra.mxu0 0.0
        %3242 = vmatprep.subr.mxu0 0.0
        %3243 = vmatpush1.msra.mxu0 0.0
        %3244 = vmatprep.subr.mxu0 0.0
        %3245 = vmatpush1.msra.mxu0 0.0
        %3246 = vmatprep.subr.mxu0 0.0
        %3247 = vmatpush1.msra.mxu0 0.0
        %3248 = vmatprep.subr.mxu0 0.0
        %3249 = vmatpush1.msra.mxu0 0.0
        %3250 = vmatprep.subr.mxu0 0.0
        %3251 = vmatpush1.msra.mxu0 0.0
        %3252 = vmatprep.mubr.f32.mxu0 0.0
        %v3253 = vand.u32 %v2736, 4294901760
        %v3254 = vsub.f32 %v2736, %v3253
        %v3255 = vand.u32 %v3254, 4294901760
        %3256 = vmatmul.mubr.f32.gmra.mrb[0].mxu0 %v3255
        %v3257 = vpop.f32.mrb[0].mxu0
        %v3258 = vadd.f32 %v3148, %v3257
        %v3259 = vpop.f32.mrb[0].mxu0
        %3260 = vmatprep.mubr.f32.mxu0 0.0
        %v3261 = vand.u32 %v2737, 4294901760
        %v3262 = vsub.f32 %v2737, %v3261
        %v3263 = vand.u32 %v3262, 4294901760
        %3264 = vmatmul.mubr.f32.gmra.mrb[0].mxu0 %v3263
        %v3265 = vpop.f32.mrb[0].mxu0
        %v3266 = vadd.f32 %v3155, %v3265
        %v3267 = vpop.f32.mrb[0].mxu0
        %3268 = vmatprep.mubr.f32.mxu0 0.0
        %v3269 = vand.u32 %v2738, 4294901760
        %v3270 = vsub.f32 %v2738, %v3269
        %v3271 = vand.u32 %v3270, 4294901760
        %3272 = vmatmul.mubr.f32.gmra.mrb[0].mxu0 %v3271
        %v3273 = vpop.f32.mrb[0].mxu0
        %v3274 = vadd.f32 %v3162, %v3273
        %v3275 = vpop.f32.mrb[0].mxu0
        %3276 = vmatprep.mubr.f32.mxu0 0.0
        %v3277 = vand.u32 %v2739, 4294901760
        %v3278 = vsub.f32 %v2739, %v3277
        %v3279 = vand.u32 %v3278, 4294901760
        %3280 = vmatmul.mubr.f32.gmra.mrb[0].mxu0 %v3279
        %v3281 = vpop.f32.mrb[0].mxu0
        %v3282 = vadd.f32 %v3169, %v3281
        %v3283 = vpop.f32.mrb[0].mxu0
        %3284 = vdwg.mxu0
        %3285 = vmatprep.subr.mxu0 0.0
        %v3286 = vand.u32 %v2741, 4294901760
        %v3287 = vsub.f32 %v2741, %v3286
        %v3288 = vand.u32 %v3287, 4294901760
        %3289 = vmatpush1.msra.mxu0 %v3288
        %3290 = vmatprep.subr.mxu0 0.0
        %v3291 = vand.u32 %v2742, 4294901760
        %v3292 = vsub.f32 %v2742, %v3291
        %v3293 = vand.u32 %v3292, 4294901760
        %3294 = vmatpush1.msra.mxu0 %v3293
        %3295 = vmatprep.subr.mxu0 0.0
        %v3296 = vand.u32 %v2743, 4294901760
        %v3297 = vsub.f32 %v2743, %v3296
        %v3298 = vand.u32 %v3297, 4294901760
        %3299 = vmatpush1.msra.mxu0 %v3298
        %3300 = vmatprep.subr.mxu0 0.0
        %v3301 = vand.u32 %v2744, 4294901760
        %v3302 = vsub.f32 %v2744, %v3301
        %v3303 = vand.u32 %v3302, 4294901760
        %3304 = vmatpush1.msra.mxu0 %v3303
        %3305 = vmatprep.subr.mxu0 0.0
        %v3306 = vand.u32 %v2745, 4294901760
        %v3307 = vsub.f32 %v2745, %v3306
        %v3308 = vand.u32 %v3307, 4294901760
        %3309 = vmatpush1.msra.mxu0 %v3308
        %3310 = vmatprep.subr.mxu0 0.0
        %v3311 = vand.u32 %v2746, 4294901760
        %v3312 = vsub.f32 %v2746, %v3311
        %v3313 = vand.u32 %v3312, 4294901760
        %3314 = vmatpush1.msra.mxu0 %v3313
        %3315 = vmatprep.subr.mxu0 0.0
        %v3316 = vand.u32 %v2747, 4294901760
        %v3317 = vsub.f32 %v2747, %v3316
        %v3318 = vand.u32 %v3317, 4294901760
        %3319 = vmatpush1.msra.mxu0 %v3318
        %3320 = vmatprep.subr.mxu0 0.0
        %v3321 = vand.u32 %v2748, 4294901760
        %v3322 = vsub.f32 %v2748, %v3321
        %v3323 = vand.u32 %v3322, 4294901760
        %3324 = vmatpush1.msra.mxu0 %v3323
        %3325 = vmatprep.subr.mxu0 0.0
        %v3326 = vand.u32 %v2749, 4294901760
        %v3327 = vsub.f32 %v2749, %v3326
        %v3328 = vand.u32 %v3327, 4294901760
        %3329 = vmatpush1.msra.mxu0 %v3328
        %3330 = vmatprep.subr.mxu0 0.0
        %v3331 = vand.u32 %v2750, 4294901760
        %v3332 = vsub.f32 %v2750, %v3331
        %v3333 = vand.u32 %v3332, 4294901760
        %3334 = vmatpush1.msra.mxu0 %v3333
        %3335 = vmatprep.subr.mxu0 0.0
        %v3336 = vand.u32 %v2751, 4294901760
        %v3337 = vsub.f32 %v2751, %v3336
        %v3338 = vand.u32 %v3337, 4294901760
        %3339 = vmatpush1.msra.mxu0 %v3338
        %3340 = vmatprep.subr.mxu0 0.0
        %v3341 = vand.u32 %v2752, 4294901760
        %v3342 = vsub.f32 %v2752, %v3341
        %v3343 = vand.u32 %v3342, 4294901760
        %3344 = vmatpush1.msra.mxu0 %v3343
        %3345 = vmatprep.subr.mxu0 0.0
        %v3346 = vand.u32 %v2753, 4294901760
        %v3347 = vsub.f32 %v2753, %v3346
        %v3348 = vand.u32 %v3347, 4294901760
        %3349 = vmatpush1.msra.mxu0 %v3348
        %3350 = vmatprep.subr.mxu0 0.0
        %v3351 = vand.u32 %v2754, 4294901760
        %v3352 = vsub.f32 %v2754, %v3351
        %v3353 = vand.u32 %v3352, 4294901760
        %3354 = vmatpush1.msra.mxu0 %v3353
        %3355 = vmatprep.subr.mxu0 0.0
        %v3356 = vand.u32 %v2755, 4294901760
        %v3357 = vsub.f32 %v2755, %v3356
        %v3358 = vand.u32 %v3357, 4294901760
        %3359 = vmatpush1.msra.mxu0 %v3358
        %3360 = vmatprep.subr.mxu0 0.0
        %v3361 = vand.u32 %v2756, 4294901760
        %v3362 = vsub.f32 %v2756, %v3361
        %v3363 = vand.u32 %v3362, 4294901760
        %3364 = vmatpush1.msra.mxu0 %v3363
        %3365 = vmatprep.subr.mxu0 0.0
        %3366 = vmatpush1.msra.mxu0 0.0
        %3367 = vmatprep.subr.mxu0 0.0
        %3368 = vmatpush1.msra.mxu0 0.0
        %3369 = vmatprep.subr.mxu0 0.0
        %3370 = vmatpush1.msra.mxu0 0.0
        %3371 = vmatprep.subr.mxu0 0.0
        %3372 = vmatpush1.msra.mxu0 0.0
        %3373 = vmatprep.subr.mxu0 0.0
        %3374 = vmatpush1.msra.mxu0 0.0
        %3375 = vmatprep.subr.mxu0 0.0
        %3376 = vmatpush1.msra.mxu0 0.0
        %3377 = vmatprep.subr.mxu0 0.0
        %3378 = vmatpush1.msra.mxu0 0.0
        %3379 = vmatprep.subr.mxu0 0.0
        %3380 = vmatpush1.msra.mxu0 0.0
        %3381 = vmatprep.subr.mxu0 0.0
        %3382 = vmatpush1.msra.mxu0 0.0
        %3383 = vmatprep.subr.mxu0 0.0
        %3384 = vmatpush1.msra.mxu0 0.0
        %3385 = vmatprep.subr.mxu0 0.0
        %3386 = vmatpush1.msra.mxu0 0.0
        %3387 = vmatprep.subr.mxu0 0.0
        %3388 = vmatpush1.msra.mxu0 0.0
        %3389 = vmatprep.subr.mxu0 0.0
        %3390 = vmatpush1.msra.mxu0 0.0
        %3391 = vmatprep.subr.mxu0 0.0
        %3392 = vmatpush1.msra.mxu0 0.0
        %3393 = vmatprep.subr.mxu0 0.0
        %3394 = vmatpush1.msra.mxu0 0.0
        %3395 = vmatprep.subr.mxu0 0.0
        %3396 = vmatpush1.msra.mxu0 0.0
        %3397 = vmatprep.mubr.f32.mxu0 0.0
        %v3398 = vand.u32 %v2736, 4294901760
        %3399 = vmatmul.mubr.f32.gmra.mrb[0].mxu0 %v3398
        %v3400 = vpop.f32.mrb[0].mxu0
        %v3401 = vadd.f32 %v3258, %v3400
        %v3402 = vpop.f32.mrb[0].mxu0
        %3403 = vmatprep.mubr.f32.mxu0 0.0
        %v3404 = vand.u32 %v2737, 4294901760
        %3405 = vmatmul.mubr.f32.gmra.mrb[0].mxu0 %v3404
        %v3406 = vpop.f32.mrb[0].mxu0
        %v3407 = vadd.f32 %v3266, %v3406
        %v3408 = vpop.f32.mrb[0].mxu0
        %3409 = vmatprep.mubr.f32.mxu0 0.0
        %v3410 = vand.u32 %v2738, 4294901760
        %3411 = vmatmul.mubr.f32.gmra.mrb[0].mxu0 %v3410
        %v3412 = vpop.f32.mrb[0].mxu0
        %v3413 = vadd.f32 %v3274, %v3412
        %v3414 = vpop.f32.mrb[0].mxu0
        %3415 = vmatprep.mubr.f32.mxu0 0.0
        %v3416 = vand.u32 %v2739, 4294901760
        %3417 = vmatmul.mubr.f32.gmra.mrb[0].mxu0 %v3416
        %v3418 = vpop.f32.mrb[0].mxu0
        %v3419 = vadd.f32 %v3282, %v3418
        %v3420 = vpop.f32.mrb[0].mxu0
        %3421 = vdwg.mxu0
        %3422 = vmatprep.subr.mxu0 0.0
        %v3423 = vand.u32 %v2741, 4294901760
        %3424 = vmatpush1.msra.mxu0 %v3423
        %3425 = vmatprep.subr.mxu0 0.0
        %v3426 = vand.u32 %v2742, 4294901760
        %3427 = vmatpush1.msra.mxu0 %v3426
        %3428 = vmatprep.subr.mxu0 0.0
        %v3429 = vand.u32 %v2743, 4294901760
        %3430 = vmatpush1.msra.mxu0 %v3429
        %3431 = vmatprep.subr.mxu0 0.0
        %v3432 = vand.u32 %v2744, 4294901760
        %3433 = vmatpush1.msra.mxu0 %v3432
        %3434 = vmatprep.subr.mxu0 0.0
        %v3435 = vand.u32 %v2745, 4294901760
        %3436 = vmatpush1.msra.mxu0 %v3435
        %3437 = vmatprep.subr.mxu0 0.0
        %v3438 = vand.u32 %v2746, 4294901760
        %3439 = vmatpush1.msra.mxu0 %v3438
        %3440 = vmatprep.subr.mxu0 0.0
        %v3441 = vand.u32 %v2747, 4294901760
        %3442 = vmatpush1.msra.mxu0 %v3441
        %3443 = vmatprep.subr.mxu0 0.0
        %v3444 = vand.u32 %v2748, 4294901760
        %3445 = vmatpush1.msra.mxu0 %v3444
        %3446 = vmatprep.subr.mxu0 0.0
        %v3447 = vand.u32 %v2749, 4294901760
        %3448 = vmatpush1.msra.mxu0 %v3447
        %3449 = vmatprep.subr.mxu0 0.0
        %v3450 = vand.u32 %v2750, 4294901760
        %3451 = vmatpush1.msra.mxu0 %v3450
        %3452 = vmatprep.subr.mxu0 0.0
        %v3453 = vand.u32 %v2751, 4294901760
        %3454 = vmatpush1.msra.mxu0 %v3453
        %3455 = vmatprep.subr.mxu0 0.0
        %v3456 = vand.u32 %v2752, 4294901760
        %3457 = vmatpush1.msra.mxu0 %v3456
        %3458 = vmatprep.subr.mxu0 0.0
        %v3459 = vand.u32 %v2753, 4294901760
        %3460 = vmatpush1.msra.mxu0 %v3459
        %3461 = vmatprep.subr.mxu0 0.0
        %v3462 = vand.u32 %v2754, 4294901760
        %3463 = vmatpush1.msra.mxu0 %v3462
        %3464 = vmatprep.subr.mxu0 0.0
        %v3465 = vand.u32 %v2755, 4294901760
        %3466 = vmatpush1.msra.mxu0 %v3465
        %3467 = vmatprep.subr.mxu0 0.0
        %v3468 = vand.u32 %v2756, 4294901760
        %3469 = vmatpush1.msra.mxu0 %v3468
        %3470 = vmatprep.subr.mxu0 0.0
        %3471 = vmatpush1.msra.mxu0 0.0
        %3472 = vmatprep.subr.mxu0 0.0
        %3473 = vmatpush1.msra.mxu0 0.0
        %3474 = vmatprep.subr.mxu0 0.0
        %3475 = vmatpush1.msra.mxu0 0.0
        %3476 = vmatprep.subr.mxu0 0.0
        %3477 = vmatpush1.msra.mxu0 0.0
        %3478 = vmatprep.subr.mxu0 0.0
        %3479 = vmatpush1.msra.mxu0 0.0
        %3480 = vmatprep.subr.mxu0 0.0
        %3481 = vmatpush1.msra.mxu0 0.0
        %3482 = vmatprep.subr.mxu0 0.0
        %3483 = vmatpush1.msra.mxu0 0.0
        %3484 = vmatprep.subr.mxu0 0.0
        %3485 = vmatpush1.msra.mxu0 0.0
        %3486 = vmatprep.subr.mxu0 0.0
        %3487 = vmatpush1.msra.mxu0 0.0
        %3488 = vmatprep.subr.mxu0 0.0
        %3489 = vmatpush1.msra.mxu0 0.0
        %3490 = vmatprep.subr.mxu0 0.0
        %3491 = vmatpush1.msra.mxu0 0.0
        %3492 = vmatprep.subr.mxu0 0.0
        %3493 = vmatpush1.msra.mxu0 0.0
        %3494 = vmatprep.subr.mxu0 0.0
        %3495 = vmatpush1.msra.mxu0 0.0
        %3496 = vmatprep.subr.mxu0 0.0
        %3497 = vmatpush1.msra.mxu0 0.0
        %3498 = vmatprep.subr.mxu0 0.0
        %3499 = vmatpush1.msra.mxu0 0.0
        %3500 = vmatprep.subr.mxu0 0.0
        %3501 = vmatpush1.msra.mxu0 0.0
        %3502 = vmatprep.mubr.f32.mxu0 0.0
        %v3503 = vand.u32 %v2736, 4294901760
        %3504 = vmatmul.mubr.f32.gmra.mrb[0].mxu0 %v3503
        %v3505 = vpop.f32.mrb[0].mxu0
        %v3506 = vadd.f32 %v3401, %v3505
        %v3507 = vpop.f32.mrb[0].mxu0
        %3508 = vmatprep.mubr.f32.mxu0 0.0
        %v3509 = vand.u32 %v2737, 4294901760
        %3510 = vmatmul.mubr.f32.gmra.mrb[0].mxu0 %v3509
        %v3511 = vpop.f32.mrb[0].mxu0
        %v3512 = vadd.f32 %v3407, %v3511
        %v3513 = vpop.f32.mrb[0].mxu0
        %3514 = vmatprep.mubr.f32.mxu0 0.0
        %v3515 = vand.u32 %v2738, 4294901760
        %3516 = vmatmul.mubr.f32.gmra.mrb[0].mxu0 %v3515
        %v3517 = vpop.f32.mrb[0].mxu0
        %v3518 = vadd.f32 %v3413, %v3517
        %v3519 = vpop.f32.mrb[0].mxu0
        %3520 = vmatprep.mubr.f32.mxu0 0.0
        %v3521 = vand.u32 %v2739, 4294901760
        %3522 = vmatmul.mubr.f32.gmra.mrb[0].mxu0 %v3521
        %v3523 = vpop.f32.mrb[0].mxu0
        %v3524 = vadd.f32 %v3419, %v3523
        %v3525 = vpop.f32.mrb[0].mxu0
        %3526 = vdwg.mxu0
        %v3527 = vadd.f32 %v2715, %v3506
        %v3528 = vadd.f32 %v2721, %v3512
        %v3529 = vadd.f32 %v2727, %v3518
        %v3530 = vadd.f32 %v2733, %v3524
        %v3531 = vld [vmem:[#allocation3 + $0x3] sm:$0xff]
        %v3532 = vld [vmem:[#allocation3 + $0xb] sm:$0xff]
        %v3533 = vld [vmem:[#allocation3 + $0x13] sm:$0xff]
        %v3534 = vld [vmem:[#allocation3 + $0x1b] sm:$0x1]
        %s3535 = scalar_lea.vmem [#allocation4], 384
        %v3536 = vld [vmem:[%s3535] sm:$0xff]
        %v3537 = vld [vmem:[%s3535 + $0x8] sm:$0xff]
        %v3538 = vld [vmem:[%s3535 + $0x10] sm:$0xff]
        %v3539 = vld [vmem:[%s3535 + $0x18] sm:$0xff]
        %v3540 = vld [vmem:[%s3535 + $0x20] sm:$0xff]
        %v3541 = vld [vmem:[%s3535 + $0x28] sm:$0xff]
        %v3542 = vld [vmem:[%s3535 + $0x30] sm:$0xff]
        %v3543 = vld [vmem:[%s3535 + $0x38] sm:$0xff]
        %v3544 = vld [vmem:[%s3535 + $0x40] sm:$0xff]
        %v3545 = vld [vmem:[%s3535 + $0x48] sm:$0xff]
        %v3546 = vld [vmem:[%s3535 + $0x50] sm:$0xff]
        %v3547 = vld [vmem:[%s3535 + $0x58] sm:$0xff]
        %v3548 = vld [vmem:[%s3535 + $0x60] sm:$0xff]
        %v3549 = vld [vmem:[%s3535 + $0x68] sm:$0xff]
        %v3550 = vld [vmem:[%s3535 + $0x70] sm:$0xff]
        %v3551 = vld [vmem:[%s3535 + $0x78] sm:$0xff]
        %3552 = vmatprep.subr.mxu0 0.0
        %v3553 = vand.u32 %v3536, 4294901760
        %3554 = vmatpush1.msra.mxu0 %v3553
        %3555 = vmatprep.subr.mxu0 0.0
        %v3556 = vand.u32 %v3537, 4294901760
        %3557 = vmatpush1.msra.mxu0 %v3556
        %3558 = vmatprep.subr.mxu0 0.0
        %v3559 = vand.u32 %v3538, 4294901760
        %3560 = vmatpush1.msra.mxu0 %v3559
        %3561 = vmatprep.subr.mxu0 0.0
        %v3562 = vand.u32 %v3539, 4294901760
        %3563 = vmatpush1.msra.mxu0 %v3562
        %3564 = vmatprep.subr.mxu0 0.0
        %v3565 = vand.u32 %v3540, 4294901760
        %3566 = vmatpush1.msra.mxu0 %v3565
        %3567 = vmatprep.subr.mxu0 0.0
        %v3568 = vand.u32 %v3541, 4294901760
        %3569 = vmatpush1.msra.mxu0 %v3568
        %3570 = vmatprep.subr.mxu0 0.0
        %v3571 = vand.u32 %v3542, 4294901760
        %3572 = vmatpush1.msra.mxu0 %v3571
        %3573 = vmatprep.subr.mxu0 0.0
        %v3574 = vand.u32 %v3543, 4294901760
        %3575 = vmatpush1.msra.mxu0 %v3574
        %3576 = vmatprep.subr.mxu0 0.0
        %v3577 = vand.u32 %v3544, 4294901760
        %3578 = vmatpush1.msra.mxu0 %v3577
        %3579 = vmatprep.subr.mxu0 0.0
        %v3580 = vand.u32 %v3545, 4294901760
        %3581 = vmatpush1.msra.mxu0 %v3580
        %3582 = vmatprep.subr.mxu0 0.0
        %v3583 = vand.u32 %v3546, 4294901760
        %3584 = vmatpush1.msra.mxu0 %v3583
        %3585 = vmatprep.subr.mxu0 0.0
        %v3586 = vand.u32 %v3547, 4294901760
        %3587 = vmatpush1.msra.mxu0 %v3586
        %3588 = vmatprep.subr.mxu0 0.0
        %v3589 = vand.u32 %v3548, 4294901760
        %3590 = vmatpush1.msra.mxu0 %v3589
        %3591 = vmatprep.subr.mxu0 0.0
        %v3592 = vand.u32 %v3549, 4294901760
        %3593 = vmatpush1.msra.mxu0 %v3592
        %3594 = vmatprep.subr.mxu0 0.0
        %v3595 = vand.u32 %v3550, 4294901760
        %3596 = vmatpush1.msra.mxu0 %v3595
        %3597 = vmatprep.subr.mxu0 0.0
        %v3598 = vand.u32 %v3551, 4294901760
        %3599 = vmatpush1.msra.mxu0 %v3598
        %3600 = vmatprep.subr.mxu0 0.0
        %3601 = vmatpush1.msra.mxu0 0.0
        %3602 = vmatprep.subr.mxu0 0.0
        %3603 = vmatpush1.msra.mxu0 0.0
        %3604 = vmatprep.subr.mxu0 0.0
        %3605 = vmatpush1.msra.mxu0 0.0
        %3606 = vmatprep.subr.mxu0 0.0
        %3607 = vmatpush1.msra.mxu0 0.0
        %3608 = vmatprep.subr.mxu0 0.0
        %3609 = vmatpush1.msra.mxu0 0.0
        %3610 = vmatprep.subr.mxu0 0.0
        %3611 = vmatpush1.msra.mxu0 0.0
        %3612 = vmatprep.subr.mxu0 0.0
        %3613 = vmatpush1.msra.mxu0 0.0
        %3614 = vmatprep.subr.mxu0 0.0
        %3615 = vmatpush1.msra.mxu0 0.0
        %3616 = vmatprep.subr.mxu0 0.0
        %3617 = vmatpush1.msra.mxu0 0.0
        %3618 = vmatprep.subr.mxu0 0.0
        %3619 = vmatpush1.msra.mxu0 0.0
        %3620 = vmatprep.subr.mxu0 0.0
        %3621 = vmatpush1.msra.mxu0 0.0
        %3622 = vmatprep.subr.mxu0 0.0
        %3623 = vmatpush1.msra.mxu0 0.0
        %3624 = vmatprep.subr.mxu0 0.0
        %3625 = vmatpush1.msra.mxu0 0.0
        %3626 = vmatprep.subr.mxu0 0.0
        %3627 = vmatpush1.msra.mxu0 0.0
        %3628 = vmatprep.subr.mxu0 0.0
        %3629 = vmatpush1.msra.mxu0 0.0
        %3630 = vmatprep.subr.mxu0 0.0
        %3631 = vmatpush1.msra.mxu0 0.0
        %3632 = vmatprep.mubr.f32.mxu0 0.0
        %v3633 = vand.u32 %v3531, 4294901760
        %v3634 = vsub.f32 %v3531, %v3633
        %v3635 = vand.u32 %v3634, 4294901760
        %v3636 = vsub.f32 %v3634, %v3635
        %v3637 = vand.u32 %v3636, 4294901760
        %3638 = vmatmul.mubr.f32.gmra.mrb[0].mxu0 %v3637
        %v3639 = vpop.f32.mrb[0].mxu0
        %v3640 = vadd.f32 0.0, %v3639
        %v3641 = vpop.f32.mrb[0].mxu0
        %3642 = vmatprep.mubr.f32.mxu0 0.0
        %v3643 = vand.u32 %v3532, 4294901760
        %v3644 = vsub.f32 %v3532, %v3643
        %v3645 = vand.u32 %v3644, 4294901760
        %v3646 = vsub.f32 %v3644, %v3645
        %v3647 = vand.u32 %v3646, 4294901760
        %3648 = vmatmul.mubr.f32.gmra.mrb[0].mxu0 %v3647
        %v3649 = vpop.f32.mrb[0].mxu0
        %v3650 = vadd.f32 0.0, %v3649
        %v3651 = vpop.f32.mrb[0].mxu0
        %3652 = vmatprep.mubr.f32.mxu0 0.0
        %v3653 = vand.u32 %v3533, 4294901760
        %v3654 = vsub.f32 %v3533, %v3653
        %v3655 = vand.u32 %v3654, 4294901760
        %v3656 = vsub.f32 %v3654, %v3655
        %v3657 = vand.u32 %v3656, 4294901760
        %3658 = vmatmul.mubr.f32.gmra.mrb[0].mxu0 %v3657
        %v3659 = vpop.f32.mrb[0].mxu0
        %v3660 = vadd.f32 0.0, %v3659
        %v3661 = vpop.f32.mrb[0].mxu0
        %3662 = vmatprep.mubr.f32.mxu0 0.0
        %v3663 = vand.u32 %v3534, 4294901760
        %v3664 = vsub.f32 %v3534, %v3663
        %v3665 = vand.u32 %v3664, 4294901760
        %v3666 = vsub.f32 %v3664, %v3665
        %v3667 = vand.u32 %v3666, 4294901760
        %3668 = vmatmul.mubr.f32.gmra.mrb[0].mxu0 %v3667
        %v3669 = vpop.f32.mrb[0].mxu0
        %v3670 = vadd.f32 0.0, %v3669
        %v3671 = vpop.f32.mrb[0].mxu0
        %3672 = vdwg.mxu0
        %3673 = vmatprep.subr.mxu0 0.0
        %v3674 = vand.u32 %v3536, 4294901760
        %v3675 = vsub.f32 %v3536, %v3674
        %v3676 = vand.u32 %v3675, 4294901760
        %v3677 = vsub.f32 %v3675, %v3676
        %v3678 = vand.u32 %v3677, 4294901760
        %3679 = vmatpush1.msra.mxu0 %v3678
        %3680 = vmatprep.subr.mxu0 0.0
        %v3681 = vand.u32 %v3537, 4294901760
        %v3682 = vsub.f32 %v3537, %v3681
        %v3683 = vand.u32 %v3682, 4294901760
        %v3684 = vsub.f32 %v3682, %v3683
        %v3685 = vand.u32 %v3684, 4294901760
        %3686 = vmatpush1.msra.mxu0 %v3685
        %3687 = vmatprep.subr.mxu0 0.0
        %v3688 = vand.u32 %v3538, 4294901760
        %v3689 = vsub.f32 %v3538, %v3688
        %v3690 = vand.u32 %v3689, 4294901760
        %v3691 = vsub.f32 %v3689, %v3690
        %v3692 = vand.u32 %v3691, 4294901760
        %3693 = vmatpush1.msra.mxu0 %v3692
        %3694 = vmatprep.subr.mxu0 0.0
        %v3695 = vand.u32 %v3539, 4294901760
        %v3696 = vsub.f32 %v3539, %v3695
        %v3697 = vand.u32 %v3696, 4294901760
        %v3698 = vsub.f32 %v3696, %v3697
        %v3699 = vand.u32 %v3698, 4294901760
        %3700 = vmatpush1.msra.mxu0 %v3699
        %3701 = vmatprep.subr.mxu0 0.0
        %v3702 = vand.u32 %v3540, 4294901760
        %v3703 = vsub.f32 %v3540, %v3702
        %v3704 = vand.u32 %v3703, 4294901760
        %v3705 = vsub.f32 %v3703, %v3704
        %v3706 = vand.u32 %v3705, 4294901760
        %3707 = vmatpush1.msra.mxu0 %v3706
        %3708 = vmatprep.subr.mxu0 0.0
        %v3709 = vand.u32 %v3541, 4294901760
        %v3710 = vsub.f32 %v3541, %v3709
        %v3711 = vand.u32 %v3710, 4294901760
        %v3712 = vsub.f32 %v3710, %v3711
        %v3713 = vand.u32 %v3712, 4294901760
        %3714 = vmatpush1.msra.mxu0 %v3713
        %3715 = vmatprep.subr.mxu0 0.0
        %v3716 = vand.u32 %v3542, 4294901760
        %v3717 = vsub.f32 %v3542, %v3716
        %v3718 = vand.u32 %v3717, 4294901760
        %v3719 = vsub.f32 %v3717, %v3718
        %v3720 = vand.u32 %v3719, 4294901760
        %3721 = vmatpush1.msra.mxu0 %v3720
        %3722 = vmatprep.subr.mxu0 0.0
        %v3723 = vand.u32 %v3543, 4294901760
        %v3724 = vsub.f32 %v3543, %v3723
        %v3725 = vand.u32 %v3724, 4294901760
        %v3726 = vsub.f32 %v3724, %v3725
        %v3727 = vand.u32 %v3726, 4294901760
        %3728 = vmatpush1.msra.mxu0 %v3727
        %3729 = vmatprep.subr.mxu0 0.0
        %v3730 = vand.u32 %v3544, 4294901760
        %v3731 = vsub.f32 %v3544, %v3730
        %v3732 = vand.u32 %v3731, 4294901760
        %v3733 = vsub.f32 %v3731, %v3732
        %v3734 = vand.u32 %v3733, 4294901760
        %3735 = vmatpush1.msra.mxu0 %v3734
        %3736 = vmatprep.subr.mxu0 0.0
        %v3737 = vand.u32 %v3545, 4294901760
        %v3738 = vsub.f32 %v3545, %v3737
        %v3739 = vand.u32 %v3738, 4294901760
        %v3740 = vsub.f32 %v3738, %v3739
        %v3741 = vand.u32 %v3740, 4294901760
        %3742 = vmatpush1.msra.mxu0 %v3741
        %3743 = vmatprep.subr.mxu0 0.0
        %v3744 = vand.u32 %v3546, 4294901760
        %v3745 = vsub.f32 %v3546, %v3744
        %v3746 = vand.u32 %v3745, 4294901760
        %v3747 = vsub.f32 %v3745, %v3746
        %v3748 = vand.u32 %v3747, 4294901760
        %3749 = vmatpush1.msra.mxu0 %v3748
        %3750 = vmatprep.subr.mxu0 0.0
        %v3751 = vand.u32 %v3547, 4294901760
        %v3752 = vsub.f32 %v3547, %v3751
        %v3753 = vand.u32 %v3752, 4294901760
        %v3754 = vsub.f32 %v3752, %v3753
        %v3755 = vand.u32 %v3754, 4294901760
        %3756 = vmatpush1.msra.mxu0 %v3755
        %3757 = vmatprep.subr.mxu0 0.0
        %v3758 = vand.u32 %v3548, 4294901760
        %v3759 = vsub.f32 %v3548, %v3758
        %v3760 = vand.u32 %v3759, 4294901760
        %v3761 = vsub.f32 %v3759, %v3760
        %v3762 = vand.u32 %v3761, 4294901760
        %3763 = vmatpush1.msra.mxu0 %v3762
        %3764 = vmatprep.subr.mxu0 0.0
        %v3765 = vand.u32 %v3549, 4294901760
        %v3766 = vsub.f32 %v3549, %v3765
        %v3767 = vand.u32 %v3766, 4294901760
        %v3768 = vsub.f32 %v3766, %v3767
        %v3769 = vand.u32 %v3768, 4294901760
        %3770 = vmatpush1.msra.mxu0 %v3769
        %3771 = vmatprep.subr.mxu0 0.0
        %v3772 = vand.u32 %v3550, 4294901760
        %v3773 = vsub.f32 %v3550, %v3772
        %v3774 = vand.u32 %v3773, 4294901760
        %v3775 = vsub.f32 %v3773, %v3774
        %v3776 = vand.u32 %v3775, 4294901760
        %3777 = vmatpush1.msra.mxu0 %v3776
        %3778 = vmatprep.subr.mxu0 0.0
        %v3779 = vand.u32 %v3551, 4294901760
        %v3780 = vsub.f32 %v3551, %v3779
        %v3781 = vand.u32 %v3780, 4294901760
        %v3782 = vsub.f32 %v3780, %v3781
        %v3783 = vand.u32 %v3782, 4294901760
        %3784 = vmatpush1.msra.mxu0 %v3783
        %3785 = vmatprep.subr.mxu0 0.0
        %3786 = vmatpush1.msra.mxu0 0.0
        %3787 = vmatprep.subr.mxu0 0.0
        %3788 = vmatpush1.msra.mxu0 0.0
        %3789 = vmatprep.subr.mxu0 0.0
        %3790 = vmatpush1.msra.mxu0 0.0
        %3791 = vmatprep.subr.mxu0 0.0
        %3792 = vmatpush1.msra.mxu0 0.0
        %3793 = vmatprep.subr.mxu0 0.0
        %3794 = vmatpush1.msra.mxu0 0.0
        %3795 = vmatprep.subr.mxu0 0.0
        %3796 = vmatpush1.msra.mxu0 0.0
        %3797 = vmatprep.subr.mxu0 0.0
        %3798 = vmatpush1.msra.mxu0 0.0
        %3799 = vmatprep.subr.mxu0 0.0
        %3800 = vmatpush1.msra.mxu0 0.0
        %3801 = vmatprep.subr.mxu0 0.0
        %3802 = vmatpush1.msra.mxu0 0.0
        %3803 = vmatprep.subr.mxu0 0.0
        %3804 = vmatpush1.msra.mxu0 0.0
        %3805 = vmatprep.subr.mxu0 0.0
        %3806 = vmatpush1.msra.mxu0 0.0
        %3807 = vmatprep.subr.mxu0 0.0
        %3808 = vmatpush1.msra.mxu0 0.0
        %3809 = vmatprep.subr.mxu0 0.0
        %3810 = vmatpush1.msra.mxu0 0.0
        %3811 = vmatprep.subr.mxu0 0.0
        %3812 = vmatpush1.msra.mxu0 0.0
        %3813 = vmatprep.subr.mxu0 0.0
        %3814 = vmatpush1.msra.mxu0 0.0
        %3815 = vmatprep.subr.mxu0 0.0
        %3816 = vmatpush1.msra.mxu0 0.0
        %3817 = vmatprep.mubr.f32.mxu0 0.0
        %v3818 = vand.u32 %v3531, 4294901760
        %3819 = vmatmul.mubr.f32.gmra.mrb[0].mxu0 %v3818
        %v3820 = vpop.f32.mrb[0].mxu0
        %v3821 = vadd.f32 %v3640, %v3820
        %v3822 = vpop.f32.mrb[0].mxu0
        %3823 = vmatprep.mubr.f32.mxu0 0.0
        %v3824 = vand.u32 %v3532, 4294901760
        %3825 = vmatmul.mubr.f32.gmra.mrb[0].mxu0 %v3824
        %v3826 = vpop.f32.mrb[0].mxu0
        %v3827 = vadd.f32 %v3650, %v3826
        %v3828 = vpop.f32.mrb[0].mxu0
        %3829 = vmatprep.mubr.f32.mxu0 0.0
        %v3830 = vand.u32 %v3533, 4294901760
        %3831 = vmatmul.mubr.f32.gmra.mrb[0].mxu0 %v3830
        %v3832 = vpop.f32.mrb[0].mxu0
        %v3833 = vadd.f32 %v3660, %v3832
        %v3834 = vpop.f32.mrb[0].mxu0
        %3835 = vmatprep.mubr.f32.mxu0 0.0
        %v3836 = vand.u32 %v3534, 4294901760
        %3837 = vmatmul.mubr.f32.gmra.mrb[0].mxu0 %v3836
        %v3838 = vpop.f32.mrb[0].mxu0
        %v3839 = vadd.f32 %v3670, %v3838
        %v3840 = vpop.f32.mrb[0].mxu0
        %3841 = vdwg.mxu0
        %3842 = vmatprep.subr.mxu0 0.0
        %v3843 = vand.u32 %v3536, 4294901760
        %v3844 = vsub.f32 %v3536, %v3843
        %3845 = vmatpush1.msra.mxu0 %v3844
        %3846 = vmatprep.subr.mxu0 0.0
        %v3847 = vand.u32 %v3537, 4294901760
        %v3848 = vsub.f32 %v3537, %v3847
        %3849 = vmatpush1.msra.mxu0 %v3848
        %3850 = vmatprep.subr.mxu0 0.0
        %v3851 = vand.u32 %v3538, 4294901760
        %v3852 = vsub.f32 %v3538, %v3851
        %3853 = vmatpush1.msra.mxu0 %v3852
        %3854 = vmatprep.subr.mxu0 0.0
        %v3855 = vand.u32 %v3539, 4294901760
        %v3856 = vsub.f32 %v3539, %v3855
        %3857 = vmatpush1.msra.mxu0 %v3856
        %3858 = vmatprep.subr.mxu0 0.0
        %v3859 = vand.u32 %v3540, 4294901760
        %v3860 = vsub.f32 %v3540, %v3859
        %3861 = vmatpush1.msra.mxu0 %v3860
        %3862 = vmatprep.subr.mxu0 0.0
        %v3863 = vand.u32 %v3541, 4294901760
        %v3864 = vsub.f32 %v3541, %v3863
        %3865 = vmatpush1.msra.mxu0 %v3864
        %3866 = vmatprep.subr.mxu0 0.0
        %v3867 = vand.u32 %v3542, 4294901760
        %v3868 = vsub.f32 %v3542, %v3867
        %3869 = vmatpush1.msra.mxu0 %v3868
        %3870 = vmatprep.subr.mxu0 0.0
        %v3871 = vand.u32 %v3543, 4294901760
        %v3872 = vsub.f32 %v3543, %v3871
        %3873 = vmatpush1.msra.mxu0 %v3872
        %3874 = vmatprep.subr.mxu0 0.0
        %v3875 = vand.u32 %v3544, 4294901760
        %v3876 = vsub.f32 %v3544, %v3875
        %3877 = vmatpush1.msra.mxu0 %v3876
        %3878 = vmatprep.subr.mxu0 0.0
        %v3879 = vand.u32 %v3545, 4294901760
        %v3880 = vsub.f32 %v3545, %v3879
        %3881 = vmatpush1.msra.mxu0 %v3880
        %3882 = vmatprep.subr.mxu0 0.0
        %v3883 = vand.u32 %v3546, 4294901760
        %v3884 = vsub.f32 %v3546, %v3883
        %3885 = vmatpush1.msra.mxu0 %v3884
        %3886 = vmatprep.subr.mxu0 0.0
        %v3887 = vand.u32 %v3547, 4294901760
        %v3888 = vsub.f32 %v3547, %v3887
        %3889 = vmatpush1.msra.mxu0 %v3888
        %3890 = vmatprep.subr.mxu0 0.0
        %v3891 = vand.u32 %v3548, 4294901760
        %v3892 = vsub.f32 %v3548, %v3891
        %3893 = vmatpush1.msra.mxu0 %v3892
        %3894 = vmatprep.subr.mxu0 0.0
        %v3895 = vand.u32 %v3549, 4294901760
        %v3896 = vsub.f32 %v3549, %v3895
        %3897 = vmatpush1.msra.mxu0 %v3896
        %3898 = vmatprep.subr.mxu0 0.0
        %v3899 = vand.u32 %v3550, 4294901760
        %v3900 = vsub.f32 %v3550, %v3899
        %3901 = vmatpush1.msra.mxu0 %v3900
        %3902 = vmatprep.subr.mxu0 0.0
        %v3903 = vand.u32 %v3551, 4294901760
        %v3904 = vsub.f32 %v3551, %v3903
        %3905 = vmatpush1.msra.mxu0 %v3904
        %3906 = vmatprep.subr.mxu0 0.0
        %3907 = vmatpush1.msra.mxu0 0.0
        %3908 = vmatprep.subr.mxu0 0.0
        %3909 = vmatpush1.msra.mxu0 0.0
        %3910 = vmatprep.subr.mxu0 0.0
        %3911 = vmatpush1.msra.mxu0 0.0
        %3912 = vmatprep.subr.mxu0 0.0
        %3913 = vmatpush1.msra.mxu0 0.0
        %3914 = vmatprep.subr.mxu0 0.0
        %3915 = vmatpush1.msra.mxu0 0.0
        %3916 = vmatprep.subr.mxu0 0.0
        %3917 = vmatpush1.msra.mxu0 0.0
        %3918 = vmatprep.subr.mxu0 0.0
        %3919 = vmatpush1.msra.mxu0 0.0
        %3920 = vmatprep.subr.mxu0 0.0
        %3921 = vmatpush1.msra.mxu0 0.0
        %3922 = vmatprep.subr.mxu0 0.0
        %3923 = vmatpush1.msra.mxu0 0.0
        %3924 = vmatprep.subr.mxu0 0.0
        %3925 = vmatpush1.msra.mxu0 0.0
        %3926 = vmatprep.subr.mxu0 0.0
        %3927 = vmatpush1.msra.mxu0 0.0
        %3928 = vmatprep.subr.mxu0 0.0
        %3929 = vmatpush1.msra.mxu0 0.0
        %3930 = vmatprep.subr.mxu0 0.0
        %3931 = vmatpush1.msra.mxu0 0.0
        %3932 = vmatprep.subr.mxu0 0.0
        %3933 = vmatpush1.msra.mxu0 0.0
        %3934 = vmatprep.subr.mxu0 0.0
        %3935 = vmatpush1.msra.mxu0 0.0
        %3936 = vmatprep.subr.mxu0 0.0
        %3937 = vmatpush1.msra.mxu0 0.0
        %3938 = vmatprep.mubr.f32.mxu0 0.0
        %v3939 = vand.u32 %v3531, 4294901760
        %v3940 = vsub.f32 %v3531, %v3939
        %3941 = vmatmul.mubr.f32.gmra.mrb[0].mxu0 %v3940
        %v3942 = vpop.f32.mrb[0].mxu0
        %v3943 = vadd.f32 %v3821, %v3942
        %v3944 = vpop.f32.mrb[0].mxu0
        %3945 = vmatprep.mubr.f32.mxu0 0.0
        %v3946 = vand.u32 %v3532, 4294901760
        %v3947 = vsub.f32 %v3532, %v3946
        %3948 = vmatmul.mubr.f32.gmra.mrb[0].mxu0 %v3947
        %v3949 = vpop.f32.mrb[0].mxu0
        %v3950 = vadd.f32 %v3827, %v3949
        %v3951 = vpop.f32.mrb[0].mxu0
        %3952 = vmatprep.mubr.f32.mxu0 0.0
        %v3953 = vand.u32 %v3533, 4294901760
        %v3954 = vsub.f32 %v3533, %v3953
        %3955 = vmatmul.mubr.f32.gmra.mrb[0].mxu0 %v3954
        %v3956 = vpop.f32.mrb[0].mxu0
        %v3957 = vadd.f32 %v3833, %v3956
        %v3958 = vpop.f32.mrb[0].mxu0
        %3959 = vmatprep.mubr.f32.mxu0 0.0
        %v3960 = vand.u32 %v3534, 4294901760
        %v3961 = vsub.f32 %v3534, %v3960
        %3962 = vmatmul.mubr.f32.gmra.mrb[0].mxu0 %v3961
        %v3963 = vpop.f32.mrb[0].mxu0
        %v3964 = vadd.f32 %v3839, %v3963
        %v3965 = vpop.f32.mrb[0].mxu0
        %3966 = vdwg.mxu0
        %3967 = vmatprep.subr.mxu0 0.0
        %v3968 = vand.u32 %v3536, 4294901760
        %3969 = vmatpush1.msra.mxu0 %v3968
        %3970 = vmatprep.subr.mxu0 0.0
        %v3971 = vand.u32 %v3537, 4294901760
        %3972 = vmatpush1.msra.mxu0 %v3971
        %3973 = vmatprep.subr.mxu0 0.0
        %v3974 = vand.u32 %v3538, 4294901760
        %3975 = vmatpush1.msra.mxu0 %v3974
        %3976 = vmatprep.subr.mxu0 0.0
        %v3977 = vand.u32 %v3539, 4294901760
        %3978 = vmatpush1.msra.mxu0 %v3977
        %3979 = vmatprep.subr.mxu0 0.0
        %v3980 = vand.u32 %v3540, 4294901760
        %3981 = vmatpush1.msra.mxu0 %v3980
        %3982 = vmatprep.subr.mxu0 0.0
        %v3983 = vand.u32 %v3541, 4294901760
        %3984 = vmatpush1.msra.mxu0 %v3983
        %3985 = vmatprep.subr.mxu0 0.0
        %v3986 = vand.u32 %v3542, 4294901760
        %3987 = vmatpush1.msra.mxu0 %v3986
        %3988 = vmatprep.subr.mxu0 0.0
        %v3989 = vand.u32 %v3543, 4294901760
        %3990 = vmatpush1.msra.mxu0 %v3989
        %3991 = vmatprep.subr.mxu0 0.0
        %v3992 = vand.u32 %v3544, 4294901760
        %3993 = vmatpush1.msra.mxu0 %v3992
        %3994 = vmatprep.subr.mxu0 0.0
        %v3995 = vand.u32 %v3545, 4294901760
        %3996 = vmatpush1.msra.mxu0 %v3995
        %3997 = vmatprep.subr.mxu0 0.0
        %v3998 = vand.u32 %v3546, 4294901760
        %3999 = vmatpush1.msra.mxu0 %v3998
        %4000 = vmatprep.subr.mxu0 0.0
        %v4001 = vand.u32 %v3547, 4294901760
        %4002 = vmatpush1.msra.mxu0 %v4001
        %4003 = vmatprep.subr.mxu0 0.0
        %v4004 = vand.u32 %v3548, 4294901760
        %4005 = vmatpush1.msra.mxu0 %v4004
        %4006 = vmatprep.subr.mxu0 0.0
        %v4007 = vand.u32 %v3549, 4294901760
        %4008 = vmatpush1.msra.mxu0 %v4007
        %4009 = vmatprep.subr.mxu0 0.0
        %v4010 = vand.u32 %v3550, 4294901760
        %4011 = vmatpush1.msra.mxu0 %v4010
        %4012 = vmatprep.subr.mxu0 0.0
        %v4013 = vand.u32 %v3551, 4294901760
        %4014 = vmatpush1.msra.mxu0 %v4013
        %4015 = vmatprep.subr.mxu0 0.0
        %4016 = vmatpush1.msra.mxu0 0.0
        %4017 = vmatprep.subr.mxu0 0.0
        %4018 = vmatpush1.msra.mxu0 0.0
        %4019 = vmatprep.subr.mxu0 0.0
        %4020 = vmatpush1.msra.mxu0 0.0
        %4021 = vmatprep.subr.mxu0 0.0
        %4022 = vmatpush1.msra.mxu0 0.0
        %4023 = vmatprep.subr.mxu0 0.0
        %4024 = vmatpush1.msra.mxu0 0.0
        %4025 = vmatprep.subr.mxu0 0.0
        %4026 = vmatpush1.msra.mxu0 0.0
        %4027 = vmatprep.subr.mxu0 0.0
        %4028 = vmatpush1.msra.mxu0 0.0
        %4029 = vmatprep.subr.mxu0 0.0
        %4030 = vmatpush1.msra.mxu0 0.0
        %4031 = vmatprep.subr.mxu0 0.0
        %4032 = vmatpush1.msra.mxu0 0.0
        %4033 = vmatprep.subr.mxu0 0.0
        %4034 = vmatpush1.msra.mxu0 0.0
        %4035 = vmatprep.subr.mxu0 0.0
        %4036 = vmatpush1.msra.mxu0 0.0
        %4037 = vmatprep.subr.mxu0 0.0
        %4038 = vmatpush1.msra.mxu0 0.0
        %4039 = vmatprep.subr.mxu0 0.0
        %4040 = vmatpush1.msra.mxu0 0.0
        %4041 = vmatprep.subr.mxu0 0.0
        %4042 = vmatpush1.msra.mxu0 0.0
        %4043 = vmatprep.subr.mxu0 0.0
        %4044 = vmatpush1.msra.mxu0 0.0
        %4045 = vmatprep.subr.mxu0 0.0
        %4046 = vmatpush1.msra.mxu0 0.0
        %4047 = vmatprep.mubr.f32.mxu0 0.0
        %v4048 = vand.u32 %v3531, 4294901760
        %v4049 = vsub.f32 %v3531, %v4048
        %v4050 = vand.u32 %v4049, 4294901760
        %4051 = vmatmul.mubr.f32.gmra.mrb[0].mxu0 %v4050
        %v4052 = vpop.f32.mrb[0].mxu0
        %v4053 = vadd.f32 %v3943, %v4052
        %v4054 = vpop.f32.mrb[0].mxu0
        %4055 = vmatprep.mubr.f32.mxu0 0.0
        %v4056 = vand.u32 %v3532, 4294901760
        %v4057 = vsub.f32 %v3532, %v4056
        %v4058 = vand.u32 %v4057, 4294901760
        %4059 = vmatmul.mubr.f32.gmra.mrb[0].mxu0 %v4058
        %v4060 = vpop.f32.mrb[0].mxu0
        %v4061 = vadd.f32 %v3950, %v4060
        %v4062 = vpop.f32.mrb[0].mxu0
        %4063 = vmatprep.mubr.f32.mxu0 0.0
        %v4064 = vand.u32 %v3533, 4294901760
        %v4065 = vsub.f32 %v3533, %v4064
        %v4066 = vand.u32 %v4065, 4294901760
        %4067 = vmatmul.mubr.f32.gmra.mrb[0].mxu0 %v4066
        %v4068 = vpop.f32.mrb[0].mxu0
        %v4069 = vadd.f32 %v3957, %v4068
        %v4070 = vpop.f32.mrb[0].mxu0
        %4071 = vmatprep.mubr.f32.mxu0 0.0
        %v4072 = vand.u32 %v3534, 4294901760
        %v4073 = vsub.f32 %v3534, %v4072
        %v4074 = vand.u32 %v4073, 4294901760
        %4075 = vmatmul.mubr.f32.gmra.mrb[0].mxu0 %v4074
        %v4076 = vpop.f32.mrb[0].mxu0
        %v4077 = vadd.f32 %v3964, %v4076
        %v4078 = vpop.f32.mrb[0].mxu0
        %4079 = vdwg.mxu0
        %4080 = vmatprep.subr.mxu0 0.0
        %v4081 = vand.u32 %v3536, 4294901760
        %v4082 = vsub.f32 %v3536, %v4081
        %v4083 = vand.u32 %v4082, 4294901760
        %4084 = vmatpush1.msra.mxu0 %v4083
        %4085 = vmatprep.subr.mxu0 0.0
        %v4086 = vand.u32 %v3537, 4294901760
        %v4087 = vsub.f32 %v3537, %v4086
        %v4088 = vand.u32 %v4087, 4294901760
        %4089 = vmatpush1.msra.mxu0 %v4088
        %4090 = vmatprep.subr.mxu0 0.0
        %v4091 = vand.u32 %v3538, 4294901760
        %v4092 = vsub.f32 %v3538, %v4091
        %v4093 = vand.u32 %v4092, 4294901760
        %4094 = vmatpush1.msra.mxu0 %v4093
        %4095 = vmatprep.subr.mxu0 0.0
        %v4096 = vand.u32 %v3539, 4294901760
        %v4097 = vsub.f32 %v3539, %v4096
        %v4098 = vand.u32 %v4097, 4294901760
        %4099 = vmatpush1.msra.mxu0 %v4098
        %4100 = vmatprep.subr.mxu0 0.0
        %v4101 = vand.u32 %v3540, 4294901760
        %v4102 = vsub.f32 %v3540, %v4101
        %v4103 = vand.u32 %v4102, 4294901760
        %4104 = vmatpush1.msra.mxu0 %v4103
        %4105 = vmatprep.subr.mxu0 0.0
        %v4106 = vand.u32 %v3541, 4294901760
        %v4107 = vsub.f32 %v3541, %v4106
        %v4108 = vand.u32 %v4107, 4294901760
        %4109 = vmatpush1.msra.mxu0 %v4108
        %4110 = vmatprep.subr.mxu0 0.0
        %v4111 = vand.u32 %v3542, 4294901760
        %v4112 = vsub.f32 %v3542, %v4111
        %v4113 = vand.u32 %v4112, 4294901760
        %4114 = vmatpush1.msra.mxu0 %v4113
        %4115 = vmatprep.subr.mxu0 0.0
        %v4116 = vand.u32 %v3543, 4294901760
        %v4117 = vsub.f32 %v3543, %v4116
        %v4118 = vand.u32 %v4117, 4294901760
        %4119 = vmatpush1.msra.mxu0 %v4118
        %4120 = vmatprep.subr.mxu0 0.0
        %v4121 = vand.u32 %v3544, 4294901760
        %v4122 = vsub.f32 %v3544, %v4121
        %v4123 = vand.u32 %v4122, 4294901760
        %4124 = vmatpush1.msra.mxu0 %v4123
        %4125 = vmatprep.subr.mxu0 0.0
        %v4126 = vand.u32 %v3545, 4294901760
        %v4127 = vsub.f32 %v3545, %v4126
        %v4128 = vand.u32 %v4127, 4294901760
        %4129 = vmatpush1.msra.mxu0 %v4128
        %4130 = vmatprep.subr.mxu0 0.0
        %v4131 = vand.u32 %v3546, 4294901760
        %v4132 = vsub.f32 %v3546, %v4131
        %v4133 = vand.u32 %v4132, 4294901760
        %4134 = vmatpush1.msra.mxu0 %v4133
        %4135 = vmatprep.subr.mxu0 0.0
        %v4136 = vand.u32 %v3547, 4294901760
        %v4137 = vsub.f32 %v3547, %v4136
        %v4138 = vand.u32 %v4137, 4294901760
        %4139 = vmatpush1.msra.mxu0 %v4138
        %4140 = vmatprep.subr.mxu0 0.0
        %v4141 = vand.u32 %v3548, 4294901760
        %v4142 = vsub.f32 %v3548, %v4141
        %v4143 = vand.u32 %v4142, 4294901760
        %4144 = vmatpush1.msra.mxu0 %v4143
        %4145 = vmatprep.subr.mxu0 0.0
        %v4146 = vand.u32 %v3549, 4294901760
        %v4147 = vsub.f32 %v3549, %v4146
        %v4148 = vand.u32 %v4147, 4294901760
        %4149 = vmatpush1.msra.mxu0 %v4148
        %4150 = vmatprep.subr.mxu0 0.0
        %v4151 = vand.u32 %v3550, 4294901760
        %v4152 = vsub.f32 %v3550, %v4151
        %v4153 = vand.u32 %v4152, 4294901760
        %4154 = vmatpush1.msra.mxu0 %v4153
        %4155 = vmatprep.subr.mxu0 0.0
        %v4156 = vand.u32 %v3551, 4294901760
        %v4157 = vsub.f32 %v3551, %v4156
        %v4158 = vand.u32 %v4157, 4294901760
        %4159 = vmatpush1.msra.mxu0 %v4158
        %4160 = vmatprep.subr.mxu0 0.0
        %4161 = vmatpush1.msra.mxu0 0.0
        %4162 = vmatprep.subr.mxu0 0.0
        %4163 = vmatpush1.msra.mxu0 0.0
        %4164 = vmatprep.subr.mxu0 0.0
        %4165 = vmatpush1.msra.mxu0 0.0
        %4166 = vmatprep.subr.mxu0 0.0
        %4167 = vmatpush1.msra.mxu0 0.0
        %4168 = vmatprep.subr.mxu0 0.0
        %4169 = vmatpush1.msra.mxu0 0.0
        %4170 = vmatprep.subr.mxu0 0.0
        %4171 = vmatpush1.msra.mxu0 0.0
        %4172 = vmatprep.subr.mxu0 0.0
        %4173 = vmatpush1.msra.mxu0 0.0
        %4174 = vmatprep.subr.mxu0 0.0
        %4175 = vmatpush1.msra.mxu0 0.0
        %4176 = vmatprep.subr.mxu0 0.0
        %4177 = vmatpush1.msra.mxu0 0.0
        %4178 = vmatprep.subr.mxu0 0.0
        %4179 = vmatpush1.msra.mxu0 0.0
        %4180 = vmatprep.subr.mxu0 0.0
        %4181 = vmatpush1.msra.mxu0 0.0
        %4182 = vmatprep.subr.mxu0 0.0
        %4183 = vmatpush1.msra.mxu0 0.0
        %4184 = vmatprep.subr.mxu0 0.0
        %4185 = vmatpush1.msra.mxu0 0.0
        %4186 = vmatprep.subr.mxu0 0.0
        %4187 = vmatpush1.msra.mxu0 0.0
        %4188 = vmatprep.subr.mxu0 0.0
        %4189 = vmatpush1.msra.mxu0 0.0
        %4190 = vmatprep.subr.mxu0 0.0
        %4191 = vmatpush1.msra.mxu0 0.0
        %4192 = vmatprep.mubr.f32.mxu0 0.0
        %v4193 = vand.u32 %v3531, 4294901760
        %4194 = vmatmul.mubr.f32.gmra.mrb[0].mxu0 %v4193
        %v4195 = vpop.f32.mrb[0].mxu0
        %v4196 = vadd.f32 %v4053, %v4195
        %v4197 = vpop.f32.mrb[0].mxu0
        %4198 = vmatprep.mubr.f32.mxu0 0.0
        %v4199 = vand.u32 %v3532, 4294901760
        %4200 = vmatmul.mubr.f32.gmra.mrb[0].mxu0 %v4199
        %v4201 = vpop.f32.mrb[0].mxu0
        %v4202 = vadd.f32 %v4061, %v4201
        %v4203 = vpop.f32.mrb[0].mxu0
        %4204 = vmatprep.mubr.f32.mxu0 0.0
        %v4205 = vand.u32 %v3533, 4294901760
        %4206 = vmatmul.mubr.f32.gmra.mrb[0].mxu0 %v4205
        %v4207 = vpop.f32.mrb[0].mxu0
        %v4208 = vadd.f32 %v4069, %v4207
        %v4209 = vpop.f32.mrb[0].mxu0
        %4210 = vmatprep.mubr.f32.mxu0 0.0
        %v4211 = vand.u32 %v3534, 4294901760
        %4212 = vmatmul.mubr.f32.gmra.mrb[0].mxu0 %v4211
        %v4213 = vpop.f32.mrb[0].mxu0
        %v4214 = vadd.f32 %v4077, %v4213
        %v4215 = vpop.f32.mrb[0].mxu0
        %4216 = vdwg.mxu0
        %4217 = vmatprep.subr.mxu0 0.0
        %v4218 = vand.u32 %v3536, 4294901760
        %4219 = vmatpush1.msra.mxu0 %v4218
        %4220 = vmatprep.subr.mxu0 0.0
        %v4221 = vand.u32 %v3537, 4294901760
        %4222 = vmatpush1.msra.mxu0 %v4221
        %4223 = vmatprep.subr.mxu0 0.0
        %v4224 = vand.u32 %v3538, 4294901760
        %4225 = vmatpush1.msra.mxu0 %v4224
        %4226 = vmatprep.subr.mxu0 0.0
        %v4227 = vand.u32 %v3539, 4294901760
        %4228 = vmatpush1.msra.mxu0 %v4227
        %4229 = vmatprep.subr.mxu0 0.0
        %v4230 = vand.u32 %v3540, 4294901760
        %4231 = vmatpush1.msra.mxu0 %v4230
        %4232 = vmatprep.subr.mxu0 0.0
        %v4233 = vand.u32 %v3541, 4294901760
        %4234 = vmatpush1.msra.mxu0 %v4233
        %4235 = vmatprep.subr.mxu0 0.0
        %v4236 = vand.u32 %v3542, 4294901760
        %4237 = vmatpush1.msra.mxu0 %v4236
        %4238 = vmatprep.subr.mxu0 0.0
        %v4239 = vand.u32 %v3543, 4294901760
        %4240 = vmatpush1.msra.mxu0 %v4239
        %4241 = vmatprep.subr.mxu0 0.0
        %v4242 = vand.u32 %v3544, 4294901760
        %4243 = vmatpush1.msra.mxu0 %v4242
        %4244 = vmatprep.subr.mxu0 0.0
        %v4245 = vand.u32 %v3545, 4294901760
        %4246 = vmatpush1.msra.mxu0 %v4245
        %4247 = vmatprep.subr.mxu0 0.0
        %v4248 = vand.u32 %v3546, 4294901760
        %4249 = vmatpush1.msra.mxu0 %v4248
        %4250 = vmatprep.subr.mxu0 0.0
        %v4251 = vand.u32 %v3547, 4294901760
        %4252 = vmatpush1.msra.mxu0 %v4251
        %4253 = vmatprep.subr.mxu0 0.0
        %v4254 = vand.u32 %v3548, 4294901760
        %4255 = vmatpush1.msra.mxu0 %v4254
        %4256 = vmatprep.subr.mxu0 0.0
        %v4257 = vand.u32 %v3549, 4294901760
        %4258 = vmatpush1.msra.mxu0 %v4257
        %4259 = vmatprep.subr.mxu0 0.0
        %v4260 = vand.u32 %v3550, 4294901760
        %4261 = vmatpush1.msra.mxu0 %v4260
        %4262 = vmatprep.subr.mxu0 0.0
        %v4263 = vand.u32 %v3551, 4294901760
        %4264 = vmatpush1.msra.mxu0 %v4263
        %4265 = vmatprep.subr.mxu0 0.0
        %4266 = vmatpush1.msra.mxu0 0.0
        %4267 = vmatprep.subr.mxu0 0.0
        %4268 = vmatpush1.msra.mxu0 0.0
        %4269 = vmatprep.subr.mxu0 0.0
        %4270 = vmatpush1.msra.mxu0 0.0
        %4271 = vmatprep.subr.mxu0 0.0
        %4272 = vmatpush1.msra.mxu0 0.0
        %4273 = vmatprep.subr.mxu0 0.0
        %4274 = vmatpush1.msra.mxu0 0.0
        %4275 = vmatprep.subr.mxu0 0.0
        %4276 = vmatpush1.msra.mxu0 0.0
        %4277 = vmatprep.subr.mxu0 0.0
        %4278 = vmatpush1.msra.mxu0 0.0
        %4279 = vmatprep.subr.mxu0 0.0
        %4280 = vmatpush1.msra.mxu0 0.0
        %4281 = vmatprep.subr.mxu0 0.0
        %4282 = vmatpush1.msra.mxu0 0.0
        %4283 = vmatprep.subr.mxu0 0.0
        %4284 = vmatpush1.msra.mxu0 0.0
        %4285 = vmatprep.subr.mxu0 0.0
        %4286 = vmatpush1.msra.mxu0 0.0
        %4287 = vmatprep.subr.mxu0 0.0
        %4288 = vmatpush1.msra.mxu0 0.0
        %4289 = vmatprep.subr.mxu0 0.0
        %4290 = vmatpush1.msra.mxu0 0.0
        %4291 = vmatprep.subr.mxu0 0.0
        %4292 = vmatpush1.msra.mxu0 0.0
        %4293 = vmatprep.subr.mxu0 0.0
        %4294 = vmatpush1.msra.mxu0 0.0
        %4295 = vmatprep.subr.mxu0 0.0
        %4296 = vmatpush1.msra.mxu0 0.0
        %4297 = vmatprep.mubr.f32.mxu0 0.0
        %v4298 = vand.u32 %v3531, 4294901760
        %4299 = vmatmul.mubr.f32.gmra.mrb[0].mxu0 %v4298
        %v4300 = vpop.f32.mrb[0].mxu0
        %v4301 = vadd.f32 %v4196, %v4300
        %v4302 = vpop.f32.mrb[0].mxu0
        %4303 = vmatprep.mubr.f32.mxu0 0.0
        %v4304 = vand.u32 %v3532, 4294901760
        %4305 = vmatmul.mubr.f32.gmra.mrb[0].mxu0 %v4304
        %v4306 = vpop.f32.mrb[0].mxu0
        %v4307 = vadd.f32 %v4202, %v4306
        %v4308 = vpop.f32.mrb[0].mxu0
        %4309 = vmatprep.mubr.f32.mxu0 0.0
        %v4310 = vand.u32 %v3533, 4294901760
        %4311 = vmatmul.mubr.f32.gmra.mrb[0].mxu0 %v4310
        %v4312 = vpop.f32.mrb[0].mxu0
        %v4313 = vadd.f32 %v4208, %v4312
        %v4314 = vpop.f32.mrb[0].mxu0
        %4315 = vmatprep.mubr.f32.mxu0 0.0
        %v4316 = vand.u32 %v3534, 4294901760
        %4317 = vmatmul.mubr.f32.gmra.mrb[0].mxu0 %v4316
        %v4318 = vpop.f32.mrb[0].mxu0
        %v4319 = vadd.f32 %v4214, %v4318
        %v4320 = vpop.f32.mrb[0].mxu0
        %4321 = vdwg.mxu0
        %v4322 = vadd.f32 %v3527, %v4301
        %v4323 = vadd.f32 %v3528, %v4307
        %v4324 = vadd.f32 %v3529, %v4313
        %v4325 = vadd.f32 %v3530, %v4319
        %v4326 = vld [vmem:[#allocation3 + $0x4] sm:$0xff]
        %v4327 = vld [vmem:[#allocation3 + $0xc] sm:$0xff]
        %v4328 = vld [vmem:[#allocation3 + $0x14] sm:$0xff]
        %v4329 = vld [vmem:[#allocation3 + $0x1c] sm:$0x1]
        %s4330 = scalar_lea.vmem [#allocation4], 512
        %v4331 = vld [vmem:[%s4330] sm:$0xff]
        %v4332 = vld [vmem:[%s4330 + $0x8] sm:$0xff]
        %v4333 = vld [vmem:[%s4330 + $0x10] sm:$0xff]
        %v4334 = vld [vmem:[%s4330 + $0x18] sm:$0xff]
        %v4335 = vld [vmem:[%s4330 + $0x20] sm:$0xff]
        %v4336 = vld [vmem:[%s4330 + $0x28] sm:$0xff]
        %v4337 = vld [vmem:[%s4330 + $0x30] sm:$0xff]
        %v4338 = vld [vmem:[%s4330 + $0x38] sm:$0xff]
        %v4339 = vld [vmem:[%s4330 + $0x40] sm:$0xff]
        %v4340 = vld [vmem:[%s4330 + $0x48] sm:$0xff]
        %v4341 = vld [vmem:[%s4330 + $0x50] sm:$0xff]
        %v4342 = vld [vmem:[%s4330 + $0x58] sm:$0xff]
        %v4343 = vld [vmem:[%s4330 + $0x60] sm:$0xff]
        %v4344 = vld [vmem:[%s4330 + $0x68] sm:$0xff]
        %v4345 = vld [vmem:[%s4330 + $0x70] sm:$0xff]
        %v4346 = vld [vmem:[%s4330 + $0x78] sm:$0xff]
        %4347 = vmatprep.subr.mxu0 0.0
        %v4348 = vand.u32 %v4331, 4294901760
        %4349 = vmatpush1.msra.mxu0 %v4348
        %4350 = vmatprep.subr.mxu0 0.0
        %v4351 = vand.u32 %v4332, 4294901760
        %4352 = vmatpush1.msra.mxu0 %v4351
        %4353 = vmatprep.subr.mxu0 0.0
        %v4354 = vand.u32 %v4333, 4294901760
        %4355 = vmatpush1.msra.mxu0 %v4354
        %4356 = vmatprep.subr.mxu0 0.0
        %v4357 = vand.u32 %v4334, 4294901760
        %4358 = vmatpush1.msra.mxu0 %v4357
        %4359 = vmatprep.subr.mxu0 0.0
        %v4360 = vand.u32 %v4335, 4294901760
        %4361 = vmatpush1.msra.mxu0 %v4360
        %4362 = vmatprep.subr.mxu0 0.0
        %v4363 = vand.u32 %v4336, 4294901760
        %4364 = vmatpush1.msra.mxu0 %v4363
        %4365 = vmatprep.subr.mxu0 0.0
        %v4366 = vand.u32 %v4337, 4294901760
        %4367 = vmatpush1.msra.mxu0 %v4366
        %4368 = vmatprep.subr.mxu0 0.0
        %v4369 = vand.u32 %v4338, 4294901760
        %4370 = vmatpush1.msra.mxu0 %v4369
        %4371 = vmatprep.subr.mxu0 0.0
        %v4372 = vand.u32 %v4339, 4294901760
        %4373 = vmatpush1.msra.mxu0 %v4372
        %4374 = vmatprep.subr.mxu0 0.0
        %v4375 = vand.u32 %v4340, 4294901760
        %4376 = vmatpush1.msra.mxu0 %v4375
        %4377 = vmatprep.subr.mxu0 0.0
        %v4378 = vand.u32 %v4341, 4294901760
        %4379 = vmatpush1.msra.mxu0 %v4378
        %4380 = vmatprep.subr.mxu0 0.0
        %v4381 = vand.u32 %v4342, 4294901760
        %4382 = vmatpush1.msra.mxu0 %v4381
        %4383 = vmatprep.subr.mxu0 0.0
        %v4384 = vand.u32 %v4343, 4294901760
        %4385 = vmatpush1.msra.mxu0 %v4384
        %4386 = vmatprep.subr.mxu0 0.0
        %v4387 = vand.u32 %v4344, 4294901760
        %4388 = vmatpush1.msra.mxu0 %v4387
        %4389 = vmatprep.subr.mxu0 0.0
        %v4390 = vand.u32 %v4345, 4294901760
        %4391 = vmatpush1.msra.mxu0 %v4390
        %4392 = vmatprep.subr.mxu0 0.0
        %v4393 = vand.u32 %v4346, 4294901760
        %4394 = vmatpush1.msra.mxu0 %v4393
        %4395 = vmatprep.subr.mxu0 0.0
        %4396 = vmatpush1.msra.mxu0 0.0
        %4397 = vmatprep.subr.mxu0 0.0
        %4398 = vmatpush1.msra.mxu0 0.0
        %4399 = vmatprep.subr.mxu0 0.0
        %4400 = vmatpush1.msra.mxu0 0.0
        %4401 = vmatprep.subr.mxu0 0.0
        %4402 = vmatpush1.msra.mxu0 0.0
        %4403 = vmatprep.subr.mxu0 0.0
        %4404 = vmatpush1.msra.mxu0 0.0
        %4405 = vmatprep.subr.mxu0 0.0
        %4406 = vmatpush1.msra.mxu0 0.0
        %4407 = vmatprep.subr.mxu0 0.0
        %4408 = vmatpush1.msra.mxu0 0.0
        %4409 = vmatprep.subr.mxu0 0.0
        %4410 = vmatpush1.msra.mxu0 0.0
        %4411 = vmatprep.subr.mxu0 0.0
        %4412 = vmatpush1.msra.mxu0 0.0
        %4413 = vmatprep.subr.mxu0 0.0
        %4414 = vmatpush1.msra.mxu0 0.0
        %4415 = vmatprep.subr.mxu0 0.0
        %4416 = vmatpush1.msra.mxu0 0.0
        %4417 = vmatprep.subr.mxu0 0.0
        %4418 = vmatpush1.msra.mxu0 0.0
        %4419 = vmatprep.subr.mxu0 0.0
        %4420 = vmatpush1.msra.mxu0 0.0
        %4421 = vmatprep.subr.mxu0 0.0
        %4422 = vmatpush1.msra.mxu0 0.0
        %4423 = vmatprep.subr.mxu0 0.0
        %4424 = vmatpush1.msra.mxu0 0.0
        %4425 = vmatprep.subr.mxu0 0.0
        %4426 = vmatpush1.msra.mxu0 0.0
        %4427 = vmatprep.mubr.f32.mxu0 0.0
        %v4428 = vand.u32 %v4326, 4294901760
        %v4429 = vsub.f32 %v4326, %v4428
        %v4430 = vand.u32 %v4429, 4294901760
        %v4431 = vsub.f32 %v4429, %v4430
        %v4432 = vand.u32 %v4431, 4294901760
        %4433 = vmatmul.mubr.f32.gmra.mrb[0].mxu0 %v4432
        %v4434 = vpop.f32.mrb[0].mxu0
        %v4435 = vadd.f32 0.0, %v4434
        %v4436 = vpop.f32.mrb[0].mxu0
        %4437 = vmatprep.mubr.f32.mxu0 0.0
        %v4438 = vand.u32 %v4327, 4294901760
        %v4439 = vsub.f32 %v4327, %v4438
        %v4440 = vand.u32 %v4439, 4294901760
        %v4441 = vsub.f32 %v4439, %v4440
        %v4442 = vand.u32 %v4441, 4294901760
        %4443 = vmatmul.mubr.f32.gmra.mrb[0].mxu0 %v4442
        %v4444 = vpop.f32.mrb[0].mxu0
        %v4445 = vadd.f32 0.0, %v4444
        %v4446 = vpop.f32.mrb[0].mxu0
        %4447 = vmatprep.mubr.f32.mxu0 0.0
        %v4448 = vand.u32 %v4328, 4294901760
        %v4449 = vsub.f32 %v4328, %v4448
        %v4450 = vand.u32 %v4449, 4294901760
        %v4451 = vsub.f32 %v4449, %v4450
        %v4452 = vand.u32 %v4451, 4294901760
        %4453 = vmatmul.mubr.f32.gmra.mrb[0].mxu0 %v4452
        %v4454 = vpop.f32.mrb[0].mxu0
        %v4455 = vadd.f32 0.0, %v4454
        %v4456 = vpop.f32.mrb[0].mxu0
        %4457 = vmatprep.mubr.f32.mxu0 0.0
        %v4458 = vand.u32 %v4329, 4294901760
        %v4459 = vsub.f32 %v4329, %v4458
        %v4460 = vand.u32 %v4459, 4294901760
        %v4461 = vsub.f32 %v4459, %v4460
        %v4462 = vand.u32 %v4461, 4294901760
        %4463 = vmatmul.mubr.f32.gmra.mrb[0].mxu0 %v4462
        %v4464 = vpop.f32.mrb[0].mxu0
        %v4465 = vadd.f32 0.0, %v4464
        %v4466 = vpop.f32.mrb[0].mxu0
        %4467 = vdwg.mxu0
        %4468 = vmatprep.subr.mxu0 0.0
        %v4469 = vand.u32 %v4331, 4294901760
        %v4470 = vsub.f32 %v4331, %v4469
        %v4471 = vand.u32 %v4470, 4294901760
        %v4472 = vsub.f32 %v4470, %v4471
        %v4473 = vand.u32 %v4472, 4294901760
        %4474 = vmatpush1.msra.mxu0 %v4473
        %4475 = vmatprep.subr.mxu0 0.0
        %v4476 = vand.u32 %v4332, 4294901760
        %v4477 = vsub.f32 %v4332, %v4476
        %v4478 = vand.u32 %v4477, 4294901760
        %v4479 = vsub.f32 %v4477, %v4478
        %v4480 = vand.u32 %v4479, 4294901760
        %4481 = vmatpush1.msra.mxu0 %v4480
        %4482 = vmatprep.subr.mxu0 0.0
        %v4483 = vand.u32 %v4333, 4294901760
        %v4484 = vsub.f32 %v4333, %v4483
        %v4485 = vand.u32 %v4484, 4294901760
        %v4486 = vsub.f32 %v4484, %v4485
        %v4487 = vand.u32 %v4486, 4294901760
        %4488 = vmatpush1.msra.mxu0 %v4487
        %4489 = vmatprep.subr.mxu0 0.0
        %v4490 = vand.u32 %v4334, 4294901760
        %v4491 = vsub.f32 %v4334, %v4490
        %v4492 = vand.u32 %v4491, 4294901760
        %v4493 = vsub.f32 %v4491, %v4492
        %v4494 = vand.u32 %v4493, 4294901760
        %4495 = vmatpush1.msra.mxu0 %v4494
        %4496 = vmatprep.subr.mxu0 0.0
        %v4497 = vand.u32 %v4335, 4294901760
        %v4498 = vsub.f32 %v4335, %v4497
        %v4499 = vand.u32 %v4498, 4294901760
        %v4500 = vsub.f32 %v4498, %v4499
        %v4501 = vand.u32 %v4500, 4294901760
        %4502 = vmatpush1.msra.mxu0 %v4501
        %4503 = vmatprep.subr.mxu0 0.0
        %v4504 = vand.u32 %v4336, 4294901760
        %v4505 = vsub.f32 %v4336, %v4504
        %v4506 = vand.u32 %v4505, 4294901760
        %v4507 = vsub.f32 %v4505, %v4506
        %v4508 = vand.u32 %v4507, 4294901760
        %4509 = vmatpush1.msra.mxu0 %v4508
        %4510 = vmatprep.subr.mxu0 0.0
        %v4511 = vand.u32 %v4337, 4294901760
        %v4512 = vsub.f32 %v4337, %v4511
        %v4513 = vand.u32 %v4512, 4294901760
        %v4514 = vsub.f32 %v4512, %v4513
        %v4515 = vand.u32 %v4514, 4294901760
        %4516 = vmatpush1.msra.mxu0 %v4515
        %4517 = vmatprep.subr.mxu0 0.0
        %v4518 = vand.u32 %v4338, 4294901760
        %v4519 = vsub.f32 %v4338, %v4518
        %v4520 = vand.u32 %v4519, 4294901760
        %v4521 = vsub.f32 %v4519, %v4520
        %v4522 = vand.u32 %v4521, 4294901760
        %4523 = vmatpush1.msra.mxu0 %v4522
        %4524 = vmatprep.subr.mxu0 0.0
        %v4525 = vand.u32 %v4339, 4294901760
        %v4526 = vsub.f32 %v4339, %v4525
        %v4527 = vand.u32 %v4526, 4294901760
        %v4528 = vsub.f32 %v4526, %v4527
        %v4529 = vand.u32 %v4528, 4294901760
        %4530 = vmatpush1.msra.mxu0 %v4529
        %4531 = vmatprep.subr.mxu0 0.0
        %v4532 = vand.u32 %v4340, 4294901760
        %v4533 = vsub.f32 %v4340, %v4532
        %v4534 = vand.u32 %v4533, 4294901760
        %v4535 = vsub.f32 %v4533, %v4534
        %v4536 = vand.u32 %v4535, 4294901760
        %4537 = vmatpush1.msra.mxu0 %v4536
        %4538 = vmatprep.subr.mxu0 0.0
        %v4539 = vand.u32 %v4341, 4294901760
        %v4540 = vsub.f32 %v4341, %v4539
        %v4541 = vand.u32 %v4540, 4294901760
        %v4542 = vsub.f32 %v4540, %v4541
        %v4543 = vand.u32 %v4542, 4294901760
        %4544 = vmatpush1.msra.mxu0 %v4543
        %4545 = vmatprep.subr.mxu0 0.0
        %v4546 = vand.u32 %v4342, 4294901760
        %v4547 = vsub.f32 %v4342, %v4546
        %v4548 = vand.u32 %v4547, 4294901760
        %v4549 = vsub.f32 %v4547, %v4548
        %v4550 = vand.u32 %v4549, 4294901760
        %4551 = vmatpush1.msra.mxu0 %v4550
        %4552 = vmatprep.subr.mxu0 0.0
        %v4553 = vand.u32 %v4343, 4294901760
        %v4554 = vsub.f32 %v4343, %v4553
        %v4555 = vand.u32 %v4554, 4294901760
        %v4556 = vsub.f32 %v4554, %v4555
        %v4557 = vand.u32 %v4556, 4294901760
        %4558 = vmatpush1.msra.mxu0 %v4557
        %4559 = vmatprep.subr.mxu0 0.0
        %v4560 = vand.u32 %v4344, 4294901760
        %v4561 = vsub.f32 %v4344, %v4560
        %v4562 = vand.u32 %v4561, 4294901760
        %v4563 = vsub.f32 %v4561, %v4562
        %v4564 = vand.u32 %v4563, 4294901760
        %4565 = vmatpush1.msra.mxu0 %v4564
        %4566 = vmatprep.subr.mxu0 0.0
        %v4567 = vand.u32 %v4345, 4294901760
        %v4568 = vsub.f32 %v4345, %v4567
        %v4569 = vand.u32 %v4568, 4294901760
        %v4570 = vsub.f32 %v4568, %v4569
        %v4571 = vand.u32 %v4570, 4294901760
        %4572 = vmatpush1.msra.mxu0 %v4571
        %4573 = vmatprep.subr.mxu0 0.0
        %v4574 = vand.u32 %v4346, 4294901760
        %v4575 = vsub.f32 %v4346, %v4574
        %v4576 = vand.u32 %v4575, 4294901760
        %v4577 = vsub.f32 %v4575, %v4576
        %v4578 = vand.u32 %v4577, 4294901760
        %4579 = vmatpush1.msra.mxu0 %v4578
        %4580 = vmatprep.subr.mxu0 0.0
        %4581 = vmatpush1.msra.mxu0 0.0
        %4582 = vmatprep.subr.mxu0 0.0
        %4583 = vmatpush1.msra.mxu0 0.0
        %4584 = vmatprep.subr.mxu0 0.0
        %4585 = vmatpush1.msra.mxu0 0.0
        %4586 = vmatprep.subr.mxu0 0.0
        %4587 = vmatpush1.msra.mxu0 0.0
        %4588 = vmatprep.subr.mxu0 0.0
        %4589 = vmatpush1.msra.mxu0 0.0
        %4590 = vmatprep.subr.mxu0 0.0
        %4591 = vmatpush1.msra.mxu0 0.0
        %4592 = vmatprep.subr.mxu0 0.0
        %4593 = vmatpush1.msra.mxu0 0.0
        %4594 = vmatprep.subr.mxu0 0.0
        %4595 = vmatpush1.msra.mxu0 0.0
        %4596 = vmatprep.subr.mxu0 0.0
        %4597 = vmatpush1.msra.mxu0 0.0
        %4598 = vmatprep.subr.mxu0 0.0
        %4599 = vmatpush1.msra.mxu0 0.0
        %4600 = vmatprep.subr.mxu0 0.0
        %4601 = vmatpush1.msra.mxu0 0.0
        %4602 = vmatprep.subr.mxu0 0.0
        %4603 = vmatpush1.msra.mxu0 0.0
        %4604 = vmatprep.subr.mxu0 0.0
        %4605 = vmatpush1.msra.mxu0 0.0
        %4606 = vmatprep.subr.mxu0 0.0
        %4607 = vmatpush1.msra.mxu0 0.0
        %4608 = vmatprep.subr.mxu0 0.0
        %4609 = vmatpush1.msra.mxu0 0.0
        %4610 = vmatprep.subr.mxu0 0.0
        %4611 = vmatpush1.msra.mxu0 0.0
        %4612 = vmatprep.mubr.f32.mxu0 0.0
        %v4613 = vand.u32 %v4326, 4294901760
        %4614 = vmatmul.mubr.f32.gmra.mrb[0].mxu0 %v4613
        %v4615 = vpop.f32.mrb[0].mxu0
        %v4616 = vadd.f32 %v4435, %v4615
        %v4617 = vpop.f32.mrb[0].mxu0
        %4618 = vmatprep.mubr.f32.mxu0 0.0
        %v4619 = vand.u32 %v4327, 4294901760
        %4620 = vmatmul.mubr.f32.gmra.mrb[0].mxu0 %v4619
        %v4621 = vpop.f32.mrb[0].mxu0
        %v4622 = vadd.f32 %v4445, %v4621
        %v4623 = vpop.f32.mrb[0].mxu0
        %4624 = vmatprep.mubr.f32.mxu0 0.0
        %v4625 = vand.u32 %v4328, 4294901760
        %4626 = vmatmul.mubr.f32.gmra.mrb[0].mxu0 %v4625
        %v4627 = vpop.f32.mrb[0].mxu0
        %v4628 = vadd.f32 %v4455, %v4627
        %v4629 = vpop.f32.mrb[0].mxu0
        %4630 = vmatprep.mubr.f32.mxu0 0.0
        %v4631 = vand.u32 %v4329, 4294901760
        %4632 = vmatmul.mubr.f32.gmra.mrb[0].mxu0 %v4631
        %v4633 = vpop.f32.mrb[0].mxu0
        %v4634 = vadd.f32 %v4465, %v4633
        %v4635 = vpop.f32.mrb[0].mxu0
        %4636 = vdwg.mxu0
        %4637 = vmatprep.subr.mxu0 0.0
        %v4638 = vand.u32 %v4331, 4294901760
        %v4639 = vsub.f32 %v4331, %v4638
        %4640 = vmatpush1.msra.mxu0 %v4639
        %4641 = vmatprep.subr.mxu0 0.0
        %v4642 = vand.u32 %v4332, 4294901760
        %v4643 = vsub.f32 %v4332, %v4642
        %4644 = vmatpush1.msra.mxu0 %v4643
        %4645 = vmatprep.subr.mxu0 0.0
        %v4646 = vand.u32 %v4333, 4294901760
        %v4647 = vsub.f32 %v4333, %v4646
        %4648 = vmatpush1.msra.mxu0 %v4647
        %4649 = vmatprep.subr.mxu0 0.0
        %v4650 = vand.u32 %v4334, 4294901760
        %v4651 = vsub.f32 %v4334, %v4650
        %4652 = vmatpush1.msra.mxu0 %v4651
        %4653 = vmatprep.subr.mxu0 0.0
        %v4654 = vand.u32 %v4335, 4294901760
        %v4655 = vsub.f32 %v4335, %v4654
        %4656 = vmatpush1.msra.mxu0 %v4655
        %4657 = vmatprep.subr.mxu0 0.0
        %v4658 = vand.u32 %v4336, 4294901760
        %v4659 = vsub.f32 %v4336, %v4658
        %4660 = vmatpush1.msra.mxu0 %v4659
        %4661 = vmatprep.subr.mxu0 0.0
        %v4662 = vand.u32 %v4337, 4294901760
        %v4663 = vsub.f32 %v4337, %v4662
        %4664 = vmatpush1.msra.mxu0 %v4663
        %4665 = vmatprep.subr.mxu0 0.0
        %v4666 = vand.u32 %v4338, 4294901760
        %v4667 = vsub.f32 %v4338, %v4666
        %4668 = vmatpush1.msra.mxu0 %v4667
        %4669 = vmatprep.subr.mxu0 0.0
        %v4670 = vand.u32 %v4339, 4294901760
        %v4671 = vsub.f32 %v4339, %v4670
        %4672 = vmatpush1.msra.mxu0 %v4671
        %4673 = vmatprep.subr.mxu0 0.0
        %v4674 = vand.u32 %v4340, 4294901760
        %v4675 = vsub.f32 %v4340, %v4674
        %4676 = vmatpush1.msra.mxu0 %v4675
        %4677 = vmatprep.subr.mxu0 0.0
        %v4678 = vand.u32 %v4341, 4294901760
        %v4679 = vsub.f32 %v4341, %v4678
        %4680 = vmatpush1.msra.mxu0 %v4679
        %4681 = vmatprep.subr.mxu0 0.0
        %v4682 = vand.u32 %v4342, 4294901760
        %v4683 = vsub.f32 %v4342, %v4682
        %4684 = vmatpush1.msra.mxu0 %v4683
        %4685 = vmatprep.subr.mxu0 0.0
        %v4686 = vand.u32 %v4343, 4294901760
        %v4687 = vsub.f32 %v4343, %v4686
        %4688 = vmatpush1.msra.mxu0 %v4687
        %4689 = vmatprep.subr.mxu0 0.0
        %v4690 = vand.u32 %v4344, 4294901760
        %v4691 = vsub.f32 %v4344, %v4690
        %4692 = vmatpush1.msra.mxu0 %v4691
        %4693 = vmatprep.subr.mxu0 0.0
        %v4694 = vand.u32 %v4345, 4294901760
        %v4695 = vsub.f32 %v4345, %v4694
        %4696 = vmatpush1.msra.mxu0 %v4695
        %4697 = vmatprep.subr.mxu0 0.0
        %v4698 = vand.u32 %v4346, 4294901760
        %v4699 = vsub.f32 %v4346, %v4698
        %4700 = vmatpush1.msra.mxu0 %v4699
        %4701 = vmatprep.subr.mxu0 0.0
        %4702 = vmatpush1.msra.mxu0 0.0
        %4703 = vmatprep.subr.mxu0 0.0
        %4704 = vmatpush1.msra.mxu0 0.0
        %4705 = vmatprep.subr.mxu0 0.0
        %4706 = vmatpush1.msra.mxu0 0.0
        %4707 = vmatprep.subr.mxu0 0.0
        %4708 = vmatpush1.msra.mxu0 0.0
        %4709 = vmatprep.subr.mxu0 0.0
        %4710 = vmatpush1.msra.mxu0 0.0
        %4711 = vmatprep.subr.mxu0 0.0
        %4712 = vmatpush1.msra.mxu0 0.0
        %4713 = vmatprep.subr.mxu0 0.0
        %4714 = vmatpush1.msra.mxu0 0.0
        %4715 = vmatprep.subr.mxu0 0.0
        %4716 = vmatpush1.msra.mxu0 0.0
        %4717 = vmatprep.subr.mxu0 0.0
        %4718 = vmatpush1.msra.mxu0 0.0
        %4719 = vmatprep.subr.mxu0 0.0
        %4720 = vmatpush1.msra.mxu0 0.0
        %4721 = vmatprep.subr.mxu0 0.0
        %4722 = vmatpush1.msra.mxu0 0.0
        %4723 = vmatprep.subr.mxu0 0.0
        %4724 = vmatpush1.msra.mxu0 0.0
        %4725 = vmatprep.subr.mxu0 0.0
        %4726 = vmatpush1.msra.mxu0 0.0
        %4727 = vmatprep.subr.mxu0 0.0
        %4728 = vmatpush1.msra.mxu0 0.0
        %4729 = vmatprep.subr.mxu0 0.0
        %4730 = vmatpush1.msra.mxu0 0.0
        %4731 = vmatprep.subr.mxu0 0.0
        %4732 = vmatpush1.msra.mxu0 0.0
        %4733 = vmatprep.mubr.f32.mxu0 0.0
        %v4734 = vand.u32 %v4326, 4294901760
        %v4735 = vsub.f32 %v4326, %v4734
        %4736 = vmatmul.mubr.f32.gmra.mrb[0].mxu0 %v4735
        %v4737 = vpop.f32.mrb[0].mxu0
        %v4738 = vadd.f32 %v4616, %v4737
        %v4739 = vpop.f32.mrb[0].mxu0
        %4740 = vmatprep.mubr.f32.mxu0 0.0
        %v4741 = vand.u32 %v4327, 4294901760
        %v4742 = vsub.f32 %v4327, %v4741
        %4743 = vmatmul.mubr.f32.gmra.mrb[0].mxu0 %v4742
        %v4744 = vpop.f32.mrb[0].mxu0
        %v4745 = vadd.f32 %v4622, %v4744
        %v4746 = vpop.f32.mrb[0].mxu0
        %4747 = vmatprep.mubr.f32.mxu0 0.0
        %v4748 = vand.u32 %v4328, 4294901760
        %v4749 = vsub.f32 %v4328, %v4748
        %4750 = vmatmul.mubr.f32.gmra.mrb[0].mxu0 %v4749
        %v4751 = vpop.f32.mrb[0].mxu0
        %v4752 = vadd.f32 %v4628, %v4751
        %v4753 = vpop.f32.mrb[0].mxu0
        %4754 = vmatprep.mubr.f32.mxu0 0.0
        %v4755 = vand.u32 %v4329, 4294901760
        %v4756 = vsub.f32 %v4329, %v4755
        %4757 = vmatmul.mubr.f32.gmra.mrb[0].mxu0 %v4756
        %v4758 = vpop.f32.mrb[0].mxu0
        %v4759 = vadd.f32 %v4634, %v4758
        %v4760 = vpop.f32.mrb[0].mxu0
        %4761 = vdwg.mxu0
        %4762 = vmatprep.subr.mxu0 0.0
        %v4763 = vand.u32 %v4331, 4294901760
        %4764 = vmatpush1.msra.mxu0 %v4763
        %4765 = vmatprep.subr.mxu0 0.0
        %v4766 = vand.u32 %v4332, 4294901760
        %4767 = vmatpush1.msra.mxu0 %v4766
        %4768 = vmatprep.subr.mxu0 0.0
        %v4769 = vand.u32 %v4333, 4294901760
        %4770 = vmatpush1.msra.mxu0 %v4769
        %4771 = vmatprep.subr.mxu0 0.0
        %v4772 = vand.u32 %v4334, 4294901760
        %4773 = vmatpush1.msra.mxu0 %v4772
        %4774 = vmatprep.subr.mxu0 0.0
        %v4775 = vand.u32 %v4335, 4294901760
        %4776 = vmatpush1.msra.mxu0 %v4775
        %4777 = vmatprep.subr.mxu0 0.0
        %v4778 = vand.u32 %v4336, 4294901760
        %4779 = vmatpush1.msra.mxu0 %v4778
        %4780 = vmatprep.subr.mxu0 0.0
        %v4781 = vand.u32 %v4337, 4294901760
        %4782 = vmatpush1.msra.mxu0 %v4781
        %4783 = vmatprep.subr.mxu0 0.0
        %v4784 = vand.u32 %v4338, 4294901760
        %4785 = vmatpush1.msra.mxu0 %v4784
        %4786 = vmatprep.subr.mxu0 0.0
        %v4787 = vand.u32 %v4339, 4294901760
        %4788 = vmatpush1.msra.mxu0 %v4787
        %4789 = vmatprep.subr.mxu0 0.0
        %v4790 = vand.u32 %v4340, 4294901760
        %4791 = vmatpush1.msra.mxu0 %v4790
        %4792 = vmatprep.subr.mxu0 0.0
        %v4793 = vand.u32 %v4341, 4294901760
        %4794 = vmatpush1.msra.mxu0 %v4793
        %4795 = vmatprep.subr.mxu0 0.0
        %v4796 = vand.u32 %v4342, 4294901760
        %4797 = vmatpush1.msra.mxu0 %v4796
        %4798 = vmatprep.subr.mxu0 0.0
        %v4799 = vand.u32 %v4343, 4294901760
        %4800 = vmatpush1.msra.mxu0 %v4799
        %4801 = vmatprep.subr.mxu0 0.0
        %v4802 = vand.u32 %v4344, 4294901760
        %4803 = vmatpush1.msra.mxu0 %v4802
        %4804 = vmatprep.subr.mxu0 0.0
        %v4805 = vand.u32 %v4345, 4294901760
        %4806 = vmatpush1.msra.mxu0 %v4805
        %4807 = vmatprep.subr.mxu0 0.0
        %v4808 = vand.u32 %v4346, 4294901760
        %4809 = vmatpush1.msra.mxu0 %v4808
        %4810 = vmatprep.subr.mxu0 0.0
        %4811 = vmatpush1.msra.mxu0 0.0
        %4812 = vmatprep.subr.mxu0 0.0
        %4813 = vmatpush1.msra.mxu0 0.0
        %4814 = vmatprep.subr.mxu0 0.0
        %4815 = vmatpush1.msra.mxu0 0.0
        %4816 = vmatprep.subr.mxu0 0.0
        %4817 = vmatpush1.msra.mxu0 0.0
        %4818 = vmatprep.subr.mxu0 0.0
        %4819 = vmatpush1.msra.mxu0 0.0
        %4820 = vmatprep.subr.mxu0 0.0
        %4821 = vmatpush1.msra.mxu0 0.0
        %4822 = vmatprep.subr.mxu0 0.0
        %4823 = vmatpush1.msra.mxu0 0.0
        %4824 = vmatprep.subr.mxu0 0.0
        %4825 = vmatpush1.msra.mxu0 0.0
        %4826 = vmatprep.subr.mxu0 0.0
        %4827 = vmatpush1.msra.mxu0 0.0
        %4828 = vmatprep.subr.mxu0 0.0
        %4829 = vmatpush1.msra.mxu0 0.0
        %4830 = vmatprep.subr.mxu0 0.0
        %4831 = vmatpush1.msra.mxu0 0.0
        %4832 = vmatprep.subr.mxu0 0.0
        %4833 = vmatpush1.msra.mxu0 0.0
        %4834 = vmatprep.subr.mxu0 0.0
        %4835 = vmatpush1.msra.mxu0 0.0
        %4836 = vmatprep.subr.mxu0 0.0
        %4837 = vmatpush1.msra.mxu0 0.0
        %4838 = vmatprep.subr.mxu0 0.0
        %4839 = vmatpush1.msra.mxu0 0.0
        %4840 = vmatprep.subr.mxu0 0.0
        %4841 = vmatpush1.msra.mxu0 0.0
        %4842 = vmatprep.mubr.f32.mxu0 0.0
        %v4843 = vand.u32 %v4326, 4294901760
        %v4844 = vsub.f32 %v4326, %v4843
        %v4845 = vand.u32 %v4844, 4294901760
        %4846 = vmatmul.mubr.f32.gmra.mrb[0].mxu0 %v4845
        %v4847 = vpop.f32.mrb[0].mxu0
        %v4848 = vadd.f32 %v4738, %v4847
        %v4849 = vpop.f32.mrb[0].mxu0
        %4850 = vmatprep.mubr.f32.mxu0 0.0
        %v4851 = vand.u32 %v4327, 4294901760
        %v4852 = vsub.f32 %v4327, %v4851
        %v4853 = vand.u32 %v4852, 4294901760
        %4854 = vmatmul.mubr.f32.gmra.mrb[0].mxu0 %v4853
        %v4855 = vpop.f32.mrb[0].mxu0
        %v4856 = vadd.f32 %v4745, %v4855
        %v4857 = vpop.f32.mrb[0].mxu0
        %4858 = vmatprep.mubr.f32.mxu0 0.0
        %v4859 = vand.u32 %v4328, 4294901760
        %v4860 = vsub.f32 %v4328, %v4859
        %v4861 = vand.u32 %v4860, 4294901760
        %4862 = vmatmul.mubr.f32.gmra.mrb[0].mxu0 %v4861
        %v4863 = vpop.f32.mrb[0].mxu0
        %v4864 = vadd.f32 %v4752, %v4863
        %v4865 = vpop.f32.mrb[0].mxu0
        %4866 = vmatprep.mubr.f32.mxu0 0.0
        %v4867 = vand.u32 %v4329, 4294901760
        %v4868 = vsub.f32 %v4329, %v4867
        %v4869 = vand.u32 %v4868, 4294901760
        %4870 = vmatmul.mubr.f32.gmra.mrb[0].mxu0 %v4869
        %v4871 = vpop.f32.mrb[0].mxu0
        %v4872 = vadd.f32 %v4759, %v4871
        %v4873 = vpop.f32.mrb[0].mxu0
        %4874 = vdwg.mxu0
        %4875 = vmatprep.subr.mxu0 0.0
        %v4876 = vand.u32 %v4331, 4294901760
        %v4877 = vsub.f32 %v4331, %v4876
        %v4878 = vand.u32 %v4877, 4294901760
        %4879 = vmatpush1.msra.mxu0 %v4878
        %4880 = vmatprep.subr.mxu0 0.0
        %v4881 = vand.u32 %v4332, 4294901760
        %v4882 = vsub.f32 %v4332, %v4881
        %v4883 = vand.u32 %v4882, 4294901760
        %4884 = vmatpush1.msra.mxu0 %v4883
        %4885 = vmatprep.subr.mxu0 0.0
        %v4886 = vand.u32 %v4333, 4294901760
        %v4887 = vsub.f32 %v4333, %v4886
        %v4888 = vand.u32 %v4887, 4294901760
        %4889 = vmatpush1.msra.mxu0 %v4888
        %4890 = vmatprep.subr.mxu0 0.0
        %v4891 = vand.u32 %v4334, 4294901760
        %v4892 = vsub.f32 %v4334, %v4891
        %v4893 = vand.u32 %v4892, 4294901760
        %4894 = vmatpush1.msra.mxu0 %v4893
        %4895 = vmatprep.subr.mxu0 0.0
        %v4896 = vand.u32 %v4335, 4294901760
        %v4897 = vsub.f32 %v4335, %v4896
        %v4898 = vand.u32 %v4897, 4294901760
        %4899 = vmatpush1.msra.mxu0 %v4898
        %4900 = vmatprep.subr.mxu0 0.0
        %v4901 = vand.u32 %v4336, 4294901760
        %v4902 = vsub.f32 %v4336, %v4901
        %v4903 = vand.u32 %v4902, 4294901760
        %4904 = vmatpush1.msra.mxu0 %v4903
        %4905 = vmatprep.subr.mxu0 0.0
        %v4906 = vand.u32 %v4337, 4294901760
        %v4907 = vsub.f32 %v4337, %v4906
        %v4908 = vand.u32 %v4907, 4294901760
        %4909 = vmatpush1.msra.mxu0 %v4908
        %4910 = vmatprep.subr.mxu0 0.0
        %v4911 = vand.u32 %v4338, 4294901760
        %v4912 = vsub.f32 %v4338, %v4911
        %v4913 = vand.u32 %v4912, 4294901760
        %4914 = vmatpush1.msra.mxu0 %v4913
        %4915 = vmatprep.subr.mxu0 0.0
        %v4916 = vand.u32 %v4339, 4294901760
        %v4917 = vsub.f32 %v4339, %v4916
        %v4918 = vand.u32 %v4917, 4294901760
        %4919 = vmatpush1.msra.mxu0 %v4918
        %4920 = vmatprep.subr.mxu0 0.0
        %v4921 = vand.u32 %v4340, 4294901760
        %v4922 = vsub.f32 %v4340, %v4921
        %v4923 = vand.u32 %v4922, 4294901760
        %4924 = vmatpush1.msra.mxu0 %v4923
        %4925 = vmatprep.subr.mxu0 0.0
        %v4926 = vand.u32 %v4341, 4294901760
        %v4927 = vsub.f32 %v4341, %v4926
        %v4928 = vand.u32 %v4927, 4294901760
        %4929 = vmatpush1.msra.mxu0 %v4928
        %4930 = vmatprep.subr.mxu0 0.0
        %v4931 = vand.u32 %v4342, 4294901760
        %v4932 = vsub.f32 %v4342, %v4931
        %v4933 = vand.u32 %v4932, 4294901760
        %4934 = vmatpush1.msra.mxu0 %v4933
        %4935 = vmatprep.subr.mxu0 0.0
        %v4936 = vand.u32 %v4343, 4294901760
        %v4937 = vsub.f32 %v4343, %v4936
        %v4938 = vand.u32 %v4937, 4294901760
        %4939 = vmatpush1.msra.mxu0 %v4938
        %4940 = vmatprep.subr.mxu0 0.0
        %v4941 = vand.u32 %v4344, 4294901760
        %v4942 = vsub.f32 %v4344, %v4941
        %v4943 = vand.u32 %v4942, 4294901760
        %4944 = vmatpush1.msra.mxu0 %v4943
        %4945 = vmatprep.subr.mxu0 0.0
        %v4946 = vand.u32 %v4345, 4294901760
        %v4947 = vsub.f32 %v4345, %v4946
        %v4948 = vand.u32 %v4947, 4294901760
        %4949 = vmatpush1.msra.mxu0 %v4948
        %4950 = vmatprep.subr.mxu0 0.0
        %v4951 = vand.u32 %v4346, 4294901760
        %v4952 = vsub.f32 %v4346, %v4951
        %v4953 = vand.u32 %v4952, 4294901760
        %4954 = vmatpush1.msra.mxu0 %v4953
        %4955 = vmatprep.subr.mxu0 0.0
        %4956 = vmatpush1.msra.mxu0 0.0
        %4957 = vmatprep.subr.mxu0 0.0
        %4958 = vmatpush1.msra.mxu0 0.0
        %4959 = vmatprep.subr.mxu0 0.0
        %4960 = vmatpush1.msra.mxu0 0.0
        %4961 = vmatprep.subr.mxu0 0.0
        %4962 = vmatpush1.msra.mxu0 0.0
        %4963 = vmatprep.subr.mxu0 0.0
        %4964 = vmatpush1.msra.mxu0 0.0
        %4965 = vmatprep.subr.mxu0 0.0
        %4966 = vmatpush1.msra.mxu0 0.0
        %4967 = vmatprep.subr.mxu0 0.0
        %4968 = vmatpush1.msra.mxu0 0.0
        %4969 = vmatprep.subr.mxu0 0.0
        %4970 = vmatpush1.msra.mxu0 0.0
        %4971 = vmatprep.subr.mxu0 0.0
        %4972 = vmatpush1.msra.mxu0 0.0
        %4973 = vmatprep.subr.mxu0 0.0
        %4974 = vmatpush1.msra.mxu0 0.0
        %4975 = vmatprep.subr.mxu0 0.0
        %4976 = vmatpush1.msra.mxu0 0.0
        %4977 = vmatprep.subr.mxu0 0.0
        %4978 = vmatpush1.msra.mxu0 0.0
        %4979 = vmatprep.subr.mxu0 0.0
        %4980 = vmatpush1.msra.mxu0 0.0
        %4981 = vmatprep.subr.mxu0 0.0
        %4982 = vmatpush1.msra.mxu0 0.0
        %4983 = vmatprep.subr.mxu0 0.0
        %4984 = vmatpush1.msra.mxu0 0.0
        %4985 = vmatprep.subr.mxu0 0.0
        %4986 = vmatpush1.msra.mxu0 0.0
        %4987 = vmatprep.mubr.f32.mxu0 0.0
        %v4988 = vand.u32 %v4326, 4294901760
        %4989 = vmatmul.mubr.f32.gmra.mrb[0].mxu0 %v4988
        %v4990 = vpop.f32.mrb[0].mxu0
        %v4991 = vadd.f32 %v4848, %v4990
        %v4992 = vpop.f32.mrb[0].mxu0
        %4993 = vmatprep.mubr.f32.mxu0 0.0
        %v4994 = vand.u32 %v4327, 4294901760
        %4995 = vmatmul.mubr.f32.gmra.mrb[0].mxu0 %v4994
        %v4996 = vpop.f32.mrb[0].mxu0
        %v4997 = vadd.f32 %v4856, %v4996
        %v4998 = vpop.f32.mrb[0].mxu0
        %4999 = vmatprep.mubr.f32.mxu0 0.0
        %v5000 = vand.u32 %v4328, 4294901760
        %5001 = vmatmul.mubr.f32.gmra.mrb[0].mxu0 %v5000
        %v5002 = vpop.f32.mrb[0].mxu0
        %v5003 = vadd.f32 %v4864, %v5002
        %v5004 = vpop.f32.mrb[0].mxu0
        %5005 = vmatprep.mubr.f32.mxu0 0.0
        %v5006 = vand.u32 %v4329, 4294901760
        %5007 = vmatmul.mubr.f32.gmra.mrb[0].mxu0 %v5006
        %v5008 = vpop.f32.mrb[0].mxu0
        %v5009 = vadd.f32 %v4872, %v5008
        %v5010 = vpop.f32.mrb[0].mxu0
        %5011 = vdwg.mxu0
        %5012 = vmatprep.subr.mxu0 0.0
        %v5013 = vand.u32 %v4331, 4294901760
        %5014 = vmatpush1.msra.mxu0 %v5013
        %5015 = vmatprep.subr.mxu0 0.0
        %v5016 = vand.u32 %v4332, 4294901760
        %5017 = vmatpush1.msra.mxu0 %v5016
        %5018 = vmatprep.subr.mxu0 0.0
        %v5019 = vand.u32 %v4333, 4294901760
        %5020 = vmatpush1.msra.mxu0 %v5019
        %5021 = vmatprep.subr.mxu0 0.0
        %v5022 = vand.u32 %v4334, 4294901760
        %5023 = vmatpush1.msra.mxu0 %v5022
        %5024 = vmatprep.subr.mxu0 0.0
        %v5025 = vand.u32 %v4335, 4294901760
        %5026 = vmatpush1.msra.mxu0 %v5025
        %5027 = vmatprep.subr.mxu0 0.0
        %v5028 = vand.u32 %v4336, 4294901760
        %5029 = vmatpush1.msra.mxu0 %v5028
        %5030 = vmatprep.subr.mxu0 0.0
        %v5031 = vand.u32 %v4337, 4294901760
        %5032 = vmatpush1.msra.mxu0 %v5031
        %5033 = vmatprep.subr.mxu0 0.0
        %v5034 = vand.u32 %v4338, 4294901760
        %5035 = vmatpush1.msra.mxu0 %v5034
        %5036 = vmatprep.subr.mxu0 0.0
        %v5037 = vand.u32 %v4339, 4294901760
        %5038 = vmatpush1.msra.mxu0 %v5037
        %5039 = vmatprep.subr.mxu0 0.0
        %v5040 = vand.u32 %v4340, 4294901760
        %5041 = vmatpush1.msra.mxu0 %v5040
        %5042 = vmatprep.subr.mxu0 0.0
        %v5043 = vand.u32 %v4341, 4294901760
        %5044 = vmatpush1.msra.mxu0 %v5043
        %5045 = vmatprep.subr.mxu0 0.0
        %v5046 = vand.u32 %v4342, 4294901760
        %5047 = vmatpush1.msra.mxu0 %v5046
        %5048 = vmatprep.subr.mxu0 0.0
        %v5049 = vand.u32 %v4343, 4294901760
        %5050 = vmatpush1.msra.mxu0 %v5049
        %5051 = vmatprep.subr.mxu0 0.0
        %v5052 = vand.u32 %v4344, 4294901760
        %5053 = vmatpush1.msra.mxu0 %v5052
        %5054 = vmatprep.subr.mxu0 0.0
        %v5055 = vand.u32 %v4345, 4294901760
        %5056 = vmatpush1.msra.mxu0 %v5055
        %5057 = vmatprep.subr.mxu0 0.0
        %v5058 = vand.u32 %v4346, 4294901760
        %5059 = vmatpush1.msra.mxu0 %v5058
        %5060 = vmatprep.subr.mxu0 0.0
        %5061 = vmatpush1.msra.mxu0 0.0
        %5062 = vmatprep.subr.mxu0 0.0
        %5063 = vmatpush1.msra.mxu0 0.0
        %5064 = vmatprep.subr.mxu0 0.0
        %5065 = vmatpush1.msra.mxu0 0.0
        %5066 = vmatprep.subr.mxu0 0.0
        %5067 = vmatpush1.msra.mxu0 0.0
        %5068 = vmatprep.subr.mxu0 0.0
        %5069 = vmatpush1.msra.mxu0 0.0
        %5070 = vmatprep.subr.mxu0 0.0
        %5071 = vmatpush1.msra.mxu0 0.0
        %5072 = vmatprep.subr.mxu0 0.0
        %5073 = vmatpush1.msra.mxu0 0.0
        %5074 = vmatprep.subr.mxu0 0.0
        %5075 = vmatpush1.msra.mxu0 0.0
        %5076 = vmatprep.subr.mxu0 0.0
        %5077 = vmatpush1.msra.mxu0 0.0
        %5078 = vmatprep.subr.mxu0 0.0
        %5079 = vmatpush1.msra.mxu0 0.0
        %5080 = vmatprep.subr.mxu0 0.0
        %5081 = vmatpush1.msra.mxu0 0.0
        %5082 = vmatprep.subr.mxu0 0.0
        %5083 = vmatpush1.msra.mxu0 0.0
        %5084 = vmatprep.subr.mxu0 0.0
        %5085 = vmatpush1.msra.mxu0 0.0
        %5086 = vmatprep.subr.mxu0 0.0
        %5087 = vmatpush1.msra.mxu0 0.0
        %5088 = vmatprep.subr.mxu0 0.0
        %5089 = vmatpush1.msra.mxu0 0.0
        %5090 = vmatprep.subr.mxu0 0.0
        %5091 = vmatpush1.msra.mxu0 0.0
        %5092 = vmatprep.mubr.f32.mxu0 0.0
        %v5093 = vand.u32 %v4326, 4294901760
        %5094 = vmatmul.mubr.f32.gmra.mrb[0].mxu0 %v5093
        %v5095 = vpop.f32.mrb[0].mxu0
        %v5096 = vadd.f32 %v4991, %v5095
        %v5097 = vpop.f32.mrb[0].mxu0
        %5098 = vmatprep.mubr.f32.mxu0 0.0
        %v5099 = vand.u32 %v4327, 4294901760
        %5100 = vmatmul.mubr.f32.gmra.mrb[0].mxu0 %v5099
        %v5101 = vpop.f32.mrb[0].mxu0
        %v5102 = vadd.f32 %v4997, %v5101
        %v5103 = vpop.f32.mrb[0].mxu0
        %5104 = vmatprep.mubr.f32.mxu0 0.0
        %v5105 = vand.u32 %v4328, 4294901760
        %5106 = vmatmul.mubr.f32.gmra.mrb[0].mxu0 %v5105
        %v5107 = vpop.f32.mrb[0].mxu0
        %v5108 = vadd.f32 %v5003, %v5107
        %v5109 = vpop.f32.mrb[0].mxu0
        %5110 = vmatprep.mubr.f32.mxu0 0.0
        %v5111 = vand.u32 %v4329, 4294901760
        %5112 = vmatmul.mubr.f32.gmra.mrb[0].mxu0 %v5111
        %v5113 = vpop.f32.mrb[0].mxu0
        %v5114 = vadd.f32 %v5009, %v5113
        %v5115 = vpop.f32.mrb[0].mxu0
        %5116 = vdwg.mxu0
        %v5117 = vadd.f32 %v4322, %v5096
        %v5118 = vadd.f32 %v4323, %v5102
        %v5119 = vadd.f32 %v4324, %v5108
        %v5120 = vadd.f32 %v4325, %v5114
        %v5121 = vld [vmem:[#allocation3 + $0x5] sm:$0xff]
        %v5122 = vld [vmem:[#allocation3 + $0xd] sm:$0xff]
        %v5123 = vld [vmem:[#allocation3 + $0x15] sm:$0xff]
        %v5124 = vld [vmem:[#allocation3 + $0x1d] sm:$0x1]
        %s5125 = scalar_lea.vmem [#allocation4], 640
        %v5126 = vld [vmem:[%s5125] sm:$0xff]
        %v5127 = vld [vmem:[%s5125 + $0x8] sm:$0xff]
        %v5128 = vld [vmem:[%s5125 + $0x10] sm:$0xff]
        %v5129 = vld [vmem:[%s5125 + $0x18] sm:$0xff]
        %v5130 = vld [vmem:[%s5125 + $0x20] sm:$0xff]
        %v5131 = vld [vmem:[%s5125 + $0x28] sm:$0xff]
        %v5132 = vld [vmem:[%s5125 + $0x30] sm:$0xff]
        %v5133 = vld [vmem:[%s5125 + $0x38] sm:$0xff]
        %v5134 = vld [vmem:[%s5125 + $0x40] sm:$0xff]
        %v5135 = vld [vmem:[%s5125 + $0x48] sm:$0xff]
        %v5136 = vld [vmem:[%s5125 + $0x50] sm:$0xff]
        %v5137 = vld [vmem:[%s5125 + $0x58] sm:$0xff]
        %v5138 = vld [vmem:[%s5125 + $0x60] sm:$0xff]
        %v5139 = vld [vmem:[%s5125 + $0x68] sm:$0xff]
        %v5140 = vld [vmem:[%s5125 + $0x70] sm:$0xff]
        %v5141 = vld [vmem:[%s5125 + $0x78] sm:$0xff]
        %5142 = vmatprep.subr.mxu0 0.0
        %v5143 = vand.u32 %v5126, 4294901760
        %5144 = vmatpush1.msra.mxu0 %v5143
        %5145 = vmatprep.subr.mxu0 0.0
        %v5146 = vand.u32 %v5127, 4294901760
        %5147 = vmatpush1.msra.mxu0 %v5146
        %5148 = vmatprep.subr.mxu0 0.0
        %v5149 = vand.u32 %v5128, 4294901760
        %5150 = vmatpush1.msra.mxu0 %v5149
        %5151 = vmatprep.subr.mxu0 0.0
        %v5152 = vand.u32 %v5129, 4294901760
        %5153 = vmatpush1.msra.mxu0 %v5152
        %5154 = vmatprep.subr.mxu0 0.0
        %v5155 = vand.u32 %v5130, 4294901760
        %5156 = vmatpush1.msra.mxu0 %v5155
        %5157 = vmatprep.subr.mxu0 0.0
        %v5158 = vand.u32 %v5131, 4294901760
        %5159 = vmatpush1.msra.mxu0 %v5158
        %5160 = vmatprep.subr.mxu0 0.0
        %v5161 = vand.u32 %v5132, 4294901760
        %5162 = vmatpush1.msra.mxu0 %v5161
        %5163 = vmatprep.subr.mxu0 0.0
        %v5164 = vand.u32 %v5133, 4294901760
        %5165 = vmatpush1.msra.mxu0 %v5164
        %5166 = vmatprep.subr.mxu0 0.0
        %v5167 = vand.u32 %v5134, 4294901760
        %5168 = vmatpush1.msra.mxu0 %v5167
        %5169 = vmatprep.subr.mxu0 0.0
        %v5170 = vand.u32 %v5135, 4294901760
        %5171 = vmatpush1.msra.mxu0 %v5170
        %5172 = vmatprep.subr.mxu0 0.0
        %v5173 = vand.u32 %v5136, 4294901760
        %5174 = vmatpush1.msra.mxu0 %v5173
        %5175 = vmatprep.subr.mxu0 0.0
        %v5176 = vand.u32 %v5137, 4294901760
        %5177 = vmatpush1.msra.mxu0 %v5176
        %5178 = vmatprep.subr.mxu0 0.0
        %v5179 = vand.u32 %v5138, 4294901760
        %5180 = vmatpush1.msra.mxu0 %v5179
        %5181 = vmatprep.subr.mxu0 0.0
        %v5182 = vand.u32 %v5139, 4294901760
        %5183 = vmatpush1.msra.mxu0 %v5182
        %5184 = vmatprep.subr.mxu0 0.0
        %v5185 = vand.u32 %v5140, 4294901760
        %5186 = vmatpush1.msra.mxu0 %v5185
        %5187 = vmatprep.subr.mxu0 0.0
        %v5188 = vand.u32 %v5141, 4294901760
        %5189 = vmatpush1.msra.mxu0 %v5188
        %5190 = vmatprep.subr.mxu0 0.0
        %5191 = vmatpush1.msra.mxu0 0.0
        %5192 = vmatprep.subr.mxu0 0.0
        %5193 = vmatpush1.msra.mxu0 0.0
        %5194 = vmatprep.subr.mxu0 0.0
        %5195 = vmatpush1.msra.mxu0 0.0
        %5196 = vmatprep.subr.mxu0 0.0
        %5197 = vmatpush1.msra.mxu0 0.0
        %5198 = vmatprep.subr.mxu0 0.0
        %5199 = vmatpush1.msra.mxu0 0.0
        %5200 = vmatprep.subr.mxu0 0.0
        %5201 = vmatpush1.msra.mxu0 0.0
        %5202 = vmatprep.subr.mxu0 0.0
        %5203 = vmatpush1.msra.mxu0 0.0
        %5204 = vmatprep.subr.mxu0 0.0
        %5205 = vmatpush1.msra.mxu0 0.0
        %5206 = vmatprep.subr.mxu0 0.0
        %5207 = vmatpush1.msra.mxu0 0.0
        %5208 = vmatprep.subr.mxu0 0.0
        %5209 = vmatpush1.msra.mxu0 0.0
        %5210 = vmatprep.subr.mxu0 0.0
        %5211 = vmatpush1.msra.mxu0 0.0
        %5212 = vmatprep.subr.mxu0 0.0
        %5213 = vmatpush1.msra.mxu0 0.0
        %5214 = vmatprep.subr.mxu0 0.0
        %5215 = vmatpush1.msra.mxu0 0.0
        %5216 = vmatprep.subr.mxu0 0.0
        %5217 = vmatpush1.msra.mxu0 0.0
        %5218 = vmatprep.subr.mxu0 0.0
        %5219 = vmatpush1.msra.mxu0 0.0
        %5220 = vmatprep.subr.mxu0 0.0
        %5221 = vmatpush1.msra.mxu0 0.0
        %5222 = vmatprep.mubr.f32.mxu0 0.0
        %v5223 = vand.u32 %v5121, 4294901760
        %v5224 = vsub.f32 %v5121, %v5223
        %v5225 = vand.u32 %v5224, 4294901760
        %v5226 = vsub.f32 %v5224, %v5225
        %v5227 = vand.u32 %v5226, 4294901760
        %5228 = vmatmul.mubr.f32.gmra.mrb[0].mxu0 %v5227
        %v5229 = vpop.f32.mrb[0].mxu0
        %v5230 = vadd.f32 0.0, %v5229
        %v5231 = vpop.f32.mrb[0].mxu0
        %5232 = vmatprep.mubr.f32.mxu0 0.0
        %v5233 = vand.u32 %v5122, 4294901760
        %v5234 = vsub.f32 %v5122, %v5233
        %v5235 = vand.u32 %v5234, 4294901760
        %v5236 = vsub.f32 %v5234, %v5235
        %v5237 = vand.u32 %v5236, 4294901760
        %5238 = vmatmul.mubr.f32.gmra.mrb[0].mxu0 %v5237
        %v5239 = vpop.f32.mrb[0].mxu0
        %v5240 = vadd.f32 0.0, %v5239
        %v5241 = vpop.f32.mrb[0].mxu0
        %5242 = vmatprep.mubr.f32.mxu0 0.0
        %v5243 = vand.u32 %v5123, 4294901760
        %v5244 = vsub.f32 %v5123, %v5243
        %v5245 = vand.u32 %v5244, 4294901760
        %v5246 = vsub.f32 %v5244, %v5245
        %v5247 = vand.u32 %v5246, 4294901760
        %5248 = vmatmul.mubr.f32.gmra.mrb[0].mxu0 %v5247
        %v5249 = vpop.f32.mrb[0].mxu0
        %v5250 = vadd.f32 0.0, %v5249
        %v5251 = vpop.f32.mrb[0].mxu0
        %5252 = vmatprep.mubr.f32.mxu0 0.0
        %v5253 = vand.u32 %v5124, 4294901760
        %v5254 = vsub.f32 %v5124, %v5253
        %v5255 = vand.u32 %v5254, 4294901760
        %v5256 = vsub.f32 %v5254, %v5255
        %v5257 = vand.u32 %v5256, 4294901760
        %5258 = vmatmul.mubr.f32.gmra.mrb[0].mxu0 %v5257
        %v5259 = vpop.f32.mrb[0].mxu0
        %v5260 = vadd.f32 0.0, %v5259
        %v5261 = vpop.f32.mrb[0].mxu0
        %5262 = vdwg.mxu0
        %5263 = vmatprep.subr.mxu0 0.0
        %v5264 = vand.u32 %v5126, 4294901760
        %v5265 = vsub.f32 %v5126, %v5264
        %v5266 = vand.u32 %v5265, 4294901760
        %v5267 = vsub.f32 %v5265, %v5266
        %v5268 = vand.u32 %v5267, 4294901760
        %5269 = vmatpush1.msra.mxu0 %v5268
        %5270 = vmatprep.subr.mxu0 0.0
        %v5271 = vand.u32 %v5127, 4294901760
        %v5272 = vsub.f32 %v5127, %v5271
        %v5273 = vand.u32 %v5272, 4294901760
        %v5274 = vsub.f32 %v5272, %v5273
        %v5275 = vand.u32 %v5274, 4294901760
        %5276 = vmatpush1.msra.mxu0 %v5275
        %5277 = vmatprep.subr.mxu0 0.0
        %v5278 = vand.u32 %v5128, 4294901760
        %v5279 = vsub.f32 %v5128, %v5278
        %v5280 = vand.u32 %v5279, 4294901760
        %v5281 = vsub.f32 %v5279, %v5280
        %v5282 = vand.u32 %v5281, 4294901760
        %5283 = vmatpush1.msra.mxu0 %v5282
        %5284 = vmatprep.subr.mxu0 0.0
        %v5285 = vand.u32 %v5129, 4294901760
        %v5286 = vsub.f32 %v5129, %v5285
        %v5287 = vand.u32 %v5286, 4294901760
        %v5288 = vsub.f32 %v5286, %v5287
        %v5289 = vand.u32 %v5288, 4294901760
        %5290 = vmatpush1.msra.mxu0 %v5289
        %5291 = vmatprep.subr.mxu0 0.0
        %v5292 = vand.u32 %v5130, 4294901760
        %v5293 = vsub.f32 %v5130, %v5292
        %v5294 = vand.u32 %v5293, 4294901760
        %v5295 = vsub.f32 %v5293, %v5294
        %v5296 = vand.u32 %v5295, 4294901760
        %5297 = vmatpush1.msra.mxu0 %v5296
        %5298 = vmatprep.subr.mxu0 0.0
        %v5299 = vand.u32 %v5131, 4294901760
        %v5300 = vsub.f32 %v5131, %v5299
        %v5301 = vand.u32 %v5300, 4294901760
        %v5302 = vsub.f32 %v5300, %v5301
        %v5303 = vand.u32 %v5302, 4294901760
        %5304 = vmatpush1.msra.mxu0 %v5303
        %5305 = vmatprep.subr.mxu0 0.0
        %v5306 = vand.u32 %v5132, 4294901760
        %v5307 = vsub.f32 %v5132, %v5306
        %v5308 = vand.u32 %v5307, 4294901760
        %v5309 = vsub.f32 %v5307, %v5308
        %v5310 = vand.u32 %v5309, 4294901760
        %5311 = vmatpush1.msra.mxu0 %v5310
        %5312 = vmatprep.subr.mxu0 0.0
        %v5313 = vand.u32 %v5133, 4294901760
        %v5314 = vsub.f32 %v5133, %v5313
        %v5315 = vand.u32 %v5314, 4294901760
        %v5316 = vsub.f32 %v5314, %v5315
        %v5317 = vand.u32 %v5316, 4294901760
        %5318 = vmatpush1.msra.mxu0 %v5317
        %5319 = vmatprep.subr.mxu0 0.0
        %v5320 = vand.u32 %v5134, 4294901760
        %v5321 = vsub.f32 %v5134, %v5320
        %v5322 = vand.u32 %v5321, 4294901760
        %v5323 = vsub.f32 %v5321, %v5322
        %v5324 = vand.u32 %v5323, 4294901760
        %5325 = vmatpush1.msra.mxu0 %v5324
        %5326 = vmatprep.subr.mxu0 0.0
        %v5327 = vand.u32 %v5135, 4294901760
        %v5328 = vsub.f32 %v5135, %v5327
        %v5329 = vand.u32 %v5328, 4294901760
        %v5330 = vsub.f32 %v5328, %v5329
        %v5331 = vand.u32 %v5330, 4294901760
        %5332 = vmatpush1.msra.mxu0 %v5331
        %5333 = vmatprep.subr.mxu0 0.0
        %v5334 = vand.u32 %v5136, 4294901760
        %v5335 = vsub.f32 %v5136, %v5334
        %v5336 = vand.u32 %v5335, 4294901760
        %v5337 = vsub.f32 %v5335, %v5336
        %v5338 = vand.u32 %v5337, 4294901760
        %5339 = vmatpush1.msra.mxu0 %v5338
        %5340 = vmatprep.subr.mxu0 0.0
        %v5341 = vand.u32 %v5137, 4294901760
        %v5342 = vsub.f32 %v5137, %v5341
        %v5343 = vand.u32 %v5342, 4294901760
        %v5344 = vsub.f32 %v5342, %v5343
        %v5345 = vand.u32 %v5344, 4294901760
        %5346 = vmatpush1.msra.mxu0 %v5345
        %5347 = vmatprep.subr.mxu0 0.0
        %v5348 = vand.u32 %v5138, 4294901760
        %v5349 = vsub.f32 %v5138, %v5348
        %v5350 = vand.u32 %v5349, 4294901760
        %v5351 = vsub.f32 %v5349, %v5350
        %v5352 = vand.u32 %v5351, 4294901760
        %5353 = vmatpush1.msra.mxu0 %v5352
        %5354 = vmatprep.subr.mxu0 0.0
        %v5355 = vand.u32 %v5139, 4294901760
        %v5356 = vsub.f32 %v5139, %v5355
        %v5357 = vand.u32 %v5356, 4294901760
        %v5358 = vsub.f32 %v5356, %v5357
        %v5359 = vand.u32 %v5358, 4294901760
        %5360 = vmatpush1.msra.mxu0 %v5359
        %5361 = vmatprep.subr.mxu0 0.0
        %v5362 = vand.u32 %v5140, 4294901760
        %v5363 = vsub.f32 %v5140, %v5362
        %v5364 = vand.u32 %v5363, 4294901760
        %v5365 = vsub.f32 %v5363, %v5364
        %v5366 = vand.u32 %v5365, 4294901760
        %5367 = vmatpush1.msra.mxu0 %v5366
        %5368 = vmatprep.subr.mxu0 0.0
        %v5369 = vand.u32 %v5141, 4294901760
        %v5370 = vsub.f32 %v5141, %v5369
        %v5371 = vand.u32 %v5370, 4294901760
        %v5372 = vsub.f32 %v5370, %v5371
        %v5373 = vand.u32 %v5372, 4294901760
        %5374 = vmatpush1.msra.mxu0 %v5373
        %5375 = vmatprep.subr.mxu0 0.0
        %5376 = vmatpush1.msra.mxu0 0.0
        %5377 = vmatprep.subr.mxu0 0.0
        %5378 = vmatpush1.msra.mxu0 0.0
        %5379 = vmatprep.subr.mxu0 0.0
        %5380 = vmatpush1.msra.mxu0 0.0
        %5381 = vmatprep.subr.mxu0 0.0
        %5382 = vmatpush1.msra.mxu0 0.0
        %5383 = vmatprep.subr.mxu0 0.0
        %5384 = vmatpush1.msra.mxu0 0.0
        %5385 = vmatprep.subr.mxu0 0.0
        %5386 = vmatpush1.msra.mxu0 0.0
        %5387 = vmatprep.subr.mxu0 0.0
        %5388 = vmatpush1.msra.mxu0 0.0
        %5389 = vmatprep.subr.mxu0 0.0
        %5390 = vmatpush1.msra.mxu0 0.0
        %5391 = vmatprep.subr.mxu0 0.0
        %5392 = vmatpush1.msra.mxu0 0.0
        %5393 = vmatprep.subr.mxu0 0.0
        %5394 = vmatpush1.msra.mxu0 0.0
        %5395 = vmatprep.subr.mxu0 0.0
        %5396 = vmatpush1.msra.mxu0 0.0
        %5397 = vmatprep.subr.mxu0 0.0
        %5398 = vmatpush1.msra.mxu0 0.0
        %5399 = vmatprep.subr.mxu0 0.0
        %5400 = vmatpush1.msra.mxu0 0.0
        %5401 = vmatprep.subr.mxu0 0.0
        %5402 = vmatpush1.msra.mxu0 0.0
        %5403 = vmatprep.subr.mxu0 0.0
        %5404 = vmatpush1.msra.mxu0 0.0
        %5405 = vmatprep.subr.mxu0 0.0
        %5406 = vmatpush1.msra.mxu0 0.0
        %5407 = vmatprep.mubr.f32.mxu0 0.0
        %v5408 = vand.u32 %v5121, 4294901760
        %5409 = vmatmul.mubr.f32.gmra.mrb[0].mxu0 %v5408
        %v5410 = vpop.f32.mrb[0].mxu0
        %v5411 = vadd.f32 %v5230, %v5410
        %v5412 = vpop.f32.mrb[0].mxu0
        %5413 = vmatprep.mubr.f32.mxu0 0.0
        %v5414 = vand.u32 %v5122, 4294901760
        %5415 = vmatmul.mubr.f32.gmra.mrb[0].mxu0 %v5414
        %v5416 = vpop.f32.mrb[0].mxu0
        %v5417 = vadd.f32 %v5240, %v5416
        %v5418 = vpop.f32.mrb[0].mxu0
        %5419 = vmatprep.mubr.f32.mxu0 0.0
        %v5420 = vand.u32 %v5123, 4294901760
        %5421 = vmatmul.mubr.f32.gmra.mrb[0].mxu0 %v5420
        %v5422 = vpop.f32.mrb[0].mxu0
        %v5423 = vadd.f32 %v5250, %v5422
        %v5424 = vpop.f32.mrb[0].mxu0
        %5425 = vmatprep.mubr.f32.mxu0 0.0
        %v5426 = vand.u32 %v5124, 4294901760
        %5427 = vmatmul.mubr.f32.gmra.mrb[0].mxu0 %v5426
        %v5428 = vpop.f32.mrb[0].mxu0
        %v5429 = vadd.f32 %v5260, %v5428
        %v5430 = vpop.f32.mrb[0].mxu0
        %5431 = vdwg.mxu0
        %5432 = vmatprep.subr.mxu0 0.0
        %v5433 = vand.u32 %v5126, 4294901760
        %v5434 = vsub.f32 %v5126, %v5433
        %5435 = vmatpush1.msra.mxu0 %v5434
        %5436 = vmatprep.subr.mxu0 0.0
        %v5437 = vand.u32 %v5127, 4294901760
        %v5438 = vsub.f32 %v5127, %v5437
        %5439 = vmatpush1.msra.mxu0 %v5438
        %5440 = vmatprep.subr.mxu0 0.0
        %v5441 = vand.u32 %v5128, 4294901760
        %v5442 = vsub.f32 %v5128, %v5441
        %5443 = vmatpush1.msra.mxu0 %v5442
        %5444 = vmatprep.subr.mxu0 0.0
        %v5445 = vand.u32 %v5129, 4294901760
        %v5446 = vsub.f32 %v5129, %v5445
        %5447 = vmatpush1.msra.mxu0 %v5446
        %5448 = vmatprep.subr.mxu0 0.0
        %v5449 = vand.u32 %v5130, 4294901760
        %v5450 = vsub.f32 %v5130, %v5449
        %5451 = vmatpush1.msra.mxu0 %v5450
        %5452 = vmatprep.subr.mxu0 0.0
        %v5453 = vand.u32 %v5131, 4294901760
        %v5454 = vsub.f32 %v5131, %v5453
        %5455 = vmatpush1.msra.mxu0 %v5454
        %5456 = vmatprep.subr.mxu0 0.0
        %v5457 = vand.u32 %v5132, 4294901760
        %v5458 = vsub.f32 %v5132, %v5457
        %5459 = vmatpush1.msra.mxu0 %v5458
        %5460 = vmatprep.subr.mxu0 0.0
        %v5461 = vand.u32 %v5133, 4294901760
        %v5462 = vsub.f32 %v5133, %v5461
        %5463 = vmatpush1.msra.mxu0 %v5462
        %5464 = vmatprep.subr.mxu0 0.0
        %v5465 = vand.u32 %v5134, 4294901760
        %v5466 = vsub.f32 %v5134, %v5465
        %5467 = vmatpush1.msra.mxu0 %v5466
        %5468 = vmatprep.subr.mxu0 0.0
        %v5469 = vand.u32 %v5135, 4294901760
        %v5470 = vsub.f32 %v5135, %v5469
        %5471 = vmatpush1.msra.mxu0 %v5470
        %5472 = vmatprep.subr.mxu0 0.0
        %v5473 = vand.u32 %v5136, 4294901760
        %v5474 = vsub.f32 %v5136, %v5473
        %5475 = vmatpush1.msra.mxu0 %v5474
        %5476 = vmatprep.subr.mxu0 0.0
        %v5477 = vand.u32 %v5137, 4294901760
        %v5478 = vsub.f32 %v5137, %v5477
        %5479 = vmatpush1.msra.mxu0 %v5478
        %5480 = vmatprep.subr.mxu0 0.0
        %v5481 = vand.u32 %v5138, 4294901760
        %v5482 = vsub.f32 %v5138, %v5481
        %5483 = vmatpush1.msra.mxu0 %v5482
        %5484 = vmatprep.subr.mxu0 0.0
        %v5485 = vand.u32 %v5139, 4294901760
        %v5486 = vsub.f32 %v5139, %v5485
        %5487 = vmatpush1.msra.mxu0 %v5486
        %5488 = vmatprep.subr.mxu0 0.0
        %v5489 = vand.u32 %v5140, 4294901760
        %v5490 = vsub.f32 %v5140, %v5489
        %5491 = vmatpush1.msra.mxu0 %v5490
        %5492 = vmatprep.subr.mxu0 0.0
        %v5493 = vand.u32 %v5141, 4294901760
        %v5494 = vsub.f32 %v5141, %v5493
        %5495 = vmatpush1.msra.mxu0 %v5494
        %5496 = vmatprep.subr.mxu0 0.0
        %5497 = vmatpush1.msra.mxu0 0.0
        %5498 = vmatprep.subr.mxu0 0.0
        %5499 = vmatpush1.msra.mxu0 0.0
        %5500 = vmatprep.subr.mxu0 0.0
        %5501 = vmatpush1.msra.mxu0 0.0
        %5502 = vmatprep.subr.mxu0 0.0
        %5503 = vmatpush1.msra.mxu0 0.0
        %5504 = vmatprep.subr.mxu0 0.0
        %5505 = vmatpush1.msra.mxu0 0.0
        %5506 = vmatprep.subr.mxu0 0.0
        %5507 = vmatpush1.msra.mxu0 0.0
        %5508 = vmatprep.subr.mxu0 0.0
        %5509 = vmatpush1.msra.mxu0 0.0
        %5510 = vmatprep.subr.mxu0 0.0
        %5511 = vmatpush1.msra.mxu0 0.0
        %5512 = vmatprep.subr.mxu0 0.0
        %5513 = vmatpush1.msra.mxu0 0.0
        %5514 = vmatprep.subr.mxu0 0.0
        %5515 = vmatpush1.msra.mxu0 0.0
        %5516 = vmatprep.subr.mxu0 0.0
        %5517 = vmatpush1.msra.mxu0 0.0
        %5518 = vmatprep.subr.mxu0 0.0
        %5519 = vmatpush1.msra.mxu0 0.0
        %5520 = vmatprep.subr.mxu0 0.0
        %5521 = vmatpush1.msra.mxu0 0.0
        %5522 = vmatprep.subr.mxu0 0.0
        %5523 = vmatpush1.msra.mxu0 0.0
        %5524 = vmatprep.subr.mxu0 0.0
        %5525 = vmatpush1.msra.mxu0 0.0
        %5526 = vmatprep.subr.mxu0 0.0
        %5527 = vmatpush1.msra.mxu0 0.0
        %5528 = vmatprep.mubr.f32.mxu0 0.0
        %v5529 = vand.u32 %v5121, 4294901760
        %v5530 = vsub.f32 %v5121, %v5529
        %5531 = vmatmul.mubr.f32.gmra.mrb[0].mxu0 %v5530
        %v5532 = vpop.f32.mrb[0].mxu0
        %v5533 = vadd.f32 %v5411, %v5532
        %v5534 = vpop.f32.mrb[0].mxu0
        %5535 = vmatprep.mubr.f32.mxu0 0.0
        %v5536 = vand.u32 %v5122, 4294901760
        %v5537 = vsub.f32 %v5122, %v5536
        %5538 = vmatmul.mubr.f32.gmra.mrb[0].mxu0 %v5537
        %v5539 = vpop.f32.mrb[0].mxu0
        %v5540 = vadd.f32 %v5417, %v5539
        %v5541 = vpop.f32.mrb[0].mxu0
        %5542 = vmatprep.mubr.f32.mxu0 0.0
        %v5543 = vand.u32 %v5123, 4294901760
        %v5544 = vsub.f32 %v5123, %v5543
        %5545 = vmatmul.mubr.f32.gmra.mrb[0].mxu0 %v5544
        %v5546 = vpop.f32.mrb[0].mxu0
        %v5547 = vadd.f32 %v5423, %v5546
        %v5548 = vpop.f32.mrb[0].mxu0
        %5549 = vmatprep.mubr.f32.mxu0 0.0
        %v5550 = vand.u32 %v5124, 4294901760
        %v5551 = vsub.f32 %v5124, %v5550
        %5552 = vmatmul.mubr.f32.gmra.mrb[0].mxu0 %v5551
        %v5553 = vpop.f32.mrb[0].mxu0
        %v5554 = vadd.f32 %v5429, %v5553
        %v5555 = vpop.f32.mrb[0].mxu0
        %5556 = vdwg.mxu0
        %5557 = vmatprep.subr.mxu0 0.0
        %v5558 = vand.u32 %v5126, 4294901760
        %5559 = vmatpush1.msra.mxu0 %v5558
        %5560 = vmatprep.subr.mxu0 0.0
        %v5561 = vand.u32 %v5127, 4294901760
        %5562 = vmatpush1.msra.mxu0 %v5561
        %5563 = vmatprep.subr.mxu0 0.0
        %v5564 = vand.u32 %v5128, 4294901760
        %5565 = vmatpush1.msra.mxu0 %v5564
        %5566 = vmatprep.subr.mxu0 0.0
        %v5567 = vand.u32 %v5129, 4294901760
        %5568 = vmatpush1.msra.mxu0 %v5567
        %5569 = vmatprep.subr.mxu0 0.0
        %v5570 = vand.u32 %v5130, 4294901760
        %5571 = vmatpush1.msra.mxu0 %v5570
        %5572 = vmatprep.subr.mxu0 0.0
        %v5573 = vand.u32 %v5131, 4294901760
        %5574 = vmatpush1.msra.mxu0 %v5573
        %5575 = vmatprep.subr.mxu0 0.0
        %v5576 = vand.u32 %v5132, 4294901760
        %5577 = vmatpush1.msra.mxu0 %v5576
        %5578 = vmatprep.subr.mxu0 0.0
        %v5579 = vand.u32 %v5133, 4294901760
        %5580 = vmatpush1.msra.mxu0 %v5579
        %5581 = vmatprep.subr.mxu0 0.0
        %v5582 = vand.u32 %v5134, 4294901760
        %5583 = vmatpush1.msra.mxu0 %v5582
        %5584 = vmatprep.subr.mxu0 0.0
        %v5585 = vand.u32 %v5135, 4294901760
        %5586 = vmatpush1.msra.mxu0 %v5585
        %5587 = vmatprep.subr.mxu0 0.0
        %v5588 = vand.u32 %v5136, 4294901760
        %5589 = vmatpush1.msra.mxu0 %v5588
        %5590 = vmatprep.subr.mxu0 0.0
        %v5591 = vand.u32 %v5137, 4294901760
        %5592 = vmatpush1.msra.mxu0 %v5591
        %5593 = vmatprep.subr.mxu0 0.0
        %v5594 = vand.u32 %v5138, 4294901760
        %5595 = vmatpush1.msra.mxu0 %v5594
        %5596 = vmatprep.subr.mxu0 0.0
        %v5597 = vand.u32 %v5139, 4294901760
        %5598 = vmatpush1.msra.mxu0 %v5597
        %5599 = vmatprep.subr.mxu0 0.0
        %v5600 = vand.u32 %v5140, 4294901760
        %5601 = vmatpush1.msra.mxu0 %v5600
        %5602 = vmatprep.subr.mxu0 0.0
        %v5603 = vand.u32 %v5141, 4294901760
        %5604 = vmatpush1.msra.mxu0 %v5603
        %5605 = vmatprep.subr.mxu0 0.0
        %5606 = vmatpush1.msra.mxu0 0.0
        %5607 = vmatprep.subr.mxu0 0.0
        %5608 = vmatpush1.msra.mxu0 0.0
        %5609 = vmatprep.subr.mxu0 0.0
        %5610 = vmatpush1.msra.mxu0 0.0
        %5611 = vmatprep.subr.mxu0 0.0
        %5612 = vmatpush1.msra.mxu0 0.0
        %5613 = vmatprep.subr.mxu0 0.0
        %5614 = vmatpush1.msra.mxu0 0.0
        %5615 = vmatprep.subr.mxu0 0.0
        %5616 = vmatpush1.msra.mxu0 0.0
        %5617 = vmatprep.subr.mxu0 0.0
        %5618 = vmatpush1.msra.mxu0 0.0
        %5619 = vmatprep.subr.mxu0 0.0
        %5620 = vmatpush1.msra.mxu0 0.0
        %5621 = vmatprep.subr.mxu0 0.0
        %5622 = vmatpush1.msra.mxu0 0.0
        %5623 = vmatprep.subr.mxu0 0.0
        %5624 = vmatpush1.msra.mxu0 0.0
        %5625 = vmatprep.subr.mxu0 0.0
        %5626 = vmatpush1.msra.mxu0 0.0
        %5627 = vmatprep.subr.mxu0 0.0
        %5628 = vmatpush1.msra.mxu0 0.0
        %5629 = vmatprep.subr.mxu0 0.0
        %5630 = vmatpush1.msra.mxu0 0.0
        %5631 = vmatprep.subr.mxu0 0.0
        %5632 = vmatpush1.msra.mxu0 0.0
        %5633 = vmatprep.subr.mxu0 0.0
        %5634 = vmatpush1.msra.mxu0 0.0
        %5635 = vmatprep.subr.mxu0 0.0
        %5636 = vmatpush1.msra.mxu0 0.0
        %5637 = vmatprep.mubr.f32.mxu0 0.0
        %v5638 = vand.u32 %v5121, 4294901760
        %v5639 = vsub.f32 %v5121, %v5638
        %v5640 = vand.u32 %v5639, 4294901760
        %5641 = vmatmul.mubr.f32.gmra.mrb[0].mxu0 %v5640
        %v5642 = vpop.f32.mrb[0].mxu0
        %v5643 = vadd.f32 %v5533, %v5642
        %v5644 = vpop.f32.mrb[0].mxu0
        %5645 = vmatprep.mubr.f32.mxu0 0.0
        %v5646 = vand.u32 %v5122, 4294901760
        %v5647 = vsub.f32 %v5122, %v5646
        %v5648 = vand.u32 %v5647, 4294901760
        %5649 = vmatmul.mubr.f32.gmra.mrb[0].mxu0 %v5648
        %v5650 = vpop.f32.mrb[0].mxu0
        %v5651 = vadd.f32 %v5540, %v5650
        %v5652 = vpop.f32.mrb[0].mxu0
        %5653 = vmatprep.mubr.f32.mxu0 0.0
        %v5654 = vand.u32 %v5123, 4294901760
        %v5655 = vsub.f32 %v5123, %v5654
        %v5656 = vand.u32 %v5655, 4294901760
        %5657 = vmatmul.mubr.f32.gmra.mrb[0].mxu0 %v5656
        %v5658 = vpop.f32.mrb[0].mxu0
        %v5659 = vadd.f32 %v5547, %v5658
        %v5660 = vpop.f32.mrb[0].mxu0
        %5661 = vmatprep.mubr.f32.mxu0 0.0
        %v5662 = vand.u32 %v5124, 4294901760
        %v5663 = vsub.f32 %v5124, %v5662
        %v5664 = vand.u32 %v5663, 4294901760
        %5665 = vmatmul.mubr.f32.gmra.mrb[0].mxu0 %v5664
        %v5666 = vpop.f32.mrb[0].mxu0
        %v5667 = vadd.f32 %v5554, %v5666
        %v5668 = vpop.f32.mrb[0].mxu0
        %5669 = vdwg.mxu0
        %5670 = vmatprep.subr.mxu0 0.0
        %v5671 = vand.u32 %v5126, 4294901760
        %v5672 = vsub.f32 %v5126, %v5671
        %v5673 = vand.u32 %v5672, 4294901760
        %5674 = vmatpush1.msra.mxu0 %v5673
        %5675 = vmatprep.subr.mxu0 0.0
        %v5676 = vand.u32 %v5127, 4294901760
        %v5677 = vsub.f32 %v5127, %v5676
        %v5678 = vand.u32 %v5677, 4294901760
        %5679 = vmatpush1.msra.mxu0 %v5678
        %5680 = vmatprep.subr.mxu0 0.0
        %v5681 = vand.u32 %v5128, 4294901760
        %v5682 = vsub.f32 %v5128, %v5681
        %v5683 = vand.u32 %v5682, 4294901760
        %5684 = vmatpush1.msra.mxu0 %v5683
        %5685 = vmatprep.subr.mxu0 0.0
        %v5686 = vand.u32 %v5129, 4294901760
        %v5687 = vsub.f32 %v5129, %v5686
        %v5688 = vand.u32 %v5687, 4294901760
        %5689 = vmatpush1.msra.mxu0 %v5688
        %5690 = vmatprep.subr.mxu0 0.0
        %v5691 = vand.u32 %v5130, 4294901760
        %v5692 = vsub.f32 %v5130, %v5691
        %v5693 = vand.u32 %v5692, 4294901760
        %5694 = vmatpush1.msra.mxu0 %v5693
        %5695 = vmatprep.subr.mxu0 0.0
        %v5696 = vand.u32 %v5131, 4294901760
        %v5697 = vsub.f32 %v5131, %v5696
        %v5698 = vand.u32 %v5697, 4294901760
        %5699 = vmatpush1.msra.mxu0 %v5698
        %5700 = vmatprep.subr.mxu0 0.0
        %v5701 = vand.u32 %v5132, 4294901760
        %v5702 = vsub.f32 %v5132, %v5701
        %v5703 = vand.u32 %v5702, 4294901760
        %5704 = vmatpush1.msra.mxu0 %v5703
        %5705 = vmatprep.subr.mxu0 0.0
        %v5706 = vand.u32 %v5133, 4294901760
        %v5707 = vsub.f32 %v5133, %v5706
        %v5708 = vand.u32 %v5707, 4294901760
        %5709 = vmatpush1.msra.mxu0 %v5708
        %5710 = vmatprep.subr.mxu0 0.0
        %v5711 = vand.u32 %v5134, 4294901760
        %v5712 = vsub.f32 %v5134, %v5711
        %v5713 = vand.u32 %v5712, 4294901760
        %5714 = vmatpush1.msra.mxu0 %v5713
        %5715 = vmatprep.subr.mxu0 0.0
        %v5716 = vand.u32 %v5135, 4294901760
        %v5717 = vsub.f32 %v5135, %v5716
        %v5718 = vand.u32 %v5717, 4294901760
        %5719 = vmatpush1.msra.mxu0 %v5718
        %5720 = vmatprep.subr.mxu0 0.0
        %v5721 = vand.u32 %v5136, 4294901760
        %v5722 = vsub.f32 %v5136, %v5721
        %v5723 = vand.u32 %v5722, 4294901760
        %5724 = vmatpush1.msra.mxu0 %v5723
        %5725 = vmatprep.subr.mxu0 0.0
        %v5726 = vand.u32 %v5137, 4294901760
        %v5727 = vsub.f32 %v5137, %v5726
        %v5728 = vand.u32 %v5727, 4294901760
        %5729 = vmatpush1.msra.mxu0 %v5728
        %5730 = vmatprep.subr.mxu0 0.0
        %v5731 = vand.u32 %v5138, 4294901760
        %v5732 = vsub.f32 %v5138, %v5731
        %v5733 = vand.u32 %v5732, 4294901760
        %5734 = vmatpush1.msra.mxu0 %v5733
        %5735 = vmatprep.subr.mxu0 0.0
        %v5736 = vand.u32 %v5139, 4294901760
        %v5737 = vsub.f32 %v5139, %v5736
        %v5738 = vand.u32 %v5737, 4294901760
        %5739 = vmatpush1.msra.mxu0 %v5738
        %5740 = vmatprep.subr.mxu0 0.0
        %v5741 = vand.u32 %v5140, 4294901760
        %v5742 = vsub.f32 %v5140, %v5741
        %v5743 = vand.u32 %v5742, 4294901760
        %5744 = vmatpush1.msra.mxu0 %v5743
        %5745 = vmatprep.subr.mxu0 0.0
        %v5746 = vand.u32 %v5141, 4294901760
        %v5747 = vsub.f32 %v5141, %v5746
        %v5748 = vand.u32 %v5747, 4294901760
        %5749 = vmatpush1.msra.mxu0 %v5748
        %5750 = vmatprep.subr.mxu0 0.0
        %5751 = vmatpush1.msra.mxu0 0.0
        %5752 = vmatprep.subr.mxu0 0.0
        %5753 = vmatpush1.msra.mxu0 0.0
        %5754 = vmatprep.subr.mxu0 0.0
        %5755 = vmatpush1.msra.mxu0 0.0
        %5756 = vmatprep.subr.mxu0 0.0
        %5757 = vmatpush1.msra.mxu0 0.0
        %5758 = vmatprep.subr.mxu0 0.0
        %5759 = vmatpush1.msra.mxu0 0.0
        %5760 = vmatprep.subr.mxu0 0.0
        %5761 = vmatpush1.msra.mxu0 0.0
        %5762 = vmatprep.subr.mxu0 0.0
        %5763 = vmatpush1.msra.mxu0 0.0
        %5764 = vmatprep.subr.mxu0 0.0
        %5765 = vmatpush1.msra.mxu0 0.0
        %5766 = vmatprep.subr.mxu0 0.0
        %5767 = vmatpush1.msra.mxu0 0.0
        %5768 = vmatprep.subr.mxu0 0.0
        %5769 = vmatpush1.msra.mxu0 0.0
        %5770 = vmatprep.subr.mxu0 0.0
        %5771 = vmatpush1.msra.mxu0 0.0
        %5772 = vmatprep.subr.mxu0 0.0
        %5773 = vmatpush1.msra.mxu0 0.0
        %5774 = vmatprep.subr.mxu0 0.0
        %5775 = vmatpush1.msra.mxu0 0.0
        %5776 = vmatprep.subr.mxu0 0.0
        %5777 = vmatpush1.msra.mxu0 0.0
        %5778 = vmatprep.subr.mxu0 0.0
        %5779 = vmatpush1.msra.mxu0 0.0
        %5780 = vmatprep.subr.mxu0 0.0
        %5781 = vmatpush1.msra.mxu0 0.0
        %5782 = vmatprep.mubr.f32.mxu0 0.0
        %v5783 = vand.u32 %v5121, 4294901760
        %5784 = vmatmul.mubr.f32.gmra.mrb[0].mxu0 %v5783
        %v5785 = vpop.f32.mrb[0].mxu0
        %v5786 = vadd.f32 %v5643, %v5785
        %v5787 = vpop.f32.mrb[0].mxu0
        %5788 = vmatprep.mubr.f32.mxu0 0.0
        %v5789 = vand.u32 %v5122, 4294901760
        %5790 = vmatmul.mubr.f32.gmra.mrb[0].mxu0 %v5789
        %v5791 = vpop.f32.mrb[0].mxu0
        %v5792 = vadd.f32 %v5651, %v5791
        %v5793 = vpop.f32.mrb[0].mxu0
        %5794 = vmatprep.mubr.f32.mxu0 0.0
        %v5795 = vand.u32 %v5123, 4294901760
        %5796 = vmatmul.mubr.f32.gmra.mrb[0].mxu0 %v5795
        %v5797 = vpop.f32.mrb[0].mxu0
        %v5798 = vadd.f32 %v5659, %v5797
        %v5799 = vpop.f32.mrb[0].mxu0
        %5800 = vmatprep.mubr.f32.mxu0 0.0
        %v5801 = vand.u32 %v5124, 4294901760
        %5802 = vmatmul.mubr.f32.gmra.mrb[0].mxu0 %v5801
        %v5803 = vpop.f32.mrb[0].mxu0
        %v5804 = vadd.f32 %v5667, %v5803
        %v5805 = vpop.f32.mrb[0].mxu0
        %5806 = vdwg.mxu0
        %5807 = vmatprep.subr.mxu0 0.0
        %v5808 = vand.u32 %v5126, 4294901760
        %5809 = vmatpush1.msra.mxu0 %v5808
        %5810 = vmatprep.subr.mxu0 0.0
        %v5811 = vand.u32 %v5127, 4294901760
        %5812 = vmatpush1.msra.mxu0 %v5811
        %5813 = vmatprep.subr.mxu0 0.0
        %v5814 = vand.u32 %v5128, 4294901760
        %5815 = vmatpush1.msra.mxu0 %v5814
        %5816 = vmatprep.subr.mxu0 0.0
        %v5817 = vand.u32 %v5129, 4294901760
        %5818 = vmatpush1.msra.mxu0 %v5817
        %5819 = vmatprep.subr.mxu0 0.0
        %v5820 = vand.u32 %v5130, 4294901760
        %5821 = vmatpush1.msra.mxu0 %v5820
        %5822 = vmatprep.subr.mxu0 0.0
        %v5823 = vand.u32 %v5131, 4294901760
        %5824 = vmatpush1.msra.mxu0 %v5823
        %5825 = vmatprep.subr.mxu0 0.0
        %v5826 = vand.u32 %v5132, 4294901760
        %5827 = vmatpush1.msra.mxu0 %v5826
        %5828 = vmatprep.subr.mxu0 0.0
        %v5829 = vand.u32 %v5133, 4294901760
        %5830 = vmatpush1.msra.mxu0 %v5829
        %5831 = vmatprep.subr.mxu0 0.0
        %v5832 = vand.u32 %v5134, 4294901760
        %5833 = vmatpush1.msra.mxu0 %v5832
        %5834 = vmatprep.subr.mxu0 0.0
        %v5835 = vand.u32 %v5135, 4294901760
        %5836 = vmatpush1.msra.mxu0 %v5835
        %5837 = vmatprep.subr.mxu0 0.0
        %v5838 = vand.u32 %v5136, 4294901760
        %5839 = vmatpush1.msra.mxu0 %v5838
        %5840 = vmatprep.subr.mxu0 0.0
        %v5841 = vand.u32 %v5137, 4294901760
        %5842 = vmatpush1.msra.mxu0 %v5841
        %5843 = vmatprep.subr.mxu0 0.0
        %v5844 = vand.u32 %v5138, 4294901760
        %5845 = vmatpush1.msra.mxu0 %v5844
        %5846 = vmatprep.subr.mxu0 0.0
        %v5847 = vand.u32 %v5139, 4294901760
        %5848 = vmatpush1.msra.mxu0 %v5847
        %5849 = vmatprep.subr.mxu0 0.0
        %v5850 = vand.u32 %v5140, 4294901760
        %5851 = vmatpush1.msra.mxu0 %v5850
        %5852 = vmatprep.subr.mxu0 0.0
        %v5853 = vand.u32 %v5141, 4294901760
        %5854 = vmatpush1.msra.mxu0 %v5853
        %5855 = vmatprep.subr.mxu0 0.0
        %5856 = vmatpush1.msra.mxu0 0.0
        %5857 = vmatprep.subr.mxu0 0.0
        %5858 = vmatpush1.msra.mxu0 0.0
        %5859 = vmatprep.subr.mxu0 0.0
        %5860 = vmatpush1.msra.mxu0 0.0
        %5861 = vmatprep.subr.mxu0 0.0
        %5862 = vmatpush1.msra.mxu0 0.0
        %5863 = vmatprep.subr.mxu0 0.0
        %5864 = vmatpush1.msra.mxu0 0.0
        %5865 = vmatprep.subr.mxu0 0.0
        %5866 = vmatpush1.msra.mxu0 0.0
        %5867 = vmatprep.subr.mxu0 0.0
        %5868 = vmatpush1.msra.mxu0 0.0
        %5869 = vmatprep.subr.mxu0 0.0
        %5870 = vmatpush1.msra.mxu0 0.0
        %5871 = vmatprep.subr.mxu0 0.0
        %5872 = vmatpush1.msra.mxu0 0.0
        %5873 = vmatprep.subr.mxu0 0.0
        %5874 = vmatpush1.msra.mxu0 0.0
        %5875 = vmatprep.subr.mxu0 0.0
        %5876 = vmatpush1.msra.mxu0 0.0
        %5877 = vmatprep.subr.mxu0 0.0
        %5878 = vmatpush1.msra.mxu0 0.0
        %5879 = vmatprep.subr.mxu0 0.0
        %5880 = vmatpush1.msra.mxu0 0.0
        %5881 = vmatprep.subr.mxu0 0.0
        %5882 = vmatpush1.msra.mxu0 0.0
        %5883 = vmatprep.subr.mxu0 0.0
        %5884 = vmatpush1.msra.mxu0 0.0
        %5885 = vmatprep.subr.mxu0 0.0
        %5886 = vmatpush1.msra.mxu0 0.0
        %5887 = vmatprep.mubr.f32.mxu0 0.0
        %v5888 = vand.u32 %v5121, 4294901760
        %5889 = vmatmul.mubr.f32.gmra.mrb[0].mxu0 %v5888
        %v5890 = vpop.f32.mrb[0].mxu0
        %v5891 = vadd.f32 %v5786, %v5890
        %v5892 = vpop.f32.mrb[0].mxu0
        %5893 = vmatprep.mubr.f32.mxu0 0.0
        %v5894 = vand.u32 %v5122, 4294901760
        %5895 = vmatmul.mubr.f32.gmra.mrb[0].mxu0 %v5894
        %v5896 = vpop.f32.mrb[0].mxu0
        %v5897 = vadd.f32 %v5792, %v5896
        %v5898 = vpop.f32.mrb[0].mxu0
        %5899 = vmatprep.mubr.f32.mxu0 0.0
        %v5900 = vand.u32 %v5123, 4294901760
        %5901 = vmatmul.mubr.f32.gmra.mrb[0].mxu0 %v5900
        %v5902 = vpop.f32.mrb[0].mxu0
        %v5903 = vadd.f32 %v5798, %v5902
        %v5904 = vpop.f32.mrb[0].mxu0
        %5905 = vmatprep.mubr.f32.mxu0 0.0
        %v5906 = vand.u32 %v5124, 4294901760
        %5907 = vmatmul.mubr.f32.gmra.mrb[0].mxu0 %v5906
        %v5908 = vpop.f32.mrb[0].mxu0
        %v5909 = vadd.f32 %v5804, %v5908
        %v5910 = vpop.f32.mrb[0].mxu0
        %5911 = vdwg.mxu0
        %v5912 = vadd.f32 %v5117, %v5891
        %v5913 = vadd.f32 %v5118, %v5897
        %v5914 = vadd.f32 %v5119, %v5903
        %v5915 = vadd.f32 %v5120, %v5909
        %v5916 = vld [vmem:[#allocation3 + $0x6] sm:$0xff]
        %v5917 = vld [vmem:[#allocation3 + $0xe] sm:$0xff]
        %v5918 = vld [vmem:[#allocation3 + $0x16] sm:$0xff]
        %v5919 = vld [vmem:[#allocation3 + $0x1e] sm:$0x1]
        %s5920 = scalar_lea.vmem [#allocation4], 768
        %v5921 = vld [vmem:[%s5920] sm:$0xff]
        %v5922 = vld [vmem:[%s5920 + $0x8] sm:$0xff]
        %v5923 = vld [vmem:[%s5920 + $0x10] sm:$0xff]
        %v5924 = vld [vmem:[%s5920 + $0x18] sm:$0xff]
        %v5925 = vld [vmem:[%s5920 + $0x20] sm:$0xff]
        %v5926 = vld [vmem:[%s5920 + $0x28] sm:$0xff]
        %v5927 = vld [vmem:[%s5920 + $0x30] sm:$0xff]
        %v5928 = vld [vmem:[%s5920 + $0x38] sm:$0xff]
        %v5929 = vld [vmem:[%s5920 + $0x40] sm:$0xff]
        %v5930 = vld [vmem:[%s5920 + $0x48] sm:$0xff]
        %v5931 = vld [vmem:[%s5920 + $0x50] sm:$0xff]
        %v5932 = vld [vmem:[%s5920 + $0x58] sm:$0xff]
        %v5933 = vld [vmem:[%s5920 + $0x60] sm:$0xff]
        %v5934 = vld [vmem:[%s5920 + $0x68] sm:$0xff]
        %v5935 = vld [vmem:[%s5920 + $0x70] sm:$0xff]
        %v5936 = vld [vmem:[%s5920 + $0x78] sm:$0xff]
        %5937 = vmatprep.subr.mxu0 0.0
        %v5938 = vand.u32 %v5921, 4294901760
        %5939 = vmatpush1.msra.mxu0 %v5938
        %5940 = vmatprep.subr.mxu0 0.0
        %v5941 = vand.u32 %v5922, 4294901760
        %5942 = vmatpush1.msra.mxu0 %v5941
        %5943 = vmatprep.subr.mxu0 0.0
        %v5944 = vand.u32 %v5923, 4294901760
        %5945 = vmatpush1.msra.mxu0 %v5944
        %5946 = vmatprep.subr.mxu0 0.0
        %v5947 = vand.u32 %v5924, 4294901760
        %5948 = vmatpush1.msra.mxu0 %v5947
        %5949 = vmatprep.subr.mxu0 0.0
        %v5950 = vand.u32 %v5925, 4294901760
        %5951 = vmatpush1.msra.mxu0 %v5950
        %5952 = vmatprep.subr.mxu0 0.0
        %v5953 = vand.u32 %v5926, 4294901760
        %5954 = vmatpush1.msra.mxu0 %v5953
        %5955 = vmatprep.subr.mxu0 0.0
        %v5956 = vand.u32 %v5927, 4294901760
        %5957 = vmatpush1.msra.mxu0 %v5956
        %5958 = vmatprep.subr.mxu0 0.0
        %v5959 = vand.u32 %v5928, 4294901760
        %5960 = vmatpush1.msra.mxu0 %v5959
        %5961 = vmatprep.subr.mxu0 0.0
        %v5962 = vand.u32 %v5929, 4294901760
        %5963 = vmatpush1.msra.mxu0 %v5962
        %5964 = vmatprep.subr.mxu0 0.0
        %v5965 = vand.u32 %v5930, 4294901760
        %5966 = vmatpush1.msra.mxu0 %v5965
        %5967 = vmatprep.subr.mxu0 0.0
        %v5968 = vand.u32 %v5931, 4294901760
        %5969 = vmatpush1.msra.mxu0 %v5968
        %5970 = vmatprep.subr.mxu0 0.0
        %v5971 = vand.u32 %v5932, 4294901760
        %5972 = vmatpush1.msra.mxu0 %v5971
        %5973 = vmatprep.subr.mxu0 0.0
        %v5974 = vand.u32 %v5933, 4294901760
        %5975 = vmatpush1.msra.mxu0 %v5974
        %5976 = vmatprep.subr.mxu0 0.0
        %v5977 = vand.u32 %v5934, 4294901760
        %5978 = vmatpush1.msra.mxu0 %v5977
        %5979 = vmatprep.subr.mxu0 0.0
        %v5980 = vand.u32 %v5935, 4294901760
        %5981 = vmatpush1.msra.mxu0 %v5980
        %5982 = vmatprep.subr.mxu0 0.0
        %v5983 = vand.u32 %v5936, 4294901760
        %5984 = vmatpush1.msra.mxu0 %v5983
        %5985 = vmatprep.subr.mxu0 0.0
        %5986 = vmatpush1.msra.mxu0 0.0
        %5987 = vmatprep.subr.mxu0 0.0
        %5988 = vmatpush1.msra.mxu0 0.0
        %5989 = vmatprep.subr.mxu0 0.0
        %5990 = vmatpush1.msra.mxu0 0.0
        %5991 = vmatprep.subr.mxu0 0.0
        %5992 = vmatpush1.msra.mxu0 0.0
        %5993 = vmatprep.subr.mxu0 0.0
        %5994 = vmatpush1.msra.mxu0 0.0
        %5995 = vmatprep.subr.mxu0 0.0
        %5996 = vmatpush1.msra.mxu0 0.0
        %5997 = vmatprep.subr.mxu0 0.0
        %5998 = vmatpush1.msra.mxu0 0.0
        %5999 = vmatprep.subr.mxu0 0.0
        %6000 = vmatpush1.msra.mxu0 0.0
        %6001 = vmatprep.subr.mxu0 0.0
        %6002 = vmatpush1.msra.mxu0 0.0
        %6003 = vmatprep.subr.mxu0 0.0
        %6004 = vmatpush1.msra.mxu0 0.0
        %6005 = vmatprep.subr.mxu0 0.0
        %6006 = vmatpush1.msra.mxu0 0.0
        %6007 = vmatprep.subr.mxu0 0.0
        %6008 = vmatpush1.msra.mxu0 0.0
        %6009 = vmatprep.subr.mxu0 0.0
        %6010 = vmatpush1.msra.mxu0 0.0
        %6011 = vmatprep.subr.mxu0 0.0
        %6012 = vmatpush1.msra.mxu0 0.0
        %6013 = vmatprep.subr.mxu0 0.0
        %6014 = vmatpush1.msra.mxu0 0.0
        %6015 = vmatprep.subr.mxu0 0.0
        %6016 = vmatpush1.msra.mxu0 0.0
        %6017 = vmatprep.mubr.f32.mxu0 0.0
        %v6018 = vand.u32 %v5916, 4294901760
        %v6019 = vsub.f32 %v5916, %v6018
        %v6020 = vand.u32 %v6019, 4294901760
        %v6021 = vsub.f32 %v6019, %v6020
        %v6022 = vand.u32 %v6021, 4294901760
        %6023 = vmatmul.mubr.f32.gmra.mrb[0].mxu0 %v6022
        %v6024 = vpop.f32.mrb[0].mxu0
        %v6025 = vadd.f32 0.0, %v6024
        %v6026 = vpop.f32.mrb[0].mxu0
        %6027 = vmatprep.mubr.f32.mxu0 0.0
        %v6028 = vand.u32 %v5917, 4294901760
        %v6029 = vsub.f32 %v5917, %v6028
        %v6030 = vand.u32 %v6029, 4294901760
        %v6031 = vsub.f32 %v6029, %v6030
        %v6032 = vand.u32 %v6031, 4294901760
        %6033 = vmatmul.mubr.f32.gmra.mrb[0].mxu0 %v6032
        %v6034 = vpop.f32.mrb[0].mxu0
        %v6035 = vadd.f32 0.0, %v6034
        %v6036 = vpop.f32.mrb[0].mxu0
        %6037 = vmatprep.mubr.f32.mxu0 0.0
        %v6038 = vand.u32 %v5918, 4294901760
        %v6039 = vsub.f32 %v5918, %v6038
        %v6040 = vand.u32 %v6039, 4294901760
        %v6041 = vsub.f32 %v6039, %v6040
        %v6042 = vand.u32 %v6041, 4294901760
        %6043 = vmatmul.mubr.f32.gmra.mrb[0].mxu0 %v6042
        %v6044 = vpop.f32.mrb[0].mxu0
        %v6045 = vadd.f32 0.0, %v6044
        %v6046 = vpop.f32.mrb[0].mxu0
        %6047 = vmatprep.mubr.f32.mxu0 0.0
        %v6048 = vand.u32 %v5919, 4294901760
        %v6049 = vsub.f32 %v5919, %v6048
        %v6050 = vand.u32 %v6049, 4294901760
        %v6051 = vsub.f32 %v6049, %v6050
        %v6052 = vand.u32 %v6051, 4294901760
        %6053 = vmatmul.mubr.f32.gmra.mrb[0].mxu0 %v6052
        %v6054 = vpop.f32.mrb[0].mxu0
        %v6055 = vadd.f32 0.0, %v6054
        %v6056 = vpop.f32.mrb[0].mxu0
        %6057 = vdwg.mxu0
        %6058 = vmatprep.subr.mxu0 0.0
        %v6059 = vand.u32 %v5921, 4294901760
        %v6060 = vsub.f32 %v5921, %v6059
        %v6061 = vand.u32 %v6060, 4294901760
        %v6062 = vsub.f32 %v6060, %v6061
        %v6063 = vand.u32 %v6062, 4294901760
        %6064 = vmatpush1.msra.mxu0 %v6063
        %6065 = vmatprep.subr.mxu0 0.0
        %v6066 = vand.u32 %v5922, 4294901760
        %v6067 = vsub.f32 %v5922, %v6066
        %v6068 = vand.u32 %v6067, 4294901760
        %v6069 = vsub.f32 %v6067, %v6068
        %v6070 = vand.u32 %v6069, 4294901760
        %6071 = vmatpush1.msra.mxu0 %v6070
        %6072 = vmatprep.subr.mxu0 0.0
        %v6073 = vand.u32 %v5923, 4294901760
        %v6074 = vsub.f32 %v5923, %v6073
        %v6075 = vand.u32 %v6074, 4294901760
        %v6076 = vsub.f32 %v6074, %v6075
        %v6077 = vand.u32 %v6076, 4294901760
        %6078 = vmatpush1.msra.mxu0 %v6077
        %6079 = vmatprep.subr.mxu0 0.0
        %v6080 = vand.u32 %v5924, 4294901760
        %v6081 = vsub.f32 %v5924, %v6080
        %v6082 = vand.u32 %v6081, 4294901760
        %v6083 = vsub.f32 %v6081, %v6082
        %v6084 = vand.u32 %v6083, 4294901760
        %6085 = vmatpush1.msra.mxu0 %v6084
        %6086 = vmatprep.subr.mxu0 0.0
        %v6087 = vand.u32 %v5925, 4294901760
        %v6088 = vsub.f32 %v5925, %v6087
        %v6089 = vand.u32 %v6088, 4294901760
        %v6090 = vsub.f32 %v6088, %v6089
        %v6091 = vand.u32 %v6090, 4294901760
        %6092 = vmatpush1.msra.mxu0 %v6091
        %6093 = vmatprep.subr.mxu0 0.0
        %v6094 = vand.u32 %v5926, 4294901760
        %v6095 = vsub.f32 %v5926, %v6094
        %v6096 = vand.u32 %v6095, 4294901760
        %v6097 = vsub.f32 %v6095, %v6096
        %v6098 = vand.u32 %v6097, 4294901760
        %6099 = vmatpush1.msra.mxu0 %v6098
        %6100 = vmatprep.subr.mxu0 0.0
        %v6101 = vand.u32 %v5927, 4294901760
        %v6102 = vsub.f32 %v5927, %v6101
        %v6103 = vand.u32 %v6102, 4294901760
        %v6104 = vsub.f32 %v6102, %v6103
        %v6105 = vand.u32 %v6104, 4294901760
        %6106 = vmatpush1.msra.mxu0 %v6105
        %6107 = vmatprep.subr.mxu0 0.0
        %v6108 = vand.u32 %v5928, 4294901760
        %v6109 = vsub.f32 %v5928, %v6108
        %v6110 = vand.u32 %v6109, 4294901760
        %v6111 = vsub.f32 %v6109, %v6110
        %v6112 = vand.u32 %v6111, 4294901760
        %6113 = vmatpush1.msra.mxu0 %v6112
        %6114 = vmatprep.subr.mxu0 0.0
        %v6115 = vand.u32 %v5929, 4294901760
        %v6116 = vsub.f32 %v5929, %v6115
        %v6117 = vand.u32 %v6116, 4294901760
        %v6118 = vsub.f32 %v6116, %v6117
        %v6119 = vand.u32 %v6118, 4294901760
        %6120 = vmatpush1.msra.mxu0 %v6119
        %6121 = vmatprep.subr.mxu0 0.0
        %v6122 = vand.u32 %v5930, 4294901760
        %v6123 = vsub.f32 %v5930, %v6122
        %v6124 = vand.u32 %v6123, 4294901760
        %v6125 = vsub.f32 %v6123, %v6124
        %v6126 = vand.u32 %v6125, 4294901760
        %6127 = vmatpush1.msra.mxu0 %v6126
        %6128 = vmatprep.subr.mxu0 0.0
        %v6129 = vand.u32 %v5931, 4294901760
        %v6130 = vsub.f32 %v5931, %v6129
        %v6131 = vand.u32 %v6130, 4294901760
        %v6132 = vsub.f32 %v6130, %v6131
        %v6133 = vand.u32 %v6132, 4294901760
        %6134 = vmatpush1.msra.mxu0 %v6133
        %6135 = vmatprep.subr.mxu0 0.0
        %v6136 = vand.u32 %v5932, 4294901760
        %v6137 = vsub.f32 %v5932, %v6136
        %v6138 = vand.u32 %v6137, 4294901760
        %v6139 = vsub.f32 %v6137, %v6138
        %v6140 = vand.u32 %v6139, 4294901760
        %6141 = vmatpush1.msra.mxu0 %v6140
        %6142 = vmatprep.subr.mxu0 0.0
        %v6143 = vand.u32 %v5933, 4294901760
        %v6144 = vsub.f32 %v5933, %v6143
        %v6145 = vand.u32 %v6144, 4294901760
        %v6146 = vsub.f32 %v6144, %v6145
        %v6147 = vand.u32 %v6146, 4294901760
        %6148 = vmatpush1.msra.mxu0 %v6147
        %6149 = vmatprep.subr.mxu0 0.0
        %v6150 = vand.u32 %v5934, 4294901760
        %v6151 = vsub.f32 %v5934, %v6150
        %v6152 = vand.u32 %v6151, 4294901760
        %v6153 = vsub.f32 %v6151, %v6152
        %v6154 = vand.u32 %v6153, 4294901760
        %6155 = vmatpush1.msra.mxu0 %v6154
        %6156 = vmatprep.subr.mxu0 0.0
        %v6157 = vand.u32 %v5935, 4294901760
        %v6158 = vsub.f32 %v5935, %v6157
        %v6159 = vand.u32 %v6158, 4294901760
        %v6160 = vsub.f32 %v6158, %v6159
        %v6161 = vand.u32 %v6160, 4294901760
        %6162 = vmatpush1.msra.mxu0 %v6161
        %6163 = vmatprep.subr.mxu0 0.0
        %v6164 = vand.u32 %v5936, 4294901760
        %v6165 = vsub.f32 %v5936, %v6164
        %v6166 = vand.u32 %v6165, 4294901760
        %v6167 = vsub.f32 %v6165, %v6166
        %v6168 = vand.u32 %v6167, 4294901760
        %6169 = vmatpush1.msra.mxu0 %v6168
        %6170 = vmatprep.subr.mxu0 0.0
        %6171 = vmatpush1.msra.mxu0 0.0
        %6172 = vmatprep.subr.mxu0 0.0
        %6173 = vmatpush1.msra.mxu0 0.0
        %6174 = vmatprep.subr.mxu0 0.0
        %6175 = vmatpush1.msra.mxu0 0.0
        %6176 = vmatprep.subr.mxu0 0.0
        %6177 = vmatpush1.msra.mxu0 0.0
        %6178 = vmatprep.subr.mxu0 0.0
        %6179 = vmatpush1.msra.mxu0 0.0
        %6180 = vmatprep.subr.mxu0 0.0
        %6181 = vmatpush1.msra.mxu0 0.0
        %6182 = vmatprep.subr.mxu0 0.0
        %6183 = vmatpush1.msra.mxu0 0.0
        %6184 = vmatprep.subr.mxu0 0.0
        %6185 = vmatpush1.msra.mxu0 0.0
        %6186 = vmatprep.subr.mxu0 0.0
        %6187 = vmatpush1.msra.mxu0 0.0
        %6188 = vmatprep.subr.mxu0 0.0
        %6189 = vmatpush1.msra.mxu0 0.0
        %6190 = vmatprep.subr.mxu0 0.0
        %6191 = vmatpush1.msra.mxu0 0.0
        %6192 = vmatprep.subr.mxu0 0.0
        %6193 = vmatpush1.msra.mxu0 0.0
        %6194 = vmatprep.subr.mxu0 0.0
        %6195 = vmatpush1.msra.mxu0 0.0
        %6196 = vmatprep.subr.mxu0 0.0
        %6197 = vmatpush1.msra.mxu0 0.0
        %6198 = vmatprep.subr.mxu0 0.0
        %6199 = vmatpush1.msra.mxu0 0.0
        %6200 = vmatprep.subr.mxu0 0.0
        %6201 = vmatpush1.msra.mxu0 0.0
        %6202 = vmatprep.mubr.f32.mxu0 0.0
        %v6203 = vand.u32 %v5916, 4294901760
        %6204 = vmatmul.mubr.f32.gmra.mrb[0].mxu0 %v6203
        %v6205 = vpop.f32.mrb[0].mxu0
        %v6206 = vadd.f32 %v6025, %v6205
        %v6207 = vpop.f32.mrb[0].mxu0
        %6208 = vmatprep.mubr.f32.mxu0 0.0
        %v6209 = vand.u32 %v5917, 4294901760
        %6210 = vmatmul.mubr.f32.gmra.mrb[0].mxu0 %v6209
        %v6211 = vpop.f32.mrb[0].mxu0
        %v6212 = vadd.f32 %v6035, %v6211
        %v6213 = vpop.f32.mrb[0].mxu0
        %6214 = vmatprep.mubr.f32.mxu0 0.0
        %v6215 = vand.u32 %v5918, 4294901760
        %6216 = vmatmul.mubr.f32.gmra.mrb[0].mxu0 %v6215
        %v6217 = vpop.f32.mrb[0].mxu0
        %v6218 = vadd.f32 %v6045, %v6217
        %v6219 = vpop.f32.mrb[0].mxu0
        %6220 = vmatprep.mubr.f32.mxu0 0.0
        %v6221 = vand.u32 %v5919, 4294901760
        %6222 = vmatmul.mubr.f32.gmra.mrb[0].mxu0 %v6221
        %v6223 = vpop.f32.mrb[0].mxu0
        %v6224 = vadd.f32 %v6055, %v6223
        %v6225 = vpop.f32.mrb[0].mxu0
        %6226 = vdwg.mxu0
        %6227 = vmatprep.subr.mxu0 0.0
        %v6228 = vand.u32 %v5921, 4294901760
        %v6229 = vsub.f32 %v5921, %v6228
        %6230 = vmatpush1.msra.mxu0 %v6229
        %6231 = vmatprep.subr.mxu0 0.0
        %v6232 = vand.u32 %v5922, 4294901760
        %v6233 = vsub.f32 %v5922, %v6232
        %6234 = vmatpush1.msra.mxu0 %v6233
        %6235 = vmatprep.subr.mxu0 0.0
        %v6236 = vand.u32 %v5923, 4294901760
        %v6237 = vsub.f32 %v5923, %v6236
        %6238 = vmatpush1.msra.mxu0 %v6237
        %6239 = vmatprep.subr.mxu0 0.0
        %v6240 = vand.u32 %v5924, 4294901760
        %v6241 = vsub.f32 %v5924, %v6240
        %6242 = vmatpush1.msra.mxu0 %v6241
        %6243 = vmatprep.subr.mxu0 0.0
        %v6244 = vand.u32 %v5925, 4294901760
        %v6245 = vsub.f32 %v5925, %v6244
        %6246 = vmatpush1.msra.mxu0 %v6245
        %6247 = vmatprep.subr.mxu0 0.0
        %v6248 = vand.u32 %v5926, 4294901760
        %v6249 = vsub.f32 %v5926, %v6248
        %6250 = vmatpush1.msra.mxu0 %v6249
        %6251 = vmatprep.subr.mxu0 0.0
        %v6252 = vand.u32 %v5927, 4294901760
        %v6253 = vsub.f32 %v5927, %v6252
        %6254 = vmatpush1.msra.mxu0 %v6253
        %6255 = vmatprep.subr.mxu0 0.0
        %v6256 = vand.u32 %v5928, 4294901760
        %v6257 = vsub.f32 %v5928, %v6256
        %6258 = vmatpush1.msra.mxu0 %v6257
        %6259 = vmatprep.subr.mxu0 0.0
        %v6260 = vand.u32 %v5929, 4294901760
        %v6261 = vsub.f32 %v5929, %v6260
        %6262 = vmatpush1.msra.mxu0 %v6261
        %6263 = vmatprep.subr.mxu0 0.0
        %v6264 = vand.u32 %v5930, 4294901760
        %v6265 = vsub.f32 %v5930, %v6264
        %6266 = vmatpush1.msra.mxu0 %v6265
        %6267 = vmatprep.subr.mxu0 0.0
        %v6268 = vand.u32 %v5931, 4294901760
        %v6269 = vsub.f32 %v5931, %v6268
        %6270 = vmatpush1.msra.mxu0 %v6269
        %6271 = vmatprep.subr.mxu0 0.0
        %v6272 = vand.u32 %v5932, 4294901760
        %v6273 = vsub.f32 %v5932, %v6272
        %6274 = vmatpush1.msra.mxu0 %v6273
        %6275 = vmatprep.subr.mxu0 0.0
        %v6276 = vand.u32 %v5933, 4294901760
        %v6277 = vsub.f32 %v5933, %v6276
        %6278 = vmatpush1.msra.mxu0 %v6277
        %6279 = vmatprep.subr.mxu0 0.0
        %v6280 = vand.u32 %v5934, 4294901760
        %v6281 = vsub.f32 %v5934, %v6280
        %6282 = vmatpush1.msra.mxu0 %v6281
        %6283 = vmatprep.subr.mxu0 0.0
        %v6284 = vand.u32 %v5935, 4294901760
        %v6285 = vsub.f32 %v5935, %v6284
        %6286 = vmatpush1.msra.mxu0 %v6285
        %6287 = vmatprep.subr.mxu0 0.0
        %v6288 = vand.u32 %v5936, 4294901760
        %v6289 = vsub.f32 %v5936, %v6288
        %6290 = vmatpush1.msra.mxu0 %v6289
        %6291 = vmatprep.subr.mxu0 0.0
        %6292 = vmatpush1.msra.mxu0 0.0
        %6293 = vmatprep.subr.mxu0 0.0
        %6294 = vmatpush1.msra.mxu0 0.0
        %6295 = vmatprep.subr.mxu0 0.0
        %6296 = vmatpush1.msra.mxu0 0.0
        %6297 = vmatprep.subr.mxu0 0.0
        %6298 = vmatpush1.msra.mxu0 0.0
        %6299 = vmatprep.subr.mxu0 0.0
        %6300 = vmatpush1.msra.mxu0 0.0
        %6301 = vmatprep.subr.mxu0 0.0
        %6302 = vmatpush1.msra.mxu0 0.0
        %6303 = vmatprep.subr.mxu0 0.0
        %6304 = vmatpush1.msra.mxu0 0.0
        %6305 = vmatprep.subr.mxu0 0.0
        %6306 = vmatpush1.msra.mxu0 0.0
        %6307 = vmatprep.subr.mxu0 0.0
        %6308 = vmatpush1.msra.mxu0 0.0
        %6309 = vmatprep.subr.mxu0 0.0
        %6310 = vmatpush1.msra.mxu0 0.0
        %6311 = vmatprep.subr.mxu0 0.0
        %6312 = vmatpush1.msra.mxu0 0.0
        %6313 = vmatprep.subr.mxu0 0.0
        %6314 = vmatpush1.msra.mxu0 0.0
        %6315 = vmatprep.subr.mxu0 0.0
        %6316 = vmatpush1.msra.mxu0 0.0
        %6317 = vmatprep.subr.mxu0 0.0
        %6318 = vmatpush1.msra.mxu0 0.0
        %6319 = vmatprep.subr.mxu0 0.0
        %6320 = vmatpush1.msra.mxu0 0.0
        %6321 = vmatprep.subr.mxu0 0.0
        %6322 = vmatpush1.msra.mxu0 0.0
        %6323 = vmatprep.mubr.f32.mxu0 0.0
        %v6324 = vand.u32 %v5916, 4294901760
        %v6325 = vsub.f32 %v5916, %v6324
        %6326 = vmatmul.mubr.f32.gmra.mrb[0].mxu0 %v6325
        %v6327 = vpop.f32.mrb[0].mxu0
        %v6328 = vadd.f32 %v6206, %v6327
        %v6329 = vpop.f32.mrb[0].mxu0
        %6330 = vmatprep.mubr.f32.mxu0 0.0
        %v6331 = vand.u32 %v5917, 4294901760
        %v6332 = vsub.f32 %v5917, %v6331
        %6333 = vmatmul.mubr.f32.gmra.mrb[0].mxu0 %v6332
        %v6334 = vpop.f32.mrb[0].mxu0
        %v6335 = vadd.f32 %v6212, %v6334
        %v6336 = vpop.f32.mrb[0].mxu0
        %6337 = vmatprep.mubr.f32.mxu0 0.0
        %v6338 = vand.u32 %v5918, 4294901760
        %v6339 = vsub.f32 %v5918, %v6338
        %6340 = vmatmul.mubr.f32.gmra.mrb[0].mxu0 %v6339
        %v6341 = vpop.f32.mrb[0].mxu0
        %v6342 = vadd.f32 %v6218, %v6341
        %v6343 = vpop.f32.mrb[0].mxu0
        %6344 = vmatprep.mubr.f32.mxu0 0.0
        %v6345 = vand.u32 %v5919, 4294901760
        %v6346 = vsub.f32 %v5919, %v6345
        %6347 = vmatmul.mubr.f32.gmra.mrb[0].mxu0 %v6346
        %v6348 = vpop.f32.mrb[0].mxu0
        %v6349 = vadd.f32 %v6224, %v6348
        %v6350 = vpop.f32.mrb[0].mxu0
        %6351 = vdwg.mxu0
        %6352 = vmatprep.subr.mxu0 0.0
        %v6353 = vand.u32 %v5921, 4294901760
        %6354 = vmatpush1.msra.mxu0 %v6353
        %6355 = vmatprep.subr.mxu0 0.0
        %v6356 = vand.u32 %v5922, 4294901760
        %6357 = vmatpush1.msra.mxu0 %v6356
        %6358 = vmatprep.subr.mxu0 0.0
        %v6359 = vand.u32 %v5923, 4294901760
        %6360 = vmatpush1.msra.mxu0 %v6359
        %6361 = vmatprep.subr.mxu0 0.0
        %v6362 = vand.u32 %v5924, 4294901760
        %6363 = vmatpush1.msra.mxu0 %v6362
        %6364 = vmatprep.subr.mxu0 0.0
        %v6365 = vand.u32 %v5925, 4294901760
        %6366 = vmatpush1.msra.mxu0 %v6365
        %6367 = vmatprep.subr.mxu0 0.0
        %v6368 = vand.u32 %v5926, 4294901760
        %6369 = vmatpush1.msra.mxu0 %v6368
        %6370 = vmatprep.subr.mxu0 0.0
        %v6371 = vand.u32 %v5927, 4294901760
        %6372 = vmatpush1.msra.mxu0 %v6371
        %6373 = vmatprep.subr.mxu0 0.0
        %v6374 = vand.u32 %v5928, 4294901760
        %6375 = vmatpush1.msra.mxu0 %v6374
        %6376 = vmatprep.subr.mxu0 0.0
        %v6377 = vand.u32 %v5929, 4294901760
        %6378 = vmatpush1.msra.mxu0 %v6377
        %6379 = vmatprep.subr.mxu0 0.0
        %v6380 = vand.u32 %v5930, 4294901760
        %6381 = vmatpush1.msra.mxu0 %v6380
        %6382 = vmatprep.subr.mxu0 0.0
        %v6383 = vand.u32 %v5931, 4294901760
        %6384 = vmatpush1.msra.mxu0 %v6383
        %6385 = vmatprep.subr.mxu0 0.0
        %v6386 = vand.u32 %v5932, 4294901760
        %6387 = vmatpush1.msra.mxu0 %v6386
        %6388 = vmatprep.subr.mxu0 0.0
        %v6389 = vand.u32 %v5933, 4294901760
        %6390 = vmatpush1.msra.mxu0 %v6389
        %6391 = vmatprep.subr.mxu0 0.0
        %v6392 = vand.u32 %v5934, 4294901760
        %6393 = vmatpush1.msra.mxu0 %v6392
        %6394 = vmatprep.subr.mxu0 0.0
        %v6395 = vand.u32 %v5935, 4294901760
        %6396 = vmatpush1.msra.mxu0 %v6395
        %6397 = vmatprep.subr.mxu0 0.0
        %v6398 = vand.u32 %v5936, 4294901760
        %6399 = vmatpush1.msra.mxu0 %v6398
        %6400 = vmatprep.subr.mxu0 0.0
        %6401 = vmatpush1.msra.mxu0 0.0
        %6402 = vmatprep.subr.mxu0 0.0
        %6403 = vmatpush1.msra.mxu0 0.0
        %6404 = vmatprep.subr.mxu0 0.0
        %6405 = vmatpush1.msra.mxu0 0.0
        %6406 = vmatprep.subr.mxu0 0.0
        %6407 = vmatpush1.msra.mxu0 0.0
        %6408 = vmatprep.subr.mxu0 0.0
        %6409 = vmatpush1.msra.mxu0 0.0
        %6410 = vmatprep.subr.mxu0 0.0
        %6411 = vmatpush1.msra.mxu0 0.0
        %6412 = vmatprep.subr.mxu0 0.0
        %6413 = vmatpush1.msra.mxu0 0.0
        %6414 = vmatprep.subr.mxu0 0.0
        %6415 = vmatpush1.msra.mxu0 0.0
        %6416 = vmatprep.subr.mxu0 0.0
        %6417 = vmatpush1.msra.mxu0 0.0
        %6418 = vmatprep.subr.mxu0 0.0
        %6419 = vmatpush1.msra.mxu0 0.0
        %6420 = vmatprep.subr.mxu0 0.0
        %6421 = vmatpush1.msra.mxu0 0.0
        %6422 = vmatprep.subr.mxu0 0.0
        %6423 = vmatpush1.msra.mxu0 0.0
        %6424 = vmatprep.subr.mxu0 0.0
        %6425 = vmatpush1.msra.mxu0 0.0
        %6426 = vmatprep.subr.mxu0 0.0
        %6427 = vmatpush1.msra.mxu0 0.0
        %6428 = vmatprep.subr.mxu0 0.0
        %6429 = vmatpush1.msra.mxu0 0.0
        %6430 = vmatprep.subr.mxu0 0.0
        %6431 = vmatpush1.msra.mxu0 0.0
        %6432 = vmatprep.mubr.f32.mxu0 0.0
        %v6433 = vand.u32 %v5916, 4294901760
        %v6434 = vsub.f32 %v5916, %v6433
        %v6435 = vand.u32 %v6434, 4294901760
        %6436 = vmatmul.mubr.f32.gmra.mrb[0].mxu0 %v6435
        %v6437 = vpop.f32.mrb[0].mxu0
        %v6438 = vadd.f32 %v6328, %v6437
        %v6439 = vpop.f32.mrb[0].mxu0
        %6440 = vmatprep.mubr.f32.mxu0 0.0
        %v6441 = vand.u32 %v5917, 4294901760
        %v6442 = vsub.f32 %v5917, %v6441
        %v6443 = vand.u32 %v6442, 4294901760
        %6444 = vmatmul.mubr.f32.gmra.mrb[0].mxu0 %v6443
        %v6445 = vpop.f32.mrb[0].mxu0
        %v6446 = vadd.f32 %v6335, %v6445
        %v6447 = vpop.f32.mrb[0].mxu0
        %6448 = vmatprep.mubr.f32.mxu0 0.0
        %v6449 = vand.u32 %v5918, 4294901760
        %v6450 = vsub.f32 %v5918, %v6449
        %v6451 = vand.u32 %v6450, 4294901760
        %6452 = vmatmul.mubr.f32.gmra.mrb[0].mxu0 %v6451
        %v6453 = vpop.f32.mrb[0].mxu0
        %v6454 = vadd.f32 %v6342, %v6453
        %v6455 = vpop.f32.mrb[0].mxu0
        %6456 = vmatprep.mubr.f32.mxu0 0.0
        %v6457 = vand.u32 %v5919, 4294901760
        %v6458 = vsub.f32 %v5919, %v6457
        %v6459 = vand.u32 %v6458, 4294901760
        %6460 = vmatmul.mubr.f32.gmra.mrb[0].mxu0 %v6459
        %v6461 = vpop.f32.mrb[0].mxu0
        %v6462 = vadd.f32 %v6349, %v6461
        %v6463 = vpop.f32.mrb[0].mxu0
        %6464 = vdwg.mxu0
        %6465 = vmatprep.subr.mxu0 0.0
        %v6466 = vand.u32 %v5921, 4294901760
        %v6467 = vsub.f32 %v5921, %v6466
        %v6468 = vand.u32 %v6467, 4294901760
        %6469 = vmatpush1.msra.mxu0 %v6468
        %6470 = vmatprep.subr.mxu0 0.0
        %v6471 = vand.u32 %v5922, 4294901760
        %v6472 = vsub.f32 %v5922, %v6471
        %v6473 = vand.u32 %v6472, 4294901760
        %6474 = vmatpush1.msra.mxu0 %v6473
        %6475 = vmatprep.subr.mxu0 0.0
        %v6476 = vand.u32 %v5923, 4294901760
        %v6477 = vsub.f32 %v5923, %v6476
        %v6478 = vand.u32 %v6477, 4294901760
        %6479 = vmatpush1.msra.mxu0 %v6478
        %6480 = vmatprep.subr.mxu0 0.0
        %v6481 = vand.u32 %v5924, 4294901760
        %v6482 = vsub.f32 %v5924, %v6481
        %v6483 = vand.u32 %v6482, 4294901760
        %6484 = vmatpush1.msra.mxu0 %v6483
        %6485 = vmatprep.subr.mxu0 0.0
        %v6486 = vand.u32 %v5925, 4294901760
        %v6487 = vsub.f32 %v5925, %v6486
        %v6488 = vand.u32 %v6487, 4294901760
        %6489 = vmatpush1.msra.mxu0 %v6488
        %6490 = vmatprep.subr.mxu0 0.0
        %v6491 = vand.u32 %v5926, 4294901760
        %v6492 = vsub.f32 %v5926, %v6491
        %v6493 = vand.u32 %v6492, 4294901760
        %6494 = vmatpush1.msra.mxu0 %v6493
        %6495 = vmatprep.subr.mxu0 0.0
        %v6496 = vand.u32 %v5927, 4294901760
        %v6497 = vsub.f32 %v5927, %v6496
        %v6498 = vand.u32 %v6497, 4294901760
        %6499 = vmatpush1.msra.mxu0 %v6498
        %6500 = vmatprep.subr.mxu0 0.0
        %v6501 = vand.u32 %v5928, 4294901760
        %v6502 = vsub.f32 %v5928, %v6501
        %v6503 = vand.u32 %v6502, 4294901760
        %6504 = vmatpush1.msra.mxu0 %v6503
        %6505 = vmatprep.subr.mxu0 0.0
        %v6506 = vand.u32 %v5929, 4294901760
        %v6507 = vsub.f32 %v5929, %v6506
        %v6508 = vand.u32 %v6507, 4294901760
        %6509 = vmatpush1.msra.mxu0 %v6508
        %6510 = vmatprep.subr.mxu0 0.0
        %v6511 = vand.u32 %v5930, 4294901760
        %v6512 = vsub.f32 %v5930, %v6511
        %v6513 = vand.u32 %v6512, 4294901760
        %6514 = vmatpush1.msra.mxu0 %v6513
        %6515 = vmatprep.subr.mxu0 0.0
        %v6516 = vand.u32 %v5931, 4294901760
        %v6517 = vsub.f32 %v5931, %v6516
        %v6518 = vand.u32 %v6517, 4294901760
        %6519 = vmatpush1.msra.mxu0 %v6518
        %6520 = vmatprep.subr.mxu0 0.0
        %v6521 = vand.u32 %v5932, 4294901760
        %v6522 = vsub.f32 %v5932, %v6521
        %v6523 = vand.u32 %v6522, 4294901760
        %6524 = vmatpush1.msra.mxu0 %v6523
        %6525 = vmatprep.subr.mxu0 0.0
        %v6526 = vand.u32 %v5933, 4294901760
        %v6527 = vsub.f32 %v5933, %v6526
        %v6528 = vand.u32 %v6527, 4294901760
        %6529 = vmatpush1.msra.mxu0 %v6528
        %6530 = vmatprep.subr.mxu0 0.0
        %v6531 = vand.u32 %v5934, 4294901760
        %v6532 = vsub.f32 %v5934, %v6531
        %v6533 = vand.u32 %v6532, 4294901760
        %6534 = vmatpush1.msra.mxu0 %v6533
        %6535 = vmatprep.subr.mxu0 0.0
        %v6536 = vand.u32 %v5935, 4294901760
        %v6537 = vsub.f32 %v5935, %v6536
        %v6538 = vand.u32 %v6537, 4294901760
        %6539 = vmatpush1.msra.mxu0 %v6538
        %6540 = vmatprep.subr.mxu0 0.0
        %v6541 = vand.u32 %v5936, 4294901760
        %v6542 = vsub.f32 %v5936, %v6541
        %v6543 = vand.u32 %v6542, 4294901760
        %6544 = vmatpush1.msra.mxu0 %v6543
        %6545 = vmatprep.subr.mxu0 0.0
        %6546 = vmatpush1.msra.mxu0 0.0
        %6547 = vmatprep.subr.mxu0 0.0
        %6548 = vmatpush1.msra.mxu0 0.0
        %6549 = vmatprep.subr.mxu0 0.0
        %6550 = vmatpush1.msra.mxu0 0.0
        %6551 = vmatprep.subr.mxu0 0.0
        %6552 = vmatpush1.msra.mxu0 0.0
        %6553 = vmatprep.subr.mxu0 0.0
        %6554 = vmatpush1.msra.mxu0 0.0
        %6555 = vmatprep.subr.mxu0 0.0
        %6556 = vmatpush1.msra.mxu0 0.0
        %6557 = vmatprep.subr.mxu0 0.0
        %6558 = vmatpush1.msra.mxu0 0.0
        %6559 = vmatprep.subr.mxu0 0.0
        %6560 = vmatpush1.msra.mxu0 0.0
        %6561 = vmatprep.subr.mxu0 0.0
        %6562 = vmatpush1.msra.mxu0 0.0
        %6563 = vmatprep.subr.mxu0 0.0
        %6564 = vmatpush1.msra.mxu0 0.0
        %6565 = vmatprep.subr.mxu0 0.0
        %6566 = vmatpush1.msra.mxu0 0.0
        %6567 = vmatprep.subr.mxu0 0.0
        %6568 = vmatpush1.msra.mxu0 0.0
        %6569 = vmatprep.subr.mxu0 0.0
        %6570 = vmatpush1.msra.mxu0 0.0
        %6571 = vmatprep.subr.mxu0 0.0
        %6572 = vmatpush1.msra.mxu0 0.0
        %6573 = vmatprep.subr.mxu0 0.0
        %6574 = vmatpush1.msra.mxu0 0.0
        %6575 = vmatprep.subr.mxu0 0.0
        %6576 = vmatpush1.msra.mxu0 0.0
        %6577 = vmatprep.mubr.f32.mxu0 0.0
        %v6578 = vand.u32 %v5916, 4294901760
        %6579 = vmatmul.mubr.f32.gmra.mrb[0].mxu0 %v6578
        %v6580 = vpop.f32.mrb[0].mxu0
        %v6581 = vadd.f32 %v6438, %v6580
        %v6582 = vpop.f32.mrb[0].mxu0
        %6583 = vmatprep.mubr.f32.mxu0 0.0
        %v6584 = vand.u32 %v5917, 4294901760
        %6585 = vmatmul.mubr.f32.gmra.mrb[0].mxu0 %v6584
        %v6586 = vpop.f32.mrb[0].mxu0
        %v6587 = vadd.f32 %v6446, %v6586
        %v6588 = vpop.f32.mrb[0].mxu0
        %6589 = vmatprep.mubr.f32.mxu0 0.0
        %v6590 = vand.u32 %v5918, 4294901760
        %6591 = vmatmul.mubr.f32.gmra.mrb[0].mxu0 %v6590
        %v6592 = vpop.f32.mrb[0].mxu0
        %v6593 = vadd.f32 %v6454, %v6592
        %v6594 = vpop.f32.mrb[0].mxu0
        %6595 = vmatprep.mubr.f32.mxu0 0.0
        %v6596 = vand.u32 %v5919, 4294901760
        %6597 = vmatmul.mubr.f32.gmra.mrb[0].mxu0 %v6596
        %v6598 = vpop.f32.mrb[0].mxu0
        %v6599 = vadd.f32 %v6462, %v6598
        %v6600 = vpop.f32.mrb[0].mxu0
        %6601 = vdwg.mxu0
        %6602 = vmatprep.subr.mxu0 0.0
        %v6603 = vand.u32 %v5921, 4294901760
        %6604 = vmatpush1.msra.mxu0 %v6603
        %6605 = vmatprep.subr.mxu0 0.0
        %v6606 = vand.u32 %v5922, 4294901760
        %6607 = vmatpush1.msra.mxu0 %v6606
        %6608 = vmatprep.subr.mxu0 0.0
        %v6609 = vand.u32 %v5923, 4294901760
        %6610 = vmatpush1.msra.mxu0 %v6609
        %6611 = vmatprep.subr.mxu0 0.0
        %v6612 = vand.u32 %v5924, 4294901760
        %6613 = vmatpush1.msra.mxu0 %v6612
        %6614 = vmatprep.subr.mxu0 0.0
        %v6615 = vand.u32 %v5925, 4294901760
        %6616 = vmatpush1.msra.mxu0 %v6615
        %6617 = vmatprep.subr.mxu0 0.0
        %v6618 = vand.u32 %v5926, 4294901760
        %6619 = vmatpush1.msra.mxu0 %v6618
        %6620 = vmatprep.subr.mxu0 0.0
        %v6621 = vand.u32 %v5927, 4294901760
        %6622 = vmatpush1.msra.mxu0 %v6621
        %6623 = vmatprep.subr.mxu0 0.0
        %v6624 = vand.u32 %v5928, 4294901760
        %6625 = vmatpush1.msra.mxu0 %v6624
        %6626 = vmatprep.subr.mxu0 0.0
        %v6627 = vand.u32 %v5929, 4294901760
        %6628 = vmatpush1.msra.mxu0 %v6627
        %6629 = vmatprep.subr.mxu0 0.0
        %v6630 = vand.u32 %v5930, 4294901760
        %6631 = vmatpush1.msra.mxu0 %v6630
        %6632 = vmatprep.subr.mxu0 0.0
        %v6633 = vand.u32 %v5931, 4294901760
        %6634 = vmatpush1.msra.mxu0 %v6633
        %6635 = vmatprep.subr.mxu0 0.0
        %v6636 = vand.u32 %v5932, 4294901760
        %6637 = vmatpush1.msra.mxu0 %v6636
        %6638 = vmatprep.subr.mxu0 0.0
        %v6639 = vand.u32 %v5933, 4294901760
        %6640 = vmatpush1.msra.mxu0 %v6639
        %6641 = vmatprep.subr.mxu0 0.0
        %v6642 = vand.u32 %v5934, 4294901760
        %6643 = vmatpush1.msra.mxu0 %v6642
        %6644 = vmatprep.subr.mxu0 0.0
        %v6645 = vand.u32 %v5935, 4294901760
        %6646 = vmatpush1.msra.mxu0 %v6645
        %6647 = vmatprep.subr.mxu0 0.0
        %v6648 = vand.u32 %v5936, 4294901760
        %6649 = vmatpush1.msra.mxu0 %v6648
        %6650 = vmatprep.subr.mxu0 0.0
        %6651 = vmatpush1.msra.mxu0 0.0
        %6652 = vmatprep.subr.mxu0 0.0
        %6653 = vmatpush1.msra.mxu0 0.0
        %6654 = vmatprep.subr.mxu0 0.0
        %6655 = vmatpush1.msra.mxu0 0.0
        %6656 = vmatprep.subr.mxu0 0.0
        %6657 = vmatpush1.msra.mxu0 0.0
        %6658 = vmatprep.subr.mxu0 0.0
        %6659 = vmatpush1.msra.mxu0 0.0
        %6660 = vmatprep.subr.mxu0 0.0
        %6661 = vmatpush1.msra.mxu0 0.0
        %6662 = vmatprep.subr.mxu0 0.0
        %6663 = vmatpush1.msra.mxu0 0.0
        %6664 = vmatprep.subr.mxu0 0.0
        %6665 = vmatpush1.msra.mxu0 0.0
        %6666 = vmatprep.subr.mxu0 0.0
        %6667 = vmatpush1.msra.mxu0 0.0
        %6668 = vmatprep.subr.mxu0 0.0
        %6669 = vmatpush1.msra.mxu0 0.0
        %6670 = vmatprep.subr.mxu0 0.0
        %6671 = vmatpush1.msra.mxu0 0.0
        %6672 = vmatprep.subr.mxu0 0.0
        %6673 = vmatpush1.msra.mxu0 0.0
        %6674 = vmatprep.subr.mxu0 0.0
        %6675 = vmatpush1.msra.mxu0 0.0
        %6676 = vmatprep.subr.mxu0 0.0
        %6677 = vmatpush1.msra.mxu0 0.0
        %6678 = vmatprep.subr.mxu0 0.0
        %6679 = vmatpush1.msra.mxu0 0.0
        %6680 = vmatprep.subr.mxu0 0.0
        %6681 = vmatpush1.msra.mxu0 0.0
        %6682 = vmatprep.mubr.f32.mxu0 0.0
        %v6683 = vand.u32 %v5916, 4294901760
        %6684 = vmatmul.mubr.f32.gmra.mrb[0].mxu0 %v6683
        %v6685 = vpop.f32.mrb[0].mxu0
        %v6686 = vadd.f32 %v6581, %v6685
        %v6687 = vpop.f32.mrb[0].mxu0
        %6688 = vmatprep.mubr.f32.mxu0 0.0
        %v6689 = vand.u32 %v5917, 4294901760
        %6690 = vmatmul.mubr.f32.gmra.mrb[0].mxu0 %v6689
        %v6691 = vpop.f32.mrb[0].mxu0
        %v6692 = vadd.f32 %v6587, %v6691
        %v6693 = vpop.f32.mrb[0].mxu0
        %6694 = vmatprep.mubr.f32.mxu0 0.0
        %v6695 = vand.u32 %v5918, 4294901760
        %6696 = vmatmul.mubr.f32.gmra.mrb[0].mxu0 %v6695
        %v6697 = vpop.f32.mrb[0].mxu0
        %v6698 = vadd.f32 %v6593, %v6697
        %v6699 = vpop.f32.mrb[0].mxu0
        %6700 = vmatprep.mubr.f32.mxu0 0.0
        %v6701 = vand.u32 %v5919, 4294901760
        %6702 = vmatmul.mubr.f32.gmra.mrb[0].mxu0 %v6701
        %v6703 = vpop.f32.mrb[0].mxu0
        %v6704 = vadd.f32 %v6599, %v6703
        %v6705 = vpop.f32.mrb[0].mxu0
        %6706 = vdwg.mxu0
        %v6707 = vadd.f32 %v5912, %v6686
        %v6708 = vadd.f32 %v5913, %v6692
        %v6709 = vadd.f32 %v5914, %v6698
        %v6710 = vadd.f32 %v5915, %v6704
        %v6711 = vld [vmem:[#allocation3 + $0x7] sm:$0xff]
        %v6712 = vld [vmem:[#allocation3 + $0xf] sm:$0xff]
        %v6713 = vld [vmem:[#allocation3 + $0x17] sm:$0xff]
        %v6714 = vld [vmem:[#allocation3 + $0x1f] sm:$0x1]
        %s6715 = scalar_lea.vmem [#allocation4], 896
        %v6716 = vld [vmem:[%s6715] sm:$0xff]
        %v6717 = vld [vmem:[%s6715 + $0x8] sm:$0xff]
        %v6718 = vld [vmem:[%s6715 + $0x10] sm:$0xff]
        %v6719 = vld [vmem:[%s6715 + $0x18] sm:$0xff]
        %v6720 = vld [vmem:[%s6715 + $0x20] sm:$0xff]
        %v6721 = vld [vmem:[%s6715 + $0x28] sm:$0xff]
        %v6722 = vld [vmem:[%s6715 + $0x30] sm:$0xff]
        %v6723 = vld [vmem:[%s6715 + $0x38] sm:$0xff]
        %v6724 = vld [vmem:[%s6715 + $0x40] sm:$0xff]
        %v6725 = vld [vmem:[%s6715 + $0x48] sm:$0xff]
        %v6726 = vld [vmem:[%s6715 + $0x50] sm:$0xff]
        %v6727 = vld [vmem:[%s6715 + $0x58] sm:$0xff]
        %v6728 = vld [vmem:[%s6715 + $0x60] sm:$0xff]
        %v6729 = vld [vmem:[%s6715 + $0x68] sm:$0xff]
        %v6730 = vld [vmem:[%s6715 + $0x70] sm:$0xff]
        %v6731 = vld [vmem:[%s6715 + $0x78] sm:$0xff]
        %6732 = vmatprep.subr.mxu0 0.0
        %v6733 = vand.u32 %v6716, 4294901760
        %6734 = vmatpush1.msra.mxu0 %v6733
        %6735 = vmatprep.subr.mxu0 0.0
        %v6736 = vand.u32 %v6717, 4294901760
        %6737 = vmatpush1.msra.mxu0 %v6736
        %6738 = vmatprep.subr.mxu0 0.0
        %v6739 = vand.u32 %v6718, 4294901760
        %6740 = vmatpush1.msra.mxu0 %v6739
        %6741 = vmatprep.subr.mxu0 0.0
        %v6742 = vand.u32 %v6719, 4294901760
        %6743 = vmatpush1.msra.mxu0 %v6742
        %6744 = vmatprep.subr.mxu0 0.0
        %v6745 = vand.u32 %v6720, 4294901760
        %6746 = vmatpush1.msra.mxu0 %v6745
        %6747 = vmatprep.subr.mxu0 0.0
        %v6748 = vand.u32 %v6721, 4294901760
        %6749 = vmatpush1.msra.mxu0 %v6748
        %6750 = vmatprep.subr.mxu0 0.0
        %v6751 = vand.u32 %v6722, 4294901760
        %6752 = vmatpush1.msra.mxu0 %v6751
        %6753 = vmatprep.subr.mxu0 0.0
        %v6754 = vand.u32 %v6723, 4294901760
        %6755 = vmatpush1.msra.mxu0 %v6754
        %6756 = vmatprep.subr.mxu0 0.0
        %v6757 = vand.u32 %v6724, 4294901760
        %6758 = vmatpush1.msra.mxu0 %v6757
        %6759 = vmatprep.subr.mxu0 0.0
        %v6760 = vand.u32 %v6725, 4294901760
        %6761 = vmatpush1.msra.mxu0 %v6760
        %6762 = vmatprep.subr.mxu0 0.0
        %v6763 = vand.u32 %v6726, 4294901760
        %6764 = vmatpush1.msra.mxu0 %v6763
        %6765 = vmatprep.subr.mxu0 0.0
        %v6766 = vand.u32 %v6727, 4294901760
        %6767 = vmatpush1.msra.mxu0 %v6766
        %6768 = vmatprep.subr.mxu0 0.0
        %v6769 = vand.u32 %v6728, 4294901760
        %6770 = vmatpush1.msra.mxu0 %v6769
        %6771 = vmatprep.subr.mxu0 0.0
        %v6772 = vand.u32 %v6729, 4294901760
        %6773 = vmatpush1.msra.mxu0 %v6772
        %6774 = vmatprep.subr.mxu0 0.0
        %v6775 = vand.u32 %v6730, 4294901760
        %6776 = vmatpush1.msra.mxu0 %v6775
        %6777 = vmatprep.subr.mxu0 0.0
        %v6778 = vand.u32 %v6731, 4294901760
        %6779 = vmatpush1.msra.mxu0 %v6778
        %6780 = vmatprep.subr.mxu0 0.0
        %6781 = vmatpush1.msra.mxu0 0.0
        %6782 = vmatprep.subr.mxu0 0.0
        %6783 = vmatpush1.msra.mxu0 0.0
        %6784 = vmatprep.subr.mxu0 0.0
        %6785 = vmatpush1.msra.mxu0 0.0
        %6786 = vmatprep.subr.mxu0 0.0
        %6787 = vmatpush1.msra.mxu0 0.0
        %6788 = vmatprep.subr.mxu0 0.0
        %6789 = vmatpush1.msra.mxu0 0.0
        %6790 = vmatprep.subr.mxu0 0.0
        %6791 = vmatpush1.msra.mxu0 0.0
        %6792 = vmatprep.subr.mxu0 0.0
        %6793 = vmatpush1.msra.mxu0 0.0
        %6794 = vmatprep.subr.mxu0 0.0
        %6795 = vmatpush1.msra.mxu0 0.0
        %6796 = vmatprep.subr.mxu0 0.0
        %6797 = vmatpush1.msra.mxu0 0.0
        %6798 = vmatprep.subr.mxu0 0.0
        %6799 = vmatpush1.msra.mxu0 0.0
        %6800 = vmatprep.subr.mxu0 0.0
        %6801 = vmatpush1.msra.mxu0 0.0
        %6802 = vmatprep.subr.mxu0 0.0
        %6803 = vmatpush1.msra.mxu0 0.0
        %6804 = vmatprep.subr.mxu0 0.0
        %6805 = vmatpush1.msra.mxu0 0.0
        %6806 = vmatprep.subr.mxu0 0.0
        %6807 = vmatpush1.msra.mxu0 0.0
        %6808 = vmatprep.subr.mxu0 0.0
        %6809 = vmatpush1.msra.mxu0 0.0
        %6810 = vmatprep.subr.mxu0 0.0
        %6811 = vmatpush1.msra.mxu0 0.0
        %6812 = vmatprep.mubr.f32.mxu0 0.0
        %v6813 = vand.u32 %v6711, 4294901760
        %v6814 = vsub.f32 %v6711, %v6813
        %v6815 = vand.u32 %v6814, 4294901760
        %v6816 = vsub.f32 %v6814, %v6815
        %v6817 = vand.u32 %v6816, 4294901760
        %6818 = vmatmul.mubr.f32.gmra.mrb[0].mxu0 %v6817
        %v6819 = vpop.f32.mrb[0].mxu0
        %v6820 = vadd.f32 0.0, %v6819
        %v6821 = vpop.f32.mrb[0].mxu0
        %6822 = vmatprep.mubr.f32.mxu0 0.0
        %v6823 = vand.u32 %v6712, 4294901760
        %v6824 = vsub.f32 %v6712, %v6823
        %v6825 = vand.u32 %v6824, 4294901760
        %v6826 = vsub.f32 %v6824, %v6825
        %v6827 = vand.u32 %v6826, 4294901760
        %6828 = vmatmul.mubr.f32.gmra.mrb[0].mxu0 %v6827
        %v6829 = vpop.f32.mrb[0].mxu0
        %v6830 = vadd.f32 0.0, %v6829
        %v6831 = vpop.f32.mrb[0].mxu0
        %6832 = vmatprep.mubr.f32.mxu0 0.0
        %v6833 = vand.u32 %v6713, 4294901760
        %v6834 = vsub.f32 %v6713, %v6833
        %v6835 = vand.u32 %v6834, 4294901760
        %v6836 = vsub.f32 %v6834, %v6835
        %v6837 = vand.u32 %v6836, 4294901760
        %6838 = vmatmul.mubr.f32.gmra.mrb[0].mxu0 %v6837
        %v6839 = vpop.f32.mrb[0].mxu0
        %v6840 = vadd.f32 0.0, %v6839
        %v6841 = vpop.f32.mrb[0].mxu0
        %6842 = vmatprep.mubr.f32.mxu0 0.0
        %v6843 = vand.u32 %v6714, 4294901760
        %v6844 = vsub.f32 %v6714, %v6843
        %v6845 = vand.u32 %v6844, 4294901760
        %v6846 = vsub.f32 %v6844, %v6845
        %v6847 = vand.u32 %v6846, 4294901760
        %6848 = vmatmul.mubr.f32.gmra.mrb[0].mxu0 %v6847
        %v6849 = vpop.f32.mrb[0].mxu0
        %v6850 = vadd.f32 0.0, %v6849
        %v6851 = vpop.f32.mrb[0].mxu0
        %6852 = vdwg.mxu0
        %6853 = vmatprep.subr.mxu0 0.0
        %v6854 = vand.u32 %v6716, 4294901760
        %v6855 = vsub.f32 %v6716, %v6854
        %v6856 = vand.u32 %v6855, 4294901760
        %v6857 = vsub.f32 %v6855, %v6856
        %v6858 = vand.u32 %v6857, 4294901760
        %6859 = vmatpush1.msra.mxu0 %v6858
        %6860 = vmatprep.subr.mxu0 0.0
        %v6861 = vand.u32 %v6717, 4294901760
        %v6862 = vsub.f32 %v6717, %v6861
        %v6863 = vand.u32 %v6862, 4294901760
        %v6864 = vsub.f32 %v6862, %v6863
        %v6865 = vand.u32 %v6864, 4294901760
        %6866 = vmatpush1.msra.mxu0 %v6865
        %6867 = vmatprep.subr.mxu0 0.0
        %v6868 = vand.u32 %v6718, 4294901760
        %v6869 = vsub.f32 %v6718, %v6868
        %v6870 = vand.u32 %v6869, 4294901760
        %v6871 = vsub.f32 %v6869, %v6870
        %v6872 = vand.u32 %v6871, 4294901760
        %6873 = vmatpush1.msra.mxu0 %v6872
        %6874 = vmatprep.subr.mxu0 0.0
        %v6875 = vand.u32 %v6719, 4294901760
        %v6876 = vsub.f32 %v6719, %v6875
        %v6877 = vand.u32 %v6876, 4294901760
        %v6878 = vsub.f32 %v6876, %v6877
        %v6879 = vand.u32 %v6878, 4294901760
        %6880 = vmatpush1.msra.mxu0 %v6879
        %6881 = vmatprep.subr.mxu0 0.0
        %v6882 = vand.u32 %v6720, 4294901760
        %v6883 = vsub.f32 %v6720, %v6882
        %v6884 = vand.u32 %v6883, 4294901760
        %v6885 = vsub.f32 %v6883, %v6884
        %v6886 = vand.u32 %v6885, 4294901760
        %6887 = vmatpush1.msra.mxu0 %v6886
        %6888 = vmatprep.subr.mxu0 0.0
        %v6889 = vand.u32 %v6721, 4294901760
        %v6890 = vsub.f32 %v6721, %v6889
        %v6891 = vand.u32 %v6890, 4294901760
        %v6892 = vsub.f32 %v6890, %v6891
        %v6893 = vand.u32 %v6892, 4294901760
        %6894 = vmatpush1.msra.mxu0 %v6893
        %6895 = vmatprep.subr.mxu0 0.0
        %v6896 = vand.u32 %v6722, 4294901760
        %v6897 = vsub.f32 %v6722, %v6896
        %v6898 = vand.u32 %v6897, 4294901760
        %v6899 = vsub.f32 %v6897, %v6898
        %v6900 = vand.u32 %v6899, 4294901760
        %6901 = vmatpush1.msra.mxu0 %v6900
        %6902 = vmatprep.subr.mxu0 0.0
        %v6903 = vand.u32 %v6723, 4294901760
        %v6904 = vsub.f32 %v6723, %v6903
        %v6905 = vand.u32 %v6904, 4294901760
        %v6906 = vsub.f32 %v6904, %v6905
        %v6907 = vand.u32 %v6906, 4294901760
        %6908 = vmatpush1.msra.mxu0 %v6907
        %6909 = vmatprep.subr.mxu0 0.0
        %v6910 = vand.u32 %v6724, 4294901760
        %v6911 = vsub.f32 %v6724, %v6910
        %v6912 = vand.u32 %v6911, 4294901760
        %v6913 = vsub.f32 %v6911, %v6912
        %v6914 = vand.u32 %v6913, 4294901760
        %6915 = vmatpush1.msra.mxu0 %v6914
        %6916 = vmatprep.subr.mxu0 0.0
        %v6917 = vand.u32 %v6725, 4294901760
        %v6918 = vsub.f32 %v6725, %v6917
        %v6919 = vand.u32 %v6918, 4294901760
        %v6920 = vsub.f32 %v6918, %v6919
        %v6921 = vand.u32 %v6920, 4294901760
        %6922 = vmatpush1.msra.mxu0 %v6921
        %6923 = vmatprep.subr.mxu0 0.0
        %v6924 = vand.u32 %v6726, 4294901760
        %v6925 = vsub.f32 %v6726, %v6924
        %v6926 = vand.u32 %v6925, 4294901760
        %v6927 = vsub.f32 %v6925, %v6926
        %v6928 = vand.u32 %v6927, 4294901760
        %6929 = vmatpush1.msra.mxu0 %v6928
        %6930 = vmatprep.subr.mxu0 0.0
        %v6931 = vand.u32 %v6727, 4294901760
        %v6932 = vsub.f32 %v6727, %v6931
        %v6933 = vand.u32 %v6932, 4294901760
        %v6934 = vsub.f32 %v6932, %v6933
        %v6935 = vand.u32 %v6934, 4294901760
        %6936 = vmatpush1.msra.mxu0 %v6935
        %6937 = vmatprep.subr.mxu0 0.0
        %v6938 = vand.u32 %v6728, 4294901760
        %v6939 = vsub.f32 %v6728, %v6938
        %v6940 = vand.u32 %v6939, 4294901760
        %v6941 = vsub.f32 %v6939, %v6940
        %v6942 = vand.u32 %v6941, 4294901760
        %6943 = vmatpush1.msra.mxu0 %v6942
        %6944 = vmatprep.subr.mxu0 0.0
        %v6945 = vand.u32 %v6729, 4294901760
        %v6946 = vsub.f32 %v6729, %v6945
        %v6947 = vand.u32 %v6946, 4294901760
        %v6948 = vsub.f32 %v6946, %v6947
        %v6949 = vand.u32 %v6948, 4294901760
        %6950 = vmatpush1.msra.mxu0 %v6949
        %6951 = vmatprep.subr.mxu0 0.0
        %v6952 = vand.u32 %v6730, 4294901760
        %v6953 = vsub.f32 %v6730, %v6952
        %v6954 = vand.u32 %v6953, 4294901760
        %v6955 = vsub.f32 %v6953, %v6954
        %v6956 = vand.u32 %v6955, 4294901760
        %6957 = vmatpush1.msra.mxu0 %v6956
        %6958 = vmatprep.subr.mxu0 0.0
        %v6959 = vand.u32 %v6731, 4294901760
        %v6960 = vsub.f32 %v6731, %v6959
        %v6961 = vand.u32 %v6960, 4294901760
        %v6962 = vsub.f32 %v6960, %v6961
        %v6963 = vand.u32 %v6962, 4294901760
        %6964 = vmatpush1.msra.mxu0 %v6963
        %6965 = vmatprep.subr.mxu0 0.0
        %6966 = vmatpush1.msra.mxu0 0.0
        %6967 = vmatprep.subr.mxu0 0.0
        %6968 = vmatpush1.msra.mxu0 0.0
        %6969 = vmatprep.subr.mxu0 0.0
        %6970 = vmatpush1.msra.mxu0 0.0
        %6971 = vmatprep.subr.mxu0 0.0
        %6972 = vmatpush1.msra.mxu0 0.0
        %6973 = vmatprep.subr.mxu0 0.0
        %6974 = vmatpush1.msra.mxu0 0.0
        %6975 = vmatprep.subr.mxu0 0.0
        %6976 = vmatpush1.msra.mxu0 0.0
        %6977 = vmatprep.subr.mxu0 0.0
        %6978 = vmatpush1.msra.mxu0 0.0
        %6979 = vmatprep.subr.mxu0 0.0
        %6980 = vmatpush1.msra.mxu0 0.0
        %6981 = vmatprep.subr.mxu0 0.0
        %6982 = vmatpush1.msra.mxu0 0.0
        %6983 = vmatprep.subr.mxu0 0.0
        %6984 = vmatpush1.msra.mxu0 0.0
        %6985 = vmatprep.subr.mxu0 0.0
        %6986 = vmatpush1.msra.mxu0 0.0
        %6987 = vmatprep.subr.mxu0 0.0
        %6988 = vmatpush1.msra.mxu0 0.0
        %6989 = vmatprep.subr.mxu0 0.0
        %6990 = vmatpush1.msra.mxu0 0.0
        %6991 = vmatprep.subr.mxu0 0.0
        %6992 = vmatpush1.msra.mxu0 0.0
        %6993 = vmatprep.subr.mxu0 0.0
        %6994 = vmatpush1.msra.mxu0 0.0
        %6995 = vmatprep.subr.mxu0 0.0
        %6996 = vmatpush1.msra.mxu0 0.0
        %6997 = vmatprep.mubr.f32.mxu0 0.0
        %v6998 = vand.u32 %v6711, 4294901760
        %6999 = vmatmul.mubr.f32.gmra.mrb[0].mxu0 %v6998
        %v7000 = vpop.f32.mrb[0].mxu0
        %v7001 = vadd.f32 %v6820, %v7000
        %v7002 = vpop.f32.mrb[0].mxu0
        %7003 = vmatprep.mubr.f32.mxu0 0.0
        %v7004 = vand.u32 %v6712, 4294901760
        %7005 = vmatmul.mubr.f32.gmra.mrb[0].mxu0 %v7004
        %v7006 = vpop.f32.mrb[0].mxu0
        %v7007 = vadd.f32 %v6830, %v7006
        %v7008 = vpop.f32.mrb[0].mxu0
        %7009 = vmatprep.mubr.f32.mxu0 0.0
        %v7010 = vand.u32 %v6713, 4294901760
        %7011 = vmatmul.mubr.f32.gmra.mrb[0].mxu0 %v7010
        %v7012 = vpop.f32.mrb[0].mxu0
        %v7013 = vadd.f32 %v6840, %v7012
        %v7014 = vpop.f32.mrb[0].mxu0
        %7015 = vmatprep.mubr.f32.mxu0 0.0
        %v7016 = vand.u32 %v6714, 4294901760
        %7017 = vmatmul.mubr.f32.gmra.mrb[0].mxu0 %v7016
        %v7018 = vpop.f32.mrb[0].mxu0
        %v7019 = vadd.f32 %v6850, %v7018
        %v7020 = vpop.f32.mrb[0].mxu0
        %7021 = vdwg.mxu0
        %7022 = vmatprep.subr.mxu0 0.0
        %v7023 = vand.u32 %v6716, 4294901760
        %v7024 = vsub.f32 %v6716, %v7023
        %7025 = vmatpush1.msra.mxu0 %v7024
        %7026 = vmatprep.subr.mxu0 0.0
        %v7027 = vand.u32 %v6717, 4294901760
        %v7028 = vsub.f32 %v6717, %v7027
        %7029 = vmatpush1.msra.mxu0 %v7028
        %7030 = vmatprep.subr.mxu0 0.0
        %v7031 = vand.u32 %v6718, 4294901760
        %v7032 = vsub.f32 %v6718, %v7031
        %7033 = vmatpush1.msra.mxu0 %v7032
        %7034 = vmatprep.subr.mxu0 0.0
        %v7035 = vand.u32 %v6719, 4294901760
        %v7036 = vsub.f32 %v6719, %v7035
        %7037 = vmatpush1.msra.mxu0 %v7036
        %7038 = vmatprep.subr.mxu0 0.0
        %v7039 = vand.u32 %v6720, 4294901760
        %v7040 = vsub.f32 %v6720, %v7039
        %7041 = vmatpush1.msra.mxu0 %v7040
        %7042 = vmatprep.subr.mxu0 0.0
        %v7043 = vand.u32 %v6721, 4294901760
        %v7044 = vsub.f32 %v6721, %v7043
        %7045 = vmatpush1.msra.mxu0 %v7044
        %7046 = vmatprep.subr.mxu0 0.0
        %v7047 = vand.u32 %v6722, 4294901760
        %v7048 = vsub.f32 %v6722, %v7047
        %7049 = vmatpush1.msra.mxu0 %v7048
        %7050 = vmatprep.subr.mxu0 0.0
        %v7051 = vand.u32 %v6723, 4294901760
        %v7052 = vsub.f32 %v6723, %v7051
        %7053 = vmatpush1.msra.mxu0 %v7052
        %7054 = vmatprep.subr.mxu0 0.0
        %v7055 = vand.u32 %v6724, 4294901760
        %v7056 = vsub.f32 %v6724, %v7055
        %7057 = vmatpush1.msra.mxu0 %v7056
        %7058 = vmatprep.subr.mxu0 0.0
        %v7059 = vand.u32 %v6725, 4294901760
        %v7060 = vsub.f32 %v6725, %v7059
        %7061 = vmatpush1.msra.mxu0 %v7060
        %7062 = vmatprep.subr.mxu0 0.0
        %v7063 = vand.u32 %v6726, 4294901760
        %v7064 = vsub.f32 %v6726, %v7063
        %7065 = vmatpush1.msra.mxu0 %v7064
        %7066 = vmatprep.subr.mxu0 0.0
        %v7067 = vand.u32 %v6727, 4294901760
        %v7068 = vsub.f32 %v6727, %v7067
        %7069 = vmatpush1.msra.mxu0 %v7068
        %7070 = vmatprep.subr.mxu0 0.0
        %v7071 = vand.u32 %v6728, 4294901760
        %v7072 = vsub.f32 %v6728, %v7071
        %7073 = vmatpush1.msra.mxu0 %v7072
        %7074 = vmatprep.subr.mxu0 0.0
        %v7075 = vand.u32 %v6729, 4294901760
        %v7076 = vsub.f32 %v6729, %v7075
        %7077 = vmatpush1.msra.mxu0 %v7076
        %7078 = vmatprep.subr.mxu0 0.0
        %v7079 = vand.u32 %v6730, 4294901760
        %v7080 = vsub.f32 %v6730, %v7079
        %7081 = vmatpush1.msra.mxu0 %v7080
        %7082 = vmatprep.subr.mxu0 0.0
        %v7083 = vand.u32 %v6731, 4294901760
        %v7084 = vsub.f32 %v6731, %v7083
        %7085 = vmatpush1.msra.mxu0 %v7084
        %7086 = vmatprep.subr.mxu0 0.0
        %7087 = vmatpush1.msra.mxu0 0.0
        %7088 = vmatprep.subr.mxu0 0.0
        %7089 = vmatpush1.msra.mxu0 0.0
        %7090 = vmatprep.subr.mxu0 0.0
        %7091 = vmatpush1.msra.mxu0 0.0
        %7092 = vmatprep.subr.mxu0 0.0
        %7093 = vmatpush1.msra.mxu0 0.0
        %7094 = vmatprep.subr.mxu0 0.0
        %7095 = vmatpush1.msra.mxu0 0.0
        %7096 = vmatprep.subr.mxu0 0.0
        %7097 = vmatpush1.msra.mxu0 0.0
        %7098 = vmatprep.subr.mxu0 0.0
        %7099 = vmatpush1.msra.mxu0 0.0
        %7100 = vmatprep.subr.mxu0 0.0
        %7101 = vmatpush1.msra.mxu0 0.0
        %7102 = vmatprep.subr.mxu0 0.0
        %7103 = vmatpush1.msra.mxu0 0.0
        %7104 = vmatprep.subr.mxu0 0.0
        %7105 = vmatpush1.msra.mxu0 0.0
        %7106 = vmatprep.subr.mxu0 0.0
        %7107 = vmatpush1.msra.mxu0 0.0
        %7108 = vmatprep.subr.mxu0 0.0
        %7109 = vmatpush1.msra.mxu0 0.0
        %7110 = vmatprep.subr.mxu0 0.0
        %7111 = vmatpush1.msra.mxu0 0.0
        %7112 = vmatprep.subr.mxu0 0.0
        %7113 = vmatpush1.msra.mxu0 0.0
        %7114 = vmatprep.subr.mxu0 0.0
        %7115 = vmatpush1.msra.mxu0 0.0
        %7116 = vmatprep.subr.mxu0 0.0
        %7117 = vmatpush1.msra.mxu0 0.0
        %7118 = vmatprep.mubr.f32.mxu0 0.0
        %v7119 = vand.u32 %v6711, 4294901760
        %v7120 = vsub.f32 %v6711, %v7119
        %7121 = vmatmul.mubr.f32.gmra.mrb[0].mxu0 %v7120
        %v7122 = vpop.f32.mrb[0].mxu0
        %v7123 = vadd.f32 %v7001, %v7122
        %v7124 = vpop.f32.mrb[0].mxu0
        %7125 = vmatprep.mubr.f32.mxu0 0.0
        %v7126 = vand.u32 %v6712, 4294901760
        %v7127 = vsub.f32 %v6712, %v7126
        %7128 = vmatmul.mubr.f32.gmra.mrb[0].mxu0 %v7127
        %v7129 = vpop.f32.mrb[0].mxu0
        %v7130 = vadd.f32 %v7007, %v7129
        %v7131 = vpop.f32.mrb[0].mxu0
        %7132 = vmatprep.mubr.f32.mxu0 0.0
        %v7133 = vand.u32 %v6713, 4294901760
        %v7134 = vsub.f32 %v6713, %v7133
        %7135 = vmatmul.mubr.f32.gmra.mrb[0].mxu0 %v7134
        %v7136 = vpop.f32.mrb[0].mxu0
        %v7137 = vadd.f32 %v7013, %v7136
        %v7138 = vpop.f32.mrb[0].mxu0
        %7139 = vmatprep.mubr.f32.mxu0 0.0
        %v7140 = vand.u32 %v6714, 4294901760
        %v7141 = vsub.f32 %v6714, %v7140
        %7142 = vmatmul.mubr.f32.gmra.mrb[0].mxu0 %v7141
        %v7143 = vpop.f32.mrb[0].mxu0
        %v7144 = vadd.f32 %v7019, %v7143
        %v7145 = vpop.f32.mrb[0].mxu0
        %7146 = vdwg.mxu0
        %7147 = vmatprep.subr.mxu0 0.0
        %v7148 = vand.u32 %v6716, 4294901760
        %7149 = vmatpush1.msra.mxu0 %v7148
        %7150 = vmatprep.subr.mxu0 0.0
        %v7151 = vand.u32 %v6717, 4294901760
        %7152 = vmatpush1.msra.mxu0 %v7151
        %7153 = vmatprep.subr.mxu0 0.0
        %v7154 = vand.u32 %v6718, 4294901760
        %7155 = vmatpush1.msra.mxu0 %v7154
        %7156 = vmatprep.subr.mxu0 0.0
        %v7157 = vand.u32 %v6719, 4294901760
        %7158 = vmatpush1.msra.mxu0 %v7157
        %7159 = vmatprep.subr.mxu0 0.0
        %v7160 = vand.u32 %v6720, 4294901760
        %7161 = vmatpush1.msra.mxu0 %v7160
        %7162 = vmatprep.subr.mxu0 0.0
        %v7163 = vand.u32 %v6721, 4294901760
        %7164 = vmatpush1.msra.mxu0 %v7163
        %7165 = vmatprep.subr.mxu0 0.0
        %v7166 = vand.u32 %v6722, 4294901760
        %7167 = vmatpush1.msra.mxu0 %v7166
        %7168 = vmatprep.subr.mxu0 0.0
        %v7169 = vand.u32 %v6723, 4294901760
        %7170 = vmatpush1.msra.mxu0 %v7169
        %7171 = vmatprep.subr.mxu0 0.0
        %v7172 = vand.u32 %v6724, 4294901760
        %7173 = vmatpush1.msra.mxu0 %v7172
        %7174 = vmatprep.subr.mxu0 0.0
        %v7175 = vand.u32 %v6725, 4294901760
        %7176 = vmatpush1.msra.mxu0 %v7175
        %7177 = vmatprep.subr.mxu0 0.0
        %v7178 = vand.u32 %v6726, 4294901760
        %7179 = vmatpush1.msra.mxu0 %v7178
        %7180 = vmatprep.subr.mxu0 0.0
        %v7181 = vand.u32 %v6727, 4294901760
        %7182 = vmatpush1.msra.mxu0 %v7181
        %7183 = vmatprep.subr.mxu0 0.0
        %v7184 = vand.u32 %v6728, 4294901760
        %7185 = vmatpush1.msra.mxu0 %v7184
        %7186 = vmatprep.subr.mxu0 0.0
        %v7187 = vand.u32 %v6729, 4294901760
        %7188 = vmatpush1.msra.mxu0 %v7187
        %7189 = vmatprep.subr.mxu0 0.0
        %v7190 = vand.u32 %v6730, 4294901760
        %7191 = vmatpush1.msra.mxu0 %v7190
        %7192 = vmatprep.subr.mxu0 0.0
        %v7193 = vand.u32 %v6731, 4294901760
        %7194 = vmatpush1.msra.mxu0 %v7193
        %7195 = vmatprep.subr.mxu0 0.0
        %7196 = vmatpush1.msra.mxu0 0.0
        %7197 = vmatprep.subr.mxu0 0.0
        %7198 = vmatpush1.msra.mxu0 0.0
        %7199 = vmatprep.subr.mxu0 0.0
        %7200 = vmatpush1.msra.mxu0 0.0
        %7201 = vmatprep.subr.mxu0 0.0
        %7202 = vmatpush1.msra.mxu0 0.0
        %7203 = vmatprep.subr.mxu0 0.0
        %7204 = vmatpush1.msra.mxu0 0.0
        %7205 = vmatprep.subr.mxu0 0.0
        %7206 = vmatpush1.msra.mxu0 0.0
        %7207 = vmatprep.subr.mxu0 0.0
        %7208 = vmatpush1.msra.mxu0 0.0
        %7209 = vmatprep.subr.mxu0 0.0
        %7210 = vmatpush1.msra.mxu0 0.0
        %7211 = vmatprep.subr.mxu0 0.0
        %7212 = vmatpush1.msra.mxu0 0.0
        %7213 = vmatprep.subr.mxu0 0.0
        %7214 = vmatpush1.msra.mxu0 0.0
        %7215 = vmatprep.subr.mxu0 0.0
        %7216 = vmatpush1.msra.mxu0 0.0
        %7217 = vmatprep.subr.mxu0 0.0
        %7218 = vmatpush1.msra.mxu0 0.0
        %7219 = vmatprep.subr.mxu0 0.0
        %7220 = vmatpush1.msra.mxu0 0.0
        %7221 = vmatprep.subr.mxu0 0.0
        %7222 = vmatpush1.msra.mxu0 0.0
        %7223 = vmatprep.subr.mxu0 0.0
        %7224 = vmatpush1.msra.mxu0 0.0
        %7225 = vmatprep.subr.mxu0 0.0
        %7226 = vmatpush1.msra.mxu0 0.0
        %7227 = vmatprep.mubr.f32.mxu0 0.0
        %v7228 = vand.u32 %v6711, 4294901760
        %v7229 = vsub.f32 %v6711, %v7228
        %v7230 = vand.u32 %v7229, 4294901760
        %7231 = vmatmul.mubr.f32.gmra.mrb[0].mxu0 %v7230
        %v7232 = vpop.f32.mrb[0].mxu0
        %v7233 = vadd.f32 %v7123, %v7232
        %v7234 = vpop.f32.mrb[0].mxu0
        %7235 = vmatprep.mubr.f32.mxu0 0.0
        %v7236 = vand.u32 %v6712, 4294901760
        %v7237 = vsub.f32 %v6712, %v7236
        %v7238 = vand.u32 %v7237, 4294901760
        %7239 = vmatmul.mubr.f32.gmra.mrb[0].mxu0 %v7238
        %v7240 = vpop.f32.mrb[0].mxu0
        %v7241 = vadd.f32 %v7130, %v7240
        %v7242 = vpop.f32.mrb[0].mxu0
        %7243 = vmatprep.mubr.f32.mxu0 0.0
        %v7244 = vand.u32 %v6713, 4294901760
        %v7245 = vsub.f32 %v6713, %v7244
        %v7246 = vand.u32 %v7245, 4294901760
        %7247 = vmatmul.mubr.f32.gmra.mrb[0].mxu0 %v7246
        %v7248 = vpop.f32.mrb[0].mxu0
        %v7249 = vadd.f32 %v7137, %v7248
        %v7250 = vpop.f32.mrb[0].mxu0
        %7251 = vmatprep.mubr.f32.mxu0 0.0
        %v7252 = vand.u32 %v6714, 4294901760
        %v7253 = vsub.f32 %v6714, %v7252
        %v7254 = vand.u32 %v7253, 4294901760
        %7255 = vmatmul.mubr.f32.gmra.mrb[0].mxu0 %v7254
        %v7256 = vpop.f32.mrb[0].mxu0
        %v7257 = vadd.f32 %v7144, %v7256
        %v7258 = vpop.f32.mrb[0].mxu0
        %7259 = vdwg.mxu0
        %7260 = vmatprep.subr.mxu0 0.0
        %v7261 = vand.u32 %v6716, 4294901760
        %v7262 = vsub.f32 %v6716, %v7261
        %v7263 = vand.u32 %v7262, 4294901760
        %7264 = vmatpush1.msra.mxu0 %v7263
        %7265 = vmatprep.subr.mxu0 0.0
        %v7266 = vand.u32 %v6717, 4294901760
        %v7267 = vsub.f32 %v6717, %v7266
        %v7268 = vand.u32 %v7267, 4294901760
        %7269 = vmatpush1.msra.mxu0 %v7268
        %7270 = vmatprep.subr.mxu0 0.0
        %v7271 = vand.u32 %v6718, 4294901760
        %v7272 = vsub.f32 %v6718, %v7271
        %v7273 = vand.u32 %v7272, 4294901760
        %7274 = vmatpush1.msra.mxu0 %v7273
        %7275 = vmatprep.subr.mxu0 0.0
        %v7276 = vand.u32 %v6719, 4294901760
        %v7277 = vsub.f32 %v6719, %v7276
        %v7278 = vand.u32 %v7277, 4294901760
        %7279 = vmatpush1.msra.mxu0 %v7278
        %7280 = vmatprep.subr.mxu0 0.0
        %v7281 = vand.u32 %v6720, 4294901760
        %v7282 = vsub.f32 %v6720, %v7281
        %v7283 = vand.u32 %v7282, 4294901760
        %7284 = vmatpush1.msra.mxu0 %v7283
        %7285 = vmatprep.subr.mxu0 0.0
        %v7286 = vand.u32 %v6721, 4294901760
        %v7287 = vsub.f32 %v6721, %v7286
        %v7288 = vand.u32 %v7287, 4294901760
        %7289 = vmatpush1.msra.mxu0 %v7288
        %7290 = vmatprep.subr.mxu0 0.0
        %v7291 = vand.u32 %v6722, 4294901760
        %v7292 = vsub.f32 %v6722, %v7291
        %v7293 = vand.u32 %v7292, 4294901760
        %7294 = vmatpush1.msra.mxu0 %v7293
        %7295 = vmatprep.subr.mxu0 0.0
        %v7296 = vand.u32 %v6723, 4294901760
        %v7297 = vsub.f32 %v6723, %v7296
        %v7298 = vand.u32 %v7297, 4294901760
        %7299 = vmatpush1.msra.mxu0 %v7298
        %7300 = vmatprep.subr.mxu0 0.0
        %v7301 = vand.u32 %v6724, 4294901760
        %v7302 = vsub.f32 %v6724, %v7301
        %v7303 = vand.u32 %v7302, 4294901760
        %7304 = vmatpush1.msra.mxu0 %v7303
        %7305 = vmatprep.subr.mxu0 0.0
        %v7306 = vand.u32 %v6725, 4294901760
        %v7307 = vsub.f32 %v6725, %v7306
        %v7308 = vand.u32 %v7307, 4294901760
        %7309 = vmatpush1.msra.mxu0 %v7308
        %7310 = vmatprep.subr.mxu0 0.0
        %v7311 = vand.u32 %v6726, 4294901760
        %v7312 = vsub.f32 %v6726, %v7311
        %v7313 = vand.u32 %v7312, 4294901760
        %7314 = vmatpush1.msra.mxu0 %v7313
        %7315 = vmatprep.subr.mxu0 0.0
        %v7316 = vand.u32 %v6727, 4294901760
        %v7317 = vsub.f32 %v6727, %v7316
        %v7318 = vand.u32 %v7317, 4294901760
        %7319 = vmatpush1.msra.mxu0 %v7318
        %7320 = vmatprep.subr.mxu0 0.0
        %v7321 = vand.u32 %v6728, 4294901760
        %v7322 = vsub.f32 %v6728, %v7321
        %v7323 = vand.u32 %v7322, 4294901760
        %7324 = vmatpush1.msra.mxu0 %v7323
        %7325 = vmatprep.subr.mxu0 0.0
        %v7326 = vand.u32 %v6729, 4294901760
        %v7327 = vsub.f32 %v6729, %v7326
        %v7328 = vand.u32 %v7327, 4294901760
        %7329 = vmatpush1.msra.mxu0 %v7328
        %7330 = vmatprep.subr.mxu0 0.0
        %v7331 = vand.u32 %v6730, 4294901760
        %v7332 = vsub.f32 %v6730, %v7331
        %v7333 = vand.u32 %v7332, 4294901760
        %7334 = vmatpush1.msra.mxu0 %v7333
        %7335 = vmatprep.subr.mxu0 0.0
        %v7336 = vand.u32 %v6731, 4294901760
        %v7337 = vsub.f32 %v6731, %v7336
        %v7338 = vand.u32 %v7337, 4294901760
        %7339 = vmatpush1.msra.mxu0 %v7338
        %7340 = vmatprep.subr.mxu0 0.0
        %7341 = vmatpush1.msra.mxu0 0.0
        %7342 = vmatprep.subr.mxu0 0.0
        %7343 = vmatpush1.msra.mxu0 0.0
        %7344 = vmatprep.subr.mxu0 0.0
        %7345 = vmatpush1.msra.mxu0 0.0
        %7346 = vmatprep.subr.mxu0 0.0
        %7347 = vmatpush1.msra.mxu0 0.0
        %7348 = vmatprep.subr.mxu0 0.0
        %7349 = vmatpush1.msra.mxu0 0.0
        %7350 = vmatprep.subr.mxu0 0.0
        %7351 = vmatpush1.msra.mxu0 0.0
        %7352 = vmatprep.subr.mxu0 0.0
        %7353 = vmatpush1.msra.mxu0 0.0
        %7354 = vmatprep.subr.mxu0 0.0
        %7355 = vmatpush1.msra.mxu0 0.0
        %7356 = vmatprep.subr.mxu0 0.0
        %7357 = vmatpush1.msra.mxu0 0.0
        %7358 = vmatprep.subr.mxu0 0.0
        %7359 = vmatpush1.msra.mxu0 0.0
        %7360 = vmatprep.subr.mxu0 0.0
        %7361 = vmatpush1.msra.mxu0 0.0
        %7362 = vmatprep.subr.mxu0 0.0
        %7363 = vmatpush1.msra.mxu0 0.0
        %7364 = vmatprep.subr.mxu0 0.0
        %7365 = vmatpush1.msra.mxu0 0.0
        %7366 = vmatprep.subr.mxu0 0.0
        %7367 = vmatpush1.msra.mxu0 0.0
        %7368 = vmatprep.subr.mxu0 0.0
        %7369 = vmatpush1.msra.mxu0 0.0
        %7370 = vmatprep.subr.mxu0 0.0
        %7371 = vmatpush1.msra.mxu0 0.0
        %7372 = vmatprep.mubr.f32.mxu0 0.0
        %v7373 = vand.u32 %v6711, 4294901760
        %7374 = vmatmul.mubr.f32.gmra.mrb[0].mxu0 %v7373
        %v7375 = vpop.f32.mrb[0].mxu0
        %v7376 = vadd.f32 %v7233, %v7375
        %v7377 = vpop.f32.mrb[0].mxu0
        %7378 = vmatprep.mubr.f32.mxu0 0.0
        %v7379 = vand.u32 %v6712, 4294901760
        %7380 = vmatmul.mubr.f32.gmra.mrb[0].mxu0 %v7379
        %v7381 = vpop.f32.mrb[0].mxu0
        %v7382 = vadd.f32 %v7241, %v7381
        %v7383 = vpop.f32.mrb[0].mxu0
        %7384 = vmatprep.mubr.f32.mxu0 0.0
        %v7385 = vand.u32 %v6713, 4294901760
        %7386 = vmatmul.mubr.f32.gmra.mrb[0].mxu0 %v7385
        %v7387 = vpop.f32.mrb[0].mxu0
        %v7388 = vadd.f32 %v7249, %v7387
        %v7389 = vpop.f32.mrb[0].mxu0
        %7390 = vmatprep.mubr.f32.mxu0 0.0
        %v7391 = vand.u32 %v6714, 4294901760
        %7392 = vmatmul.mubr.f32.gmra.mrb[0].mxu0 %v7391
        %v7393 = vpop.f32.mrb[0].mxu0
        %v7394 = vadd.f32 %v7257, %v7393
        %v7395 = vpop.f32.mrb[0].mxu0
        %7396 = vdwg.mxu0
        %7397 = vmatprep.subr.mxu0 0.0
        %v7398 = vand.u32 %v6716, 4294901760
        %7399 = vmatpush1.msra.mxu0 %v7398
        %7400 = vmatprep.subr.mxu0 0.0
        %v7401 = vand.u32 %v6717, 4294901760
        %7402 = vmatpush1.msra.mxu0 %v7401
        %7403 = vmatprep.subr.mxu0 0.0
        %v7404 = vand.u32 %v6718, 4294901760
        %7405 = vmatpush1.msra.mxu0 %v7404
        %7406 = vmatprep.subr.mxu0 0.0
        %v7407 = vand.u32 %v6719, 4294901760
        %7408 = vmatpush1.msra.mxu0 %v7407
        %7409 = vmatprep.subr.mxu0 0.0
        %v7410 = vand.u32 %v6720, 4294901760
        %7411 = vmatpush1.msra.mxu0 %v7410
        %7412 = vmatprep.subr.mxu0 0.0
        %v7413 = vand.u32 %v6721, 4294901760
        %7414 = vmatpush1.msra.mxu0 %v7413
        %7415 = vmatprep.subr.mxu0 0.0
        %v7416 = vand.u32 %v6722, 4294901760
        %7417 = vmatpush1.msra.mxu0 %v7416
        %7418 = vmatprep.subr.mxu0 0.0
        %v7419 = vand.u32 %v6723, 4294901760
        %7420 = vmatpush1.msra.mxu0 %v7419
        %7421 = vmatprep.subr.mxu0 0.0
        %v7422 = vand.u32 %v6724, 4294901760
        %7423 = vmatpush1.msra.mxu0 %v7422
        %7424 = vmatprep.subr.mxu0 0.0
        %v7425 = vand.u32 %v6725, 4294901760
        %7426 = vmatpush1.msra.mxu0 %v7425
        %7427 = vmatprep.subr.mxu0 0.0
        %v7428 = vand.u32 %v6726, 4294901760
        %7429 = vmatpush1.msra.mxu0 %v7428
        %7430 = vmatprep.subr.mxu0 0.0
        %v7431 = vand.u32 %v6727, 4294901760
        %7432 = vmatpush1.msra.mxu0 %v7431
        %7433 = vmatprep.subr.mxu0 0.0
        %v7434 = vand.u32 %v6728, 4294901760
        %7435 = vmatpush1.msra.mxu0 %v7434
        %7436 = vmatprep.subr.mxu0 0.0
        %v7437 = vand.u32 %v6729, 4294901760
        %7438 = vmatpush1.msra.mxu0 %v7437
        %7439 = vmatprep.subr.mxu0 0.0
        %v7440 = vand.u32 %v6730, 4294901760
        %7441 = vmatpush1.msra.mxu0 %v7440
        %7442 = vmatprep.subr.mxu0 0.0
        %v7443 = vand.u32 %v6731, 4294901760
        %7444 = vmatpush1.msra.mxu0 %v7443
        %7445 = vmatprep.subr.mxu0 0.0
        %7446 = vmatpush1.msra.mxu0 0.0
        %7447 = vmatprep.subr.mxu0 0.0
        %7448 = vmatpush1.msra.mxu0 0.0
        %7449 = vmatprep.subr.mxu0 0.0
        %7450 = vmatpush1.msra.mxu0 0.0
        %7451 = vmatprep.subr.mxu0 0.0
        %7452 = vmatpush1.msra.mxu0 0.0
        %7453 = vmatprep.subr.mxu0 0.0
        %7454 = vmatpush1.msra.mxu0 0.0
        %7455 = vmatprep.subr.mxu0 0.0
        %7456 = vmatpush1.msra.mxu0 0.0
        %7457 = vmatprep.subr.mxu0 0.0
        %7458 = vmatpush1.msra.mxu0 0.0
        %7459 = vmatprep.subr.mxu0 0.0
        %7460 = vmatpush1.msra.mxu0 0.0
        %7461 = vmatprep.subr.mxu0 0.0
        %7462 = vmatpush1.msra.mxu0 0.0
        %7463 = vmatprep.subr.mxu0 0.0
        %7464 = vmatpush1.msra.mxu0 0.0
        %7465 = vmatprep.subr.mxu0 0.0
        %7466 = vmatpush1.msra.mxu0 0.0
        %7467 = vmatprep.subr.mxu0 0.0
        %7468 = vmatpush1.msra.mxu0 0.0
        %7469 = vmatprep.subr.mxu0 0.0
        %7470 = vmatpush1.msra.mxu0 0.0
        %7471 = vmatprep.subr.mxu0 0.0
        %7472 = vmatpush1.msra.mxu0 0.0
        %7473 = vmatprep.subr.mxu0 0.0
        %7474 = vmatpush1.msra.mxu0 0.0
        %7475 = vmatprep.subr.mxu0 0.0
        %7476 = vmatpush1.msra.mxu0 0.0
        %7477 = vmatprep.mubr.f32.mxu0 0.0
        %v7478 = vand.u32 %v6711, 4294901760
        %7479 = vmatmul.mubr.f32.gmra.mrb[0].mxu0 %v7478
        %v7480 = vpop.f32.mrb[0].mxu0
        %v7481 = vadd.f32 %v7376, %v7480
        %v7482 = vpop.f32.mrb[0].mxu0
        %7483 = vmatprep.mubr.f32.mxu0 0.0
        %v7484 = vand.u32 %v6712, 4294901760
        %7485 = vmatmul.mubr.f32.gmra.mrb[0].mxu0 %v7484
        %v7486 = vpop.f32.mrb[0].mxu0
        %v7487 = vadd.f32 %v7382, %v7486
        %v7488 = vpop.f32.mrb[0].mxu0
        %7489 = vmatprep.mubr.f32.mxu0 0.0
        %v7490 = vand.u32 %v6713, 4294901760
        %7491 = vmatmul.mubr.f32.gmra.mrb[0].mxu0 %v7490
        %v7492 = vpop.f32.mrb[0].mxu0
        %v7493 = vadd.f32 %v7388, %v7492
        %v7494 = vpop.f32.mrb[0].mxu0
        %7495 = vmatprep.mubr.f32.mxu0 0.0
        %v7496 = vand.u32 %v6714, 4294901760
        %7497 = vmatmul.mubr.f32.gmra.mrb[0].mxu0 %v7496
        %v7498 = vpop.f32.mrb[0].mxu0
        %v7499 = vadd.f32 %v7394, %v7498
        %v7500 = vpop.f32.mrb[0].mxu0
        %7501 = vdwg.mxu0
        %v7502 = vadd.f32 %v6707, %v7481
        %v7503 = vadd.f32 %v6708, %v7487
        %v7504 = vadd.f32 %v6709, %v7493
        %v7505 = vadd.f32 %v6710, %v7499
        %v7506 = vlaneseq
        %v7507 = vshrl.u32 %v7506, 7
        %v7508 = vsub.s32 0, %v7507
        %v7509 = vrot.slane %v1154, %v7508
        %v7510 = vadd.f32 %v7502, %v7509
        %v7511 = vadd.f32 %v7503, %v7509
        %v7512 = vadd.f32 %v7504, %v7509
        %v7513 = vadd.f32 %v7505, %v7509
        %v7514 = vmax.f32 %v7510, 0.0
        %v7515 = vmax.f32 %v7511, 0.0
        %v7516 = vmax.f32 %v7512, 0.0
        %v7517 = vmax.f32 %v7513, 0.0
        %7518 = vst [vmem:[#allocation2] sm:$0xff] %v7514
        %7519 = vst [vmem:[#allocation2 + $0x8] sm:$0xff] %v7515
        %7520 = vst [vmem:[#allocation2 + $0x10] sm:$0xff] %v7516
        %7521 = vst [vmem:[#allocation2 + $0x18] sm:$0x1] %v7517
        %v7522 = vld [vmem:[#allocation2] ss:$2 sm:$0xff]
        %v7523 = vld [vmem:[%s1132] ss:$2 sm:$0xf]
        %v7524 = vld [vmem:[%s1138] ss:$2 sm:$0xff]
        %v7525 = vld [vmem:[%s1140] ss:$2 sm:$0xf]
        %v7526 = vmax.f32 %v7522, %v7524
        %v7527 = vmax.f32 %v7523, %v7525
        %7528 = vst [vmem:[#allocation3] sm:$0xff] %v7526
        %7529 = vst [vmem:[#allocation3 + $0x8] sm:$0xf] %v7527
        %v7530 = vld [vmem:[%s4 + $0x2] sm:$0x1]
        %v7531 = vld [vmem:[#allocation3] sm:$0xff]
        %v7532 = vld [vmem:[#allocation3 + $0x8] sm:$0x1]
        %v7533 = vld [vmem:[%s3] sm:$0xff]
        %v7534 = vld [vmem:[%s3 + $0x8] sm:$0xff]
        %v7535 = vld [vmem:[%s3 + $0x10] sm:$0xff]
        %v7536 = vld [vmem:[%s3 + $0x18] sm:$0xff]
        %v7537 = vld [vmem:[%s3 + $0x20] sm:$0xff]
        %v7538 = vld [vmem:[%s3 + $0x28] sm:$0xff]
        %v7539 = vld [vmem:[%s3 + $0x30] sm:$0xff]
        %v7540 = vld [vmem:[%s3 + $0x38] sm:$0xff]
        %v7541 = vld [vmem:[%s3 + $0x40] sm:$0xff]
        %v7542 = vld [vmem:[%s3 + $0x48] sm:$0xff]
        %v7543 = vld [vmem:[%s3 + $0x50] sm:$0xff]
        %v7544 = vld [vmem:[%s3 + $0x58] sm:$0xff]
        %v7545 = vld [vmem:[%s3 + $0x60] sm:$0xff]
        %v7546 = vld [vmem:[%s3 + $0x68] sm:$0xff]
        %v7547 = vld [vmem:[%s3 + $0x70] sm:$0xff]
        %v7548 = vld [vmem:[%s3 + $0x78] sm:$0xff]
        %v7549 = vld [vmem:[#allocation3 + $0x1] sm:$0xff]
        %v7550 = vld [vmem:[#allocation3 + $0x9] sm:$0x1]
        %s7551 = scalar_lea.vmem %s3, 128
        %v7552 = vld [vmem:[%s7551] sm:$0xff]
        %v7553 = vld [vmem:[%s7551 + $0x8] sm:$0xff]
        %v7554 = vld [vmem:[%s7551 + $0x10] sm:$0xff]
        %v7555 = vld [vmem:[%s7551 + $0x18] sm:$0xff]
        %v7556 = vld [vmem:[%s7551 + $0x20] sm:$0xff]
        %v7557 = vld [vmem:[%s7551 + $0x28] sm:$0xff]
        %v7558 = vld [vmem:[%s7551 + $0x30] sm:$0xff]
        %v7559 = vld [vmem:[%s7551 + $0x38] sm:$0xff]
        %v7560 = vld [vmem:[%s7551 + $0x40] sm:$0xff]
        %v7561 = vld [vmem:[%s7551 + $0x48] sm:$0xff]
        %v7562 = vld [vmem:[%s7551 + $0x50] sm:$0xff]
        %v7563 = vld [vmem:[%s7551 + $0x58] sm:$0xff]
        %v7564 = vld [vmem:[%s7551 + $0x60] sm:$0xff]
        %v7565 = vld [vmem:[%s7551 + $0x68] sm:$0xff]
        %v7566 = vld [vmem:[%s7551 + $0x70] sm:$0xff]
        %v7567 = vld [vmem:[%s7551 + $0x78] sm:$0xff]
        %7568 = vmatprep.subr.mxu0 0.0
        %v7569 = vand.u32 %v7552, 4294901760
        %7570 = vmatpush1.msra.mxu0 %v7569
        %7571 = vmatprep.subr.mxu0 0.0
        %v7572 = vand.u32 %v7553, 4294901760
        %7573 = vmatpush1.msra.mxu0 %v7572
        %7574 = vmatprep.subr.mxu0 0.0
        %v7575 = vand.u32 %v7554, 4294901760
        %7576 = vmatpush1.msra.mxu0 %v7575
        %7577 = vmatprep.subr.mxu0 0.0
        %v7578 = vand.u32 %v7555, 4294901760
        %7579 = vmatpush1.msra.mxu0 %v7578
        %7580 = vmatprep.subr.mxu0 0.0
        %v7581 = vand.u32 %v7556, 4294901760
        %7582 = vmatpush1.msra.mxu0 %v7581
        %7583 = vmatprep.subr.mxu0 0.0
        %v7584 = vand.u32 %v7557, 4294901760
        %7585 = vmatpush1.msra.mxu0 %v7584
        %7586 = vmatprep.subr.mxu0 0.0
        %v7587 = vand.u32 %v7558, 4294901760
        %7588 = vmatpush1.msra.mxu0 %v7587
        %7589 = vmatprep.subr.mxu0 0.0
        %v7590 = vand.u32 %v7559, 4294901760
        %7591 = vmatpush1.msra.mxu0 %v7590
        %7592 = vmatprep.subr.mxu0 0.0
        %v7593 = vand.u32 %v7560, 4294901760
        %7594 = vmatpush1.msra.mxu0 %v7593
        %7595 = vmatprep.subr.mxu0 0.0
        %v7596 = vand.u32 %v7561, 4294901760
        %7597 = vmatpush1.msra.mxu0 %v7596
        %7598 = vmatprep.subr.mxu0 0.0
        %v7599 = vand.u32 %v7562, 4294901760
        %7600 = vmatpush1.msra.mxu0 %v7599
        %7601 = vmatprep.subr.mxu0 0.0
        %v7602 = vand.u32 %v7563, 4294901760
        %7603 = vmatpush1.msra.mxu0 %v7602
        %7604 = vmatprep.subr.mxu0 0.0
        %v7605 = vand.u32 %v7564, 4294901760
        %7606 = vmatpush1.msra.mxu0 %v7605
        %7607 = vmatprep.subr.mxu0 0.0
        %v7608 = vand.u32 %v7565, 4294901760
        %7609 = vmatpush1.msra.mxu0 %v7608
        %7610 = vmatprep.subr.mxu0 0.0
        %v7611 = vand.u32 %v7566, 4294901760
        %7612 = vmatpush1.msra.mxu0 %v7611
        %7613 = vmatprep.subr.mxu0 0.0
        %v7614 = vand.u32 %v7567, 4294901760
        %7615 = vmatpush1.msra.mxu0 %v7614
        %7616 = vmatprep.subr.mxu0 0.0
        %7617 = vmatpush1.msra.mxu0 0.0
        %7618 = vmatprep.subr.mxu0 0.0
        %7619 = vmatpush1.msra.mxu0 0.0
        %7620 = vmatprep.subr.mxu0 0.0
        %7621 = vmatpush1.msra.mxu0 0.0
        %7622 = vmatprep.subr.mxu0 0.0
        %7623 = vmatpush1.msra.mxu0 0.0
        %7624 = vmatprep.subr.mxu0 0.0
        %7625 = vmatpush1.msra.mxu0 0.0
        %7626 = vmatprep.subr.mxu0 0.0
        %7627 = vmatpush1.msra.mxu0 0.0
        %7628 = vmatprep.subr.mxu0 0.0
        %7629 = vmatpush1.msra.mxu0 0.0
        %7630 = vmatprep.subr.mxu0 0.0
        %7631 = vmatpush1.msra.mxu0 0.0
        %7632 = vmatprep.subr.mxu0 0.0
        %7633 = vmatpush1.msra.mxu0 0.0
        %7634 = vmatprep.subr.mxu0 0.0
        %7635 = vmatpush1.msra.mxu0 0.0
        %7636 = vmatprep.subr.mxu0 0.0
        %7637 = vmatpush1.msra.mxu0 0.0
        %7638 = vmatprep.subr.mxu0 0.0
        %7639 = vmatpush1.msra.mxu0 0.0
        %7640 = vmatprep.subr.mxu0 0.0
        %7641 = vmatpush1.msra.mxu0 0.0
        %7642 = vmatprep.subr.mxu0 0.0
        %7643 = vmatpush1.msra.mxu0 0.0
        %7644 = vmatprep.subr.mxu0 0.0
        %7645 = vmatpush1.msra.mxu0 0.0
        %7646 = vmatprep.subr.mxu0 0.0
        %7647 = vmatpush1.msra.mxu0 0.0
        %7648 = vmatprep.mubr.f32.mxu0 0.0
        %v7649 = vand.u32 %v7549, 4294901760
        %v7650 = vsub.f32 %v7549, %v7649
        %v7651 = vand.u32 %v7650, 4294901760
        %v7652 = vsub.f32 %v7650, %v7651
        %v7653 = vand.u32 %v7652, 4294901760
        %7654 = vmatmul.mubr.f32.gmra.mrb[0].mxu0 %v7653
        %v7655 = vpop.f32.mrb[0].mxu0
        %v7656 = vadd.f32 0.0, %v7655
        %v7657 = vpop.f32.mrb[0].mxu0
        %7658 = vmatprep.mubr.f32.mxu0 0.0
        %v7659 = vand.u32 %v7550, 4294901760
        %v7660 = vsub.f32 %v7550, %v7659
        %v7661 = vand.u32 %v7660, 4294901760
        %v7662 = vsub.f32 %v7660, %v7661
        %v7663 = vand.u32 %v7662, 4294901760
        %7664 = vmatmul.mubr.f32.gmra.mrb[0].mxu0 %v7663
        %v7665 = vpop.f32.mrb[0].mxu0
        %v7666 = vadd.f32 0.0, %v7665
        %v7667 = vpop.f32.mrb[0].mxu0
        %7668 = vdwg.mxu0
        %7669 = vmatprep.subr.mxu0 0.0
        %v7670 = vand.u32 %v7552, 4294901760
        %v7671 = vsub.f32 %v7552, %v7670
        %v7672 = vand.u32 %v7671, 4294901760
        %v7673 = vsub.f32 %v7671, %v7672
        %v7674 = vand.u32 %v7673, 4294901760
        %7675 = vmatpush1.msra.mxu0 %v7674
        %7676 = vmatprep.subr.mxu0 0.0
        %v7677 = vand.u32 %v7553, 4294901760
        %v7678 = vsub.f32 %v7553, %v7677
        %v7679 = vand.u32 %v7678, 4294901760
        %v7680 = vsub.f32 %v7678, %v7679
        %v7681 = vand.u32 %v7680, 4294901760
        %7682 = vmatpush1.msra.mxu0 %v7681
        %7683 = vmatprep.subr.mxu0 0.0
        %v7684 = vand.u32 %v7554, 4294901760
        %v7685 = vsub.f32 %v7554, %v7684
        %v7686 = vand.u32 %v7685, 4294901760
        %v7687 = vsub.f32 %v7685, %v7686
        %v7688 = vand.u32 %v7687, 4294901760
        %7689 = vmatpush1.msra.mxu0 %v7688
        %7690 = vmatprep.subr.mxu0 0.0
        %v7691 = vand.u32 %v7555, 4294901760
        %v7692 = vsub.f32 %v7555, %v7691
        %v7693 = vand.u32 %v7692, 4294901760
        %v7694 = vsub.f32 %v7692, %v7693
        %v7695 = vand.u32 %v7694, 4294901760
        %7696 = vmatpush1.msra.mxu0 %v7695
        %7697 = vmatprep.subr.mxu0 0.0
        %v7698 = vand.u32 %v7556, 4294901760
        %v7699 = vsub.f32 %v7556, %v7698
        %v7700 = vand.u32 %v7699, 4294901760
        %v7701 = vsub.f32 %v7699, %v7700
        %v7702 = vand.u32 %v7701, 4294901760
        %7703 = vmatpush1.msra.mxu0 %v7702
        %7704 = vmatprep.subr.mxu0 0.0
        %v7705 = vand.u32 %v7557, 4294901760
        %v7706 = vsub.f32 %v7557, %v7705
        %v7707 = vand.u32 %v7706, 4294901760
        %v7708 = vsub.f32 %v7706, %v7707
        %v7709 = vand.u32 %v7708, 4294901760
        %7710 = vmatpush1.msra.mxu0 %v7709
        %7711 = vmatprep.subr.mxu0 0.0
        %v7712 = vand.u32 %v7558, 4294901760
        %v7713 = vsub.f32 %v7558, %v7712
        %v7714 = vand.u32 %v7713, 4294901760
        %v7715 = vsub.f32 %v7713, %v7714
        %v7716 = vand.u32 %v7715, 4294901760
        %7717 = vmatpush1.msra.mxu0 %v7716
        %7718 = vmatprep.subr.mxu0 0.0
        %v7719 = vand.u32 %v7559, 4294901760
        %v7720 = vsub.f32 %v7559, %v7719
        %v7721 = vand.u32 %v7720, 4294901760
        %v7722 = vsub.f32 %v7720, %v7721
        %v7723 = vand.u32 %v7722, 4294901760
        %7724 = vmatpush1.msra.mxu0 %v7723
        %7725 = vmatprep.subr.mxu0 0.0
        %v7726 = vand.u32 %v7560, 4294901760
        %v7727 = vsub.f32 %v7560, %v7726
        %v7728 = vand.u32 %v7727, 4294901760
        %v7729 = vsub.f32 %v7727, %v7728
        %v7730 = vand.u32 %v7729, 4294901760
        %7731 = vmatpush1.msra.mxu0 %v7730
        %7732 = vmatprep.subr.mxu0 0.0
        %v7733 = vand.u32 %v7561, 4294901760
        %v7734 = vsub.f32 %v7561, %v7733
        %v7735 = vand.u32 %v7734, 4294901760
        %v7736 = vsub.f32 %v7734, %v7735
        %v7737 = vand.u32 %v7736, 4294901760
        %7738 = vmatpush1.msra.mxu0 %v7737
        %7739 = vmatprep.subr.mxu0 0.0
        %v7740 = vand.u32 %v7562, 4294901760
        %v7741 = vsub.f32 %v7562, %v7740
        %v7742 = vand.u32 %v7741, 4294901760
        %v7743 = vsub.f32 %v7741, %v7742
        %v7744 = vand.u32 %v7743, 4294901760
        %7745 = vmatpush1.msra.mxu0 %v7744
        %7746 = vmatprep.subr.mxu0 0.0
        %v7747 = vand.u32 %v7563, 4294901760
        %v7748 = vsub.f32 %v7563, %v7747
        %v7749 = vand.u32 %v7748, 4294901760
        %v7750 = vsub.f32 %v7748, %v7749
        %v7751 = vand.u32 %v7750, 4294901760
        %7752 = vmatpush1.msra.mxu0 %v7751
        %7753 = vmatprep.subr.mxu0 0.0
        %v7754 = vand.u32 %v7564, 4294901760
        %v7755 = vsub.f32 %v7564, %v7754
        %v7756 = vand.u32 %v7755, 4294901760
        %v7757 = vsub.f32 %v7755, %v7756
        %v7758 = vand.u32 %v7757, 4294901760
        %7759 = vmatpush1.msra.mxu0 %v7758
        %7760 = vmatprep.subr.mxu0 0.0
        %v7761 = vand.u32 %v7565, 4294901760
        %v7762 = vsub.f32 %v7565, %v7761
        %v7763 = vand.u32 %v7762, 4294901760
        %v7764 = vsub.f32 %v7762, %v7763
        %v7765 = vand.u32 %v7764, 4294901760
        %7766 = vmatpush1.msra.mxu0 %v7765
        %7767 = vmatprep.subr.mxu0 0.0
        %v7768 = vand.u32 %v7566, 4294901760
        %v7769 = vsub.f32 %v7566, %v7768
        %v7770 = vand.u32 %v7769, 4294901760
        %v7771 = vsub.f32 %v7769, %v7770
        %v7772 = vand.u32 %v7771, 4294901760
        %7773 = vmatpush1.msra.mxu0 %v7772
        %7774 = vmatprep.subr.mxu0 0.0
        %v7775 = vand.u32 %v7567, 4294901760
        %v7776 = vsub.f32 %v7567, %v7775
        %v7777 = vand.u32 %v7776, 4294901760
        %v7778 = vsub.f32 %v7776, %v7777
        %v7779 = vand.u32 %v7778, 4294901760
        %7780 = vmatpush1.msra.mxu0 %v7779
        %7781 = vmatprep.subr.mxu0 0.0
        %7782 = vmatpush1.msra.mxu0 0.0
        %7783 = vmatprep.subr.mxu0 0.0
        %7784 = vmatpush1.msra.mxu0 0.0
        %7785 = vmatprep.subr.mxu0 0.0
        %7786 = vmatpush1.msra.mxu0 0.0
        %7787 = vmatprep.subr.mxu0 0.0
        %7788 = vmatpush1.msra.mxu0 0.0
        %7789 = vmatprep.subr.mxu0 0.0
        %7790 = vmatpush1.msra.mxu0 0.0
        %7791 = vmatprep.subr.mxu0 0.0
        %7792 = vmatpush1.msra.mxu0 0.0
        %7793 = vmatprep.subr.mxu0 0.0
        %7794 = vmatpush1.msra.mxu0 0.0
        %7795 = vmatprep.subr.mxu0 0.0
        %7796 = vmatpush1.msra.mxu0 0.0
        %7797 = vmatprep.subr.mxu0 0.0
        %7798 = vmatpush1.msra.mxu0 0.0
        %7799 = vmatprep.subr.mxu0 0.0
        %7800 = vmatpush1.msra.mxu0 0.0
        %7801 = vmatprep.subr.mxu0 0.0
        %7802 = vmatpush1.msra.mxu0 0.0
        %7803 = vmatprep.subr.mxu0 0.0
        %7804 = vmatpush1.msra.mxu0 0.0
        %7805 = vmatprep.subr.mxu0 0.0
        %7806 = vmatpush1.msra.mxu0 0.0
        %7807 = vmatprep.subr.mxu0 0.0
        %7808 = vmatpush1.msra.mxu0 0.0
        %7809 = vmatprep.subr.mxu0 0.0
        %7810 = vmatpush1.msra.mxu0 0.0
        %7811 = vmatprep.subr.mxu0 0.0
        %7812 = vmatpush1.msra.mxu0 0.0
        %7813 = vmatprep.mubr.f32.mxu0 0.0
        %v7814 = vand.u32 %v7549, 4294901760
        %7815 = vmatmul.mubr.f32.gmra.mrb[0].mxu0 %v7814
        %v7816 = vpop.f32.mrb[0].mxu0
        %v7817 = vadd.f32 %v7656, %v7816
        %v7818 = vpop.f32.mrb[0].mxu0
        %7819 = vmatprep.mubr.f32.mxu0 0.0
        %v7820 = vand.u32 %v7550, 4294901760
        %7821 = vmatmul.mubr.f32.gmra.mrb[0].mxu0 %v7820
        %v7822 = vpop.f32.mrb[0].mxu0
        %v7823 = vadd.f32 %v7666, %v7822
        %v7824 = vpop.f32.mrb[0].mxu0
        %7825 = vdwg.mxu0
        %7826 = vmatprep.subr.mxu0 0.0
        %v7827 = vand.u32 %v7552, 4294901760
        %v7828 = vsub.f32 %v7552, %v7827
        %7829 = vmatpush1.msra.mxu0 %v7828
        %7830 = vmatprep.subr.mxu0 0.0
        %v7831 = vand.u32 %v7553, 4294901760
        %v7832 = vsub.f32 %v7553, %v7831
        %7833 = vmatpush1.msra.mxu0 %v7832
        %7834 = vmatprep.subr.mxu0 0.0
        %v7835 = vand.u32 %v7554, 4294901760
        %v7836 = vsub.f32 %v7554, %v7835
        %7837 = vmatpush1.msra.mxu0 %v7836
        %7838 = vmatprep.subr.mxu0 0.0
        %v7839 = vand.u32 %v7555, 4294901760
        %v7840 = vsub.f32 %v7555, %v7839
        %7841 = vmatpush1.msra.mxu0 %v7840
        %7842 = vmatprep.subr.mxu0 0.0
        %v7843 = vand.u32 %v7556, 4294901760
        %v7844 = vsub.f32 %v7556, %v7843
        %7845 = vmatpush1.msra.mxu0 %v7844
        %7846 = vmatprep.subr.mxu0 0.0
        %v7847 = vand.u32 %v7557, 4294901760
        %v7848 = vsub.f32 %v7557, %v7847
        %7849 = vmatpush1.msra.mxu0 %v7848
        %7850 = vmatprep.subr.mxu0 0.0
        %v7851 = vand.u32 %v7558, 4294901760
        %v7852 = vsub.f32 %v7558, %v7851
        %7853 = vmatpush1.msra.mxu0 %v7852
        %7854 = vmatprep.subr.mxu0 0.0
        %v7855 = vand.u32 %v7559, 4294901760
        %v7856 = vsub.f32 %v7559, %v7855
        %7857 = vmatpush1.msra.mxu0 %v7856
        %7858 = vmatprep.subr.mxu0 0.0
        %v7859 = vand.u32 %v7560, 4294901760
        %v7860 = vsub.f32 %v7560, %v7859
        %7861 = vmatpush1.msra.mxu0 %v7860
        %7862 = vmatprep.subr.mxu0 0.0
        %v7863 = vand.u32 %v7561, 4294901760
        %v7864 = vsub.f32 %v7561, %v7863
        %7865 = vmatpush1.msra.mxu0 %v7864
        %7866 = vmatprep.subr.mxu0 0.0
        %v7867 = vand.u32 %v7562, 4294901760
        %v7868 = vsub.f32 %v7562, %v7867
        %7869 = vmatpush1.msra.mxu0 %v7868
        %7870 = vmatprep.subr.mxu0 0.0
        %v7871 = vand.u32 %v7563, 4294901760
        %v7872 = vsub.f32 %v7563, %v7871
        %7873 = vmatpush1.msra.mxu0 %v7872
        %7874 = vmatprep.subr.mxu0 0.0
        %v7875 = vand.u32 %v7564, 4294901760
        %v7876 = vsub.f32 %v7564, %v7875
        %7877 = vmatpush1.msra.mxu0 %v7876
        %7878 = vmatprep.subr.mxu0 0.0
        %v7879 = vand.u32 %v7565, 4294901760
        %v7880 = vsub.f32 %v7565, %v7879
        %7881 = vmatpush1.msra.mxu0 %v7880
        %7882 = vmatprep.subr.mxu0 0.0
        %v7883 = vand.u32 %v7566, 4294901760
        %v7884 = vsub.f32 %v7566, %v7883
        %7885 = vmatpush1.msra.mxu0 %v7884
        %7886 = vmatprep.subr.mxu0 0.0
        %v7887 = vand.u32 %v7567, 4294901760
        %v7888 = vsub.f32 %v7567, %v7887
        %7889 = vmatpush1.msra.mxu0 %v7888
        %7890 = vmatprep.subr.mxu0 0.0
        %7891 = vmatpush1.msra.mxu0 0.0
        %7892 = vmatprep.subr.mxu0 0.0
        %7893 = vmatpush1.msra.mxu0 0.0
        %7894 = vmatprep.subr.mxu0 0.0
        %7895 = vmatpush1.msra.mxu0 0.0
        %7896 = vmatprep.subr.mxu0 0.0
        %7897 = vmatpush1.msra.mxu0 0.0
        %7898 = vmatprep.subr.mxu0 0.0
        %7899 = vmatpush1.msra.mxu0 0.0
        %7900 = vmatprep.subr.mxu0 0.0
        %7901 = vmatpush1.msra.mxu0 0.0
        %7902 = vmatprep.subr.mxu0 0.0
        %7903 = vmatpush1.msra.mxu0 0.0
        %7904 = vmatprep.subr.mxu0 0.0
        %7905 = vmatpush1.msra.mxu0 0.0
        %7906 = vmatprep.subr.mxu0 0.0
        %7907 = vmatpush1.msra.mxu0 0.0
        %7908 = vmatprep.subr.mxu0 0.0
        %7909 = vmatpush1.msra.mxu0 0.0
        %7910 = vmatprep.subr.mxu0 0.0
        %7911 = vmatpush1.msra.mxu0 0.0
        %7912 = vmatprep.subr.mxu0 0.0
        %7913 = vmatpush1.msra.mxu0 0.0
        %7914 = vmatprep.subr.mxu0 0.0
        %7915 = vmatpush1.msra.mxu0 0.0
        %7916 = vmatprep.subr.mxu0 0.0
        %7917 = vmatpush1.msra.mxu0 0.0
        %7918 = vmatprep.subr.mxu0 0.0
        %7919 = vmatpush1.msra.mxu0 0.0
        %7920 = vmatprep.subr.mxu0 0.0
        %7921 = vmatpush1.msra.mxu0 0.0
        %7922 = vmatprep.mubr.f32.mxu0 0.0
        %v7923 = vand.u32 %v7549, 4294901760
        %v7924 = vsub.f32 %v7549, %v7923
        %7925 = vmatmul.mubr.f32.gmra.mrb[0].mxu0 %v7924
        %v7926 = vpop.f32.mrb[0].mxu0
        %v7927 = vadd.f32 %v7817, %v7926
        %v7928 = vpop.f32.mrb[0].mxu0
        %7929 = vmatprep.mubr.f32.mxu0 0.0
        %v7930 = vand.u32 %v7550, 4294901760
        %v7931 = vsub.f32 %v7550, %v7930
        %7932 = vmatmul.mubr.f32.gmra.mrb[0].mxu0 %v7931
        %v7933 = vpop.f32.mrb[0].mxu0
        %v7934 = vadd.f32 %v7823, %v7933
        %v7935 = vpop.f32.mrb[0].mxu0
        %7936 = vdwg.mxu0
        %7937 = vmatprep.subr.mxu0 0.0
        %v7938 = vand.u32 %v7552, 4294901760
        %7939 = vmatpush1.msra.mxu0 %v7938
        %7940 = vmatprep.subr.mxu0 0.0
        %v7941 = vand.u32 %v7553, 4294901760
        %7942 = vmatpush1.msra.mxu0 %v7941
        %7943 = vmatprep.subr.mxu0 0.0
        %v7944 = vand.u32 %v7554, 4294901760
        %7945 = vmatpush1.msra.mxu0 %v7944
        %7946 = vmatprep.subr.mxu0 0.0
        %v7947 = vand.u32 %v7555, 4294901760
        %7948 = vmatpush1.msra.mxu0 %v7947
        %7949 = vmatprep.subr.mxu0 0.0
        %v7950 = vand.u32 %v7556, 4294901760
        %7951 = vmatpush1.msra.mxu0 %v7950
        %7952 = vmatprep.subr.mxu0 0.0
        %v7953 = vand.u32 %v7557, 4294901760
        %7954 = vmatpush1.msra.mxu0 %v7953
        %7955 = vmatprep.subr.mxu0 0.0
        %v7956 = vand.u32 %v7558, 4294901760
        %7957 = vmatpush1.msra.mxu0 %v7956
        %7958 = vmatprep.subr.mxu0 0.0
        %v7959 = vand.u32 %v7559, 4294901760
        %7960 = vmatpush1.msra.mxu0 %v7959
        %7961 = vmatprep.subr.mxu0 0.0
        %v7962 = vand.u32 %v7560, 4294901760
        %7963 = vmatpush1.msra.mxu0 %v7962
        %7964 = vmatprep.subr.mxu0 0.0
        %v7965 = vand.u32 %v7561, 4294901760
        %7966 = vmatpush1.msra.mxu0 %v7965
        %7967 = vmatprep.subr.mxu0 0.0
        %v7968 = vand.u32 %v7562, 4294901760
        %7969 = vmatpush1.msra.mxu0 %v7968
        %7970 = vmatprep.subr.mxu0 0.0
        %v7971 = vand.u32 %v7563, 4294901760
        %7972 = vmatpush1.msra.mxu0 %v7971
        %7973 = vmatprep.subr.mxu0 0.0
        %v7974 = vand.u32 %v7564, 4294901760
        %7975 = vmatpush1.msra.mxu0 %v7974
        %7976 = vmatprep.subr.mxu0 0.0
        %v7977 = vand.u32 %v7565, 4294901760
        %7978 = vmatpush1.msra.mxu0 %v7977
        %7979 = vmatprep.subr.mxu0 0.0
        %v7980 = vand.u32 %v7566, 4294901760
        %7981 = vmatpush1.msra.mxu0 %v7980
        %7982 = vmatprep.subr.mxu0 0.0
        %v7983 = vand.u32 %v7567, 4294901760
        %7984 = vmatpush1.msra.mxu0 %v7983
        %7985 = vmatprep.subr.mxu0 0.0
        %7986 = vmatpush1.msra.mxu0 0.0
        %7987 = vmatprep.subr.mxu0 0.0
        %7988 = vmatpush1.msra.mxu0 0.0
        %7989 = vmatprep.subr.mxu0 0.0
        %7990 = vmatpush1.msra.mxu0 0.0
        %7991 = vmatprep.subr.mxu0 0.0
        %7992 = vmatpush1.msra.mxu0 0.0
        %7993 = vmatprep.subr.mxu0 0.0
        %7994 = vmatpush1.msra.mxu0 0.0
        %7995 = vmatprep.subr.mxu0 0.0
        %7996 = vmatpush1.msra.mxu0 0.0
        %7997 = vmatprep.subr.mxu0 0.0
        %7998 = vmatpush1.msra.mxu0 0.0
        %7999 = vmatprep.subr.mxu0 0.0
        %8000 = vmatpush1.msra.mxu0 0.0
        %8001 = vmatprep.subr.mxu0 0.0
        %8002 = vmatpush1.msra.mxu0 0.0
        %8003 = vmatprep.subr.mxu0 0.0
        %8004 = vmatpush1.msra.mxu0 0.0
        %8005 = vmatprep.subr.mxu0 0.0
        %8006 = vmatpush1.msra.mxu0 0.0
        %8007 = vmatprep.subr.mxu0 0.0
        %8008 = vmatpush1.msra.mxu0 0.0
        %8009 = vmatprep.subr.mxu0 0.0
        %8010 = vmatpush1.msra.mxu0 0.0
        %8011 = vmatprep.subr.mxu0 0.0
        %8012 = vmatpush1.msra.mxu0 0.0
        %8013 = vmatprep.subr.mxu0 0.0
        %8014 = vmatpush1.msra.mxu0 0.0
        %8015 = vmatprep.subr.mxu0 0.0
        %8016 = vmatpush1.msra.mxu0 0.0
        %8017 = vmatprep.mubr.f32.mxu0 0.0
        %v8018 = vand.u32 %v7549, 4294901760
        %v8019 = vsub.f32 %v7549, %v8018
        %v8020 = vand.u32 %v8019, 4294901760
        %8021 = vmatmul.mubr.f32.gmra.mrb[0].mxu0 %v8020
        %v8022 = vpop.f32.mrb[0].mxu0
        %v8023 = vadd.f32 %v7927, %v8022
        %v8024 = vpop.f32.mrb[0].mxu0
        %8025 = vmatprep.mubr.f32.mxu0 0.0
        %v8026 = vand.u32 %v7550, 4294901760
        %v8027 = vsub.f32 %v7550, %v8026
        %v8028 = vand.u32 %v8027, 4294901760
        %8029 = vmatmul.mubr.f32.gmra.mrb[0].mxu0 %v8028
        %v8030 = vpop.f32.mrb[0].mxu0
        %v8031 = vadd.f32 %v7934, %v8030
        %v8032 = vpop.f32.mrb[0].mxu0
        %8033 = vdwg.mxu0
        %8034 = vmatprep.subr.mxu0 0.0
        %v8035 = vand.u32 %v7552, 4294901760
        %v8036 = vsub.f32 %v7552, %v8035
        %v8037 = vand.u32 %v8036, 4294901760
        %8038 = vmatpush1.msra.mxu0 %v8037
        %8039 = vmatprep.subr.mxu0 0.0
        %v8040 = vand.u32 %v7553, 4294901760
        %v8041 = vsub.f32 %v7553, %v8040
        %v8042 = vand.u32 %v8041, 4294901760
        %8043 = vmatpush1.msra.mxu0 %v8042
        %8044 = vmatprep.subr.mxu0 0.0
        %v8045 = vand.u32 %v7554, 4294901760
        %v8046 = vsub.f32 %v7554, %v8045
        %v8047 = vand.u32 %v8046, 4294901760
        %8048 = vmatpush1.msra.mxu0 %v8047
        %8049 = vmatprep.subr.mxu0 0.0
        %v8050 = vand.u32 %v7555, 4294901760
        %v8051 = vsub.f32 %v7555, %v8050
        %v8052 = vand.u32 %v8051, 4294901760
        %8053 = vmatpush1.msra.mxu0 %v8052
        %8054 = vmatprep.subr.mxu0 0.0
        %v8055 = vand.u32 %v7556, 4294901760
        %v8056 = vsub.f32 %v7556, %v8055
        %v8057 = vand.u32 %v8056, 4294901760
        %8058 = vmatpush1.msra.mxu0 %v8057
        %8059 = vmatprep.subr.mxu0 0.0
        %v8060 = vand.u32 %v7557, 4294901760
        %v8061 = vsub.f32 %v7557, %v8060
        %v8062 = vand.u32 %v8061, 4294901760
        %8063 = vmatpush1.msra.mxu0 %v8062
        %8064 = vmatprep.subr.mxu0 0.0
        %v8065 = vand.u32 %v7558, 4294901760
        %v8066 = vsub.f32 %v7558, %v8065
        %v8067 = vand.u32 %v8066, 4294901760
        %8068 = vmatpush1.msra.mxu0 %v8067
        %8069 = vmatprep.subr.mxu0 0.0
        %v8070 = vand.u32 %v7559, 4294901760
        %v8071 = vsub.f32 %v7559, %v8070
        %v8072 = vand.u32 %v8071, 4294901760
        %8073 = vmatpush1.msra.mxu0 %v8072
        %8074 = vmatprep.subr.mxu0 0.0
        %v8075 = vand.u32 %v7560, 4294901760
        %v8076 = vsub.f32 %v7560, %v8075
        %v8077 = vand.u32 %v8076, 4294901760
        %8078 = vmatpush1.msra.mxu0 %v8077
        %8079 = vmatprep.subr.mxu0 0.0
        %v8080 = vand.u32 %v7561, 4294901760
        %v8081 = vsub.f32 %v7561, %v8080
        %v8082 = vand.u32 %v8081, 4294901760
        %8083 = vmatpush1.msra.mxu0 %v8082
        %8084 = vmatprep.subr.mxu0 0.0
        %v8085 = vand.u32 %v7562, 4294901760
        %v8086 = vsub.f32 %v7562, %v8085
        %v8087 = vand.u32 %v8086, 4294901760
        %8088 = vmatpush1.msra.mxu0 %v8087
        %8089 = vmatprep.subr.mxu0 0.0
        %v8090 = vand.u32 %v7563, 4294901760
        %v8091 = vsub.f32 %v7563, %v8090
        %v8092 = vand.u32 %v8091, 4294901760
        %8093 = vmatpush1.msra.mxu0 %v8092
        %8094 = vmatprep.subr.mxu0 0.0
        %v8095 = vand.u32 %v7564, 4294901760
        %v8096 = vsub.f32 %v7564, %v8095
        %v8097 = vand.u32 %v8096, 4294901760
        %8098 = vmatpush1.msra.mxu0 %v8097
        %8099 = vmatprep.subr.mxu0 0.0
        %v8100 = vand.u32 %v7565, 4294901760
        %v8101 = vsub.f32 %v7565, %v8100
        %v8102 = vand.u32 %v8101, 4294901760
        %8103 = vmatpush1.msra.mxu0 %v8102
        %8104 = vmatprep.subr.mxu0 0.0
        %v8105 = vand.u32 %v7566, 4294901760
        %v8106 = vsub.f32 %v7566, %v8105
        %v8107 = vand.u32 %v8106, 4294901760
        %8108 = vmatpush1.msra.mxu0 %v8107
        %8109 = vmatprep.subr.mxu0 0.0
        %v8110 = vand.u32 %v7567, 4294901760
        %v8111 = vsub.f32 %v7567, %v8110
        %v8112 = vand.u32 %v8111, 4294901760
        %8113 = vmatpush1.msra.mxu0 %v8112
        %8114 = vmatprep.subr.mxu0 0.0
        %8115 = vmatpush1.msra.mxu0 0.0
        %8116 = vmatprep.subr.mxu0 0.0
        %8117 = vmatpush1.msra.mxu0 0.0
        %8118 = vmatprep.subr.mxu0 0.0
        %8119 = vmatpush1.msra.mxu0 0.0
        %8120 = vmatprep.subr.mxu0 0.0
        %8121 = vmatpush1.msra.mxu0 0.0
        %8122 = vmatprep.subr.mxu0 0.0
        %8123 = vmatpush1.msra.mxu0 0.0
        %8124 = vmatprep.subr.mxu0 0.0
        %8125 = vmatpush1.msra.mxu0 0.0
        %8126 = vmatprep.subr.mxu0 0.0
        %8127 = vmatpush1.msra.mxu0 0.0
        %8128 = vmatprep.subr.mxu0 0.0
        %8129 = vmatpush1.msra.mxu0 0.0
        %8130 = vmatprep.subr.mxu0 0.0
        %8131 = vmatpush1.msra.mxu0 0.0
        %8132 = vmatprep.subr.mxu0 0.0
        %8133 = vmatpush1.msra.mxu0 0.0
        %8134 = vmatprep.subr.mxu0 0.0
        %8135 = vmatpush1.msra.mxu0 0.0
        %8136 = vmatprep.subr.mxu0 0.0
        %8137 = vmatpush1.msra.mxu0 0.0
        %8138 = vmatprep.subr.mxu0 0.0
        %8139 = vmatpush1.msra.mxu0 0.0
        %8140 = vmatprep.subr.mxu0 0.0
        %8141 = vmatpush1.msra.mxu0 0.0
        %8142 = vmatprep.subr.mxu0 0.0
        %8143 = vmatpush1.msra.mxu0 0.0
        %8144 = vmatprep.subr.mxu0 0.0
        %8145 = vmatpush1.msra.mxu0 0.0
        %8146 = vmatprep.mubr.f32.mxu0 0.0
        %v8147 = vand.u32 %v7549, 4294901760
        %8148 = vmatmul.mubr.f32.gmra.mrb[0].mxu0 %v8147
        %v8149 = vpop.f32.mrb[0].mxu0
        %v8150 = vadd.f32 %v8023, %v8149
        %v8151 = vpop.f32.mrb[0].mxu0
        %8152 = vmatprep.mubr.f32.mxu0 0.0
        %v8153 = vand.u32 %v7550, 4294901760
        %8154 = vmatmul.mubr.f32.gmra.mrb[0].mxu0 %v8153
        %v8155 = vpop.f32.mrb[0].mxu0
        %v8156 = vadd.f32 %v8031, %v8155
        %v8157 = vpop.f32.mrb[0].mxu0
        %8158 = vdwg.mxu0
        %8159 = vmatprep.subr.mxu0 0.0
        %v8160 = vand.u32 %v7552, 4294901760
        %8161 = vmatpush1.msra.mxu0 %v8160
        %8162 = vmatprep.subr.mxu0 0.0
        %v8163 = vand.u32 %v7553, 4294901760
        %8164 = vmatpush1.msra.mxu0 %v8163
        %8165 = vmatprep.subr.mxu0 0.0
        %v8166 = vand.u32 %v7554, 4294901760
        %8167 = vmatpush1.msra.mxu0 %v8166
        %8168 = vmatprep.subr.mxu0 0.0
        %v8169 = vand.u32 %v7555, 4294901760
        %8170 = vmatpush1.msra.mxu0 %v8169
        %8171 = vmatprep.subr.mxu0 0.0
        %v8172 = vand.u32 %v7556, 4294901760
        %8173 = vmatpush1.msra.mxu0 %v8172
        %8174 = vmatprep.subr.mxu0 0.0
        %v8175 = vand.u32 %v7557, 4294901760
        %8176 = vmatpush1.msra.mxu0 %v8175
        %8177 = vmatprep.subr.mxu0 0.0
        %v8178 = vand.u32 %v7558, 4294901760
        %8179 = vmatpush1.msra.mxu0 %v8178
        %8180 = vmatprep.subr.mxu0 0.0
        %v8181 = vand.u32 %v7559, 4294901760
        %8182 = vmatpush1.msra.mxu0 %v8181
        %8183 = vmatprep.subr.mxu0 0.0
        %v8184 = vand.u32 %v7560, 4294901760
        %8185 = vmatpush1.msra.mxu0 %v8184
        %8186 = vmatprep.subr.mxu0 0.0
        %v8187 = vand.u32 %v7561, 4294901760
        %8188 = vmatpush1.msra.mxu0 %v8187
        %8189 = vmatprep.subr.mxu0 0.0
        %v8190 = vand.u32 %v7562, 4294901760
        %8191 = vmatpush1.msra.mxu0 %v8190
        %8192 = vmatprep.subr.mxu0 0.0
        %v8193 = vand.u32 %v7563, 4294901760
        %8194 = vmatpush1.msra.mxu0 %v8193
        %8195 = vmatprep.subr.mxu0 0.0
        %v8196 = vand.u32 %v7564, 4294901760
        %8197 = vmatpush1.msra.mxu0 %v8196
        %8198 = vmatprep.subr.mxu0 0.0
        %v8199 = vand.u32 %v7565, 4294901760
        %8200 = vmatpush1.msra.mxu0 %v8199
        %8201 = vmatprep.subr.mxu0 0.0
        %v8202 = vand.u32 %v7566, 4294901760
        %8203 = vmatpush1.msra.mxu0 %v8202
        %8204 = vmatprep.subr.mxu0 0.0
        %v8205 = vand.u32 %v7567, 4294901760
        %8206 = vmatpush1.msra.mxu0 %v8205
        %8207 = vmatprep.subr.mxu0 0.0
        %8208 = vmatpush1.msra.mxu0 0.0
        %8209 = vmatprep.subr.mxu0 0.0
        %8210 = vmatpush1.msra.mxu0 0.0
        %8211 = vmatprep.subr.mxu0 0.0
        %8212 = vmatpush1.msra.mxu0 0.0
        %8213 = vmatprep.subr.mxu0 0.0
        %8214 = vmatpush1.msra.mxu0 0.0
        %8215 = vmatprep.subr.mxu0 0.0
        %8216 = vmatpush1.msra.mxu0 0.0
        %8217 = vmatprep.subr.mxu0 0.0
        %8218 = vmatpush1.msra.mxu0 0.0
        %8219 = vmatprep.subr.mxu0 0.0
        %8220 = vmatpush1.msra.mxu0 0.0
        %8221 = vmatprep.subr.mxu0 0.0
        %8222 = vmatpush1.msra.mxu0 0.0
        %8223 = vmatprep.subr.mxu0 0.0
        %8224 = vmatpush1.msra.mxu0 0.0
        %8225 = vmatprep.subr.mxu0 0.0
        %8226 = vmatpush1.msra.mxu0 0.0
        %8227 = vmatprep.subr.mxu0 0.0
        %8228 = vmatpush1.msra.mxu0 0.0
        %8229 = vmatprep.subr.mxu0 0.0
        %8230 = vmatpush1.msra.mxu0 0.0
        %8231 = vmatprep.subr.mxu0 0.0
        %8232 = vmatpush1.msra.mxu0 0.0
        %8233 = vmatprep.subr.mxu0 0.0
        %8234 = vmatpush1.msra.mxu0 0.0
        %8235 = vmatprep.subr.mxu0 0.0
        %8236 = vmatpush1.msra.mxu0 0.0
        %8237 = vmatprep.subr.mxu0 0.0
        %8238 = vmatpush1.msra.mxu0 0.0
        %8239 = vmatprep.mubr.f32.mxu0 0.0
        %v8240 = vand.u32 %v7549, 4294901760
        %8241 = vmatmul.mubr.f32.gmra.mrb[0].mxu0 %v8240
        %v8242 = vpop.f32.mrb[0].mxu0
        %v8243 = vadd.f32 %v8150, %v8242
        %v8244 = vpop.f32.mrb[0].mxu0
        %8245 = vmatprep.mubr.f32.mxu0 0.0
        %v8246 = vand.u32 %v7550, 4294901760
        %8247 = vmatmul.mubr.f32.gmra.mrb[0].mxu0 %v8246
        %v8248 = vpop.f32.mrb[0].mxu0
        %v8249 = vadd.f32 %v8156, %v8248
        %v8250 = vpop.f32.mrb[0].mxu0
        %8251 = vdwg.mxu0
        %8252 = vmatprep.subr.mxu0 0.0
        %v8253 = vand.u32 %v7533, 4294901760
        %8254 = vmatpush1.msra.mxu0 %v8253
        %8255 = vmatprep.subr.mxu0 0.0
        %v8256 = vand.u32 %v7534, 4294901760
        %8257 = vmatpush1.msra.mxu0 %v8256
        %8258 = vmatprep.subr.mxu0 0.0
        %v8259 = vand.u32 %v7535, 4294901760
        %8260 = vmatpush1.msra.mxu0 %v8259
        %8261 = vmatprep.subr.mxu0 0.0
        %v8262 = vand.u32 %v7536, 4294901760
        %8263 = vmatpush1.msra.mxu0 %v8262
        %8264 = vmatprep.subr.mxu0 0.0
        %v8265 = vand.u32 %v7537, 4294901760
        %8266 = vmatpush1.msra.mxu0 %v8265
        %8267 = vmatprep.subr.mxu0 0.0
        %v8268 = vand.u32 %v7538, 4294901760
        %8269 = vmatpush1.msra.mxu0 %v8268
        %8270 = vmatprep.subr.mxu0 0.0
        %v8271 = vand.u32 %v7539, 4294901760
        %8272 = vmatpush1.msra.mxu0 %v8271
        %8273 = vmatprep.subr.mxu0 0.0
        %v8274 = vand.u32 %v7540, 4294901760
        %8275 = vmatpush1.msra.mxu0 %v8274
        %8276 = vmatprep.subr.mxu0 0.0
        %v8277 = vand.u32 %v7541, 4294901760
        %8278 = vmatpush1.msra.mxu0 %v8277
        %8279 = vmatprep.subr.mxu0 0.0
        %v8280 = vand.u32 %v7542, 4294901760
        %8281 = vmatpush1.msra.mxu0 %v8280
        %8282 = vmatprep.subr.mxu0 0.0
        %v8283 = vand.u32 %v7543, 4294901760
        %8284 = vmatpush1.msra.mxu0 %v8283
        %8285 = vmatprep.subr.mxu0 0.0
        %v8286 = vand.u32 %v7544, 4294901760
        %8287 = vmatpush1.msra.mxu0 %v8286
        %8288 = vmatprep.subr.mxu0 0.0
        %v8289 = vand.u32 %v7545, 4294901760
        %8290 = vmatpush1.msra.mxu0 %v8289
        %8291 = vmatprep.subr.mxu0 0.0
        %v8292 = vand.u32 %v7546, 4294901760
        %8293 = vmatpush1.msra.mxu0 %v8292
        %8294 = vmatprep.subr.mxu0 0.0
        %v8295 = vand.u32 %v7547, 4294901760
        %8296 = vmatpush1.msra.mxu0 %v8295
        %8297 = vmatprep.subr.mxu0 0.0
        %v8298 = vand.u32 %v7548, 4294901760
        %8299 = vmatpush1.msra.mxu0 %v8298
        %8300 = vmatprep.subr.mxu0 0.0
        %8301 = vmatpush1.msra.mxu0 0.0
        %8302 = vmatprep.subr.mxu0 0.0
        %8303 = vmatpush1.msra.mxu0 0.0
        %8304 = vmatprep.subr.mxu0 0.0
        %8305 = vmatpush1.msra.mxu0 0.0
        %8306 = vmatprep.subr.mxu0 0.0
        %8307 = vmatpush1.msra.mxu0 0.0
        %8308 = vmatprep.subr.mxu0 0.0
        %8309 = vmatpush1.msra.mxu0 0.0
        %8310 = vmatprep.subr.mxu0 0.0
        %8311 = vmatpush1.msra.mxu0 0.0
        %8312 = vmatprep.subr.mxu0 0.0
        %8313 = vmatpush1.msra.mxu0 0.0
        %8314 = vmatprep.subr.mxu0 0.0
        %8315 = vmatpush1.msra.mxu0 0.0
        %8316 = vmatprep.subr.mxu0 0.0
        %8317 = vmatpush1.msra.mxu0 0.0
        %8318 = vmatprep.subr.mxu0 0.0
        %8319 = vmatpush1.msra.mxu0 0.0
        %8320 = vmatprep.subr.mxu0 0.0
        %8321 = vmatpush1.msra.mxu0 0.0
        %8322 = vmatprep.subr.mxu0 0.0
        %8323 = vmatpush1.msra.mxu0 0.0
        %8324 = vmatprep.subr.mxu0 0.0
        %8325 = vmatpush1.msra.mxu0 0.0
        %8326 = vmatprep.subr.mxu0 0.0
        %8327 = vmatpush1.msra.mxu0 0.0
        %8328 = vmatprep.subr.mxu0 0.0
        %8329 = vmatpush1.msra.mxu0 0.0
        %8330 = vmatprep.subr.mxu0 0.0
        %8331 = vmatpush1.msra.mxu0 0.0
        %8332 = vmatprep.mubr.f32.mxu0 0.0
        %v8333 = vand.u32 %v7531, 4294901760
        %v8334 = vsub.f32 %v7531, %v8333
        %v8335 = vand.u32 %v8334, 4294901760
        %v8336 = vsub.f32 %v8334, %v8335
        %v8337 = vand.u32 %v8336, 4294901760
        %8338 = vmatmul.mubr.f32.gmra.mrb[0].mxu0 %v8337
        %v8339 = vpop.f32.mrb[0].mxu0
        %v8340 = vadd.f32 %v8243, %v8339
        %v8341 = vpop.f32.mrb[0].mxu0
        %8342 = vmatprep.mubr.f32.mxu0 0.0
        %v8343 = vand.u32 %v7532, 4294901760
        %v8344 = vsub.f32 %v7532, %v8343
        %v8345 = vand.u32 %v8344, 4294901760
        %v8346 = vsub.f32 %v8344, %v8345
        %v8347 = vand.u32 %v8346, 4294901760
        %8348 = vmatmul.mubr.f32.gmra.mrb[0].mxu0 %v8347
        %v8349 = vpop.f32.mrb[0].mxu0
        %v8350 = vadd.f32 %v8249, %v8349
        %v8351 = vpop.f32.mrb[0].mxu0
        %8352 = vdwg.mxu0
        %8353 = vmatprep.subr.mxu0 0.0
        %v8354 = vand.u32 %v7533, 4294901760
        %v8355 = vsub.f32 %v7533, %v8354
        %v8356 = vand.u32 %v8355, 4294901760
        %v8357 = vsub.f32 %v8355, %v8356
        %v8358 = vand.u32 %v8357, 4294901760
        %8359 = vmatpush1.msra.mxu0 %v8358
        %8360 = vmatprep.subr.mxu0 0.0
        %v8361 = vand.u32 %v7534, 4294901760
        %v8362 = vsub.f32 %v7534, %v8361
        %v8363 = vand.u32 %v8362, 4294901760
        %v8364 = vsub.f32 %v8362, %v8363
        %v8365 = vand.u32 %v8364, 4294901760
        %8366 = vmatpush1.msra.mxu0 %v8365
        %8367 = vmatprep.subr.mxu0 0.0
        %v8368 = vand.u32 %v7535, 4294901760
        %v8369 = vsub.f32 %v7535, %v8368
        %v8370 = vand.u32 %v8369, 4294901760
        %v8371 = vsub.f32 %v8369, %v8370
        %v8372 = vand.u32 %v8371, 4294901760
        %8373 = vmatpush1.msra.mxu0 %v8372
        %8374 = vmatprep.subr.mxu0 0.0
        %v8375 = vand.u32 %v7536, 4294901760
        %v8376 = vsub.f32 %v7536, %v8375
        %v8377 = vand.u32 %v8376, 4294901760
        %v8378 = vsub.f32 %v8376, %v8377
        %v8379 = vand.u32 %v8378, 4294901760
        %8380 = vmatpush1.msra.mxu0 %v8379
        %8381 = vmatprep.subr.mxu0 0.0
        %v8382 = vand.u32 %v7537, 4294901760
        %v8383 = vsub.f32 %v7537, %v8382
        %v8384 = vand.u32 %v8383, 4294901760
        %v8385 = vsub.f32 %v8383, %v8384
        %v8386 = vand.u32 %v8385, 4294901760
        %8387 = vmatpush1.msra.mxu0 %v8386
        %8388 = vmatprep.subr.mxu0 0.0
        %v8389 = vand.u32 %v7538, 4294901760
        %v8390 = vsub.f32 %v7538, %v8389
        %v8391 = vand.u32 %v8390, 4294901760
        %v8392 = vsub.f32 %v8390, %v8391
        %v8393 = vand.u32 %v8392, 4294901760
        %8394 = vmatpush1.msra.mxu0 %v8393
        %8395 = vmatprep.subr.mxu0 0.0
        %v8396 = vand.u32 %v7539, 4294901760
        %v8397 = vsub.f32 %v7539, %v8396
        %v8398 = vand.u32 %v8397, 4294901760
        %v8399 = vsub.f32 %v8397, %v8398
        %v8400 = vand.u32 %v8399, 4294901760
        %8401 = vmatpush1.msra.mxu0 %v8400
        %8402 = vmatprep.subr.mxu0 0.0
        %v8403 = vand.u32 %v7540, 4294901760
        %v8404 = vsub.f32 %v7540, %v8403
        %v8405 = vand.u32 %v8404, 4294901760
        %v8406 = vsub.f32 %v8404, %v8405
        %v8407 = vand.u32 %v8406, 4294901760
        %8408 = vmatpush1.msra.mxu0 %v8407
        %8409 = vmatprep.subr.mxu0 0.0
        %v8410 = vand.u32 %v7541, 4294901760
        %v8411 = vsub.f32 %v7541, %v8410
        %v8412 = vand.u32 %v8411, 4294901760
        %v8413 = vsub.f32 %v8411, %v8412
        %v8414 = vand.u32 %v8413, 4294901760
        %8415 = vmatpush1.msra.mxu0 %v8414
        %8416 = vmatprep.subr.mxu0 0.0
        %v8417 = vand.u32 %v7542, 4294901760
        %v8418 = vsub.f32 %v7542, %v8417
        %v8419 = vand.u32 %v8418, 4294901760
        %v8420 = vsub.f32 %v8418, %v8419
        %v8421 = vand.u32 %v8420, 4294901760
        %8422 = vmatpush1.msra.mxu0 %v8421
        %8423 = vmatprep.subr.mxu0 0.0
        %v8424 = vand.u32 %v7543, 4294901760
        %v8425 = vsub.f32 %v7543, %v8424
        %v8426 = vand.u32 %v8425, 4294901760
        %v8427 = vsub.f32 %v8425, %v8426
        %v8428 = vand.u32 %v8427, 4294901760
        %8429 = vmatpush1.msra.mxu0 %v8428
        %8430 = vmatprep.subr.mxu0 0.0
        %v8431 = vand.u32 %v7544, 4294901760
        %v8432 = vsub.f32 %v7544, %v8431
        %v8433 = vand.u32 %v8432, 4294901760
        %v8434 = vsub.f32 %v8432, %v8433
        %v8435 = vand.u32 %v8434, 4294901760
        %8436 = vmatpush1.msra.mxu0 %v8435
        %8437 = vmatprep.subr.mxu0 0.0
        %v8438 = vand.u32 %v7545, 4294901760
        %v8439 = vsub.f32 %v7545, %v8438
        %v8440 = vand.u32 %v8439, 4294901760
        %v8441 = vsub.f32 %v8439, %v8440
        %v8442 = vand.u32 %v8441, 4294901760
        %8443 = vmatpush1.msra.mxu0 %v8442
        %8444 = vmatprep.subr.mxu0 0.0
        %v8445 = vand.u32 %v7546, 4294901760
        %v8446 = vsub.f32 %v7546, %v8445
        %v8447 = vand.u32 %v8446, 4294901760
        %v8448 = vsub.f32 %v8446, %v8447
        %v8449 = vand.u32 %v8448, 4294901760
        %8450 = vmatpush1.msra.mxu0 %v8449
        %8451 = vmatprep.subr.mxu0 0.0
        %v8452 = vand.u32 %v7547, 4294901760
        %v8453 = vsub.f32 %v7547, %v8452
        %v8454 = vand.u32 %v8453, 4294901760
        %v8455 = vsub.f32 %v8453, %v8454
        %v8456 = vand.u32 %v8455, 4294901760
        %8457 = vmatpush1.msra.mxu0 %v8456
        %8458 = vmatprep.subr.mxu0 0.0
        %v8459 = vand.u32 %v7548, 4294901760
        %v8460 = vsub.f32 %v7548, %v8459
        %v8461 = vand.u32 %v8460, 4294901760
        %v8462 = vsub.f32 %v8460, %v8461
        %v8463 = vand.u32 %v8462, 4294901760
        %8464 = vmatpush1.msra.mxu0 %v8463
        %8465 = vmatprep.subr.mxu0 0.0
        %8466 = vmatpush1.msra.mxu0 0.0
        %8467 = vmatprep.subr.mxu0 0.0
        %8468 = vmatpush1.msra.mxu0 0.0
        %8469 = vmatprep.subr.mxu0 0.0
        %8470 = vmatpush1.msra.mxu0 0.0
        %8471 = vmatprep.subr.mxu0 0.0
        %8472 = vmatpush1.msra.mxu0 0.0
        %8473 = vmatprep.subr.mxu0 0.0
        %8474 = vmatpush1.msra.mxu0 0.0
        %8475 = vmatprep.subr.mxu0 0.0
        %8476 = vmatpush1.msra.mxu0 0.0
        %8477 = vmatprep.subr.mxu0 0.0
        %8478 = vmatpush1.msra.mxu0 0.0
        %8479 = vmatprep.subr.mxu0 0.0
        %8480 = vmatpush1.msra.mxu0 0.0
        %8481 = vmatprep.subr.mxu0 0.0
        %8482 = vmatpush1.msra.mxu0 0.0
        %8483 = vmatprep.subr.mxu0 0.0
        %8484 = vmatpush1.msra.mxu0 0.0
        %8485 = vmatprep.subr.mxu0 0.0
        %8486 = vmatpush1.msra.mxu0 0.0
        %8487 = vmatprep.subr.mxu0 0.0
        %8488 = vmatpush1.msra.mxu0 0.0
        %8489 = vmatprep.subr.mxu0 0.0
        %8490 = vmatpush1.msra.mxu0 0.0
        %8491 = vmatprep.subr.mxu0 0.0
        %8492 = vmatpush1.msra.mxu0 0.0
        %8493 = vmatprep.subr.mxu0 0.0
        %8494 = vmatpush1.msra.mxu0 0.0
        %8495 = vmatprep.subr.mxu0 0.0
        %8496 = vmatpush1.msra.mxu0 0.0
        %8497 = vmatprep.mubr.f32.mxu0 0.0
        %v8498 = vand.u32 %v7531, 4294901760
        %8499 = vmatmul.mubr.f32.gmra.mrb[0].mxu0 %v8498
        %v8500 = vpop.f32.mrb[0].mxu0
        %v8501 = vadd.f32 %v8340, %v8500
        %v8502 = vpop.f32.mrb[0].mxu0
        %8503 = vmatprep.mubr.f32.mxu0 0.0
        %v8504 = vand.u32 %v7532, 4294901760
        %8505 = vmatmul.mubr.f32.gmra.mrb[0].mxu0 %v8504
        %v8506 = vpop.f32.mrb[0].mxu0
        %v8507 = vadd.f32 %v8350, %v8506
        %v8508 = vpop.f32.mrb[0].mxu0
        %8509 = vdwg.mxu0
        %8510 = vmatprep.subr.mxu0 0.0
        %v8511 = vand.u32 %v7533, 4294901760
        %v8512 = vsub.f32 %v7533, %v8511
        %8513 = vmatpush1.msra.mxu0 %v8512
        %8514 = vmatprep.subr.mxu0 0.0
        %v8515 = vand.u32 %v7534, 4294901760
        %v8516 = vsub.f32 %v7534, %v8515
        %8517 = vmatpush1.msra.mxu0 %v8516
        %8518 = vmatprep.subr.mxu0 0.0
        %v8519 = vand.u32 %v7535, 4294901760
        %v8520 = vsub.f32 %v7535, %v8519
        %8521 = vmatpush1.msra.mxu0 %v8520
        %8522 = vmatprep.subr.mxu0 0.0
        %v8523 = vand.u32 %v7536, 4294901760
        %v8524 = vsub.f32 %v7536, %v8523
        %8525 = vmatpush1.msra.mxu0 %v8524
        %8526 = vmatprep.subr.mxu0 0.0
        %v8527 = vand.u32 %v7537, 4294901760
        %v8528 = vsub.f32 %v7537, %v8527
        %8529 = vmatpush1.msra.mxu0 %v8528
        %8530 = vmatprep.subr.mxu0 0.0
        %v8531 = vand.u32 %v7538, 4294901760
        %v8532 = vsub.f32 %v7538, %v8531
        %8533 = vmatpush1.msra.mxu0 %v8532
        %8534 = vmatprep.subr.mxu0 0.0
        %v8535 = vand.u32 %v7539, 4294901760
        %v8536 = vsub.f32 %v7539, %v8535
        %8537 = vmatpush1.msra.mxu0 %v8536
        %8538 = vmatprep.subr.mxu0 0.0
        %v8539 = vand.u32 %v7540, 4294901760
        %v8540 = vsub.f32 %v7540, %v8539
        %8541 = vmatpush1.msra.mxu0 %v8540
        %8542 = vmatprep.subr.mxu0 0.0
        %v8543 = vand.u32 %v7541, 4294901760
        %v8544 = vsub.f32 %v7541, %v8543
        %8545 = vmatpush1.msra.mxu0 %v8544
        %8546 = vmatprep.subr.mxu0 0.0
        %v8547 = vand.u32 %v7542, 4294901760
        %v8548 = vsub.f32 %v7542, %v8547
        %8549 = vmatpush1.msra.mxu0 %v8548
        %8550 = vmatprep.subr.mxu0 0.0
        %v8551 = vand.u32 %v7543, 4294901760
        %v8552 = vsub.f32 %v7543, %v8551
        %8553 = vmatpush1.msra.mxu0 %v8552
        %8554 = vmatprep.subr.mxu0 0.0
        %v8555 = vand.u32 %v7544, 4294901760
        %v8556 = vsub.f32 %v7544, %v8555
        %8557 = vmatpush1.msra.mxu0 %v8556
        %8558 = vmatprep.subr.mxu0 0.0
        %v8559 = vand.u32 %v7545, 4294901760
        %v8560 = vsub.f32 %v7545, %v8559
        %8561 = vmatpush1.msra.mxu0 %v8560
        %8562 = vmatprep.subr.mxu0 0.0
        %v8563 = vand.u32 %v7546, 4294901760
        %v8564 = vsub.f32 %v7546, %v8563
        %8565 = vmatpush1.msra.mxu0 %v8564
        %8566 = vmatprep.subr.mxu0 0.0
        %v8567 = vand.u32 %v7547, 4294901760
        %v8568 = vsub.f32 %v7547, %v8567
        %8569 = vmatpush1.msra.mxu0 %v8568
        %8570 = vmatprep.subr.mxu0 0.0
        %v8571 = vand.u32 %v7548, 4294901760
        %v8572 = vsub.f32 %v7548, %v8571
        %8573 = vmatpush1.msra.mxu0 %v8572
        %8574 = vmatprep.subr.mxu0 0.0
        %8575 = vmatpush1.msra.mxu0 0.0
        %8576 = vmatprep.subr.mxu0 0.0
        %8577 = vmatpush1.msra.mxu0 0.0
        %8578 = vmatprep.subr.mxu0 0.0
        %8579 = vmatpush1.msra.mxu0 0.0
        %8580 = vmatprep.subr.mxu0 0.0
        %8581 = vmatpush1.msra.mxu0 0.0
        %8582 = vmatprep.subr.mxu0 0.0
        %8583 = vmatpush1.msra.mxu0 0.0
        %8584 = vmatprep.subr.mxu0 0.0
        %8585 = vmatpush1.msra.mxu0 0.0
        %8586 = vmatprep.subr.mxu0 0.0
        %8587 = vmatpush1.msra.mxu0 0.0
        %8588 = vmatprep.subr.mxu0 0.0
        %8589 = vmatpush1.msra.mxu0 0.0
        %8590 = vmatprep.subr.mxu0 0.0
        %8591 = vmatpush1.msra.mxu0 0.0
        %8592 = vmatprep.subr.mxu0 0.0
        %8593 = vmatpush1.msra.mxu0 0.0
        %8594 = vmatprep.subr.mxu0 0.0
        %8595 = vmatpush1.msra.mxu0 0.0
        %8596 = vmatprep.subr.mxu0 0.0
        %8597 = vmatpush1.msra.mxu0 0.0
        %8598 = vmatprep.subr.mxu0 0.0
        %8599 = vmatpush1.msra.mxu0 0.0
        %8600 = vmatprep.subr.mxu0 0.0
        %8601 = vmatpush1.msra.mxu0 0.0
        %8602 = vmatprep.subr.mxu0 0.0
        %8603 = vmatpush1.msra.mxu0 0.0
        %8604 = vmatprep.subr.mxu0 0.0
        %8605 = vmatpush1.msra.mxu0 0.0
        %8606 = vmatprep.mubr.f32.mxu0 0.0
        %v8607 = vand.u32 %v7531, 4294901760
        %v8608 = vsub.f32 %v7531, %v8607
        %8609 = vmatmul.mubr.f32.gmra.mrb[0].mxu0 %v8608
        %v8610 = vpop.f32.mrb[0].mxu0
        %v8611 = vadd.f32 %v8501, %v8610
        %v8612 = vpop.f32.mrb[0].mxu0
        %8613 = vmatprep.mubr.f32.mxu0 0.0
        %v8614 = vand.u32 %v7532, 4294901760
        %v8615 = vsub.f32 %v7532, %v8614
        %8616 = vmatmul.mubr.f32.gmra.mrb[0].mxu0 %v8615
        %v8617 = vpop.f32.mrb[0].mxu0
        %v8618 = vadd.f32 %v8507, %v8617
        %v8619 = vpop.f32.mrb[0].mxu0
        %8620 = vdwg.mxu0
        %8621 = vmatprep.subr.mxu0 0.0
        %v8622 = vand.u32 %v7533, 4294901760
        %8623 = vmatpush1.msra.mxu0 %v8622
        %8624 = vmatprep.subr.mxu0 0.0
        %v8625 = vand.u32 %v7534, 4294901760
        %8626 = vmatpush1.msra.mxu0 %v8625
        %8627 = vmatprep.subr.mxu0 0.0
        %v8628 = vand.u32 %v7535, 4294901760
        %8629 = vmatpush1.msra.mxu0 %v8628
        %8630 = vmatprep.subr.mxu0 0.0
        %v8631 = vand.u32 %v7536, 4294901760
        %8632 = vmatpush1.msra.mxu0 %v8631
        %8633 = vmatprep.subr.mxu0 0.0
        %v8634 = vand.u32 %v7537, 4294901760
        %8635 = vmatpush1.msra.mxu0 %v8634
        %8636 = vmatprep.subr.mxu0 0.0
        %v8637 = vand.u32 %v7538, 4294901760
        %8638 = vmatpush1.msra.mxu0 %v8637
        %8639 = vmatprep.subr.mxu0 0.0
        %v8640 = vand.u32 %v7539, 4294901760
        %8641 = vmatpush1.msra.mxu0 %v8640
        %8642 = vmatprep.subr.mxu0 0.0
        %v8643 = vand.u32 %v7540, 4294901760
        %8644 = vmatpush1.msra.mxu0 %v8643
        %8645 = vmatprep.subr.mxu0 0.0
        %v8646 = vand.u32 %v7541, 4294901760
        %8647 = vmatpush1.msra.mxu0 %v8646
        %8648 = vmatprep.subr.mxu0 0.0
        %v8649 = vand.u32 %v7542, 4294901760
        %8650 = vmatpush1.msra.mxu0 %v8649
        %8651 = vmatprep.subr.mxu0 0.0
        %v8652 = vand.u32 %v7543, 4294901760
        %8653 = vmatpush1.msra.mxu0 %v8652
        %8654 = vmatprep.subr.mxu0 0.0
        %v8655 = vand.u32 %v7544, 4294901760
        %8656 = vmatpush1.msra.mxu0 %v8655
        %8657 = vmatprep.subr.mxu0 0.0
        %v8658 = vand.u32 %v7545, 4294901760
        %8659 = vmatpush1.msra.mxu0 %v8658
        %8660 = vmatprep.subr.mxu0 0.0
        %v8661 = vand.u32 %v7546, 4294901760
        %8662 = vmatpush1.msra.mxu0 %v8661
        %8663 = vmatprep.subr.mxu0 0.0
        %v8664 = vand.u32 %v7547, 4294901760
        %8665 = vmatpush1.msra.mxu0 %v8664
        %8666 = vmatprep.subr.mxu0 0.0
        %v8667 = vand.u32 %v7548, 4294901760
        %8668 = vmatpush1.msra.mxu0 %v8667
        %8669 = vmatprep.subr.mxu0 0.0
        %8670 = vmatpush1.msra.mxu0 0.0
        %8671 = vmatprep.subr.mxu0 0.0
        %8672 = vmatpush1.msra.mxu0 0.0
        %8673 = vmatprep.subr.mxu0 0.0
        %8674 = vmatpush1.msra.mxu0 0.0
        %8675 = vmatprep.subr.mxu0 0.0
        %8676 = vmatpush1.msra.mxu0 0.0
        %8677 = vmatprep.subr.mxu0 0.0
        %8678 = vmatpush1.msra.mxu0 0.0
        %8679 = vmatprep.subr.mxu0 0.0
        %8680 = vmatpush1.msra.mxu0 0.0
        %8681 = vmatprep.subr.mxu0 0.0
        %8682 = vmatpush1.msra.mxu0 0.0
        %8683 = vmatprep.subr.mxu0 0.0
        %8684 = vmatpush1.msra.mxu0 0.0
        %8685 = vmatprep.subr.mxu0 0.0
        %8686 = vmatpush1.msra.mxu0 0.0
        %8687 = vmatprep.subr.mxu0 0.0
        %8688 = vmatpush1.msra.mxu0 0.0
        %8689 = vmatprep.subr.mxu0 0.0
        %8690 = vmatpush1.msra.mxu0 0.0
        %8691 = vmatprep.subr.mxu0 0.0
        %8692 = vmatpush1.msra.mxu0 0.0
        %8693 = vmatprep.subr.mxu0 0.0
        %8694 = vmatpush1.msra.mxu0 0.0
        %8695 = vmatprep.subr.mxu0 0.0
        %8696 = vmatpush1.msra.mxu0 0.0
        %8697 = vmatprep.subr.mxu0 0.0
        %8698 = vmatpush1.msra.mxu0 0.0
        %8699 = vmatprep.subr.mxu0 0.0
        %8700 = vmatpush1.msra.mxu0 0.0
        %8701 = vmatprep.mubr.f32.mxu0 0.0
        %v8702 = vand.u32 %v7531, 4294901760
        %v8703 = vsub.f32 %v7531, %v8702
        %v8704 = vand.u32 %v8703, 4294901760
        %8705 = vmatmul.mubr.f32.gmra.mrb[0].mxu0 %v8704
        %v8706 = vpop.f32.mrb[0].mxu0
        %v8707 = vadd.f32 %v8611, %v8706
        %v8708 = vpop.f32.mrb[0].mxu0
        %8709 = vmatprep.mubr.f32.mxu0 0.0
        %v8710 = vand.u32 %v7532, 4294901760
        %v8711 = vsub.f32 %v7532, %v8710
        %v8712 = vand.u32 %v8711, 4294901760
        %8713 = vmatmul.mubr.f32.gmra.mrb[0].mxu0 %v8712
        %v8714 = vpop.f32.mrb[0].mxu0
        %v8715 = vadd.f32 %v8618, %v8714
        %v8716 = vpop.f32.mrb[0].mxu0
        %8717 = vdwg.mxu0
        %8718 = vmatprep.subr.mxu0 0.0
        %v8719 = vand.u32 %v7533, 4294901760
        %v8720 = vsub.f32 %v7533, %v8719
        %v8721 = vand.u32 %v8720, 4294901760
        %8722 = vmatpush1.msra.mxu0 %v8721
        %8723 = vmatprep.subr.mxu0 0.0
        %v8724 = vand.u32 %v7534, 4294901760
        %v8725 = vsub.f32 %v7534, %v8724
        %v8726 = vand.u32 %v8725, 4294901760
        %8727 = vmatpush1.msra.mxu0 %v8726
        %8728 = vmatprep.subr.mxu0 0.0
        %v8729 = vand.u32 %v7535, 4294901760
        %v8730 = vsub.f32 %v7535, %v8729
        %v8731 = vand.u32 %v8730, 4294901760
        %8732 = vmatpush1.msra.mxu0 %v8731
        %8733 = vmatprep.subr.mxu0 0.0
        %v8734 = vand.u32 %v7536, 4294901760
        %v8735 = vsub.f32 %v7536, %v8734
        %v8736 = vand.u32 %v8735, 4294901760
        %8737 = vmatpush1.msra.mxu0 %v8736
        %8738 = vmatprep.subr.mxu0 0.0
        %v8739 = vand.u32 %v7537, 4294901760
        %v8740 = vsub.f32 %v7537, %v8739
        %v8741 = vand.u32 %v8740, 4294901760
        %8742 = vmatpush1.msra.mxu0 %v8741
        %8743 = vmatprep.subr.mxu0 0.0
        %v8744 = vand.u32 %v7538, 4294901760
        %v8745 = vsub.f32 %v7538, %v8744
        %v8746 = vand.u32 %v8745, 4294901760
        %8747 = vmatpush1.msra.mxu0 %v8746
        %8748 = vmatprep.subr.mxu0 0.0
        %v8749 = vand.u32 %v7539, 4294901760
        %v8750 = vsub.f32 %v7539, %v8749
        %v8751 = vand.u32 %v8750, 4294901760
        %8752 = vmatpush1.msra.mxu0 %v8751
        %8753 = vmatprep.subr.mxu0 0.0
        %v8754 = vand.u32 %v7540, 4294901760
        %v8755 = vsub.f32 %v7540, %v8754
        %v8756 = vand.u32 %v8755, 4294901760
        %8757 = vmatpush1.msra.mxu0 %v8756
        %8758 = vmatprep.subr.mxu0 0.0
        %v8759 = vand.u32 %v7541, 4294901760
        %v8760 = vsub.f32 %v7541, %v8759
        %v8761 = vand.u32 %v8760, 4294901760
        %8762 = vmatpush1.msra.mxu0 %v8761
        %8763 = vmatprep.subr.mxu0 0.0
        %v8764 = vand.u32 %v7542, 4294901760
        %v8765 = vsub.f32 %v7542, %v8764
        %v8766 = vand.u32 %v8765, 4294901760
        %8767 = vmatpush1.msra.mxu0 %v8766
        %8768 = vmatprep.subr.mxu0 0.0
        %v8769 = vand.u32 %v7543, 4294901760
        %v8770 = vsub.f32 %v7543, %v8769
        %v8771 = vand.u32 %v8770, 4294901760
        %8772 = vmatpush1.msra.mxu0 %v8771
        %8773 = vmatprep.subr.mxu0 0.0
        %v8774 = vand.u32 %v7544, 4294901760
        %v8775 = vsub.f32 %v7544, %v8774
        %v8776 = vand.u32 %v8775, 4294901760
        %8777 = vmatpush1.msra.mxu0 %v8776
        %8778 = vmatprep.subr.mxu0 0.0
        %v8779 = vand.u32 %v7545, 4294901760
        %v8780 = vsub.f32 %v7545, %v8779
        %v8781 = vand.u32 %v8780, 4294901760
        %8782 = vmatpush1.msra.mxu0 %v8781
        %8783 = vmatprep.subr.mxu0 0.0
        %v8784 = vand.u32 %v7546, 4294901760
        %v8785 = vsub.f32 %v7546, %v8784
        %v8786 = vand.u32 %v8785, 4294901760
        %8787 = vmatpush1.msra.mxu0 %v8786
        %8788 = vmatprep.subr.mxu0 0.0
        %v8789 = vand.u32 %v7547, 4294901760
        %v8790 = vsub.f32 %v7547, %v8789
        %v8791 = vand.u32 %v8790, 4294901760
        %8792 = vmatpush1.msra.mxu0 %v8791
        %8793 = vmatprep.subr.mxu0 0.0
        %v8794 = vand.u32 %v7548, 4294901760
        %v8795 = vsub.f32 %v7548, %v8794
        %v8796 = vand.u32 %v8795, 4294901760
        %8797 = vmatpush1.msra.mxu0 %v8796
        %8798 = vmatprep.subr.mxu0 0.0
        %8799 = vmatpush1.msra.mxu0 0.0
        %8800 = vmatprep.subr.mxu0 0.0
        %8801 = vmatpush1.msra.mxu0 0.0
        %8802 = vmatprep.subr.mxu0 0.0
        %8803 = vmatpush1.msra.mxu0 0.0
        %8804 = vmatprep.subr.mxu0 0.0
        %8805 = vmatpush1.msra.mxu0 0.0
        %8806 = vmatprep.subr.mxu0 0.0
        %8807 = vmatpush1.msra.mxu0 0.0
        %8808 = vmatprep.subr.mxu0 0.0
        %8809 = vmatpush1.msra.mxu0 0.0
        %8810 = vmatprep.subr.mxu0 0.0
        %8811 = vmatpush1.msra.mxu0 0.0
        %8812 = vmatprep.subr.mxu0 0.0
        %8813 = vmatpush1.msra.mxu0 0.0
        %8814 = vmatprep.subr.mxu0 0.0
        %8815 = vmatpush1.msra.mxu0 0.0
        %8816 = vmatprep.subr.mxu0 0.0
        %8817 = vmatpush1.msra.mxu0 0.0
        %8818 = vmatprep.subr.mxu0 0.0
        %8819 = vmatpush1.msra.mxu0 0.0
        %8820 = vmatprep.subr.mxu0 0.0
        %8821 = vmatpush1.msra.mxu0 0.0
        %8822 = vmatprep.subr.mxu0 0.0
        %8823 = vmatpush1.msra.mxu0 0.0
        %8824 = vmatprep.subr.mxu0 0.0
        %8825 = vmatpush1.msra.mxu0 0.0
        %8826 = vmatprep.subr.mxu0 0.0
        %8827 = vmatpush1.msra.mxu0 0.0
        %8828 = vmatprep.subr.mxu0 0.0
        %8829 = vmatpush1.msra.mxu0 0.0
        %8830 = vmatprep.mubr.f32.mxu0 0.0
        %v8831 = vand.u32 %v7531, 4294901760
        %8832 = vmatmul.mubr.f32.gmra.mrb[0].mxu0 %v8831
        %v8833 = vpop.f32.mrb[0].mxu0
        %v8834 = vadd.f32 %v8707, %v8833
        %v8835 = vpop.f32.mrb[0].mxu0
        %8836 = vmatprep.mubr.f32.mxu0 0.0
        %v8837 = vand.u32 %v7532, 4294901760
        %8838 = vmatmul.mubr.f32.gmra.mrb[0].mxu0 %v8837
        %v8839 = vpop.f32.mrb[0].mxu0
        %v8840 = vadd.f32 %v8715, %v8839
        %v8841 = vpop.f32.mrb[0].mxu0
        %8842 = vdwg.mxu0
        %8843 = vmatprep.subr.mxu0 0.0
        %v8844 = vand.u32 %v7533, 4294901760
        %8845 = vmatpush1.msra.mxu0 %v8844
        %8846 = vmatprep.subr.mxu0 0.0
        %v8847 = vand.u32 %v7534, 4294901760
        %8848 = vmatpush1.msra.mxu0 %v8847
        %8849 = vmatprep.subr.mxu0 0.0
        %v8850 = vand.u32 %v7535, 4294901760
        %8851 = vmatpush1.msra.mxu0 %v8850
        %8852 = vmatprep.subr.mxu0 0.0
        %v8853 = vand.u32 %v7536, 4294901760
        %8854 = vmatpush1.msra.mxu0 %v8853
        %8855 = vmatprep.subr.mxu0 0.0
        %v8856 = vand.u32 %v7537, 4294901760
        %8857 = vmatpush1.msra.mxu0 %v8856
        %8858 = vmatprep.subr.mxu0 0.0
        %v8859 = vand.u32 %v7538, 4294901760
        %8860 = vmatpush1.msra.mxu0 %v8859
        %8861 = vmatprep.subr.mxu0 0.0
        %v8862 = vand.u32 %v7539, 4294901760
        %8863 = vmatpush1.msra.mxu0 %v8862
        %8864 = vmatprep.subr.mxu0 0.0
        %v8865 = vand.u32 %v7540, 4294901760
        %8866 = vmatpush1.msra.mxu0 %v8865
        %8867 = vmatprep.subr.mxu0 0.0
        %v8868 = vand.u32 %v7541, 4294901760
        %8869 = vmatpush1.msra.mxu0 %v8868
        %8870 = vmatprep.subr.mxu0 0.0
        %v8871 = vand.u32 %v7542, 4294901760
        %8872 = vmatpush1.msra.mxu0 %v8871
        %8873 = vmatprep.subr.mxu0 0.0
        %v8874 = vand.u32 %v7543, 4294901760
        %8875 = vmatpush1.msra.mxu0 %v8874
        %8876 = vmatprep.subr.mxu0 0.0
        %v8877 = vand.u32 %v7544, 4294901760
        %8878 = vmatpush1.msra.mxu0 %v8877
        %8879 = vmatprep.subr.mxu0 0.0
        %v8880 = vand.u32 %v7545, 4294901760
        %8881 = vmatpush1.msra.mxu0 %v8880
        %8882 = vmatprep.subr.mxu0 0.0
        %v8883 = vand.u32 %v7546, 4294901760
        %8884 = vmatpush1.msra.mxu0 %v8883
        %8885 = vmatprep.subr.mxu0 0.0
        %v8886 = vand.u32 %v7547, 4294901760
        %8887 = vmatpush1.msra.mxu0 %v8886
        %8888 = vmatprep.subr.mxu0 0.0
        %v8889 = vand.u32 %v7548, 4294901760
        %8890 = vmatpush1.msra.mxu0 %v8889
        %8891 = vmatprep.subr.mxu0 0.0
        %8892 = vmatpush1.msra.mxu0 0.0
        %8893 = vmatprep.subr.mxu0 0.0
        %8894 = vmatpush1.msra.mxu0 0.0
        %8895 = vmatprep.subr.mxu0 0.0
        %8896 = vmatpush1.msra.mxu0 0.0
        %8897 = vmatprep.subr.mxu0 0.0
        %8898 = vmatpush1.msra.mxu0 0.0
        %8899 = vmatprep.subr.mxu0 0.0
        %8900 = vmatpush1.msra.mxu0 0.0
        %8901 = vmatprep.subr.mxu0 0.0
        %8902 = vmatpush1.msra.mxu0 0.0
        %8903 = vmatprep.subr.mxu0 0.0
        %8904 = vmatpush1.msra.mxu0 0.0
        %8905 = vmatprep.subr.mxu0 0.0
        %8906 = vmatpush1.msra.mxu0 0.0
        %8907 = vmatprep.subr.mxu0 0.0
        %8908 = vmatpush1.msra.mxu0 0.0
        %8909 = vmatprep.subr.mxu0 0.0
        %8910 = vmatpush1.msra.mxu0 0.0
        %8911 = vmatprep.subr.mxu0 0.0
        %8912 = vmatpush1.msra.mxu0 0.0
        %8913 = vmatprep.subr.mxu0 0.0
        %8914 = vmatpush1.msra.mxu0 0.0
        %8915 = vmatprep.subr.mxu0 0.0
        %8916 = vmatpush1.msra.mxu0 0.0
        %8917 = vmatprep.subr.mxu0 0.0
        %8918 = vmatpush1.msra.mxu0 0.0
        %8919 = vmatprep.subr.mxu0 0.0
        %8920 = vmatpush1.msra.mxu0 0.0
        %8921 = vmatprep.subr.mxu0 0.0
        %8922 = vmatpush1.msra.mxu0 0.0
        %8923 = vmatprep.mubr.f32.mxu0 0.0
        %v8924 = vand.u32 %v7531, 4294901760
        %8925 = vmatmul.mubr.f32.gmra.mrb[0].mxu0 %v8924
        %v8926 = vpop.f32.mrb[0].mxu0
        %v8927 = vadd.f32 %v8834, %v8926
        %v8928 = vpop.f32.mrb[0].mxu0
        %8929 = vmatprep.mubr.f32.mxu0 0.0
        %v8930 = vand.u32 %v7532, 4294901760
        %8931 = vmatmul.mubr.f32.gmra.mrb[0].mxu0 %v8930
        %v8932 = vpop.f32.mrb[0].mxu0
        %v8933 = vadd.f32 %v8840, %v8932
        %v8934 = vpop.f32.mrb[0].mxu0
        %8935 = vdwg.mxu0
        %v8936 = vld [vmem:[#allocation3 + $0x2] sm:$0xff]
        %v8937 = vld [vmem:[#allocation3 + $0xa] sm:$0x1]
        %s8938 = scalar_lea.vmem %s3, 256
        %v8939 = vld [vmem:[%s8938] sm:$0xff]
        %v8940 = vld [vmem:[%s8938 + $0x8] sm:$0xff]
        %v8941 = vld [vmem:[%s8938 + $0x10] sm:$0xff]
        %v8942 = vld [vmem:[%s8938 + $0x18] sm:$0xff]
        %v8943 = vld [vmem:[%s8938 + $0x20] sm:$0xff]
        %v8944 = vld [vmem:[%s8938 + $0x28] sm:$0xff]
        %v8945 = vld [vmem:[%s8938 + $0x30] sm:$0xff]
        %v8946 = vld [vmem:[%s8938 + $0x38] sm:$0xff]
        %v8947 = vld [vmem:[%s8938 + $0x40] sm:$0xff]
        %v8948 = vld [vmem:[%s8938 + $0x48] sm:$0xff]
        %v8949 = vld [vmem:[%s8938 + $0x50] sm:$0xff]
        %v8950 = vld [vmem:[%s8938 + $0x58] sm:$0xff]
        %v8951 = vld [vmem:[%s8938 + $0x60] sm:$0xff]
        %v8952 = vld [vmem:[%s8938 + $0x68] sm:$0xff]
        %v8953 = vld [vmem:[%s8938 + $0x70] sm:$0xff]
        %v8954 = vld [vmem:[%s8938 + $0x78] sm:$0xff]
        %8955 = vmatprep.subr.mxu0 0.0
        %v8956 = vand.u32 %v8939, 4294901760
        %8957 = vmatpush1.msra.mxu0 %v8956
        %8958 = vmatprep.subr.mxu0 0.0
        %v8959 = vand.u32 %v8940, 4294901760
        %8960 = vmatpush1.msra.mxu0 %v8959
        %8961 = vmatprep.subr.mxu0 0.0
        %v8962 = vand.u32 %v8941, 4294901760
        %8963 = vmatpush1.msra.mxu0 %v8962
        %8964 = vmatprep.subr.mxu0 0.0
        %v8965 = vand.u32 %v8942, 4294901760
        %8966 = vmatpush1.msra.mxu0 %v8965
        %8967 = vmatprep.subr.mxu0 0.0
        %v8968 = vand.u32 %v8943, 4294901760
        %8969 = vmatpush1.msra.mxu0 %v8968
        %8970 = vmatprep.subr.mxu0 0.0
        %v8971 = vand.u32 %v8944, 4294901760
        %8972 = vmatpush1.msra.mxu0 %v8971
        %8973 = vmatprep.subr.mxu0 0.0
        %v8974 = vand.u32 %v8945, 4294901760
        %8975 = vmatpush1.msra.mxu0 %v8974
        %8976 = vmatprep.subr.mxu0 0.0
        %v8977 = vand.u32 %v8946, 4294901760
        %8978 = vmatpush1.msra.mxu0 %v8977
        %8979 = vmatprep.subr.mxu0 0.0
        %v8980 = vand.u32 %v8947, 4294901760
        %8981 = vmatpush1.msra.mxu0 %v8980
        %8982 = vmatprep.subr.mxu0 0.0
        %v8983 = vand.u32 %v8948, 4294901760
        %8984 = vmatpush1.msra.mxu0 %v8983
        %8985 = vmatprep.subr.mxu0 0.0
        %v8986 = vand.u32 %v8949, 4294901760
        %8987 = vmatpush1.msra.mxu0 %v8986
        %8988 = vmatprep.subr.mxu0 0.0
        %v8989 = vand.u32 %v8950, 4294901760
        %8990 = vmatpush1.msra.mxu0 %v8989
        %8991 = vmatprep.subr.mxu0 0.0
        %v8992 = vand.u32 %v8951, 4294901760
        %8993 = vmatpush1.msra.mxu0 %v8992
        %8994 = vmatprep.subr.mxu0 0.0
        %v8995 = vand.u32 %v8952, 4294901760
        %8996 = vmatpush1.msra.mxu0 %v8995
        %8997 = vmatprep.subr.mxu0 0.0
        %v8998 = vand.u32 %v8953, 4294901760
        %8999 = vmatpush1.msra.mxu0 %v8998
        %9000 = vmatprep.subr.mxu0 0.0
        %v9001 = vand.u32 %v8954, 4294901760
        %9002 = vmatpush1.msra.mxu0 %v9001
        %9003 = vmatprep.subr.mxu0 0.0
        %9004 = vmatpush1.msra.mxu0 0.0
        %9005 = vmatprep.subr.mxu0 0.0
        %9006 = vmatpush1.msra.mxu0 0.0
        %9007 = vmatprep.subr.mxu0 0.0
        %9008 = vmatpush1.msra.mxu0 0.0
        %9009 = vmatprep.subr.mxu0 0.0
        %9010 = vmatpush1.msra.mxu0 0.0
        %9011 = vmatprep.subr.mxu0 0.0
        %9012 = vmatpush1.msra.mxu0 0.0
        %9013 = vmatprep.subr.mxu0 0.0
        %9014 = vmatpush1.msra.mxu0 0.0
        %9015 = vmatprep.subr.mxu0 0.0
        %9016 = vmatpush1.msra.mxu0 0.0
        %9017 = vmatprep.subr.mxu0 0.0
        %9018 = vmatpush1.msra.mxu0 0.0
        %9019 = vmatprep.subr.mxu0 0.0
        %9020 = vmatpush1.msra.mxu0 0.0
        %9021 = vmatprep.subr.mxu0 0.0
        %9022 = vmatpush1.msra.mxu0 0.0
        %9023 = vmatprep.subr.mxu0 0.0
        %9024 = vmatpush1.msra.mxu0 0.0
        %9025 = vmatprep.subr.mxu0 0.0
        %9026 = vmatpush1.msra.mxu0 0.0
        %9027 = vmatprep.subr.mxu0 0.0
        %9028 = vmatpush1.msra.mxu0 0.0
        %9029 = vmatprep.subr.mxu0 0.0
        %9030 = vmatpush1.msra.mxu0 0.0
        %9031 = vmatprep.subr.mxu0 0.0
        %9032 = vmatpush1.msra.mxu0 0.0
        %9033 = vmatprep.subr.mxu0 0.0
        %9034 = vmatpush1.msra.mxu0 0.0
        %9035 = vmatprep.mubr.f32.mxu0 0.0
        %v9036 = vand.u32 %v8936, 4294901760
        %v9037 = vsub.f32 %v8936, %v9036
        %v9038 = vand.u32 %v9037, 4294901760
        %v9039 = vsub.f32 %v9037, %v9038
        %v9040 = vand.u32 %v9039, 4294901760
        %9041 = vmatmul.mubr.f32.gmra.mrb[0].mxu0 %v9040
        %v9042 = vpop.f32.mrb[0].mxu0
        %v9043 = vadd.f32 0.0, %v9042
        %v9044 = vpop.f32.mrb[0].mxu0
        %9045 = vmatprep.mubr.f32.mxu0 0.0
        %v9046 = vand.u32 %v8937, 4294901760
        %v9047 = vsub.f32 %v8937, %v9046
        %v9048 = vand.u32 %v9047, 4294901760
        %v9049 = vsub.f32 %v9047, %v9048
        %v9050 = vand.u32 %v9049, 4294901760
        %9051 = vmatmul.mubr.f32.gmra.mrb[0].mxu0 %v9050
        %v9052 = vpop.f32.mrb[0].mxu0
        %v9053 = vadd.f32 0.0, %v9052
        %v9054 = vpop.f32.mrb[0].mxu0
        %9055 = vdwg.mxu0
        %9056 = vmatprep.subr.mxu0 0.0
        %v9057 = vand.u32 %v8939, 4294901760
        %v9058 = vsub.f32 %v8939, %v9057
        %v9059 = vand.u32 %v9058, 4294901760
        %v9060 = vsub.f32 %v9058, %v9059
        %v9061 = vand.u32 %v9060, 4294901760
        %9062 = vmatpush1.msra.mxu0 %v9061
        %9063 = vmatprep.subr.mxu0 0.0
        %v9064 = vand.u32 %v8940, 4294901760
        %v9065 = vsub.f32 %v8940, %v9064
        %v9066 = vand.u32 %v9065, 4294901760
        %v9067 = vsub.f32 %v9065, %v9066
        %v9068 = vand.u32 %v9067, 4294901760
        %9069 = vmatpush1.msra.mxu0 %v9068
        %9070 = vmatprep.subr.mxu0 0.0
        %v9071 = vand.u32 %v8941, 4294901760
        %v9072 = vsub.f32 %v8941, %v9071
        %v9073 = vand.u32 %v9072, 4294901760
        %v9074 = vsub.f32 %v9072, %v9073
        %v9075 = vand.u32 %v9074, 4294901760
        %9076 = vmatpush1.msra.mxu0 %v9075
        %9077 = vmatprep.subr.mxu0 0.0
        %v9078 = vand.u32 %v8942, 4294901760
        %v9079 = vsub.f32 %v8942, %v9078
        %v9080 = vand.u32 %v9079, 4294901760
        %v9081 = vsub.f32 %v9079, %v9080
        %v9082 = vand.u32 %v9081, 4294901760
        %9083 = vmatpush1.msra.mxu0 %v9082
        %9084 = vmatprep.subr.mxu0 0.0
        %v9085 = vand.u32 %v8943, 4294901760
        %v9086 = vsub.f32 %v8943, %v9085
        %v9087 = vand.u32 %v9086, 4294901760
        %v9088 = vsub.f32 %v9086, %v9087
        %v9089 = vand.u32 %v9088, 4294901760
        %9090 = vmatpush1.msra.mxu0 %v9089
        %9091 = vmatprep.subr.mxu0 0.0
        %v9092 = vand.u32 %v8944, 4294901760
        %v9093 = vsub.f32 %v8944, %v9092
        %v9094 = vand.u32 %v9093, 4294901760
        %v9095 = vsub.f32 %v9093, %v9094
        %v9096 = vand.u32 %v9095, 4294901760
        %9097 = vmatpush1.msra.mxu0 %v9096
        %9098 = vmatprep.subr.mxu0 0.0
        %v9099 = vand.u32 %v8945, 4294901760
        %v9100 = vsub.f32 %v8945, %v9099
        %v9101 = vand.u32 %v9100, 4294901760
        %v9102 = vsub.f32 %v9100, %v9101
        %v9103 = vand.u32 %v9102, 4294901760
        %9104 = vmatpush1.msra.mxu0 %v9103
        %9105 = vmatprep.subr.mxu0 0.0
        %v9106 = vand.u32 %v8946, 4294901760
        %v9107 = vsub.f32 %v8946, %v9106
        %v9108 = vand.u32 %v9107, 4294901760
        %v9109 = vsub.f32 %v9107, %v9108
        %v9110 = vand.u32 %v9109, 4294901760
        %9111 = vmatpush1.msra.mxu0 %v9110
        %9112 = vmatprep.subr.mxu0 0.0
        %v9113 = vand.u32 %v8947, 4294901760
        %v9114 = vsub.f32 %v8947, %v9113
        %v9115 = vand.u32 %v9114, 4294901760
        %v9116 = vsub.f32 %v9114, %v9115
        %v9117 = vand.u32 %v9116, 4294901760
        %9118 = vmatpush1.msra.mxu0 %v9117
        %9119 = vmatprep.subr.mxu0 0.0
        %v9120 = vand.u32 %v8948, 4294901760
        %v9121 = vsub.f32 %v8948, %v9120
        %v9122 = vand.u32 %v9121, 4294901760
        %v9123 = vsub.f32 %v9121, %v9122
        %v9124 = vand.u32 %v9123, 4294901760
        %9125 = vmatpush1.msra.mxu0 %v9124
        %9126 = vmatprep.subr.mxu0 0.0
        %v9127 = vand.u32 %v8949, 4294901760
        %v9128 = vsub.f32 %v8949, %v9127
        %v9129 = vand.u32 %v9128, 4294901760
        %v9130 = vsub.f32 %v9128, %v9129
        %v9131 = vand.u32 %v9130, 4294901760
        %9132 = vmatpush1.msra.mxu0 %v9131
        %9133 = vmatprep.subr.mxu0 0.0
        %v9134 = vand.u32 %v8950, 4294901760
        %v9135 = vsub.f32 %v8950, %v9134
        %v9136 = vand.u32 %v9135, 4294901760
        %v9137 = vsub.f32 %v9135, %v9136
        %v9138 = vand.u32 %v9137, 4294901760
        %9139 = vmatpush1.msra.mxu0 %v9138
        %9140 = vmatprep.subr.mxu0 0.0
        %v9141 = vand.u32 %v8951, 4294901760
        %v9142 = vsub.f32 %v8951, %v9141
        %v9143 = vand.u32 %v9142, 4294901760
        %v9144 = vsub.f32 %v9142, %v9143
        %v9145 = vand.u32 %v9144, 4294901760
        %9146 = vmatpush1.msra.mxu0 %v9145
        %9147 = vmatprep.subr.mxu0 0.0
        %v9148 = vand.u32 %v8952, 4294901760
        %v9149 = vsub.f32 %v8952, %v9148
        %v9150 = vand.u32 %v9149, 4294901760
        %v9151 = vsub.f32 %v9149, %v9150
        %v9152 = vand.u32 %v9151, 4294901760
        %9153 = vmatpush1.msra.mxu0 %v9152
        %9154 = vmatprep.subr.mxu0 0.0
        %v9155 = vand.u32 %v8953, 4294901760
        %v9156 = vsub.f32 %v8953, %v9155
        %v9157 = vand.u32 %v9156, 4294901760
        %v9158 = vsub.f32 %v9156, %v9157
        %v9159 = vand.u32 %v9158, 4294901760
        %9160 = vmatpush1.msra.mxu0 %v9159
        %9161 = vmatprep.subr.mxu0 0.0
        %v9162 = vand.u32 %v8954, 4294901760
        %v9163 = vsub.f32 %v8954, %v9162
        %v9164 = vand.u32 %v9163, 4294901760
        %v9165 = vsub.f32 %v9163, %v9164
        %v9166 = vand.u32 %v9165, 4294901760
        %9167 = vmatpush1.msra.mxu0 %v9166
        %9168 = vmatprep.subr.mxu0 0.0
        %9169 = vmatpush1.msra.mxu0 0.0
        %9170 = vmatprep.subr.mxu0 0.0
        %9171 = vmatpush1.msra.mxu0 0.0
        %9172 = vmatprep.subr.mxu0 0.0
        %9173 = vmatpush1.msra.mxu0 0.0
        %9174 = vmatprep.subr.mxu0 0.0
        %9175 = vmatpush1.msra.mxu0 0.0
        %9176 = vmatprep.subr.mxu0 0.0
        %9177 = vmatpush1.msra.mxu0 0.0
        %9178 = vmatprep.subr.mxu0 0.0
        %9179 = vmatpush1.msra.mxu0 0.0
        %9180 = vmatprep.subr.mxu0 0.0
        %9181 = vmatpush1.msra.mxu0 0.0
        %9182 = vmatprep.subr.mxu0 0.0
        %9183 = vmatpush1.msra.mxu0 0.0
        %9184 = vmatprep.subr.mxu0 0.0
        %9185 = vmatpush1.msra.mxu0 0.0
        %9186 = vmatprep.subr.mxu0 0.0
        %9187 = vmatpush1.msra.mxu0 0.0
        %9188 = vmatprep.subr.mxu0 0.0
        %9189 = vmatpush1.msra.mxu0 0.0
        %9190 = vmatprep.subr.mxu0 0.0
        %9191 = vmatpush1.msra.mxu0 0.0
        %9192 = vmatprep.subr.mxu0 0.0
        %9193 = vmatpush1.msra.mxu0 0.0
        %9194 = vmatprep.subr.mxu0 0.0
        %9195 = vmatpush1.msra.mxu0 0.0
        %9196 = vmatprep.subr.mxu0 0.0
        %9197 = vmatpush1.msra.mxu0 0.0
        %9198 = vmatprep.subr.mxu0 0.0
        %9199 = vmatpush1.msra.mxu0 0.0
        %9200 = vmatprep.mubr.f32.mxu0 0.0
        %v9201 = vand.u32 %v8936, 4294901760
        %9202 = vmatmul.mubr.f32.gmra.mrb[0].mxu0 %v9201
        %v9203 = vpop.f32.mrb[0].mxu0
        %v9204 = vadd.f32 %v9043, %v9203
        %v9205 = vpop.f32.mrb[0].mxu0
        %9206 = vmatprep.mubr.f32.mxu0 0.0
        %v9207 = vand.u32 %v8937, 4294901760
        %9208 = vmatmul.mubr.f32.gmra.mrb[0].mxu0 %v9207
        %v9209 = vpop.f32.mrb[0].mxu0
        %v9210 = vadd.f32 %v9053, %v9209
        %v9211 = vpop.f32.mrb[0].mxu0
        %9212 = vdwg.mxu0
        %9213 = vmatprep.subr.mxu0 0.0
        %v9214 = vand.u32 %v8939, 4294901760
        %v9215 = vsub.f32 %v8939, %v9214
        %9216 = vmatpush1.msra.mxu0 %v9215
        %9217 = vmatprep.subr.mxu0 0.0
        %v9218 = vand.u32 %v8940, 4294901760
        %v9219 = vsub.f32 %v8940, %v9218
        %9220 = vmatpush1.msra.mxu0 %v9219
        %9221 = vmatprep.subr.mxu0 0.0
        %v9222 = vand.u32 %v8941, 4294901760
        %v9223 = vsub.f32 %v8941, %v9222
        %9224 = vmatpush1.msra.mxu0 %v9223
        %9225 = vmatprep.subr.mxu0 0.0
        %v9226 = vand.u32 %v8942, 4294901760
        %v9227 = vsub.f32 %v8942, %v9226
        %9228 = vmatpush1.msra.mxu0 %v9227
        %9229 = vmatprep.subr.mxu0 0.0
        %v9230 = vand.u32 %v8943, 4294901760
        %v9231 = vsub.f32 %v8943, %v9230
        %9232 = vmatpush1.msra.mxu0 %v9231
        %9233 = vmatprep.subr.mxu0 0.0
        %v9234 = vand.u32 %v8944, 4294901760
        %v9235 = vsub.f32 %v8944, %v9234
        %9236 = vmatpush1.msra.mxu0 %v9235
        %9237 = vmatprep.subr.mxu0 0.0
        %v9238 = vand.u32 %v8945, 4294901760
        %v9239 = vsub.f32 %v8945, %v9238
        %9240 = vmatpush1.msra.mxu0 %v9239
        %9241 = vmatprep.subr.mxu0 0.0
        %v9242 = vand.u32 %v8946, 4294901760
        %v9243 = vsub.f32 %v8946, %v9242
        %9244 = vmatpush1.msra.mxu0 %v9243
        %9245 = vmatprep.subr.mxu0 0.0
        %v9246 = vand.u32 %v8947, 4294901760
        %v9247 = vsub.f32 %v8947, %v9246
        %9248 = vmatpush1.msra.mxu0 %v9247
        %9249 = vmatprep.subr.mxu0 0.0
        %v9250 = vand.u32 %v8948, 4294901760
        %v9251 = vsub.f32 %v8948, %v9250
        %9252 = vmatpush1.msra.mxu0 %v9251
        %9253 = vmatprep.subr.mxu0 0.0
        %v9254 = vand.u32 %v8949, 4294901760
        %v9255 = vsub.f32 %v8949, %v9254
        %9256 = vmatpush1.msra.mxu0 %v9255
        %9257 = vmatprep.subr.mxu0 0.0
        %v9258 = vand.u32 %v8950, 4294901760
        %v9259 = vsub.f32 %v8950, %v9258
        %9260 = vmatpush1.msra.mxu0 %v9259
        %9261 = vmatprep.subr.mxu0 0.0
        %v9262 = vand.u32 %v8951, 4294901760
        %v9263 = vsub.f32 %v8951, %v9262
        %9264 = vmatpush1.msra.mxu0 %v9263
        %9265 = vmatprep.subr.mxu0 0.0
        %v9266 = vand.u32 %v8952, 4294901760
        %v9267 = vsub.f32 %v8952, %v9266
        %9268 = vmatpush1.msra.mxu0 %v9267
        %9269 = vmatprep.subr.mxu0 0.0
        %v9270 = vand.u32 %v8953, 4294901760
        %v9271 = vsub.f32 %v8953, %v9270
        %9272 = vmatpush1.msra.mxu0 %v9271
        %9273 = vmatprep.subr.mxu0 0.0
        %v9274 = vand.u32 %v8954, 4294901760
        %v9275 = vsub.f32 %v8954, %v9274
        %9276 = vmatpush1.msra.mxu0 %v9275
        %9277 = vmatprep.subr.mxu0 0.0
        %9278 = vmatpush1.msra.mxu0 0.0
        %9279 = vmatprep.subr.mxu0 0.0
        %9280 = vmatpush1.msra.mxu0 0.0
        %9281 = vmatprep.subr.mxu0 0.0
        %9282 = vmatpush1.msra.mxu0 0.0
        %9283 = vmatprep.subr.mxu0 0.0
        %9284 = vmatpush1.msra.mxu0 0.0
        %9285 = vmatprep.subr.mxu0 0.0
        %9286 = vmatpush1.msra.mxu0 0.0
        %9287 = vmatprep.subr.mxu0 0.0
        %9288 = vmatpush1.msra.mxu0 0.0
        %9289 = vmatprep.subr.mxu0 0.0
        %9290 = vmatpush1.msra.mxu0 0.0
        %9291 = vmatprep.subr.mxu0 0.0
        %9292 = vmatpush1.msra.mxu0 0.0
        %9293 = vmatprep.subr.mxu0 0.0
        %9294 = vmatpush1.msra.mxu0 0.0
        %9295 = vmatprep.subr.mxu0 0.0
        %9296 = vmatpush1.msra.mxu0 0.0
        %9297 = vmatprep.subr.mxu0 0.0
        %9298 = vmatpush1.msra.mxu0 0.0
        %9299 = vmatprep.subr.mxu0 0.0
        %9300 = vmatpush1.msra.mxu0 0.0
        %9301 = vmatprep.subr.mxu0 0.0
        %9302 = vmatpush1.msra.mxu0 0.0
        %9303 = vmatprep.subr.mxu0 0.0
        %9304 = vmatpush1.msra.mxu0 0.0
        %9305 = vmatprep.subr.mxu0 0.0
        %9306 = vmatpush1.msra.mxu0 0.0
        %9307 = vmatprep.subr.mxu0 0.0
        %9308 = vmatpush1.msra.mxu0 0.0
        %9309 = vmatprep.mubr.f32.mxu0 0.0
        %v9310 = vand.u32 %v8936, 4294901760
        %v9311 = vsub.f32 %v8936, %v9310
        %9312 = vmatmul.mubr.f32.gmra.mrb[0].mxu0 %v9311
        %v9313 = vpop.f32.mrb[0].mxu0
        %v9314 = vadd.f32 %v9204, %v9313
        %v9315 = vpop.f32.mrb[0].mxu0
        %9316 = vmatprep.mubr.f32.mxu0 0.0
        %v9317 = vand.u32 %v8937, 4294901760
        %v9318 = vsub.f32 %v8937, %v9317
        %9319 = vmatmul.mubr.f32.gmra.mrb[0].mxu0 %v9318
        %v9320 = vpop.f32.mrb[0].mxu0
        %v9321 = vadd.f32 %v9210, %v9320
        %v9322 = vpop.f32.mrb[0].mxu0
        %9323 = vdwg.mxu0
        %9324 = vmatprep.subr.mxu0 0.0
        %v9325 = vand.u32 %v8939, 4294901760
        %9326 = vmatpush1.msra.mxu0 %v9325
        %9327 = vmatprep.subr.mxu0 0.0
        %v9328 = vand.u32 %v8940, 4294901760
        %9329 = vmatpush1.msra.mxu0 %v9328
        %9330 = vmatprep.subr.mxu0 0.0
        %v9331 = vand.u32 %v8941, 4294901760
        %9332 = vmatpush1.msra.mxu0 %v9331
        %9333 = vmatprep.subr.mxu0 0.0
        %v9334 = vand.u32 %v8942, 4294901760
        %9335 = vmatpush1.msra.mxu0 %v9334
        %9336 = vmatprep.subr.mxu0 0.0
        %v9337 = vand.u32 %v8943, 4294901760
        %9338 = vmatpush1.msra.mxu0 %v9337
        %9339 = vmatprep.subr.mxu0 0.0
        %v9340 = vand.u32 %v8944, 4294901760
        %9341 = vmatpush1.msra.mxu0 %v9340
        %9342 = vmatprep.subr.mxu0 0.0
        %v9343 = vand.u32 %v8945, 4294901760
        %9344 = vmatpush1.msra.mxu0 %v9343
        %9345 = vmatprep.subr.mxu0 0.0
        %v9346 = vand.u32 %v8946, 4294901760
        %9347 = vmatpush1.msra.mxu0 %v9346
        %9348 = vmatprep.subr.mxu0 0.0
        %v9349 = vand.u32 %v8947, 4294901760
        %9350 = vmatpush1.msra.mxu0 %v9349
        %9351 = vmatprep.subr.mxu0 0.0
        %v9352 = vand.u32 %v8948, 4294901760
        %9353 = vmatpush1.msra.mxu0 %v9352
        %9354 = vmatprep.subr.mxu0 0.0
        %v9355 = vand.u32 %v8949, 4294901760
        %9356 = vmatpush1.msra.mxu0 %v9355
        %9357 = vmatprep.subr.mxu0 0.0
        %v9358 = vand.u32 %v8950, 4294901760
        %9359 = vmatpush1.msra.mxu0 %v9358
        %9360 = vmatprep.subr.mxu0 0.0
        %v9361 = vand.u32 %v8951, 4294901760
        %9362 = vmatpush1.msra.mxu0 %v9361
        %9363 = vmatprep.subr.mxu0 0.0
        %v9364 = vand.u32 %v8952, 4294901760
        %9365 = vmatpush1.msra.mxu0 %v9364
        %9366 = vmatprep.subr.mxu0 0.0
        %v9367 = vand.u32 %v8953, 4294901760
        %9368 = vmatpush1.msra.mxu0 %v9367
        %9369 = vmatprep.subr.mxu0 0.0
        %v9370 = vand.u32 %v8954, 4294901760
        %9371 = vmatpush1.msra.mxu0 %v9370
        %9372 = vmatprep.subr.mxu0 0.0
        %9373 = vmatpush1.msra.mxu0 0.0
        %9374 = vmatprep.subr.mxu0 0.0
        %9375 = vmatpush1.msra.mxu0 0.0
        %9376 = vmatprep.subr.mxu0 0.0
        %9377 = vmatpush1.msra.mxu0 0.0
        %9378 = vmatprep.subr.mxu0 0.0
        %9379 = vmatpush1.msra.mxu0 0.0
        %9380 = vmatprep.subr.mxu0 0.0
        %9381 = vmatpush1.msra.mxu0 0.0
        %9382 = vmatprep.subr.mxu0 0.0
        %9383 = vmatpush1.msra.mxu0 0.0
        %9384 = vmatprep.subr.mxu0 0.0
        %9385 = vmatpush1.msra.mxu0 0.0
        %9386 = vmatprep.subr.mxu0 0.0
        %9387 = vmatpush1.msra.mxu0 0.0
        %9388 = vmatprep.subr.mxu0 0.0
        %9389 = vmatpush1.msra.mxu0 0.0
        %9390 = vmatprep.subr.mxu0 0.0
        %9391 = vmatpush1.msra.mxu0 0.0
        %9392 = vmatprep.subr.mxu0 0.0
        %9393 = vmatpush1.msra.mxu0 0.0
        %9394 = vmatprep.subr.mxu0 0.0
        %9395 = vmatpush1.msra.mxu0 0.0
        %9396 = vmatprep.subr.mxu0 0.0
        %9397 = vmatpush1.msra.mxu0 0.0
        %9398 = vmatprep.subr.mxu0 0.0
        %9399 = vmatpush1.msra.mxu0 0.0
        %9400 = vmatprep.subr.mxu0 0.0
        %9401 = vmatpush1.msra.mxu0 0.0
        %9402 = vmatprep.subr.mxu0 0.0
        %9403 = vmatpush1.msra.mxu0 0.0
        %9404 = vmatprep.mubr.f32.mxu0 0.0
        %v9405 = vand.u32 %v8936, 4294901760
        %v9406 = vsub.f32 %v8936, %v9405
        %v9407 = vand.u32 %v9406, 4294901760
        %9408 = vmatmul.mubr.f32.gmra.mrb[0].mxu0 %v9407
        %v9409 = vpop.f32.mrb[0].mxu0
        %v9410 = vadd.f32 %v9314, %v9409
        %v9411 = vpop.f32.mrb[0].mxu0
        %9412 = vmatprep.mubr.f32.mxu0 0.0
        %v9413 = vand.u32 %v8937, 4294901760
        %v9414 = vsub.f32 %v8937, %v9413
        %v9415 = vand.u32 %v9414, 4294901760
        %9416 = vmatmul.mubr.f32.gmra.mrb[0].mxu0 %v9415
        %v9417 = vpop.f32.mrb[0].mxu0
        %v9418 = vadd.f32 %v9321, %v9417
        %v9419 = vpop.f32.mrb[0].mxu0
        %9420 = vdwg.mxu0
        %9421 = vmatprep.subr.mxu0 0.0
        %v9422 = vand.u32 %v8939, 4294901760
        %v9423 = vsub.f32 %v8939, %v9422
        %v9424 = vand.u32 %v9423, 4294901760
        %9425 = vmatpush1.msra.mxu0 %v9424
        %9426 = vmatprep.subr.mxu0 0.0
        %v9427 = vand.u32 %v8940, 4294901760
        %v9428 = vsub.f32 %v8940, %v9427
        %v9429 = vand.u32 %v9428, 4294901760
        %9430 = vmatpush1.msra.mxu0 %v9429
        %9431 = vmatprep.subr.mxu0 0.0
        %v9432 = vand.u32 %v8941, 4294901760
        %v9433 = vsub.f32 %v8941, %v9432
        %v9434 = vand.u32 %v9433, 4294901760
        %9435 = vmatpush1.msra.mxu0 %v9434
        %9436 = vmatprep.subr.mxu0 0.0
        %v9437 = vand.u32 %v8942, 4294901760
        %v9438 = vsub.f32 %v8942, %v9437
        %v9439 = vand.u32 %v9438, 4294901760
        %9440 = vmatpush1.msra.mxu0 %v9439
        %9441 = vmatprep.subr.mxu0 0.0
        %v9442 = vand.u32 %v8943, 4294901760
        %v9443 = vsub.f32 %v8943, %v9442
        %v9444 = vand.u32 %v9443, 4294901760
        %9445 = vmatpush1.msra.mxu0 %v9444
        %9446 = vmatprep.subr.mxu0 0.0
        %v9447 = vand.u32 %v8944, 4294901760
        %v9448 = vsub.f32 %v8944, %v9447
        %v9449 = vand.u32 %v9448, 4294901760
        %9450 = vmatpush1.msra.mxu0 %v9449
        %9451 = vmatprep.subr.mxu0 0.0
        %v9452 = vand.u32 %v8945, 4294901760
        %v9453 = vsub.f32 %v8945, %v9452
        %v9454 = vand.u32 %v9453, 4294901760
        %9455 = vmatpush1.msra.mxu0 %v9454
        %9456 = vmatprep.subr.mxu0 0.0
        %v9457 = vand.u32 %v8946, 4294901760
        %v9458 = vsub.f32 %v8946, %v9457
        %v9459 = vand.u32 %v9458, 4294901760
        %9460 = vmatpush1.msra.mxu0 %v9459
        %9461 = vmatprep.subr.mxu0 0.0
        %v9462 = vand.u32 %v8947, 4294901760
        %v9463 = vsub.f32 %v8947, %v9462
        %v9464 = vand.u32 %v9463, 4294901760
        %9465 = vmatpush1.msra.mxu0 %v9464
        %9466 = vmatprep.subr.mxu0 0.0
        %v9467 = vand.u32 %v8948, 4294901760
        %v9468 = vsub.f32 %v8948, %v9467
        %v9469 = vand.u32 %v9468, 4294901760
        %9470 = vmatpush1.msra.mxu0 %v9469
        %9471 = vmatprep.subr.mxu0 0.0
        %v9472 = vand.u32 %v8949, 4294901760
        %v9473 = vsub.f32 %v8949, %v9472
        %v9474 = vand.u32 %v9473, 4294901760
        %9475 = vmatpush1.msra.mxu0 %v9474
        %9476 = vmatprep.subr.mxu0 0.0
        %v9477 = vand.u32 %v8950, 4294901760
        %v9478 = vsub.f32 %v8950, %v9477
        %v9479 = vand.u32 %v9478, 4294901760
        %9480 = vmatpush1.msra.mxu0 %v9479
        %9481 = vmatprep.subr.mxu0 0.0
        %v9482 = vand.u32 %v8951, 4294901760
        %v9483 = vsub.f32 %v8951, %v9482
        %v9484 = vand.u32 %v9483, 4294901760
        %9485 = vmatpush1.msra.mxu0 %v9484
        %9486 = vmatprep.subr.mxu0 0.0
        %v9487 = vand.u32 %v8952, 4294901760
        %v9488 = vsub.f32 %v8952, %v9487
        %v9489 = vand.u32 %v9488, 4294901760
        %9490 = vmatpush1.msra.mxu0 %v9489
        %9491 = vmatprep.subr.mxu0 0.0
        %v9492 = vand.u32 %v8953, 4294901760
        %v9493 = vsub.f32 %v8953, %v9492
        %v9494 = vand.u32 %v9493, 4294901760
        %9495 = vmatpush1.msra.mxu0 %v9494
        %9496 = vmatprep.subr.mxu0 0.0
        %v9497 = vand.u32 %v8954, 4294901760
        %v9498 = vsub.f32 %v8954, %v9497
        %v9499 = vand.u32 %v9498, 4294901760
        %9500 = vmatpush1.msra.mxu0 %v9499
        %9501 = vmatprep.subr.mxu0 0.0
        %9502 = vmatpush1.msra.mxu0 0.0
        %9503 = vmatprep.subr.mxu0 0.0
        %9504 = vmatpush1.msra.mxu0 0.0
        %9505 = vmatprep.subr.mxu0 0.0
        %9506 = vmatpush1.msra.mxu0 0.0
        %9507 = vmatprep.subr.mxu0 0.0
        %9508 = vmatpush1.msra.mxu0 0.0
        %9509 = vmatprep.subr.mxu0 0.0
        %9510 = vmatpush1.msra.mxu0 0.0
        %9511 = vmatprep.subr.mxu0 0.0
        %9512 = vmatpush1.msra.mxu0 0.0
        %9513 = vmatprep.subr.mxu0 0.0
        %9514 = vmatpush1.msra.mxu0 0.0
        %9515 = vmatprep.subr.mxu0 0.0
        %9516 = vmatpush1.msra.mxu0 0.0
        %9517 = vmatprep.subr.mxu0 0.0
        %9518 = vmatpush1.msra.mxu0 0.0
        %9519 = vmatprep.subr.mxu0 0.0
        %9520 = vmatpush1.msra.mxu0 0.0
        %9521 = vmatprep.subr.mxu0 0.0
        %9522 = vmatpush1.msra.mxu0 0.0
        %9523 = vmatprep.subr.mxu0 0.0
        %9524 = vmatpush1.msra.mxu0 0.0
        %9525 = vmatprep.subr.mxu0 0.0
        %9526 = vmatpush1.msra.mxu0 0.0
        %9527 = vmatprep.subr.mxu0 0.0
        %9528 = vmatpush1.msra.mxu0 0.0
        %9529 = vmatprep.subr.mxu0 0.0
        %9530 = vmatpush1.msra.mxu0 0.0
        %9531 = vmatprep.subr.mxu0 0.0
        %9532 = vmatpush1.msra.mxu0 0.0
        %9533 = vmatprep.mubr.f32.mxu0 0.0
        %v9534 = vand.u32 %v8936, 4294901760
        %9535 = vmatmul.mubr.f32.gmra.mrb[0].mxu0 %v9534
        %v9536 = vpop.f32.mrb[0].mxu0
        %v9537 = vadd.f32 %v9410, %v9536
        %v9538 = vpop.f32.mrb[0].mxu0
        %9539 = vmatprep.mubr.f32.mxu0 0.0
        %v9540 = vand.u32 %v8937, 4294901760
        %9541 = vmatmul.mubr.f32.gmra.mrb[0].mxu0 %v9540
        %v9542 = vpop.f32.mrb[0].mxu0
        %v9543 = vadd.f32 %v9418, %v9542
        %v9544 = vpop.f32.mrb[0].mxu0
        %9545 = vdwg.mxu0
        %9546 = vmatprep.subr.mxu0 0.0
        %v9547 = vand.u32 %v8939, 4294901760
        %9548 = vmatpush1.msra.mxu0 %v9547
        %9549 = vmatprep.subr.mxu0 0.0
        %v9550 = vand.u32 %v8940, 4294901760
        %9551 = vmatpush1.msra.mxu0 %v9550
        %9552 = vmatprep.subr.mxu0 0.0
        %v9553 = vand.u32 %v8941, 4294901760
        %9554 = vmatpush1.msra.mxu0 %v9553
        %9555 = vmatprep.subr.mxu0 0.0
        %v9556 = vand.u32 %v8942, 4294901760
        %9557 = vmatpush1.msra.mxu0 %v9556
        %9558 = vmatprep.subr.mxu0 0.0
        %v9559 = vand.u32 %v8943, 4294901760
        %9560 = vmatpush1.msra.mxu0 %v9559
        %9561 = vmatprep.subr.mxu0 0.0
        %v9562 = vand.u32 %v8944, 4294901760
        %9563 = vmatpush1.msra.mxu0 %v9562
        %9564 = vmatprep.subr.mxu0 0.0
        %v9565 = vand.u32 %v8945, 4294901760
        %9566 = vmatpush1.msra.mxu0 %v9565
        %9567 = vmatprep.subr.mxu0 0.0
        %v9568 = vand.u32 %v8946, 4294901760
        %9569 = vmatpush1.msra.mxu0 %v9568
        %9570 = vmatprep.subr.mxu0 0.0
        %v9571 = vand.u32 %v8947, 4294901760
        %9572 = vmatpush1.msra.mxu0 %v9571
        %9573 = vmatprep.subr.mxu0 0.0
        %v9574 = vand.u32 %v8948, 4294901760
        %9575 = vmatpush1.msra.mxu0 %v9574
        %9576 = vmatprep.subr.mxu0 0.0
        %v9577 = vand.u32 %v8949, 4294901760
        %9578 = vmatpush1.msra.mxu0 %v9577
        %9579 = vmatprep.subr.mxu0 0.0
        %v9580 = vand.u32 %v8950, 4294901760
        %9581 = vmatpush1.msra.mxu0 %v9580
        %9582 = vmatprep.subr.mxu0 0.0
        %v9583 = vand.u32 %v8951, 4294901760
        %9584 = vmatpush1.msra.mxu0 %v9583
        %9585 = vmatprep.subr.mxu0 0.0
        %v9586 = vand.u32 %v8952, 4294901760
        %9587 = vmatpush1.msra.mxu0 %v9586
        %9588 = vmatprep.subr.mxu0 0.0
        %v9589 = vand.u32 %v8953, 4294901760
        %9590 = vmatpush1.msra.mxu0 %v9589
        %9591 = vmatprep.subr.mxu0 0.0
        %v9592 = vand.u32 %v8954, 4294901760
        %9593 = vmatpush1.msra.mxu0 %v9592
        %9594 = vmatprep.subr.mxu0 0.0
        %9595 = vmatpush1.msra.mxu0 0.0
        %9596 = vmatprep.subr.mxu0 0.0
        %9597 = vmatpush1.msra.mxu0 0.0
        %9598 = vmatprep.subr.mxu0 0.0
        %9599 = vmatpush1.msra.mxu0 0.0
        %9600 = vmatprep.subr.mxu0 0.0
        %9601 = vmatpush1.msra.mxu0 0.0
        %9602 = vmatprep.subr.mxu0 0.0
        %9603 = vmatpush1.msra.mxu0 0.0
        %9604 = vmatprep.subr.mxu0 0.0
        %9605 = vmatpush1.msra.mxu0 0.0
        %9606 = vmatprep.subr.mxu0 0.0
        %9607 = vmatpush1.msra.mxu0 0.0
        %9608 = vmatprep.subr.mxu0 0.0
        %9609 = vmatpush1.msra.mxu0 0.0
        %9610 = vmatprep.subr.mxu0 0.0
        %9611 = vmatpush1.msra.mxu0 0.0
        %9612 = vmatprep.subr.mxu0 0.0
        %9613 = vmatpush1.msra.mxu0 0.0
        %9614 = vmatprep.subr.mxu0 0.0
        %9615 = vmatpush1.msra.mxu0 0.0
        %9616 = vmatprep.subr.mxu0 0.0
        %9617 = vmatpush1.msra.mxu0 0.0
        %9618 = vmatprep.subr.mxu0 0.0
        %9619 = vmatpush1.msra.mxu0 0.0
        %9620 = vmatprep.subr.mxu0 0.0
        %9621 = vmatpush1.msra.mxu0 0.0
        %9622 = vmatprep.subr.mxu0 0.0
        %9623 = vmatpush1.msra.mxu0 0.0
        %9624 = vmatprep.subr.mxu0 0.0
        %9625 = vmatpush1.msra.mxu0 0.0
        %9626 = vmatprep.mubr.f32.mxu0 0.0
        %v9627 = vand.u32 %v8936, 4294901760
        %9628 = vmatmul.mubr.f32.gmra.mrb[0].mxu0 %v9627
        %v9629 = vpop.f32.mrb[0].mxu0
        %v9630 = vadd.f32 %v9537, %v9629
        %v9631 = vpop.f32.mrb[0].mxu0
        %9632 = vmatprep.mubr.f32.mxu0 0.0
        %v9633 = vand.u32 %v8937, 4294901760
        %9634 = vmatmul.mubr.f32.gmra.mrb[0].mxu0 %v9633
        %v9635 = vpop.f32.mrb[0].mxu0
        %v9636 = vadd.f32 %v9543, %v9635
        %v9637 = vpop.f32.mrb[0].mxu0
        %9638 = vdwg.mxu0
        %v9639 = vadd.f32 %v8927, %v9630
        %v9640 = vadd.f32 %v8933, %v9636
        %v9641 = vld [vmem:[#allocation3 + $0x3] sm:$0xff]
        %v9642 = vld [vmem:[#allocation3 + $0xb] sm:$0x1]
        %s9643 = scalar_lea.vmem %s3, 384
        %v9644 = vld [vmem:[%s9643] sm:$0xff]
        %v9645 = vld [vmem:[%s9643 + $0x8] sm:$0xff]
        %v9646 = vld [vmem:[%s9643 + $0x10] sm:$0xff]
        %v9647 = vld [vmem:[%s9643 + $0x18] sm:$0xff]
        %v9648 = vld [vmem:[%s9643 + $0x20] sm:$0xff]
        %v9649 = vld [vmem:[%s9643 + $0x28] sm:$0xff]
        %v9650 = vld [vmem:[%s9643 + $0x30] sm:$0xff]
        %v9651 = vld [vmem:[%s9643 + $0x38] sm:$0xff]
        %v9652 = vld [vmem:[%s9643 + $0x40] sm:$0xff]
        %v9653 = vld [vmem:[%s9643 + $0x48] sm:$0xff]
        %v9654 = vld [vmem:[%s9643 + $0x50] sm:$0xff]
        %v9655 = vld [vmem:[%s9643 + $0x58] sm:$0xff]
        %v9656 = vld [vmem:[%s9643 + $0x60] sm:$0xff]
        %v9657 = vld [vmem:[%s9643 + $0x68] sm:$0xff]
        %v9658 = vld [vmem:[%s9643 + $0x70] sm:$0xff]
        %v9659 = vld [vmem:[%s9643 + $0x78] sm:$0xff]
        %9660 = vmatprep.subr.mxu0 0.0
        %v9661 = vand.u32 %v9644, 4294901760
        %9662 = vmatpush1.msra.mxu0 %v9661
        %9663 = vmatprep.subr.mxu0 0.0
        %v9664 = vand.u32 %v9645, 4294901760
        %9665 = vmatpush1.msra.mxu0 %v9664
        %9666 = vmatprep.subr.mxu0 0.0
        %v9667 = vand.u32 %v9646, 4294901760
        %9668 = vmatpush1.msra.mxu0 %v9667
        %9669 = vmatprep.subr.mxu0 0.0
        %v9670 = vand.u32 %v9647, 4294901760
        %9671 = vmatpush1.msra.mxu0 %v9670
        %9672 = vmatprep.subr.mxu0 0.0
        %v9673 = vand.u32 %v9648, 4294901760
        %9674 = vmatpush1.msra.mxu0 %v9673
        %9675 = vmatprep.subr.mxu0 0.0
        %v9676 = vand.u32 %v9649, 4294901760
        %9677 = vmatpush1.msra.mxu0 %v9676
        %9678 = vmatprep.subr.mxu0 0.0
        %v9679 = vand.u32 %v9650, 4294901760
        %9680 = vmatpush1.msra.mxu0 %v9679
        %9681 = vmatprep.subr.mxu0 0.0
        %v9682 = vand.u32 %v9651, 4294901760
        %9683 = vmatpush1.msra.mxu0 %v9682
        %9684 = vmatprep.subr.mxu0 0.0
        %v9685 = vand.u32 %v9652, 4294901760
        %9686 = vmatpush1.msra.mxu0 %v9685
        %9687 = vmatprep.subr.mxu0 0.0
        %v9688 = vand.u32 %v9653, 4294901760
        %9689 = vmatpush1.msra.mxu0 %v9688
        %9690 = vmatprep.subr.mxu0 0.0
        %v9691 = vand.u32 %v9654, 4294901760
        %9692 = vmatpush1.msra.mxu0 %v9691
        %9693 = vmatprep.subr.mxu0 0.0
        %v9694 = vand.u32 %v9655, 4294901760
        %9695 = vmatpush1.msra.mxu0 %v9694
        %9696 = vmatprep.subr.mxu0 0.0
        %v9697 = vand.u32 %v9656, 4294901760
        %9698 = vmatpush1.msra.mxu0 %v9697
        %9699 = vmatprep.subr.mxu0 0.0
        %v9700 = vand.u32 %v9657, 4294901760
        %9701 = vmatpush1.msra.mxu0 %v9700
        %9702 = vmatprep.subr.mxu0 0.0
        %v9703 = vand.u32 %v9658, 4294901760
        %9704 = vmatpush1.msra.mxu0 %v9703
        %9705 = vmatprep.subr.mxu0 0.0
        %v9706 = vand.u32 %v9659, 4294901760
        %9707 = vmatpush1.msra.mxu0 %v9706
        %9708 = vmatprep.subr.mxu0 0.0
        %9709 = vmatpush1.msra.mxu0 0.0
        %9710 = vmatprep.subr.mxu0 0.0
        %9711 = vmatpush1.msra.mxu0 0.0
        %9712 = vmatprep.subr.mxu0 0.0
        %9713 = vmatpush1.msra.mxu0 0.0
        %9714 = vmatprep.subr.mxu0 0.0
        %9715 = vmatpush1.msra.mxu0 0.0
        %9716 = vmatprep.subr.mxu0 0.0
        %9717 = vmatpush1.msra.mxu0 0.0
        %9718 = vmatprep.subr.mxu0 0.0
        %9719 = vmatpush1.msra.mxu0 0.0
        %9720 = vmatprep.subr.mxu0 0.0
        %9721 = vmatpush1.msra.mxu0 0.0
        %9722 = vmatprep.subr.mxu0 0.0
        %9723 = vmatpush1.msra.mxu0 0.0
        %9724 = vmatprep.subr.mxu0 0.0
        %9725 = vmatpush1.msra.mxu0 0.0
        %9726 = vmatprep.subr.mxu0 0.0
        %9727 = vmatpush1.msra.mxu0 0.0
        %9728 = vmatprep.subr.mxu0 0.0
        %9729 = vmatpush1.msra.mxu0 0.0
        %9730 = vmatprep.subr.mxu0 0.0
        %9731 = vmatpush1.msra.mxu0 0.0
        %9732 = vmatprep.subr.mxu0 0.0
        %9733 = vmatpush1.msra.mxu0 0.0
        %9734 = vmatprep.subr.mxu0 0.0
        %9735 = vmatpush1.msra.mxu0 0.0
        %9736 = vmatprep.subr.mxu0 0.0
        %9737 = vmatpush1.msra.mxu0 0.0
        %9738 = vmatprep.subr.mxu0 0.0
        %9739 = vmatpush1.msra.mxu0 0.0
        %9740 = vmatprep.mubr.f32.mxu0 0.0
        %v9741 = vand.u32 %v9641, 4294901760
        %v9742 = vsub.f32 %v9641, %v9741
        %v9743 = vand.u32 %v9742, 4294901760
        %v9744 = vsub.f32 %v9742, %v9743
        %v9745 = vand.u32 %v9744, 4294901760
        %9746 = vmatmul.mubr.f32.gmra.mrb[0].mxu0 %v9745
        %v9747 = vpop.f32.mrb[0].mxu0
        %v9748 = vadd.f32 0.0, %v9747
        %v9749 = vpop.f32.mrb[0].mxu0
        %9750 = vmatprep.mubr.f32.mxu0 0.0
        %v9751 = vand.u32 %v9642, 4294901760
        %v9752 = vsub.f32 %v9642, %v9751
        %v9753 = vand.u32 %v9752, 4294901760
        %v9754 = vsub.f32 %v9752, %v9753
        %v9755 = vand.u32 %v9754, 4294901760
        %9756 = vmatmul.mubr.f32.gmra.mrb[0].mxu0 %v9755
        %v9757 = vpop.f32.mrb[0].mxu0
        %v9758 = vadd.f32 0.0, %v9757
        %v9759 = vpop.f32.mrb[0].mxu0
        %9760 = vdwg.mxu0
        %9761 = vmatprep.subr.mxu0 0.0
        %v9762 = vand.u32 %v9644, 4294901760
        %v9763 = vsub.f32 %v9644, %v9762
        %v9764 = vand.u32 %v9763, 4294901760
        %v9765 = vsub.f32 %v9763, %v9764
        %v9766 = vand.u32 %v9765, 4294901760
        %9767 = vmatpush1.msra.mxu0 %v9766
        %9768 = vmatprep.subr.mxu0 0.0
        %v9769 = vand.u32 %v9645, 4294901760
        %v9770 = vsub.f32 %v9645, %v9769
        %v9771 = vand.u32 %v9770, 4294901760
        %v9772 = vsub.f32 %v9770, %v9771
        %v9773 = vand.u32 %v9772, 4294901760
        %9774 = vmatpush1.msra.mxu0 %v9773
        %9775 = vmatprep.subr.mxu0 0.0
        %v9776 = vand.u32 %v9646, 4294901760
        %v9777 = vsub.f32 %v9646, %v9776
        %v9778 = vand.u32 %v9777, 4294901760
        %v9779 = vsub.f32 %v9777, %v9778
        %v9780 = vand.u32 %v9779, 4294901760
        %9781 = vmatpush1.msra.mxu0 %v9780
        %9782 = vmatprep.subr.mxu0 0.0
        %v9783 = vand.u32 %v9647, 4294901760
        %v9784 = vsub.f32 %v9647, %v9783
        %v9785 = vand.u32 %v9784, 4294901760
        %v9786 = vsub.f32 %v9784, %v9785
        %v9787 = vand.u32 %v9786, 4294901760
        %9788 = vmatpush1.msra.mxu0 %v9787
        %9789 = vmatprep.subr.mxu0 0.0
        %v9790 = vand.u32 %v9648, 4294901760
        %v9791 = vsub.f32 %v9648, %v9790
        %v9792 = vand.u32 %v9791, 4294901760
        %v9793 = vsub.f32 %v9791, %v9792
        %v9794 = vand.u32 %v9793, 4294901760
        %9795 = vmatpush1.msra.mxu0 %v9794
        %9796 = vmatprep.subr.mxu0 0.0
        %v9797 = vand.u32 %v9649, 4294901760
        %v9798 = vsub.f32 %v9649, %v9797
        %v9799 = vand.u32 %v9798, 4294901760
        %v9800 = vsub.f32 %v9798, %v9799
        %v9801 = vand.u32 %v9800, 4294901760
        %9802 = vmatpush1.msra.mxu0 %v9801
        %9803 = vmatprep.subr.mxu0 0.0
        %v9804 = vand.u32 %v9650, 4294901760
        %v9805 = vsub.f32 %v9650, %v9804
        %v9806 = vand.u32 %v9805, 4294901760
        %v9807 = vsub.f32 %v9805, %v9806
        %v9808 = vand.u32 %v9807, 4294901760
        %9809 = vmatpush1.msra.mxu0 %v9808
        %9810 = vmatprep.subr.mxu0 0.0
        %v9811 = vand.u32 %v9651, 4294901760
        %v9812 = vsub.f32 %v9651, %v9811
        %v9813 = vand.u32 %v9812, 4294901760
        %v9814 = vsub.f32 %v9812, %v9813
        %v9815 = vand.u32 %v9814, 4294901760
        %9816 = vmatpush1.msra.mxu0 %v9815
        %9817 = vmatprep.subr.mxu0 0.0
        %v9818 = vand.u32 %v9652, 4294901760
        %v9819 = vsub.f32 %v9652, %v9818
        %v9820 = vand.u32 %v9819, 4294901760
        %v9821 = vsub.f32 %v9819, %v9820
        %v9822 = vand.u32 %v9821, 4294901760
        %9823 = vmatpush1.msra.mxu0 %v9822
        %9824 = vmatprep.subr.mxu0 0.0
        %v9825 = vand.u32 %v9653, 4294901760
        %v9826 = vsub.f32 %v9653, %v9825
        %v9827 = vand.u32 %v9826, 4294901760
        %v9828 = vsub.f32 %v9826, %v9827
        %v9829 = vand.u32 %v9828, 4294901760
        %9830 = vmatpush1.msra.mxu0 %v9829
        %9831 = vmatprep.subr.mxu0 0.0
        %v9832 = vand.u32 %v9654, 4294901760
        %v9833 = vsub.f32 %v9654, %v9832
        %v9834 = vand.u32 %v9833, 4294901760
        %v9835 = vsub.f32 %v9833, %v9834
        %v9836 = vand.u32 %v9835, 4294901760
        %9837 = vmatpush1.msra.mxu0 %v9836
        %9838 = vmatprep.subr.mxu0 0.0
        %v9839 = vand.u32 %v9655, 4294901760
        %v9840 = vsub.f32 %v9655, %v9839
        %v9841 = vand.u32 %v9840, 4294901760
        %v9842 = vsub.f32 %v9840, %v9841
        %v9843 = vand.u32 %v9842, 4294901760
        %9844 = vmatpush1.msra.mxu0 %v9843
        %9845 = vmatprep.subr.mxu0 0.0
        %v9846 = vand.u32 %v9656, 4294901760
        %v9847 = vsub.f32 %v9656, %v9846
        %v9848 = vand.u32 %v9847, 4294901760
        %v9849 = vsub.f32 %v9847, %v9848
        %v9850 = vand.u32 %v9849, 4294901760
        %9851 = vmatpush1.msra.mxu0 %v9850
        %9852 = vmatprep.subr.mxu0 0.0
        %v9853 = vand.u32 %v9657, 4294901760
        %v9854 = vsub.f32 %v9657, %v9853
        %v9855 = vand.u32 %v9854, 4294901760
        %v9856 = vsub.f32 %v9854, %v9855
        %v9857 = vand.u32 %v9856, 4294901760
        %9858 = vmatpush1.msra.mxu0 %v9857
        %9859 = vmatprep.subr.mxu0 0.0
        %v9860 = vand.u32 %v9658, 4294901760
        %v9861 = vsub.f32 %v9658, %v9860
        %v9862 = vand.u32 %v9861, 4294901760
        %v9863 = vsub.f32 %v9861, %v9862
        %v9864 = vand.u32 %v9863, 4294901760
        %9865 = vmatpush1.msra.mxu0 %v9864
        %9866 = vmatprep.subr.mxu0 0.0
        %v9867 = vand.u32 %v9659, 4294901760
        %v9868 = vsub.f32 %v9659, %v9867
        %v9869 = vand.u32 %v9868, 4294901760
        %v9870 = vsub.f32 %v9868, %v9869
        %v9871 = vand.u32 %v9870, 4294901760
        %9872 = vmatpush1.msra.mxu0 %v9871
        %9873 = vmatprep.subr.mxu0 0.0
        %9874 = vmatpush1.msra.mxu0 0.0
        %9875 = vmatprep.subr.mxu0 0.0
        %9876 = vmatpush1.msra.mxu0 0.0
        %9877 = vmatprep.subr.mxu0 0.0
        %9878 = vmatpush1.msra.mxu0 0.0
        %9879 = vmatprep.subr.mxu0 0.0
        %9880 = vmatpush1.msra.mxu0 0.0
        %9881 = vmatprep.subr.mxu0 0.0
        %9882 = vmatpush1.msra.mxu0 0.0
        %9883 = vmatprep.subr.mxu0 0.0
        %9884 = vmatpush1.msra.mxu0 0.0
        %9885 = vmatprep.subr.mxu0 0.0
        %9886 = vmatpush1.msra.mxu0 0.0
        %9887 = vmatprep.subr.mxu0 0.0
        %9888 = vmatpush1.msra.mxu0 0.0
        %9889 = vmatprep.subr.mxu0 0.0
        %9890 = vmatpush1.msra.mxu0 0.0
        %9891 = vmatprep.subr.mxu0 0.0
        %9892 = vmatpush1.msra.mxu0 0.0
        %9893 = vmatprep.subr.mxu0 0.0
        %9894 = vmatpush1.msra.mxu0 0.0
        %9895 = vmatprep.subr.mxu0 0.0
        %9896 = vmatpush1.msra.mxu0 0.0
        %9897 = vmatprep.subr.mxu0 0.0
        %9898 = vmatpush1.msra.mxu0 0.0
        %9899 = vmatprep.subr.mxu0 0.0
        %9900 = vmatpush1.msra.mxu0 0.0
        %9901 = vmatprep.subr.mxu0 0.0
        %9902 = vmatpush1.msra.mxu0 0.0
        %9903 = vmatprep.subr.mxu0 0.0
        %9904 = vmatpush1.msra.mxu0 0.0
        %9905 = vmatprep.mubr.f32.mxu0 0.0
        %v9906 = vand.u32 %v9641, 4294901760
        %9907 = vmatmul.mubr.f32.gmra.mrb[0].mxu0 %v9906
        %v9908 = vpop.f32.mrb[0].mxu0
        %v9909 = vadd.f32 %v9748, %v9908
        %v9910 = vpop.f32.mrb[0].mxu0
        %9911 = vmatprep.mubr.f32.mxu0 0.0
        %v9912 = vand.u32 %v9642, 4294901760
        %9913 = vmatmul.mubr.f32.gmra.mrb[0].mxu0 %v9912
        %v9914 = vpop.f32.mrb[0].mxu0
        %v9915 = vadd.f32 %v9758, %v9914
        %v9916 = vpop.f32.mrb[0].mxu0
        %9917 = vdwg.mxu0
        %9918 = vmatprep.subr.mxu0 0.0
        %v9919 = vand.u32 %v9644, 4294901760
        %v9920 = vsub.f32 %v9644, %v9919
        %9921 = vmatpush1.msra.mxu0 %v9920
        %9922 = vmatprep.subr.mxu0 0.0
        %v9923 = vand.u32 %v9645, 4294901760
        %v9924 = vsub.f32 %v9645, %v9923
        %9925 = vmatpush1.msra.mxu0 %v9924
        %9926 = vmatprep.subr.mxu0 0.0
        %v9927 = vand.u32 %v9646, 4294901760
        %v9928 = vsub.f32 %v9646, %v9927
        %9929 = vmatpush1.msra.mxu0 %v9928
        %9930 = vmatprep.subr.mxu0 0.0
        %v9931 = vand.u32 %v9647, 4294901760
        %v9932 = vsub.f32 %v9647, %v9931
        %9933 = vmatpush1.msra.mxu0 %v9932
        %9934 = vmatprep.subr.mxu0 0.0
        %v9935 = vand.u32 %v9648, 4294901760
        %v9936 = vsub.f32 %v9648, %v9935
        %9937 = vmatpush1.msra.mxu0 %v9936
        %9938 = vmatprep.subr.mxu0 0.0
        %v9939 = vand.u32 %v9649, 4294901760
        %v9940 = vsub.f32 %v9649, %v9939
        %9941 = vmatpush1.msra.mxu0 %v9940
        %9942 = vmatprep.subr.mxu0 0.0
        %v9943 = vand.u32 %v9650, 4294901760
        %v9944 = vsub.f32 %v9650, %v9943
        %9945 = vmatpush1.msra.mxu0 %v9944
        %9946 = vmatprep.subr.mxu0 0.0
        %v9947 = vand.u32 %v9651, 4294901760
        %v9948 = vsub.f32 %v9651, %v9947
        %9949 = vmatpush1.msra.mxu0 %v9948
        %9950 = vmatprep.subr.mxu0 0.0
        %v9951 = vand.u32 %v9652, 4294901760
        %v9952 = vsub.f32 %v9652, %v9951
        %9953 = vmatpush1.msra.mxu0 %v9952
        %9954 = vmatprep.subr.mxu0 0.0
        %v9955 = vand.u32 %v9653, 4294901760
        %v9956 = vsub.f32 %v9653, %v9955
        %9957 = vmatpush1.msra.mxu0 %v9956
        %9958 = vmatprep.subr.mxu0 0.0
        %v9959 = vand.u32 %v9654, 4294901760
        %v9960 = vsub.f32 %v9654, %v9959
        %9961 = vmatpush1.msra.mxu0 %v9960
        %9962 = vmatprep.subr.mxu0 0.0
        %v9963 = vand.u32 %v9655, 4294901760
        %v9964 = vsub.f32 %v9655, %v9963
        %9965 = vmatpush1.msra.mxu0 %v9964
        %9966 = vmatprep.subr.mxu0 0.0
        %v9967 = vand.u32 %v9656, 4294901760
        %v9968 = vsub.f32 %v9656, %v9967
        %9969 = vmatpush1.msra.mxu0 %v9968
        %9970 = vmatprep.subr.mxu0 0.0
        %v9971 = vand.u32 %v9657, 4294901760
        %v9972 = vsub.f32 %v9657, %v9971
        %9973 = vmatpush1.msra.mxu0 %v9972
        %9974 = vmatprep.subr.mxu0 0.0
        %v9975 = vand.u32 %v9658, 4294901760
        %v9976 = vsub.f32 %v9658, %v9975
        %9977 = vmatpush1.msra.mxu0 %v9976
        %9978 = vmatprep.subr.mxu0 0.0
        %v9979 = vand.u32 %v9659, 4294901760
        %v9980 = vsub.f32 %v9659, %v9979
        %9981 = vmatpush1.msra.mxu0 %v9980
        %9982 = vmatprep.subr.mxu0 0.0
        %9983 = vmatpush1.msra.mxu0 0.0
        %9984 = vmatprep.subr.mxu0 0.0
        %9985 = vmatpush1.msra.mxu0 0.0
        %9986 = vmatprep.subr.mxu0 0.0
        %9987 = vmatpush1.msra.mxu0 0.0
        %9988 = vmatprep.subr.mxu0 0.0
        %9989 = vmatpush1.msra.mxu0 0.0
        %9990 = vmatprep.subr.mxu0 0.0
        %9991 = vmatpush1.msra.mxu0 0.0
        %9992 = vmatprep.subr.mxu0 0.0
        %9993 = vmatpush1.msra.mxu0 0.0
        %9994 = vmatprep.subr.mxu0 0.0
        %9995 = vmatpush1.msra.mxu0 0.0
        %9996 = vmatprep.subr.mxu0 0.0
        %9997 = vmatpush1.msra.mxu0 0.0
        %9998 = vmatprep.subr.mxu0 0.0
        %9999 = vmatpush1.msra.mxu0 0.0
        %10000 = vmatprep.subr.mxu0 0.0
        %10001 = vmatpush1.msra.mxu0 0.0
        %10002 = vmatprep.subr.mxu0 0.0
        %10003 = vmatpush1.msra.mxu0 0.0
        %10004 = vmatprep.subr.mxu0 0.0
        %10005 = vmatpush1.msra.mxu0 0.0
        %10006 = vmatprep.subr.mxu0 0.0
        %10007 = vmatpush1.msra.mxu0 0.0
        %10008 = vmatprep.subr.mxu0 0.0
        %10009 = vmatpush1.msra.mxu0 0.0
        %10010 = vmatprep.subr.mxu0 0.0
        %10011 = vmatpush1.msra.mxu0 0.0
        %10012 = vmatprep.subr.mxu0 0.0
        %10013 = vmatpush1.msra.mxu0 0.0
        %10014 = vmatprep.mubr.f32.mxu0 0.0
        %v10015 = vand.u32 %v9641, 4294901760
        %v10016 = vsub.f32 %v9641, %v10015
        %10017 = vmatmul.mubr.f32.gmra.mrb[0].mxu0 %v10016
        %v10018 = vpop.f32.mrb[0].mxu0
        %v10019 = vadd.f32 %v9909, %v10018
        %v10020 = vpop.f32.mrb[0].mxu0
        %10021 = vmatprep.mubr.f32.mxu0 0.0
        %v10022 = vand.u32 %v9642, 4294901760
        %v10023 = vsub.f32 %v9642, %v10022
        %10024 = vmatmul.mubr.f32.gmra.mrb[0].mxu0 %v10023
        %v10025 = vpop.f32.mrb[0].mxu0
        %v10026 = vadd.f32 %v9915, %v10025
        %v10027 = vpop.f32.mrb[0].mxu0
        %10028 = vdwg.mxu0
        %10029 = vmatprep.subr.mxu0 0.0
        %v10030 = vand.u32 %v9644, 4294901760
        %10031 = vmatpush1.msra.mxu0 %v10030
        %10032 = vmatprep.subr.mxu0 0.0
        %v10033 = vand.u32 %v9645, 4294901760
        %10034 = vmatpush1.msra.mxu0 %v10033
        %10035 = vmatprep.subr.mxu0 0.0
        %v10036 = vand.u32 %v9646, 4294901760
        %10037 = vmatpush1.msra.mxu0 %v10036
        %10038 = vmatprep.subr.mxu0 0.0
        %v10039 = vand.u32 %v9647, 4294901760
        %10040 = vmatpush1.msra.mxu0 %v10039
        %10041 = vmatprep.subr.mxu0 0.0
        %v10042 = vand.u32 %v9648, 4294901760
        %10043 = vmatpush1.msra.mxu0 %v10042
        %10044 = vmatprep.subr.mxu0 0.0
        %v10045 = vand.u32 %v9649, 4294901760
        %10046 = vmatpush1.msra.mxu0 %v10045
        %10047 = vmatprep.subr.mxu0 0.0
        %v10048 = vand.u32 %v9650, 4294901760
        %10049 = vmatpush1.msra.mxu0 %v10048
        %10050 = vmatprep.subr.mxu0 0.0
        %v10051 = vand.u32 %v9651, 4294901760
        %10052 = vmatpush1.msra.mxu0 %v10051
        %10053 = vmatprep.subr.mxu0 0.0
        %v10054 = vand.u32 %v9652, 4294901760
        %10055 = vmatpush1.msra.mxu0 %v10054
        %10056 = vmatprep.subr.mxu0 0.0
        %v10057 = vand.u32 %v9653, 4294901760
        %10058 = vmatpush1.msra.mxu0 %v10057
        %10059 = vmatprep.subr.mxu0 0.0
        %v10060 = vand.u32 %v9654, 4294901760
        %10061 = vmatpush1.msra.mxu0 %v10060
        %10062 = vmatprep.subr.mxu0 0.0
        %v10063 = vand.u32 %v9655, 4294901760
        %10064 = vmatpush1.msra.mxu0 %v10063
        %10065 = vmatprep.subr.mxu0 0.0
        %v10066 = vand.u32 %v9656, 4294901760
        %10067 = vmatpush1.msra.mxu0 %v10066
        %10068 = vmatprep.subr.mxu0 0.0
        %v10069 = vand.u32 %v9657, 4294901760
        %10070 = vmatpush1.msra.mxu0 %v10069
        %10071 = vmatprep.subr.mxu0 0.0
        %v10072 = vand.u32 %v9658, 4294901760
        %10073 = vmatpush1.msra.mxu0 %v10072
        %10074 = vmatprep.subr.mxu0 0.0
        %v10075 = vand.u32 %v9659, 4294901760
        %10076 = vmatpush1.msra.mxu0 %v10075
        %10077 = vmatprep.subr.mxu0 0.0
        %10078 = vmatpush1.msra.mxu0 0.0
        %10079 = vmatprep.subr.mxu0 0.0
        %10080 = vmatpush1.msra.mxu0 0.0
        %10081 = vmatprep.subr.mxu0 0.0
        %10082 = vmatpush1.msra.mxu0 0.0
        %10083 = vmatprep.subr.mxu0 0.0
        %10084 = vmatpush1.msra.mxu0 0.0
        %10085 = vmatprep.subr.mxu0 0.0
        %10086 = vmatpush1.msra.mxu0 0.0
        %10087 = vmatprep.subr.mxu0 0.0
        %10088 = vmatpush1.msra.mxu0 0.0
        %10089 = vmatprep.subr.mxu0 0.0
        %10090 = vmatpush1.msra.mxu0 0.0
        %10091 = vmatprep.subr.mxu0 0.0
        %10092 = vmatpush1.msra.mxu0 0.0
        %10093 = vmatprep.subr.mxu0 0.0
        %10094 = vmatpush1.msra.mxu0 0.0
        %10095 = vmatprep.subr.mxu0 0.0
        %10096 = vmatpush1.msra.mxu0 0.0
        %10097 = vmatprep.subr.mxu0 0.0
        %10098 = vmatpush1.msra.mxu0 0.0
        %10099 = vmatprep.subr.mxu0 0.0
        %10100 = vmatpush1.msra.mxu0 0.0
        %10101 = vmatprep.subr.mxu0 0.0
        %10102 = vmatpush1.msra.mxu0 0.0
        %10103 = vmatprep.subr.mxu0 0.0
        %10104 = vmatpush1.msra.mxu0 0.0
        %10105 = vmatprep.subr.mxu0 0.0
        %10106 = vmatpush1.msra.mxu0 0.0
        %10107 = vmatprep.subr.mxu0 0.0
        %10108 = vmatpush1.msra.mxu0 0.0
        %10109 = vmatprep.mubr.f32.mxu0 0.0
        %v10110 = vand.u32 %v9641, 4294901760
        %v10111 = vsub.f32 %v9641, %v10110
        %v10112 = vand.u32 %v10111, 4294901760
        %10113 = vmatmul.mubr.f32.gmra.mrb[0].mxu0 %v10112
        %v10114 = vpop.f32.mrb[0].mxu0
        %v10115 = vadd.f32 %v10019, %v10114
        %v10116 = vpop.f32.mrb[0].mxu0
        %10117 = vmatprep.mubr.f32.mxu0 0.0
        %v10118 = vand.u32 %v9642, 4294901760
        %v10119 = vsub.f32 %v9642, %v10118
        %v10120 = vand.u32 %v10119, 4294901760
        %10121 = vmatmul.mubr.f32.gmra.mrb[0].mxu0 %v10120
        %v10122 = vpop.f32.mrb[0].mxu0
        %v10123 = vadd.f32 %v10026, %v10122
        %v10124 = vpop.f32.mrb[0].mxu0
        %10125 = vdwg.mxu0
        %10126 = vmatprep.subr.mxu0 0.0
        %v10127 = vand.u32 %v9644, 4294901760
        %v10128 = vsub.f32 %v9644, %v10127
        %v10129 = vand.u32 %v10128, 4294901760
        %10130 = vmatpush1.msra.mxu0 %v10129
        %10131 = vmatprep.subr.mxu0 0.0
        %v10132 = vand.u32 %v9645, 4294901760
        %v10133 = vsub.f32 %v9645, %v10132
        %v10134 = vand.u32 %v10133, 4294901760
        %10135 = vmatpush1.msra.mxu0 %v10134
        %10136 = vmatprep.subr.mxu0 0.0
        %v10137 = vand.u32 %v9646, 4294901760
        %v10138 = vsub.f32 %v9646, %v10137
        %v10139 = vand.u32 %v10138, 4294901760
        %10140 = vmatpush1.msra.mxu0 %v10139
        %10141 = vmatprep.subr.mxu0 0.0
        %v10142 = vand.u32 %v9647, 4294901760
        %v10143 = vsub.f32 %v9647, %v10142
        %v10144 = vand.u32 %v10143, 4294901760
        %10145 = vmatpush1.msra.mxu0 %v10144
        %10146 = vmatprep.subr.mxu0 0.0
        %v10147 = vand.u32 %v9648, 4294901760
        %v10148 = vsub.f32 %v9648, %v10147
        %v10149 = vand.u32 %v10148, 4294901760
        %10150 = vmatpush1.msra.mxu0 %v10149
        %10151 = vmatprep.subr.mxu0 0.0
        %v10152 = vand.u32 %v9649, 4294901760
        %v10153 = vsub.f32 %v9649, %v10152
        %v10154 = vand.u32 %v10153, 4294901760
        %10155 = vmatpush1.msra.mxu0 %v10154
        %10156 = vmatprep.subr.mxu0 0.0
        %v10157 = vand.u32 %v9650, 4294901760
        %v10158 = vsub.f32 %v9650, %v10157
        %v10159 = vand.u32 %v10158, 4294901760
        %10160 = vmatpush1.msra.mxu0 %v10159
        %10161 = vmatprep.subr.mxu0 0.0
        %v10162 = vand.u32 %v9651, 4294901760
        %v10163 = vsub.f32 %v9651, %v10162
        %v10164 = vand.u32 %v10163, 4294901760
        %10165 = vmatpush1.msra.mxu0 %v10164
        %10166 = vmatprep.subr.mxu0 0.0
        %v10167 = vand.u32 %v9652, 4294901760
        %v10168 = vsub.f32 %v9652, %v10167
        %v10169 = vand.u32 %v10168, 4294901760
        %10170 = vmatpush1.msra.mxu0 %v10169
        %10171 = vmatprep.subr.mxu0 0.0
        %v10172 = vand.u32 %v9653, 4294901760
        %v10173 = vsub.f32 %v9653, %v10172
        %v10174 = vand.u32 %v10173, 4294901760
        %10175 = vmatpush1.msra.mxu0 %v10174
        %10176 = vmatprep.subr.mxu0 0.0
        %v10177 = vand.u32 %v9654, 4294901760
        %v10178 = vsub.f32 %v9654, %v10177
        %v10179 = vand.u32 %v10178, 4294901760
        %10180 = vmatpush1.msra.mxu0 %v10179
        %10181 = vmatprep.subr.mxu0 0.0
        %v10182 = vand.u32 %v9655, 4294901760
        %v10183 = vsub.f32 %v9655, %v10182
        %v10184 = vand.u32 %v10183, 4294901760
        %10185 = vmatpush1.msra.mxu0 %v10184
        %10186 = vmatprep.subr.mxu0 0.0
        %v10187 = vand.u32 %v9656, 4294901760
        %v10188 = vsub.f32 %v9656, %v10187
        %v10189 = vand.u32 %v10188, 4294901760
        %10190 = vmatpush1.msra.mxu0 %v10189
        %10191 = vmatprep.subr.mxu0 0.0
        %v10192 = vand.u32 %v9657, 4294901760
        %v10193 = vsub.f32 %v9657, %v10192
        %v10194 = vand.u32 %v10193, 4294901760
        %10195 = vmatpush1.msra.mxu0 %v10194
        %10196 = vmatprep.subr.mxu0 0.0
        %v10197 = vand.u32 %v9658, 4294901760
        %v10198 = vsub.f32 %v9658, %v10197
        %v10199 = vand.u32 %v10198, 4294901760
        %10200 = vmatpush1.msra.mxu0 %v10199
        %10201 = vmatprep.subr.mxu0 0.0
        %v10202 = vand.u32 %v9659, 4294901760
        %v10203 = vsub.f32 %v9659, %v10202
        %v10204 = vand.u32 %v10203, 4294901760
        %10205 = vmatpush1.msra.mxu0 %v10204
        %10206 = vmatprep.subr.mxu0 0.0
        %10207 = vmatpush1.msra.mxu0 0.0
        %10208 = vmatprep.subr.mxu0 0.0
        %10209 = vmatpush1.msra.mxu0 0.0
        %10210 = vmatprep.subr.mxu0 0.0
        %10211 = vmatpush1.msra.mxu0 0.0
        %10212 = vmatprep.subr.mxu0 0.0
        %10213 = vmatpush1.msra.mxu0 0.0
        %10214 = vmatprep.subr.mxu0 0.0
        %10215 = vmatpush1.msra.mxu0 0.0
        %10216 = vmatprep.subr.mxu0 0.0
        %10217 = vmatpush1.msra.mxu0 0.0
        %10218 = vmatprep.subr.mxu0 0.0
        %10219 = vmatpush1.msra.mxu0 0.0
        %10220 = vmatprep.subr.mxu0 0.0
        %10221 = vmatpush1.msra.mxu0 0.0
        %10222 = vmatprep.subr.mxu0 0.0
        %10223 = vmatpush1.msra.mxu0 0.0
        %10224 = vmatprep.subr.mxu0 0.0
        %10225 = vmatpush1.msra.mxu0 0.0
        %10226 = vmatprep.subr.mxu0 0.0
        %10227 = vmatpush1.msra.mxu0 0.0
        %10228 = vmatprep.subr.mxu0 0.0
        %10229 = vmatpush1.msra.mxu0 0.0
        %10230 = vmatprep.subr.mxu0 0.0
        %10231 = vmatpush1.msra.mxu0 0.0
        %10232 = vmatprep.subr.mxu0 0.0
        %10233 = vmatpush1.msra.mxu0 0.0
        %10234 = vmatprep.subr.mxu0 0.0
        %10235 = vmatpush1.msra.mxu0 0.0
        %10236 = vmatprep.subr.mxu0 0.0
        %10237 = vmatpush1.msra.mxu0 0.0
        %10238 = vmatprep.mubr.f32.mxu0 0.0
        %v10239 = vand.u32 %v9641, 4294901760
        %10240 = vmatmul.mubr.f32.gmra.mrb[0].mxu0 %v10239
        %v10241 = vpop.f32.mrb[0].mxu0
        %v10242 = vadd.f32 %v10115, %v10241
        %v10243 = vpop.f32.mrb[0].mxu0
        %10244 = vmatprep.mubr.f32.mxu0 0.0
        %v10245 = vand.u32 %v9642, 4294901760
        %10246 = vmatmul.mubr.f32.gmra.mrb[0].mxu0 %v10245
        %v10247 = vpop.f32.mrb[0].mxu0
        %v10248 = vadd.f32 %v10123, %v10247
        %v10249 = vpop.f32.mrb[0].mxu0
        %10250 = vdwg.mxu0
        %10251 = vmatprep.subr.mxu0 0.0
        %v10252 = vand.u32 %v9644, 4294901760
        %10253 = vmatpush1.msra.mxu0 %v10252
        %10254 = vmatprep.subr.mxu0 0.0
        %v10255 = vand.u32 %v9645, 4294901760
        %10256 = vmatpush1.msra.mxu0 %v10255
        %10257 = vmatprep.subr.mxu0 0.0
        %v10258 = vand.u32 %v9646, 4294901760
        %10259 = vmatpush1.msra.mxu0 %v10258
        %10260 = vmatprep.subr.mxu0 0.0
        %v10261 = vand.u32 %v9647, 4294901760
        %10262 = vmatpush1.msra.mxu0 %v10261
        %10263 = vmatprep.subr.mxu0 0.0
        %v10264 = vand.u32 %v9648, 4294901760
        %10265 = vmatpush1.msra.mxu0 %v10264
        %10266 = vmatprep.subr.mxu0 0.0
        %v10267 = vand.u32 %v9649, 4294901760
        %10268 = vmatpush1.msra.mxu0 %v10267
        %10269 = vmatprep.subr.mxu0 0.0
        %v10270 = vand.u32 %v9650, 4294901760
        %10271 = vmatpush1.msra.mxu0 %v10270
        %10272 = vmatprep.subr.mxu0 0.0
        %v10273 = vand.u32 %v9651, 4294901760
        %10274 = vmatpush1.msra.mxu0 %v10273
        %10275 = vmatprep.subr.mxu0 0.0
        %v10276 = vand.u32 %v9652, 4294901760
        %10277 = vmatpush1.msra.mxu0 %v10276
        %10278 = vmatprep.subr.mxu0 0.0
        %v10279 = vand.u32 %v9653, 4294901760
        %10280 = vmatpush1.msra.mxu0 %v10279
        %10281 = vmatprep.subr.mxu0 0.0
        %v10282 = vand.u32 %v9654, 4294901760
        %10283 = vmatpush1.msra.mxu0 %v10282
        %10284 = vmatprep.subr.mxu0 0.0
        %v10285 = vand.u32 %v9655, 4294901760
        %10286 = vmatpush1.msra.mxu0 %v10285
        %10287 = vmatprep.subr.mxu0 0.0
        %v10288 = vand.u32 %v9656, 4294901760
        %10289 = vmatpush1.msra.mxu0 %v10288
        %10290 = vmatprep.subr.mxu0 0.0
        %v10291 = vand.u32 %v9657, 4294901760
        %10292 = vmatpush1.msra.mxu0 %v10291
        %10293 = vmatprep.subr.mxu0 0.0
        %v10294 = vand.u32 %v9658, 4294901760
        %10295 = vmatpush1.msra.mxu0 %v10294
        %10296 = vmatprep.subr.mxu0 0.0
        %v10297 = vand.u32 %v9659, 4294901760
        %10298 = vmatpush1.msra.mxu0 %v10297
        %10299 = vmatprep.subr.mxu0 0.0
        %10300 = vmatpush1.msra.mxu0 0.0
        %10301 = vmatprep.subr.mxu0 0.0
        %10302 = vmatpush1.msra.mxu0 0.0
        %10303 = vmatprep.subr.mxu0 0.0
        %10304 = vmatpush1.msra.mxu0 0.0
        %10305 = vmatprep.subr.mxu0 0.0
        %10306 = vmatpush1.msra.mxu0 0.0
        %10307 = vmatprep.subr.mxu0 0.0
        %10308 = vmatpush1.msra.mxu0 0.0
        %10309 = vmatprep.subr.mxu0 0.0
        %10310 = vmatpush1.msra.mxu0 0.0
        %10311 = vmatprep.subr.mxu0 0.0
        %10312 = vmatpush1.msra.mxu0 0.0
        %10313 = vmatprep.subr.mxu0 0.0
        %10314 = vmatpush1.msra.mxu0 0.0
        %10315 = vmatprep.subr.mxu0 0.0
        %10316 = vmatpush1.msra.mxu0 0.0
        %10317 = vmatprep.subr.mxu0 0.0
        %10318 = vmatpush1.msra.mxu0 0.0
        %10319 = vmatprep.subr.mxu0 0.0
        %10320 = vmatpush1.msra.mxu0 0.0
        %10321 = vmatprep.subr.mxu0 0.0
        %10322 = vmatpush1.msra.mxu0 0.0
        %10323 = vmatprep.subr.mxu0 0.0
        %10324 = vmatpush1.msra.mxu0 0.0
        %10325 = vmatprep.subr.mxu0 0.0
        %10326 = vmatpush1.msra.mxu0 0.0
        %10327 = vmatprep.subr.mxu0 0.0
        %10328 = vmatpush1.msra.mxu0 0.0
        %10329 = vmatprep.subr.mxu0 0.0
        %10330 = vmatpush1.msra.mxu0 0.0
        %10331 = vmatprep.mubr.f32.mxu0 0.0
        %v10332 = vand.u32 %v9641, 4294901760
        %10333 = vmatmul.mubr.f32.gmra.mrb[0].mxu0 %v10332
        %v10334 = vpop.f32.mrb[0].mxu0
        %v10335 = vadd.f32 %v10242, %v10334
        %v10336 = vpop.f32.mrb[0].mxu0
        %10337 = vmatprep.mubr.f32.mxu0 0.0
        %v10338 = vand.u32 %v9642, 4294901760
        %10339 = vmatmul.mubr.f32.gmra.mrb[0].mxu0 %v10338
        %v10340 = vpop.f32.mrb[0].mxu0
        %v10341 = vadd.f32 %v10248, %v10340
        %v10342 = vpop.f32.mrb[0].mxu0
        %10343 = vdwg.mxu0
        %v10344 = vadd.f32 %v9639, %v10335
        %v10345 = vadd.f32 %v9640, %v10341
        %v10346 = vlaneseq
        %v10347 = vshrl.u32 %v10346, 7
        %v10348 = vsub.s32 0, %v10347
        %v10349 = vrot.slane %v7530, %v10348
        %v10350 = vadd.f32 %v10344, %v10349
        %v10351 = vadd.f32 %v10345, %v10349
        %v10352 = vmax.f32 %v10350, 0.0
        %v10353 = vmax.f32 %v10351, 0.0
        %10354 = vst [vmem:[#allocation2] sm:$0xff] %v10352
        %10355 = vst [vmem:[#allocation2 + $0x8] sm:$0x1] %v10353
        %v10356 = vld [vmem:[#allocation2] ss:$2 sm:$0xff]
        %v10357 = vld [vmem:[%s1138] ss:$2 sm:$0xff]
        %v10358 = vmax.f32 %v10356, %v10357
        %10359 = vst [vmem:[%s237] sm:$0xff] %v10358
        %p10360 = scmp.lt.s32.totalorder %s17, 1
        %s10361 = scalar_select %p10360, %s17, 1
        %s10362 = smul.addr %s10361, 8
        %s10363 = scalar_lea.vmem %s5, %s10362
        // Predicated region
        $region45: #{cnn2_forward.1} parent=39 // pred_check
          %p10364 = pneg %p145
        $region46: #{cnn2_forward.1} parent=39 // pred_check_branch
          %10366 = sbr.rel (%p10364) target = $region48
        $region47: #{cnn2_forward.1} parent=39 // pred_region
          _
        $region48: #{cnn2_forward.1} parent=39 // pred_fallthru
          _
      $region40: #{cnn2_forward.1} parent=5 // pred_fallthru
        _
      %p10367 = scmp.le.s32.totalorder 2, %s12
      // Predicated region
      $region49: #{cnn2_forward.1} parent=5 // pred_check
        %p10368 = pneg %p10367
      $region50: #{cnn2_forward.1} parent=5 // pred_check_branch
        %10370 = sbr.rel (%p10368) target = $region52
      $region51: #{cnn2_forward.1} parent=5 // pred_region
        %s10371 = ssub.s32 %s12, 2
        // Predicated region
        $region53: #{cnn2_forward.1} parent=51 // pred_check
          %p10372 = pneg %p151
        $region54: #{cnn2_forward.1} parent=51 // pred_check_branch
          %10374 = sbr.rel (%p10372) target = $region56
        $region55: #{cnn2_forward.1} parent=51 // pred_region
          %p10375 = scmp.lt.s32.totalorder %s18, 1
          %s10376 = scalar_select %p10375, %s18, 1
          %s10377 = smul.addr %s10376, 8
          %s10378 = scalar_lea.vmem %s5, %s10377
        $region56: #{cnn2_forward.1} parent=51 // pred_fallthru
          _
      $region52: #{cnn2_forward.1} parent=5 // pred_fallthru
        _
    $region6: #{cnn2_forward.1} parent=1 // loop_footer
      %s16 = sadd.s32 1, %s12
    $region7: #{cnn2_forward.1} parent=1 // loop_footer_branch
      %11 = sbr.rel target = $region3
    $region8: #{cnn2_forward.1} parent=1 // loop_exit
      _
    %10379 = vsyncpa [#allocation5], 1
    %s10380 = scalar_lea.sflag [#allocation5], 1
    %10381 = vsyncpa %s10380, 1

</llo_original>
